<compile_context>
chip_gen: v7x
topology: tpu7x:2x2x1
jax: 0.10.0
libtpu: 0.0.40
codegen_flags: <defaults>
</compile_context>

<pallas_src>
import functools

import jax
import jax.numpy as jnp
from jax import lax
from jax.experimental import pallas as pl
from jax.experimental.pallas import tpu as pltpu

EPS = 1e-5

_VMEM = pl.BlockSpec(memory_space=pltpu.MemorySpace.VMEM)


# ------------------------------- kernels ------------------------------------

def _bn_relu_mask(y, gamma, beta, n_valid, m_pad, m_valid):
    """Training-mode BatchNorm (biased var, one-pass stats) + ReLU + re-mask.

    Rows come in chunks of `m_pad`; only the first `m_valid` rows of each chunk
    are real pixels, the rest are zero padding.  Because padded rows are
    exactly zero on entry, plain sums over axis 0 equal sums over the valid
    rows; we only divide by the true count `n_valid`.  After the affine+ReLU
    the padded rows are re-zeroed so the invariant holds for the next stage.
    """
    inv_n = 1.0 / float(n_valid)
    s = jnp.sum(y, axis=0, keepdims=True)
    sq = jnp.sum(y * y, axis=0, keepdims=True)
    mean = s * inv_n
    var = jnp.maximum(sq * inv_n - mean * mean, 0.0)
    out = (y - mean) * lax.rsqrt(var + EPS) * gamma + beta
    out = jnp.maximum(out, 0.0)
    row = lax.broadcasted_iota(jnp.int32, (y.shape[0], 1), 0)
    return jnp.where((row % m_pad) < m_valid, out, 0.0)


def _upsample_stack_kernel(x_ref, w1_ref, w2_ref, w3_ref, w4_ref,
                           g1_ref, b1_ref, g2_ref, b2_ref,
                           g3_ref, b3_ref, g4_ref, b4_ref,
                           o_ref, *, m0, m_pad):
    """All four deconv+BN+ReLU stages fused; intermediates stay in VMEM.

    Activation layout at every stage: (n_chunks * m_pad, C) with sub-position
    blocks stacked along rows (pixel-shuffle deferred to the wrapper).
    """
    c1 = w1_ref.shape[1] // 4          # 256
    c2 = w2_ref.shape[1] // 4          # 128

    x = x_ref[...]                                                     # (m_pad, 512)

    # --- up1: ConvTranspose2d(512,256,k=2,s=2): one wide matmul, N = 4*256 ---
    y = jnp.dot(x, w1_ref[...], preferred_element_type=jnp.float32)   # (m_pad, 4*c1)
    a = jnp.concatenate([y[:, i * c1:(i + 1) * c1] for i in range(4)], axis=0)
    a = _bn_relu_mask(a, g1_ref[...], b1_ref[...], 4 * m0, m_pad, m0)

    # --- up2: ConvTranspose2d(256,128,k=2,s=2) ---
    y = jnp.dot(a, w2_ref[...], preferred_element_type=jnp.float32)   # (4*m_pad, 4*c2)
    a = jnp.concatenate([y[:, i * c2:(i + 1) * c2] for i in range(4)], axis=0)
    a = _bn_relu_mask(a, g2_ref[...], b2_ref[...], 16 * m0, m_pad, m0)

    # --- up3: ConvTranspose2d(128,64,k=(2,1),s=(2,1)): one matmul per p ---
    a = jnp.concatenate(
        [jnp.dot(a, w3_ref[0], preferred_element_type=jnp.float32),
         jnp.dot(a, w3_ref[1], preferred_element_type=jnp.float32)], axis=0)
    a = _bn_relu_mask(a, g3_ref[...], b3_ref[...], 32 * m0, m_pad, m0)

    # --- up4: ConvTranspose2d(64,64,k=(2,1),s=(2,1)) ---
    a = jnp.concatenate(
        [jnp.dot(a, w4_ref[0], preferred_element_type=jnp.float32),
         jnp.dot(a, w4_ref[1], preferred_element_type=jnp.float32)], axis=0)
    a = _bn_relu_mask(a, g4_ref[...], b4_ref[...], 64 * m0, m_pad, m0)

    o_ref[...] = a                                                     # (64*m_pad, 64)


def _head_kernel(p_ref, wcw_ref, bcw_ref, wcc_ref, bcc_ref, o_ref):
    """conv_width (1x9) as one im2col matmul (K=576) + conv_channels + sigmoid."""
    h = jnp.dot(p_ref[...], wcw_ref[...],
                preferred_element_type=jnp.float32) + bcw_ref[...]
    z = jnp.dot(h, wcc_ref[...],
                preferred_element_type=jnp.float32) + bcc_ref[...]
    o_ref[...] = jax.nn.sigmoid(z)


# ------------------------------ parameter init ------------------------------

def _uniform(key, shape, fan_in):
    bound = 1.0 / float(fan_in) ** 0.5
    return jax.random.uniform(key, shape, jnp.float32, -bound, bound)


def make_params(key, output_channels=30):
    ks = jax.random.split(key, 12)
    p = {}
    # ConvTranspose2d weights: (Cin, Cout, kh, kw); BN: gamma=1, beta=0.
    up_defs = [
        ("up1", 512, 256, 2, 2),
        ("up2", 256, 128, 2, 2),
        ("up3", 128, 64, 2, 1),
        ("up4", 64, 64, 2, 1),
    ]
    for i, (name, cin, cout, kh, kw) in enumerate(up_defs):
        fan = cout * kh * kw
        p[f"{name}_w"] = _uniform(ks[2 * i], (cin, cout, kh, kw), fan)
        # The deconv bias is kept as a parameter (module parity / reference
        # check) but is NOT fed to the kernel: BN's mean subtraction cancels it.
        p[f"{name}_b"] = _uniform(ks[2 * i + 1], (cout,), fan)
        p[f"{name}_g"] = jnp.ones((cout,), jnp.float32)
        p[f"{name}_beta"] = jnp.zeros((cout,), jnp.float32)
    # conv_width: Conv2d(64, 64, (1, 9))
    p["cw_w"] = _uniform(ks[8], (64, 64, 1, 9), 64 * 9)
    p["cw_b"] = _uniform(ks[9], (64,), 64 * 9)
    # conv_channels: Conv2d(64, output_channels, 1)
    p["cc_w"] = _uniform(ks[10], (output_channels, 64, 1, 1), 64)
    p["cc_b"] = _uniform(ks[11], (output_channels,), 64)
    return p


# ------------------------------ forward (NCHW) ------------------------------

def decoder_forward(params, x_nchw):
    B, Cin, H0, W0 = x_nchw.shape
    m0 = B * H0 * W0
    m_pad = ((m0 + 7) // 8) * 8        # sublane-align all in-kernel row concats
    C = 64                             # channel count after up3/up4

    # ---- layout glue: NCHW -> (pixels, 512) rows, zero-padded to m_pad ----
    xr = jnp.transpose(x_nchw, (0, 2, 3, 1)).reshape(m0, Cin)
    xr = jnp.pad(xr, ((0, m_pad - m0), (0, 0)))

    # Deconv weights flattened so matmul columns are ordered (p, q, o).
    w1 = jnp.transpose(params["up1_w"], (0, 2, 3, 1)).reshape(512, 4 * 256)
    w2 = jnp.transpose(params["up2_w"], (0, 2, 3, 1)).reshape(256, 4 * 128)
    w3 = jnp.transpose(params["up3_w"][:, :, :, 0], (2, 0, 1))   # (2, 128, 64)
    w4 = jnp.transpose(params["up4_w"][:, :, :, 0], (2, 0, 1))   # (2, 64, 64)

    # ---- call 1: fused up1..up4 (deconv-as-matmul + BN + ReLU) ----
    up_out = pl.pallas_call(
        functools.partial(_upsample_stack_kernel, m0=m0, m_pad=m_pad),
        out_shape=jax.ShapeDtypeStruct((64 * m_pad, C), jnp.float32),
        in_specs=[_VMEM] * 13,
        out_specs=_VMEM,
        compiler_params=pltpu.CompilerParams(vmem_limit_bytes=32 * 1024 * 1024),
    )(xr, w1, w2, w3, w4,
      params["up1_g"][None, :], params["up1_beta"][None, :],
      params["up2_g"][None, :], params["up2_beta"][None, :],
      params["up3_g"][None, :], params["up3_beta"][None, :],
      params["up4_g"][None, :], params["up4_beta"][None, :])

    # ---- materialize spatial order ONCE (deferred pixel-shuffle) ----
    # Row index of up_out decomposes as (p4, p3, p2, q2, p1, q1, t) with the
    # first m0 of each m_pad-chunk valid; h = 16*h0+8*p1+4*p2+2*p3+p4,
    # w = 4*w0+2*q1+q2, where t = b*H0*W0 + h0*W0 + w0.
    H, W = 16 * H0, 4 * W0
    y = up_out.reshape(2, 2, 2, 2, 2, 2, m_pad, C)[:, :, :, :, :, :, :m0, :]
    y = y.reshape(2, 2, 2, 2, 2, 2, B, H0, W0, C)
    y = jnp.transpose(y, (6, 7, 4, 2, 1, 0, 8, 5, 3, 9))   # (b,h0,p1,p2,p3,p4,w0,q1,q2,c)
    y = y.reshape(B, H, W, C)

    # ---- im2col for the 1x9 conv: columns ordered (tap k, channel c) ----
    KW = 9
    Wout = W - KW + 1
    xw = y.reshape(B * H, W, C)
    patches = jnp.concatenate([xw[:, k:k + Wout, :] for k in range(KW)], axis=-1)
    patches = patches.reshape(B * H * Wout, KW * C)

    wcw = jnp.transpose(params["cw_w"][:, :, 0, :], (2, 1, 0)).reshape(KW * C, C)
    wcc = params["cc_w"][:, :, 0, 0].T                      # (64, out_channels)
    cout = wcc.shape[1]

    # ---- call 2: conv_width (im2col matmul, K=576) + 1x1 conv + sigmoid ----
    out = pl.pallas_call(
        _head_kernel,
        out_shape=jax.ShapeDtypeStruct((B * H * Wout, cout), jnp.float32),
        in_specs=[_VMEM] * 5,
        out_specs=_VMEM,
        compiler_params=pltpu.CompilerParams(vmem_limit_bytes=32 * 1024 * 1024),
    )(patches, wcw, params["cw_b"][None, :], wcc, params["cc_b"][None, :])

    return jnp.transpose(out.reshape(B, H, Wout, cout), (0, 3, 1, 2))   # NCHW


# --------------------------- pure-JAX reference ------------------------------

def _reference_forward(params, x):
    def up(x, w, b, g, beta):
        B, _, H, W = x.shape
        Cout, kh, kw = w.shape[1], w.shape[2], w.shape[3]
        y = jnp.einsum("nchw,copq->nohpwq", x, w)
        y = y.reshape(B, Cout, H * kh, W * kw) + b.reshape(1, -1, 1, 1)
        mean = y.mean(axis=(0, 2, 3), keepdims=True)
        var = ((y - mean) ** 2).mean(axis=(0, 2, 3), keepdims=True)   # biased
        y = (y - mean) * lax.rsqrt(var + EPS) * g.reshape(1, -1, 1, 1) \
            + beta.reshape(1, -1, 1, 1)
        return jnp.maximum(y, 0.0)

    x = up(x, params["up1_w"], params["up1_b"], params["up1_g"], params["up1_beta"])
    x = up(x, params["up2_w"], params["up2_b"], params["up2_g"], params["up2_beta"])
    x = up(x, params["up3_w"], params["up3_b"], params["up3_g"], params["up3_beta"])
    x = up(x, params["up4_w"], params["up4_b"], params["up4_g"], params["up4_beta"])
    dn = ("NCHW", "OIHW", "NCHW")
    x = lax.conv_general_dilated(x, params["cw_w"], (1, 1), "VALID",
                                 dimension_numbers=dn) + params["cw_b"].reshape(1, -1, 1, 1)
    x = lax.conv_general_dilated(x, params["cc_w"], (1, 1), "VALID",
                                 dimension_numbers=dn) + params["cc_b"].reshape(1, -1, 1, 1)
    return jax.nn.sigmoid(x)


if __name__ == "__main__":
    key = jax.random.PRNGKey(0)
    k_x, k_p = jax.random.split(key)
    # Small input consistent with the module: (B=2, C=512, H=2, W=3).
    x = jax.random.normal(k_x, (2, 512, 2, 3), jnp.float32)
    params = make_params(k_p, output_channels=30)

    out = jax.jit(decoder_forward)(params, x)
    out = jax.block_until_ready(out)

    expected = (2, 30, 2 * 16, 3 * 4 - 8)    # (2, 30, 32, 4)
    assert out.shape == expected, (out.shape, expected)
    assert bool(jnp.all(jnp.isfinite(out)))
    assert bool(jnp.all((out >= 0.0) & (out <= 1.0)))   # sigmoid range

    ref = jax.jit(_reference_forward)(params, x)
    err = float(jnp.max(jnp.abs(out - ref)))
    assert err < 1e-3, f"max abs diff vs reference: {err}"

    print("KERNEL_OK")
</pallas_src>

<mosaic_0001>
module attributes {stable_mosaic.version = 11 : i64} {
  func.func @_upsample_stack_kernel(%arg0: memref<16x512xf32, #tpu.memory_space<vmem>>, %arg1: memref<512x1024xf32, #tpu.memory_space<vmem>>, %arg2: memref<256x512xf32, #tpu.memory_space<vmem>>, %arg3: memref<2x128x64xf32, #tpu.memory_space<vmem>>, %arg4: memref<2x64x64xf32, #tpu.memory_space<vmem>>, %arg5: memref<1x256xf32, #tpu.memory_space<vmem>>, %arg6: memref<1x256xf32, #tpu.memory_space<vmem>>, %arg7: memref<1x128xf32, #tpu.memory_space<vmem>>, %arg8: memref<1x128xf32, #tpu.memory_space<vmem>>, %arg9: memref<1x64xf32, #tpu.memory_space<vmem>>, %arg10: memref<1x64xf32, #tpu.memory_space<vmem>>, %arg11: memref<1x64xf32, #tpu.memory_space<vmem>>, %arg12: memref<1x64xf32, #tpu.memory_space<vmem>>, %arg13: memref<1024x64xf32, #tpu.memory_space<vmem>>) attributes {dimension_semantics = [], scalar_prefetch = 0 : i64, scratch_operands = 0 : i64, tpu.core_type = #tpu.core_type<tc>} {
    %c0 = arith.constant 0 : index
    %c0_0 = arith.constant 0 : index
    %0 = vector.load %arg0[%c0, %c0_0] : memref<16x512xf32, #tpu.memory_space<vmem>>, vector<16x512xf32>
    %c0_1 = arith.constant 0 : index
    %c0_2 = arith.constant 0 : index
    %1 = vector.load %arg1[%c0_1, %c0_2] : memref<512x1024xf32, #tpu.memory_space<vmem>>, vector<512x1024xf32>
    %cst = arith.constant dense<0.000000e+00> : vector<16x1024xf32>
    %2 = tpu.matmul %0, %1, %cst {dimension_numbers = #tpu.dot_dimension_numbers<[1], [0], [0], [1], [0, 0, 1, 1], [], []>} : vector<16x512xf32>, vector<512x1024xf32>, vector<16x1024xf32> -> vector<16x1024xf32>
    %3 = vector.extract_strided_slice %2 {offsets = [0, 0], sizes = [16, 256], strides = [1, 1]} : vector<16x1024xf32> to vector<16x256xf32>
    %4 = vector.extract_strided_slice %2 {offsets = [0, 256], sizes = [16, 256], strides = [1, 1]} : vector<16x1024xf32> to vector<16x256xf32>
    %5 = vector.extract_strided_slice %2 {offsets = [0, 512], sizes = [16, 256], strides = [1, 1]} : vector<16x1024xf32> to vector<16x256xf32>
    %6 = vector.extract_strided_slice %2 {offsets = [0, 768], sizes = [16, 256], strides = [1, 1]} : vector<16x1024xf32> to vector<16x256xf32>
    %7 = tpu.concatenate %3, %4, %5, %6 in 0 : vector<16x256xf32>, vector<16x256xf32>, vector<16x256xf32>, vector<16x256xf32> -> vector<64x256xf32>
    %c0_3 = arith.constant 0 : index
    %c0_4 = arith.constant 0 : index
    %8 = vector.load %arg5[%c0_3, %c0_4] : memref<1x256xf32, #tpu.memory_space<vmem>>, vector<1x256xf32>
    %c0_5 = arith.constant 0 : index
    %c0_6 = arith.constant 0 : index
    %9 = vector.load %arg6[%c0_5, %c0_6] : memref<1x256xf32, #tpu.memory_space<vmem>>, vector<1x256xf32>
    %cst_7 = arith.constant dense<0.000000e+00> : vector<256xf32>
    %10 = vector.multi_reduction <add>, %7, %cst_7 [0] : vector<64x256xf32> to vector<256xf32>
    %11 = vector.shape_cast %10 : vector<256xf32> to vector<1x256xf32>
    %12 = arith.mulf %7, %7 : vector<64x256xf32>
    %cst_8 = arith.constant dense<0.000000e+00> : vector<256xf32>
    %13 = vector.multi_reduction <add>, %12, %cst_8 [0] : vector<64x256xf32> to vector<256xf32>
    %14 = vector.shape_cast %13 : vector<256xf32> to vector<1x256xf32>
    %cst_9 = arith.constant 0.020833334 : f32
    %15 = vector.broadcast %cst_9 : f32 to vector<1x256xf32>
    %16 = arith.mulf %11, %15 : vector<1x256xf32>
    %cst_10 = arith.constant 0.020833334 : f32
    %17 = vector.broadcast %cst_10 : f32 to vector<1x256xf32>
    %18 = arith.mulf %14, %17 : vector<1x256xf32>
    %19 = arith.mulf %16, %16 : vector<1x256xf32>
    %20 = arith.subf %18, %19 : vector<1x256xf32>
    %cst_11 = arith.constant 0.000000e+00 : f32
    %21 = vector.broadcast %cst_11 : f32 to vector<1x256xf32>
    %22 = arith.maximumf %20, %21 : vector<1x256xf32>
    %23 = vector.broadcast %16 : vector<1x256xf32> to vector<64x256xf32>
    %24 = arith.subf %7, %23 : vector<64x256xf32>
    %cst_12 = arith.constant 9.99999974E-6 : f32
    %25 = vector.broadcast %cst_12 : f32 to vector<1x256xf32>
    %26 = arith.addf %22, %25 : vector<1x256xf32>
    %27 = math.rsqrt %26 : vector<1x256xf32>
    %28 = vector.broadcast %27 : vector<1x256xf32> to vector<64x256xf32>
    %29 = arith.mulf %24, %28 : vector<64x256xf32>
    %30 = vector.broadcast %8 : vector<1x256xf32> to vector<64x256xf32>
    %31 = arith.mulf %29, %30 : vector<64x256xf32>
    %32 = vector.broadcast %9 : vector<1x256xf32> to vector<64x256xf32>
    %33 = arith.addf %31, %32 : vector<64x256xf32>
    %cst_13 = arith.constant 0.000000e+00 : f32
    %34 = vector.broadcast %cst_13 : f32 to vector<64x256xf32>
    %35 = arith.maximumf %33, %34 : vector<64x256xf32>
    %36 = tpu.iota {dimensions = array<i32: 0>} : vector<64x1xi32>
    %c16_i32 = arith.constant 16 : i32
    %c0_i32 = arith.constant 0 : i32
    %37 = arith.cmpi eq, %c16_i32, %c0_i32 : i32
    %c1_i32 = arith.constant 1 : i32
    %38 = arith.select %37, %c1_i32, %c16_i32 : i32
    %39 = vector.broadcast %38 : i32 to vector<64x1xi32>
    %40 = arith.remsi %36, %39 : vector<64x1xi32>
    %c0_i32_14 = arith.constant 0 : i32
    %41 = vector.broadcast %c0_i32_14 : i32 to vector<64x1xi32>
    %42 = arith.cmpi ne, %40, %41 : vector<64x1xi32>
    %c0_i32_15 = arith.constant 0 : i32
    %43 = vector.broadcast %c0_i32_15 : i32 to vector<64x1xi32>
    %44 = arith.cmpi slt, %40, %43 : vector<64x1xi32>
    %c0_i32_16 = arith.constant 0 : i32
    %45 = arith.cmpi slt, %38, %c0_i32_16 : i32
    %46 = vector.broadcast %45 : i1 to vector<64x1xi1>
    %47 = vector.broadcast %46 : vector<64x1xi1> to vector<64x1xi1>
    %48 = arith.xori %44, %47 : vector<64x1xi1>
    %49 = arith.andi %48, %42 : vector<64x1xi1>
    %50 = vector.broadcast %38 : i32 to vector<64x1xi32>
    %51 = arith.addi %40, %50 : vector<64x1xi32>
    %52 = arith.select %49, %51, %40 : vector<64x1xi1>, vector<64x1xi32>
    %c12_i32 = arith.constant 12 : i32
    %53 = vector.broadcast %c12_i32 : i32 to vector<64x1xi32>
    %54 = arith.cmpi slt, %52, %53 : vector<64x1xi32>
    %cst_17 = arith.constant 0.000000e+00 : f32
    %55 = vector.shape_cast %54 : vector<64x1xi1> to vector<64x1xi1>
    %56 = vector.broadcast %55 : vector<64x1xi1> to vector<64x256xi1>
    %57 = vector.broadcast %cst_17 : f32 to vector<64x256xf32>
    %58 = arith.select %56, %35, %57 : vector<64x256xi1>, vector<64x256xf32>
    %c0_18 = arith.constant 0 : index
    %c0_19 = arith.constant 0 : index
    %59 = vector.load %arg2[%c0_18, %c0_19] : memref<256x512xf32, #tpu.memory_space<vmem>>, vector<256x512xf32>
    %cst_20 = arith.constant dense<0.000000e+00> : vector<64x512xf32>
    %60 = tpu.matmul %58, %59, %cst_20 {dimension_numbers = #tpu.dot_dimension_numbers<[1], [0], [0], [1], [0, 0, 1, 1], [], []>} : vector<64x256xf32>, vector<256x512xf32>, vector<64x512xf32> -> vector<64x512xf32>
    %61 = vector.extract_strided_slice %60 {offsets = [0, 0], sizes = [64, 128], strides = [1, 1]} : vector<64x512xf32> to vector<64x128xf32>
    %62 = vector.extract_strided_slice %60 {offsets = [0, 128], sizes = [64, 128], strides = [1, 1]} : vector<64x512xf32> to vector<64x128xf32>
    %63 = vector.extract_strided_slice %60 {offsets = [0, 256], sizes = [64, 128], strides = [1, 1]} : vector<64x512xf32> to vector<64x128xf32>
    %64 = vector.extract_strided_slice %60 {offsets = [0, 384], sizes = [64, 128], strides = [1, 1]} : vector<64x512xf32> to vector<64x128xf32>
    %65 = tpu.concatenate %61, %62, %63, %64 in 0 : vector<64x128xf32>, vector<64x128xf32>, vector<64x128xf32>, vector<64x128xf32> -> vector<256x128xf32>
    %c0_21 = arith.constant 0 : index
    %c0_22 = arith.constant 0 : index
    %66 = vector.load %arg7[%c0_21, %c0_22] : memref<1x128xf32, #tpu.memory_space<vmem>>, vector<1x128xf32>
    %c0_23 = arith.constant 0 : index
    %c0_24 = arith.constant 0 : index
    %67 = vector.load %arg8[%c0_23, %c0_24] : memref<1x128xf32, #tpu.memory_space<vmem>>, vector<1x128xf32>
    %cst_25 = arith.constant dense<0.000000e+00> : vector<128xf32>
    %68 = vector.multi_reduction <add>, %65, %cst_25 [0] : vector<256x128xf32> to vector<128xf32>
    %69 = vector.shape_cast %68 : vector<128xf32> to vector<1x128xf32>
    %70 = arith.mulf %65, %65 : vector<256x128xf32>
    %cst_26 = arith.constant dense<0.000000e+00> : vector<128xf32>
    %71 = vector.multi_reduction <add>, %70, %cst_26 [0] : vector<256x128xf32> to vector<128xf32>
    %72 = vector.shape_cast %71 : vector<128xf32> to vector<1x128xf32>
    %cst_27 = arith.constant 0.00520833349 : f32
    %73 = vector.broadcast %cst_27 : f32 to vector<1x128xf32>
    %74 = arith.mulf %69, %73 : vector<1x128xf32>
    %cst_28 = arith.constant 0.00520833349 : f32
    %75 = vector.broadcast %cst_28 : f32 to vector<1x128xf32>
    %76 = arith.mulf %72, %75 : vector<1x128xf32>
    %77 = arith.mulf %74, %74 : vector<1x128xf32>
    %78 = arith.subf %76, %77 : vector<1x128xf32>
    %cst_29 = arith.constant 0.000000e+00 : f32
    %79 = vector.broadcast %cst_29 : f32 to vector<1x128xf32>
    %80 = arith.maximumf %78, %79 : vector<1x128xf32>
    %81 = vector.broadcast %74 : vector<1x128xf32> to vector<256x128xf32>
    %82 = arith.subf %65, %81 : vector<256x128xf32>
    %cst_30 = arith.constant 9.99999974E-6 : f32
    %83 = vector.broadcast %cst_30 : f32 to vector<1x128xf32>
    %84 = arith.addf %80, %83 : vector<1x128xf32>
    %85 = math.rsqrt %84 : vector<1x128xf32>
    %86 = vector.broadcast %85 : vector<1x128xf32> to vector<256x128xf32>
    %87 = arith.mulf %82, %86 : vector<256x128xf32>
    %88 = vector.broadcast %66 : vector<1x128xf32> to vector<256x128xf32>
    %89 = arith.mulf %87, %88 : vector<256x128xf32>
    %90 = vector.broadcast %67 : vector<1x128xf32> to vector<256x128xf32>
    %91 = arith.addf %89, %90 : vector<256x128xf32>
    %cst_31 = arith.constant 0.000000e+00 : f32
    %92 = vector.broadcast %cst_31 : f32 to vector<256x128xf32>
    %93 = arith.maximumf %91, %92 : vector<256x128xf32>
    %94 = tpu.iota {dimensions = array<i32: 0>} : vector<256x1xi32>
    %c16_i32_32 = arith.constant 16 : i32
    %c0_i32_33 = arith.constant 0 : i32
    %95 = arith.cmpi eq, %c16_i32_32, %c0_i32_33 : i32
    %c1_i32_34 = arith.constant 1 : i32
    %96 = arith.select %95, %c1_i32_34, %c16_i32_32 : i32
    %97 = vector.broadcast %96 : i32 to vector<256x1xi32>
    %98 = arith.remsi %94, %97 : vector<256x1xi32>
    %c0_i32_35 = arith.constant 0 : i32
    %99 = vector.broadcast %c0_i32_35 : i32 to vector<256x1xi32>
    %100 = arith.cmpi ne, %98, %99 : vector<256x1xi32>
    %c0_i32_36 = arith.constant 0 : i32
    %101 = vector.broadcast %c0_i32_36 : i32 to vector<256x1xi32>
    %102 = arith.cmpi slt, %98, %101 : vector<256x1xi32>
    %c0_i32_37 = arith.constant 0 : i32
    %103 = arith.cmpi slt, %96, %c0_i32_37 : i32
    %104 = vector.broadcast %103 : i1 to vector<256x1xi1>
    %105 = vector.broadcast %104 : vector<256x1xi1> to vector<256x1xi1>
    %106 = arith.xori %102, %105 : vector<256x1xi1>
    %107 = arith.andi %106, %100 : vector<256x1xi1>
    %108 = vector.broadcast %96 : i32 to vector<256x1xi32>
    %109 = arith.addi %98, %108 : vector<256x1xi32>
    %110 = arith.select %107, %109, %98 : vector<256x1xi1>, vector<256x1xi32>
    %c12_i32_38 = arith.constant 12 : i32
    %111 = vector.broadcast %c12_i32_38 : i32 to vector<256x1xi32>
    %112 = arith.cmpi slt, %110, %111 : vector<256x1xi32>
    %cst_39 = arith.constant 0.000000e+00 : f32
    %113 = vector.shape_cast %112 : vector<256x1xi1> to vector<256x1xi1>
    %114 = vector.broadcast %113 : vector<256x1xi1> to vector<256x128xi1>
    %115 = vector.broadcast %cst_39 : f32 to vector<256x128xf32>
    %116 = arith.select %114, %93, %115 : vector<256x128xi1>, vector<256x128xf32>
    %c0_40 = arith.constant 0 : index
    %c0_41 = arith.constant 0 : index
    %c0_42 = arith.constant 0 : index
    %117 = vector.load %arg3[%c0_40, %c0_41, %c0_42] : memref<2x128x64xf32, #tpu.memory_space<vmem>>, vector<1x128x64xf32>
    %118 = vector.shape_cast %117 : vector<1x128x64xf32> to vector<128x64xf32>
    %cst_43 = arith.constant dense<0.000000e+00> : vector<256x64xf32>
    %119 = tpu.matmul %116, %118, %cst_43 {dimension_numbers = #tpu.dot_dimension_numbers<[1], [0], [0], [1], [0, 0, 1, 1], [], []>} : vector<256x128xf32>, vector<128x64xf32>, vector<256x64xf32> -> vector<256x64xf32>
    %c1 = arith.constant 1 : index
    %c0_44 = arith.constant 0 : index
    %c0_45 = arith.constant 0 : index
    %120 = vector.load %arg3[%c1, %c0_44, %c0_45] : memref<2x128x64xf32, #tpu.memory_space<vmem>>, vector<1x128x64xf32>
    %121 = vector.shape_cast %120 : vector<1x128x64xf32> to vector<128x64xf32>
    %cst_46 = arith.constant dense<0.000000e+00> : vector<256x64xf32>
    %122 = tpu.matmul %116, %121, %cst_46 {dimension_numbers = #tpu.dot_dimension_numbers<[1], [0], [0], [1], [0, 0, 1, 1], [], []>} : vector<256x128xf32>, vector<128x64xf32>, vector<256x64xf32> -> vector<256x64xf32>
    %123 = tpu.concatenate %119, %122 in 0 : vector<256x64xf32>, vector<256x64xf32> -> vector<512x64xf32>
    %c0_47 = arith.constant 0 : index
    %c0_48 = arith.constant 0 : index
    %124 = vector.load %arg9[%c0_47, %c0_48] : memref<1x64xf32, #tpu.memory_space<vmem>>, vector<1x64xf32>
    %c0_49 = arith.constant 0 : index
    %c0_50 = arith.constant 0 : index
    %125 = vector.load %arg10[%c0_49, %c0_50] : memref<1x64xf32, #tpu.memory_space<vmem>>, vector<1x64xf32>
    %cst_51 = arith.constant dense<0.000000e+00> : vector<64xf32>
    %126 = vector.multi_reduction <add>, %123, %cst_51 [0] : vector<512x64xf32> to vector<64xf32>
    %127 = vector.shape_cast %126 : vector<64xf32> to vector<1x64xf32>
    %128 = arith.mulf %123, %123 : vector<512x64xf32>
    %cst_52 = arith.constant dense<0.000000e+00> : vector<64xf32>
    %129 = vector.multi_reduction <add>, %128, %cst_52 [0] : vector<512x64xf32> to vector<64xf32>
    %130 = vector.shape_cast %129 : vector<64xf32> to vector<1x64xf32>
    %cst_53 = arith.constant 0.00260416674 : f32
    %131 = vector.broadcast %cst_53 : f32 to vector<1x64xf32>
    %132 = arith.mulf %127, %131 : vector<1x64xf32>
    %cst_54 = arith.constant 0.00260416674 : f32
    %133 = vector.broadcast %cst_54 : f32 to vector<1x64xf32>
    %134 = arith.mulf %130, %133 : vector<1x64xf32>
    %135 = arith.mulf %132, %132 : vector<1x64xf32>
    %136 = arith.subf %134, %135 : vector<1x64xf32>
    %cst_55 = arith.constant 0.000000e+00 : f32
    %137 = vector.broadcast %cst_55 : f32 to vector<1x64xf32>
    %138 = arith.maximumf %136, %137 : vector<1x64xf32>
    %139 = vector.broadcast %132 : vector<1x64xf32> to vector<512x64xf32>
    %140 = arith.subf %123, %139 : vector<512x64xf32>
    %cst_56 = arith.constant 9.99999974E-6 : f32
    %141 = vector.broadcast %cst_56 : f32 to vector<1x64xf32>
    %142 = arith.addf %138, %141 : vector<1x64xf32>
    %143 = math.rsqrt %142 : vector<1x64xf32>
    %144 = vector.broadcast %143 : vector<1x64xf32> to vector<512x64xf32>
    %145 = arith.mulf %140, %144 : vector<512x64xf32>
    %146 = vector.broadcast %124 : vector<1x64xf32> to vector<512x64xf32>
    %147 = arith.mulf %145, %146 : vector<512x64xf32>
    %148 = vector.broadcast %125 : vector<1x64xf32> to vector<512x64xf32>
    %149 = arith.addf %147, %148 : vector<512x64xf32>
    %cst_57 = arith.constant 0.000000e+00 : f32
    %150 = vector.broadcast %cst_57 : f32 to vector<512x64xf32>
    %151 = arith.maximumf %149, %150 : vector<512x64xf32>
    %152 = tpu.iota {dimensions = array<i32: 0>} : vector<512x1xi32>
    %c16_i32_58 = arith.constant 16 : i32
    %c0_i32_59 = arith.constant 0 : i32
    %153 = arith.cmpi eq, %c16_i32_58, %c0_i32_59 : i32
    %c1_i32_60 = arith.constant 1 : i32
    %154 = arith.select %153, %c1_i32_60, %c16_i32_58 : i32
    %155 = vector.broadcast %154 : i32 to vector<512x1xi32>
    %156 = arith.remsi %152, %155 : vector<512x1xi32>
    %c0_i32_61 = arith.constant 0 : i32
    %157 = vector.broadcast %c0_i32_61 : i32 to vector<512x1xi32>
    %158 = arith.cmpi ne, %156, %157 : vector<512x1xi32>
    %c0_i32_62 = arith.constant 0 : i32
    %159 = vector.broadcast %c0_i32_62 : i32 to vector<512x1xi32>
    %160 = arith.cmpi slt, %156, %159 : vector<512x1xi32>
    %c0_i32_63 = arith.constant 0 : i32
    %161 = arith.cmpi slt, %154, %c0_i32_63 : i32
    %162 = vector.broadcast %161 : i1 to vector<512x1xi1>
    %163 = vector.broadcast %162 : vector<512x1xi1> to vector<512x1xi1>
    %164 = arith.xori %160, %163 : vector<512x1xi1>
    %165 = arith.andi %164, %158 : vector<512x1xi1>
    %166 = vector.broadcast %154 : i32 to vector<512x1xi32>
    %167 = arith.addi %156, %166 : vector<512x1xi32>
    %168 = arith.select %165, %167, %156 : vector<512x1xi1>, vector<512x1xi32>
    %c12_i32_64 = arith.constant 12 : i32
    %169 = vector.broadcast %c12_i32_64 : i32 to vector<512x1xi32>
    %170 = arith.cmpi slt, %168, %169 : vector<512x1xi32>
    %cst_65 = arith.constant 0.000000e+00 : f32
    %171 = vector.shape_cast %170 : vector<512x1xi1> to vector<512x1xi1>
    %172 = vector.broadcast %171 : vector<512x1xi1> to vector<512x64xi1>
    %173 = vector.broadcast %cst_65 : f32 to vector<512x64xf32>
    %174 = arith.select %172, %151, %173 : vector<512x64xi1>, vector<512x64xf32>
    %c0_66 = arith.constant 0 : index
    %c0_67 = arith.constant 0 : index
    %c0_68 = arith.constant 0 : index
    %175 = vector.load %arg4[%c0_66, %c0_67, %c0_68] : memref<2x64x64xf32, #tpu.memory_space<vmem>>, vector<1x64x64xf32>
    %176 = vector.shape_cast %175 : vector<1x64x64xf32> to vector<64x64xf32>
    %cst_69 = arith.constant dense<0.000000e+00> : vector<512x64xf32>
    %177 = tpu.matmul %174, %176, %cst_69 {dimension_numbers = #tpu.dot_dimension_numbers<[1], [0], [0], [1], [0, 0, 1, 1], [], []>} : vector<512x64xf32>, vector<64x64xf32>, vector<512x64xf32> -> vector<512x64xf32>
    %c1_70 = arith.constant 1 : index
    %c0_71 = arith.constant 0 : index
    %c0_72 = arith.constant 0 : index
    %178 = vector.load %arg4[%c1_70, %c0_71, %c0_72] : memref<2x64x64xf32, #tpu.memory_space<vmem>>, vector<1x64x64xf32>
    %179 = vector.shape_cast %178 : vector<1x64x64xf32> to vector<64x64xf32>
    %cst_73 = arith.constant dense<0.000000e+00> : vector<512x64xf32>
    %180 = tpu.matmul %174, %179, %cst_73 {dimension_numbers = #tpu.dot_dimension_numbers<[1], [0], [0], [1], [0, 0, 1, 1], [], []>} : vector<512x64xf32>, vector<64x64xf32>, vector<512x64xf32> -> vector<512x64xf32>
    %181 = tpu.concatenate %177, %180 in 0 : vector<512x64xf32>, vector<512x64xf32> -> vector<1024x64xf32>
    %c0_74 = arith.constant 0 : index
    %c0_75 = arith.constant 0 : index
    %182 = vector.load %arg11[%c0_74, %c0_75] : memref<1x64xf32, #tpu.memory_space<vmem>>, vector<1x64xf32>
    %c0_76 = arith.constant 0 : index
    %c0_77 = arith.constant 0 : index
    %183 = vector.load %arg12[%c0_76, %c0_77] : memref<1x64xf32, #tpu.memory_space<vmem>>, vector<1x64xf32>
    %cst_78 = arith.constant dense<0.000000e+00> : vector<64xf32>
    %184 = vector.multi_reduction <add>, %181, %cst_78 [0] : vector<1024x64xf32> to vector<64xf32>
    %185 = vector.shape_cast %184 : vector<64xf32> to vector<1x64xf32>
    %186 = arith.mulf %181, %181 : vector<1024x64xf32>
    %cst_79 = arith.constant dense<0.000000e+00> : vector<64xf32>
    %187 = vector.multi_reduction <add>, %186, %cst_79 [0] : vector<1024x64xf32> to vector<64xf32>
    %188 = vector.shape_cast %187 : vector<64xf32> to vector<1x64xf32>
    %cst_80 = arith.constant 0.00130208337 : f32
    %189 = vector.broadcast %cst_80 : f32 to vector<1x64xf32>
    %190 = arith.mulf %185, %189 : vector<1x64xf32>
    %cst_81 = arith.constant 0.00130208337 : f32
    %191 = vector.broadcast %cst_81 : f32 to vector<1x64xf32>
    %192 = arith.mulf %188, %191 : vector<1x64xf32>
    %193 = arith.mulf %190, %190 : vector<1x64xf32>
    %194 = arith.subf %192, %193 : vector<1x64xf32>
    %cst_82 = arith.constant 0.000000e+00 : f32
    %195 = vector.broadcast %cst_82 : f32 to vector<1x64xf32>
    %196 = arith.maximumf %194, %195 : vector<1x64xf32>
    %197 = vector.broadcast %190 : vector<1x64xf32> to vector<1024x64xf32>
    %198 = arith.subf %181, %197 : vector<1024x64xf32>
    %cst_83 = arith.constant 9.99999974E-6 : f32
    %199 = vector.broadcast %cst_83 : f32 to vector<1x64xf32>
    %200 = arith.addf %196, %199 : vector<1x64xf32>
    %201 = math.rsqrt %200 : vector<1x64xf32>
    %202 = vector.broadcast %201 : vector<1x64xf32> to vector<1024x64xf32>
    %203 = arith.mulf %198, %202 : vector<1024x64xf32>
    %204 = vector.broadcast %182 : vector<1x64xf32> to vector<1024x64xf32>
    %205 = arith.mulf %203, %204 : vector<1024x64xf32>
    %206 = vector.broadcast %183 : vector<1x64xf32> to vector<1024x64xf32>
    %207 = arith.addf %205, %206 : vector<1024x64xf32>
    %cst_84 = arith.constant 0.000000e+00 : f32
    %208 = vector.broadcast %cst_84 : f32 to vector<1024x64xf32>
    %209 = arith.maximumf %207, %208 : vector<1024x64xf32>
    %210 = tpu.iota {dimensions = array<i32: 0>} : vector<1024x1xi32>
    %c16_i32_85 = arith.constant 16 : i32
    %c0_i32_86 = arith.constant 0 : i32
    %211 = arith.cmpi eq, %c16_i32_85, %c0_i32_86 : i32
    %c1_i32_87 = arith.constant 1 : i32
    %212 = arith.select %211, %c1_i32_87, %c16_i32_85 : i32
    %213 = vector.broadcast %212 : i32 to vector<1024x1xi32>
    %214 = arith.remsi %210, %213 : vector<1024x1xi32>
    %c0_i32_88 = arith.constant 0 : i32
    %215 = vector.broadcast %c0_i32_88 : i32 to vector<1024x1xi32>
    %216 = arith.cmpi ne, %214, %215 : vector<1024x1xi32>
    %c0_i32_89 = arith.constant 0 : i32
    %217 = vector.broadcast %c0_i32_89 : i32 to vector<1024x1xi32>
    %218 = arith.cmpi slt, %214, %217 : vector<1024x1xi32>
    %c0_i32_90 = arith.constant 0 : i32
    %219 = arith.cmpi slt, %212, %c0_i32_90 : i32
    %220 = vector.broadcast %219 : i1 to vector<1024x1xi1>
    %221 = vector.broadcast %220 : vector<1024x1xi1> to vector<1024x1xi1>
    %222 = arith.xori %218, %221 : vector<1024x1xi1>
    %223 = arith.andi %222, %216 : vector<1024x1xi1>
    %224 = vector.broadcast %212 : i32 to vector<1024x1xi32>
    %225 = arith.addi %214, %224 : vector<1024x1xi32>
    %226 = arith.select %223, %225, %214 : vector<1024x1xi1>, vector<1024x1xi32>
    %c12_i32_91 = arith.constant 12 : i32
    %227 = vector.broadcast %c12_i32_91 : i32 to vector<1024x1xi32>
    %228 = arith.cmpi slt, %226, %227 : vector<1024x1xi32>
    %cst_92 = arith.constant 0.000000e+00 : f32
    %229 = vector.shape_cast %228 : vector<1024x1xi1> to vector<1024x1xi1>
    %230 = vector.broadcast %229 : vector<1024x1xi1> to vector<1024x64xi1>
    %231 = vector.broadcast %cst_92 : f32 to vector<1024x64xf32>
    %232 = arith.select %230, %209, %231 : vector<1024x64xi1>, vector<1024x64xf32>
    %c0_93 = arith.constant 0 : index
    %c0_94 = arith.constant 0 : index
    %233 = vector.load %arg13[%c0_93, %c0_94] : memref<1024x64xf32, #tpu.memory_space<vmem>>, vector<1024x64xf32>
    tpu.vector_store %arg13[%c0_93, %c0_94], %232 {strides = array<i32>} : memref<1024x64xf32, #tpu.memory_space<vmem>>, vector<1024x64xf32>,
    return
  }
}

module attributes {stable_mosaic.version = 11 : i64} {
  func.func @_head_kernel(%arg0: memref<256x576xf32, #tpu.memory_space<vmem>>, %arg1: memref<576x64xf32, #tpu.memory_space<vmem>>, %arg2: memref<1x64xf32, #tpu.memory_space<vmem>>, %arg3: memref<64x30xf32, #tpu.memory_space<vmem>>, %arg4: memref<1x30xf32, #tpu.memory_space<vmem>>, %arg5: memref<256x30xf32, #tpu.memory_space<vmem>>) attributes {dimension_semantics = [], scalar_prefetch = 0 : i64, scratch_operands = 0 : i64, tpu.core_type = #tpu.core_type<tc>} {
    %c0 = arith.constant 0 : index
    %c0_0 = arith.constant 0 : index
    %0 = vector.load %arg0[%c0, %c0_0] : memref<256x576xf32, #tpu.memory_space<vmem>>, vector<256x576xf32>
    %c0_1 = arith.constant 0 : index
    %c0_2 = arith.constant 0 : index
    %1 = vector.load %arg1[%c0_1, %c0_2] : memref<576x64xf32, #tpu.memory_space<vmem>>, vector<576x64xf32>
    %cst = arith.constant dense<0.000000e+00> : vector<256x64xf32>
    %2 = tpu.matmul %0, %1, %cst {dimension_numbers = #tpu.dot_dimension_numbers<[1], [0], [0], [1], [0, 0, 1, 1], [], []>} : vector<256x576xf32>, vector<576x64xf32>, vector<256x64xf32> -> vector<256x64xf32>
    %c0_3 = arith.constant 0 : index
    %c0_4 = arith.constant 0 : index
    %3 = vector.load %arg2[%c0_3, %c0_4] : memref<1x64xf32, #tpu.memory_space<vmem>>, vector<1x64xf32>
    %4 = vector.broadcast %3 : vector<1x64xf32> to vector<256x64xf32>
    %5 = arith.addf %2, %4 : vector<256x64xf32>
    %c0_5 = arith.constant 0 : index
    %c0_6 = arith.constant 0 : index
    %6 = vector.load %arg3[%c0_5, %c0_6] : memref<64x30xf32, #tpu.memory_space<vmem>>, vector<64x30xf32>
    %cst_7 = arith.constant dense<0.000000e+00> : vector<256x30xf32>
    %7 = tpu.matmul %5, %6, %cst_7 {dimension_numbers = #tpu.dot_dimension_numbers<[1], [0], [0], [1], [0, 0, 1, 1], [], []>} : vector<256x64xf32>, vector<64x30xf32>, vector<256x30xf32> -> vector<256x30xf32>
    %c0_8 = arith.constant 0 : index
    %c0_9 = arith.constant 0 : index
    %8 = vector.load %arg4[%c0_8, %c0_9] : memref<1x30xf32, #tpu.memory_space<vmem>>, vector<1x30xf32>
    %9 = vector.broadcast %8 : vector<1x30xf32> to vector<256x30xf32>
    %10 = arith.addf %7, %9 : vector<256x30xf32>
    %11 = arith.negf %10 : vector<256x30xf32>
    %12 = math.exp %11 : vector<256x30xf32>
    %cst_10 = arith.constant 1.000000e+00 : f32
    %13 = vector.broadcast %cst_10 : f32 to vector<256x30xf32>
    %14 = arith.addf %13, %12 : vector<256x30xf32>
    %15 = arith.divf %13, %14 : vector<256x30xf32>
    %c0_11 = arith.constant 0 : index
    %c0_12 = arith.constant 0 : index
    %16 = vector.load %arg5[%c0_11, %c0_12] : memref<256x30xf32, #tpu.memory_space<vmem>>, vector<256x30xf32>
    tpu.vector_store %arg5[%c0_11, %c0_12], %15 {strides = array<i32>} : memref<256x30xf32, #tpu.memory_space<vmem>>, vector<256x30xf32>,
    return
  }
}

</mosaic_0001>

<llo_original>
// kernel: decoder_forward.2
$region0: #{decoder_forward.2}
  #allocation0 [shape = 'u32[]', space=smem, size = 0x4, offset = 0x4, fixed_abs, tag = 'smem constant byte address 0x4 - core index']
  #allocation1 [shape = 'u32[144,128]{1,0:T(1,128)}', space=vmem, size = 0x12000, scoped, tag = 'internal scratch']
  %s0 = inlined_call_operand.vmem [shape: f32[16,512], index: 0, kind: input, shape index: {}]
  %s1 = inlined_call_operand.vmem [shape: f32[512,1024], index: 1, kind: input, shape index: {}]
  %s2 = inlined_call_operand.vmem [shape: f32[256,512], index: 2, kind: input, shape index: {}]
  %s3 = inlined_call_operand.vmem [shape: f32[2,128,64], index: 3, kind: input, shape index: {}]
  %s4 = inlined_call_operand.vmem [shape: f32[2,64,64], index: 4, kind: input, shape index: {}]
  %s5 = inlined_call_operand.vmem [shape: f32[1,256], index: 5, kind: input, shape index: {}]
  %s6 = inlined_call_operand.vmem [shape: f32[1,256], index: 6, kind: input, shape index: {}]
  %s7 = inlined_call_operand.vmem [shape: f32[1,128], index: 7, kind: input, shape index: {}]
  %s8 = inlined_call_operand.vmem [shape: f32[1,128], index: 8, kind: input, shape index: {}]
  %s9 = inlined_call_operand.vmem [shape: f32[1,64], index: 9, kind: input, shape index: {}]
  %s10 = inlined_call_operand.vmem [shape: f32[1,64], index: 10, kind: input, shape index: {}]
  %s11 = inlined_call_operand.vmem [shape: f32[1,64], index: 11, kind: input, shape index: {}]
  %s12 = inlined_call_operand.vmem [shape: f32[1,64], index: 12, kind: input, shape index: {}]
  %s13 = inlined_call_operand.vmem [shape: f32[1024,64], index: 13, kind: output, shape index: {}]
  %s14 = sld [smem:[#allocation0]]
  $region62: #{decoder_forward.2} parent=0
    _
  %s16 = ssub.s32 1, %s14
  %s17 = scalar_select 0, %s16, %s14
  // Predicated region
  $region2: #{decoder_forward.2} parent=0 // pred_check
    _
  $region3: #{decoder_forward.2} parent=0 // pred_check_branch
    %19 = sbr.rel (0) target = $region5
  $region4: #{decoder_forward.2} parent=0 // pred_region
    _
  $region5: #{decoder_forward.2} parent=0 // pred_fallthru
    _
  // Predicated region
  $region6: #{decoder_forward.2} parent=0 // pred_check
    _
  $region7: #{decoder_forward.2} parent=0 // pred_check_branch
    %21 = sbr.rel (0) target = $region9
  $region8: #{decoder_forward.2} parent=0 // pred_region
    _
  $region9: #{decoder_forward.2} parent=0 // pred_fallthru
    _
  // Predicated region
  $region10: #{decoder_forward.2} parent=0 // pred_check
    _
  $region11: #{decoder_forward.2} parent=0 // pred_check_branch
    %23 = sbr.rel (0) target = $region13
  $region12: #{decoder_forward.2} parent=0 // pred_region
    _
  $region13: #{decoder_forward.2} parent=0 // pred_fallthru
    _
  // Predicated region
  $region14: #{decoder_forward.2} parent=0 // pred_check
    _
  $region15: #{decoder_forward.2} parent=0 // pred_check_branch
    %25 = sbr.rel (0) target = $region17
  $region16: #{decoder_forward.2} parent=0 // pred_region
    _
  $region17: #{decoder_forward.2} parent=0 // pred_fallthru
    _
  // Predicated region
  $region18: #{decoder_forward.2} parent=0 // pred_check
    _
  $region19: #{decoder_forward.2} parent=0 // pred_check_branch
    %27 = sbr.rel (0) target = $region21
  $region20: #{decoder_forward.2} parent=0 // pred_region
    _
  $region21: #{decoder_forward.2} parent=0 // pred_fallthru
    _
  // Predicated region
  $region22: #{decoder_forward.2} parent=0 // pred_check
    _
  $region23: #{decoder_forward.2} parent=0 // pred_check_branch
    %29 = sbr.rel (0) target = $region25
  $region24: #{decoder_forward.2} parent=0 // pred_region
    _
  $region25: #{decoder_forward.2} parent=0 // pred_fallthru
    _
  // Predicated region
  $region26: #{decoder_forward.2} parent=0 // pred_check
    _
  $region27: #{decoder_forward.2} parent=0 // pred_check_branch
    %31 = sbr.rel (0) target = $region29
  $region28: #{decoder_forward.2} parent=0 // pred_region
    _
  $region29: #{decoder_forward.2} parent=0 // pred_fallthru
    _
  // Predicated region
  $region30: #{decoder_forward.2} parent=0 // pred_check
    _
  $region31: #{decoder_forward.2} parent=0 // pred_check_branch
    %33 = sbr.rel (0) target = $region33
  $region32: #{decoder_forward.2} parent=0 // pred_region
    _
  $region33: #{decoder_forward.2} parent=0 // pred_fallthru
    _
  // Predicated region
  $region34: #{decoder_forward.2} parent=0 // pred_check
    _
  $region35: #{decoder_forward.2} parent=0 // pred_check_branch
    %35 = sbr.rel (0) target = $region37
  $region36: #{decoder_forward.2} parent=0 // pred_region
    _
  $region37: #{decoder_forward.2} parent=0 // pred_fallthru
    _
  // Predicated region
  $region38: #{decoder_forward.2} parent=0 // pred_check
    _
  $region39: #{decoder_forward.2} parent=0 // pred_check_branch
    %37 = sbr.rel (0) target = $region41
  $region40: #{decoder_forward.2} parent=0 // pred_region
    _
  $region41: #{decoder_forward.2} parent=0 // pred_fallthru
    _
  // Predicated region
  $region42: #{decoder_forward.2} parent=0 // pred_check
    _
  $region43: #{decoder_forward.2} parent=0 // pred_check_branch
    %39 = sbr.rel (0) target = $region45
  $region44: #{decoder_forward.2} parent=0 // pred_region
    _
  $region45: #{decoder_forward.2} parent=0 // pred_fallthru
    _
  // Predicated region
  $region46: #{decoder_forward.2} parent=0 // pred_check
    _
  $region47: #{decoder_forward.2} parent=0 // pred_check_branch
    %41 = sbr.rel (0) target = $region49
  $region48: #{decoder_forward.2} parent=0 // pred_region
    _
  $region49: #{decoder_forward.2} parent=0 // pred_fallthru
    _
  // Predicated region
  $region50: #{decoder_forward.2} parent=0 // pred_check
    _
  $region51: #{decoder_forward.2} parent=0 // pred_check_branch
    %43 = sbr.rel (0) target = $region53
  $region52: #{decoder_forward.2} parent=0 // pred_region
    _
  $region53: #{decoder_forward.2} parent=0 // pred_fallthru
    _
  %v44 = vld [vmem:[%s0] sm:$0xff]
  %v45 = vld [vmem:[%s0 + $0x8] sm:$0xff]
  %v46 = vld [vmem:[%s0 + $0x10] sm:$0xff]
  %v47 = vld [vmem:[%s0 + $0x18] sm:$0xff]
  %v48 = vld [vmem:[%s0 + $0x20] sm:$0xff]
  %v49 = vld [vmem:[%s0 + $0x28] sm:$0xff]
  %v50 = vld [vmem:[%s0 + $0x30] sm:$0xff]
  %v51 = vld [vmem:[%s0 + $0x38] sm:$0xff]
  %v52 = vld [vmem:[%s1] sm:$0xff]
  %v53 = vld [vmem:[%s1 + $0x8] sm:$0xff]
  %v54 = vld [vmem:[%s1 + $0x10] sm:$0xff]
  %v55 = vld [vmem:[%s1 + $0x18] sm:$0xff]
  %v56 = vld [vmem:[%s1 + $0x20] sm:$0xff]
  %v57 = vld [vmem:[%s1 + $0x28] sm:$0xff]
  %v58 = vld [vmem:[%s1 + $0x30] sm:$0xff]
  %v59 = vld [vmem:[%s1 + $0x38] sm:$0xff]
  %v60 = vld [vmem:[%s1 + $0x40] sm:$0xff]
  %v61 = vld [vmem:[%s1 + $0x48] sm:$0xff]
  %v62 = vld [vmem:[%s1 + $0x50] sm:$0xff]
  %v63 = vld [vmem:[%s1 + $0x58] sm:$0xff]
  %v64 = vld [vmem:[%s1 + $0x60] sm:$0xff]
  %v65 = vld [vmem:[%s1 + $0x68] sm:$0xff]
  %v66 = vld [vmem:[%s1 + $0x70] sm:$0xff]
  %v67 = vld [vmem:[%s1 + $0x78] sm:$0xff]
  %v68 = vld [vmem:[%s1 + $0x80] sm:$0xff]
  %v69 = vld [vmem:[%s1 + $0x88] sm:$0xff]
  %v70 = vld [vmem:[%s1 + $0x90] sm:$0xff]
  %v71 = vld [vmem:[%s1 + $0x98] sm:$0xff]
  %v72 = vld [vmem:[%s1 + $0xa0] sm:$0xff]
  %v73 = vld [vmem:[%s1 + $0xa8] sm:$0xff]
  %v74 = vld [vmem:[%s1 + $0xb0] sm:$0xff]
  %v75 = vld [vmem:[%s1 + $0xb8] sm:$0xff]
  %v76 = vld [vmem:[%s1 + $0xc0] sm:$0xff]
  %v77 = vld [vmem:[%s1 + $0xc8] sm:$0xff]
  %v78 = vld [vmem:[%s1 + $0xd0] sm:$0xff]
  %v79 = vld [vmem:[%s1 + $0xd8] sm:$0xff]
  %v80 = vld [vmem:[%s1 + $0xe0] sm:$0xff]
  %v81 = vld [vmem:[%s1 + $0xe8] sm:$0xff]
  %v82 = vld [vmem:[%s1 + $0xf0] sm:$0xff]
  %v83 = vld [vmem:[%s1 + $0xf8] sm:$0xff]
  %v84 = vld [vmem:[%s1 + $0x100] sm:$0xff]
  %v85 = vld [vmem:[%s1 + $0x108] sm:$0xff]
  %v86 = vld [vmem:[%s1 + $0x110] sm:$0xff]
  %v87 = vld [vmem:[%s1 + $0x118] sm:$0xff]
  %v88 = vld [vmem:[%s1 + $0x120] sm:$0xff]
  %v89 = vld [vmem:[%s1 + $0x128] sm:$0xff]
  %v90 = vld [vmem:[%s1 + $0x130] sm:$0xff]
  %v91 = vld [vmem:[%s1 + $0x138] sm:$0xff]
  %v92 = vld [vmem:[%s1 + $0x140] sm:$0xff]
  %v93 = vld [vmem:[%s1 + $0x148] sm:$0xff]
  %v94 = vld [vmem:[%s1 + $0x150] sm:$0xff]
  %v95 = vld [vmem:[%s1 + $0x158] sm:$0xff]
  %v96 = vld [vmem:[%s1 + $0x160] sm:$0xff]
  %v97 = vld [vmem:[%s1 + $0x168] sm:$0xff]
  %v98 = vld [vmem:[%s1 + $0x170] sm:$0xff]
  %v99 = vld [vmem:[%s1 + $0x178] sm:$0xff]
  %v100 = vld [vmem:[%s1 + $0x180] sm:$0xff]
  %v101 = vld [vmem:[%s1 + $0x188] sm:$0xff]
  %v102 = vld [vmem:[%s1 + $0x190] sm:$0xff]
  %v103 = vld [vmem:[%s1 + $0x198] sm:$0xff]
  %v104 = vld [vmem:[%s1 + $0x1a0] sm:$0xff]
  %v105 = vld [vmem:[%s1 + $0x1a8] sm:$0xff]
  %v106 = vld [vmem:[%s1 + $0x1b0] sm:$0xff]
  %v107 = vld [vmem:[%s1 + $0x1b8] sm:$0xff]
  %v108 = vld [vmem:[%s1 + $0x1c0] sm:$0xff]
  %v109 = vld [vmem:[%s1 + $0x1c8] sm:$0xff]
  %v110 = vld [vmem:[%s1 + $0x1d0] sm:$0xff]
  %v111 = vld [vmem:[%s1 + $0x1d8] sm:$0xff]
  %v112 = vld [vmem:[%s1 + $0x1e0] sm:$0xff]
  %v113 = vld [vmem:[%s1 + $0x1e8] sm:$0xff]
  %v114 = vld [vmem:[%s1 + $0x1f0] sm:$0xff]
  %v115 = vld [vmem:[%s1 + $0x1f8] sm:$0xff]
  %v116 = vld [vmem:[%s1 + $0x200] sm:$0xff]
  %v117 = vld [vmem:[%s1 + $0x208] sm:$0xff]
  %v118 = vld [vmem:[%s1 + $0x210] sm:$0xff]
  %v119 = vld [vmem:[%s1 + $0x218] sm:$0xff]
  %v120 = vld [vmem:[%s1 + $0x220] sm:$0xff]
  %v121 = vld [vmem:[%s1 + $0x228] sm:$0xff]
  %v122 = vld [vmem:[%s1 + $0x230] sm:$0xff]
  %v123 = vld [vmem:[%s1 + $0x238] sm:$0xff]
  %v124 = vld [vmem:[%s1 + $0x240] sm:$0xff]
  %v125 = vld [vmem:[%s1 + $0x248] sm:$0xff]
  %v126 = vld [vmem:[%s1 + $0x250] sm:$0xff]
  %v127 = vld [vmem:[%s1 + $0x258] sm:$0xff]
  %v128 = vld [vmem:[%s1 + $0x260] sm:$0xff]
  %v129 = vld [vmem:[%s1 + $0x268] sm:$0xff]
  %v130 = vld [vmem:[%s1 + $0x270] sm:$0xff]
  %v131 = vld [vmem:[%s1 + $0x278] sm:$0xff]
  %v132 = vld [vmem:[%s1 + $0x280] sm:$0xff]
  %v133 = vld [vmem:[%s1 + $0x288] sm:$0xff]
  %v134 = vld [vmem:[%s1 + $0x290] sm:$0xff]
  %v135 = vld [vmem:[%s1 + $0x298] sm:$0xff]
  %v136 = vld [vmem:[%s1 + $0x2a0] sm:$0xff]
  %v137 = vld [vmem:[%s1 + $0x2a8] sm:$0xff]
  %v138 = vld [vmem:[%s1 + $0x2b0] sm:$0xff]
  %v139 = vld [vmem:[%s1 + $0x2b8] sm:$0xff]
  %v140 = vld [vmem:[%s1 + $0x2c0] sm:$0xff]
  %v141 = vld [vmem:[%s1 + $0x2c8] sm:$0xff]
  %v142 = vld [vmem:[%s1 + $0x2d0] sm:$0xff]
  %v143 = vld [vmem:[%s1 + $0x2d8] sm:$0xff]
  %v144 = vld [vmem:[%s1 + $0x2e0] sm:$0xff]
  %v145 = vld [vmem:[%s1 + $0x2e8] sm:$0xff]
  %v146 = vld [vmem:[%s1 + $0x2f0] sm:$0xff]
  %v147 = vld [vmem:[%s1 + $0x2f8] sm:$0xff]
  %v148 = vld [vmem:[%s1 + $0x300] sm:$0xff]
  %v149 = vld [vmem:[%s1 + $0x308] sm:$0xff]
  %v150 = vld [vmem:[%s1 + $0x310] sm:$0xff]
  %v151 = vld [vmem:[%s1 + $0x318] sm:$0xff]
  %v152 = vld [vmem:[%s1 + $0x320] sm:$0xff]
  %v153 = vld [vmem:[%s1 + $0x328] sm:$0xff]
  %v154 = vld [vmem:[%s1 + $0x330] sm:$0xff]
  %v155 = vld [vmem:[%s1 + $0x338] sm:$0xff]
  %v156 = vld [vmem:[%s1 + $0x340] sm:$0xff]
  %v157 = vld [vmem:[%s1 + $0x348] sm:$0xff]
  %v158 = vld [vmem:[%s1 + $0x350] sm:$0xff]
  %v159 = vld [vmem:[%s1 + $0x358] sm:$0xff]
  %v160 = vld [vmem:[%s1 + $0x360] sm:$0xff]
  %v161 = vld [vmem:[%s1 + $0x368] sm:$0xff]
  %v162 = vld [vmem:[%s1 + $0x370] sm:$0xff]
  %v163 = vld [vmem:[%s1 + $0x378] sm:$0xff]
  %v164 = vld [vmem:[%s1 + $0x380] sm:$0xff]
  %v165 = vld [vmem:[%s1 + $0x388] sm:$0xff]
  %v166 = vld [vmem:[%s1 + $0x390] sm:$0xff]
  %v167 = vld [vmem:[%s1 + $0x398] sm:$0xff]
  %v168 = vld [vmem:[%s1 + $0x3a0] sm:$0xff]
  %v169 = vld [vmem:[%s1 + $0x3a8] sm:$0xff]
  %v170 = vld [vmem:[%s1 + $0x3b0] sm:$0xff]
  %v171 = vld [vmem:[%s1 + $0x3b8] sm:$0xff]
  %v172 = vld [vmem:[%s1 + $0x3c0] sm:$0xff]
  %v173 = vld [vmem:[%s1 + $0x3c8] sm:$0xff]
  %v174 = vld [vmem:[%s1 + $0x3d0] sm:$0xff]
  %v175 = vld [vmem:[%s1 + $0x3d8] sm:$0xff]
  %v176 = vld [vmem:[%s1 + $0x3e0] sm:$0xff]
  %v177 = vld [vmem:[%s1 + $0x3e8] sm:$0xff]
  %v178 = vld [vmem:[%s1 + $0x3f0] sm:$0xff]
  %v179 = vld [vmem:[%s1 + $0x3f8] sm:$0xff]
  %v180 = vld [vmem:[%s1 + $0x400] sm:$0xff]
  %v181 = vld [vmem:[%s1 + $0x408] sm:$0xff]
  %v182 = vld [vmem:[%s1 + $0x410] sm:$0xff]
  %v183 = vld [vmem:[%s1 + $0x418] sm:$0xff]
  %v184 = vld [vmem:[%s1 + $0x420] sm:$0xff]
  %v185 = vld [vmem:[%s1 + $0x428] sm:$0xff]
  %v186 = vld [vmem:[%s1 + $0x430] sm:$0xff]
  %v187 = vld [vmem:[%s1 + $0x438] sm:$0xff]
  %v188 = vld [vmem:[%s1 + $0x440] sm:$0xff]
  %v189 = vld [vmem:[%s1 + $0x448] sm:$0xff]
  %v190 = vld [vmem:[%s1 + $0x450] sm:$0xff]
  %v191 = vld [vmem:[%s1 + $0x458] sm:$0xff]
  %v192 = vld [vmem:[%s1 + $0x460] sm:$0xff]
  %v193 = vld [vmem:[%s1 + $0x468] sm:$0xff]
  %v194 = vld [vmem:[%s1 + $0x470] sm:$0xff]
  %v195 = vld [vmem:[%s1 + $0x478] sm:$0xff]
  %v196 = vld [vmem:[%s1 + $0x480] sm:$0xff]
  %v197 = vld [vmem:[%s1 + $0x488] sm:$0xff]
  %v198 = vld [vmem:[%s1 + $0x490] sm:$0xff]
  %v199 = vld [vmem:[%s1 + $0x498] sm:$0xff]
  %v200 = vld [vmem:[%s1 + $0x4a0] sm:$0xff]
  %v201 = vld [vmem:[%s1 + $0x4a8] sm:$0xff]
  %v202 = vld [vmem:[%s1 + $0x4b0] sm:$0xff]
  %v203 = vld [vmem:[%s1 + $0x4b8] sm:$0xff]
  %v204 = vld [vmem:[%s1 + $0x4c0] sm:$0xff]
  %v205 = vld [vmem:[%s1 + $0x4c8] sm:$0xff]
  %v206 = vld [vmem:[%s1 + $0x4d0] sm:$0xff]
  %v207 = vld [vmem:[%s1 + $0x4d8] sm:$0xff]
  %v208 = vld [vmem:[%s1 + $0x4e0] sm:$0xff]
  %v209 = vld [vmem:[%s1 + $0x4e8] sm:$0xff]
  %v210 = vld [vmem:[%s1 + $0x4f0] sm:$0xff]
  %v211 = vld [vmem:[%s1 + $0x4f8] sm:$0xff]
  %v212 = vld [vmem:[%s1 + $0x500] sm:$0xff]
  %v213 = vld [vmem:[%s1 + $0x508] sm:$0xff]
  %v214 = vld [vmem:[%s1 + $0x510] sm:$0xff]
  %v215 = vld [vmem:[%s1 + $0x518] sm:$0xff]
  %v216 = vld [vmem:[%s1 + $0x520] sm:$0xff]
  %v217 = vld [vmem:[%s1 + $0x528] sm:$0xff]
  %v218 = vld [vmem:[%s1 + $0x530] sm:$0xff]
  %v219 = vld [vmem:[%s1 + $0x538] sm:$0xff]
  %v220 = vld [vmem:[%s1 + $0x540] sm:$0xff]
  %v221 = vld [vmem:[%s1 + $0x548] sm:$0xff]
  %v222 = vld [vmem:[%s1 + $0x550] sm:$0xff]
  %v223 = vld [vmem:[%s1 + $0x558] sm:$0xff]
  %v224 = vld [vmem:[%s1 + $0x560] sm:$0xff]
  %v225 = vld [vmem:[%s1 + $0x568] sm:$0xff]
  %v226 = vld [vmem:[%s1 + $0x570] sm:$0xff]
  %v227 = vld [vmem:[%s1 + $0x578] sm:$0xff]
  %v228 = vld [vmem:[%s1 + $0x580] sm:$0xff]
  %v229 = vld [vmem:[%s1 + $0x588] sm:$0xff]
  %v230 = vld [vmem:[%s1 + $0x590] sm:$0xff]
  %v231 = vld [vmem:[%s1 + $0x598] sm:$0xff]
  %v232 = vld [vmem:[%s1 + $0x5a0] sm:$0xff]
  %v233 = vld [vmem:[%s1 + $0x5a8] sm:$0xff]
  %v234 = vld [vmem:[%s1 + $0x5b0] sm:$0xff]
  %v235 = vld [vmem:[%s1 + $0x5b8] sm:$0xff]
  %v236 = vld [vmem:[%s1 + $0x5c0] sm:$0xff]
  %v237 = vld [vmem:[%s1 + $0x5c8] sm:$0xff]
  %v238 = vld [vmem:[%s1 + $0x5d0] sm:$0xff]
  %v239 = vld [vmem:[%s1 + $0x5d8] sm:$0xff]
  %v240 = vld [vmem:[%s1 + $0x5e0] sm:$0xff]
  %v241 = vld [vmem:[%s1 + $0x5e8] sm:$0xff]
  %v242 = vld [vmem:[%s1 + $0x5f0] sm:$0xff]
  %v243 = vld [vmem:[%s1 + $0x5f8] sm:$0xff]
  %v244 = vld [vmem:[%s1 + $0x600] sm:$0xff]
  %v245 = vld [vmem:[%s1 + $0x608] sm:$0xff]
  %v246 = vld [vmem:[%s1 + $0x610] sm:$0xff]
  %v247 = vld [vmem:[%s1 + $0x618] sm:$0xff]
  %v248 = vld [vmem:[%s1 + $0x620] sm:$0xff]
  %v249 = vld [vmem:[%s1 + $0x628] sm:$0xff]
  %v250 = vld [vmem:[%s1 + $0x630] sm:$0xff]
  %v251 = vld [vmem:[%s1 + $0x638] sm:$0xff]
  %v252 = vld [vmem:[%s1 + $0x640] sm:$0xff]
  %v253 = vld [vmem:[%s1 + $0x648] sm:$0xff]
  %v254 = vld [vmem:[%s1 + $0x650] sm:$0xff]
  %v255 = vld [vmem:[%s1 + $0x658] sm:$0xff]
  %v256 = vld [vmem:[%s1 + $0x660] sm:$0xff]
  %v257 = vld [vmem:[%s1 + $0x668] sm:$0xff]
  %v258 = vld [vmem:[%s1 + $0x670] sm:$0xff]
  %v259 = vld [vmem:[%s1 + $0x678] sm:$0xff]
  %v260 = vld [vmem:[%s1 + $0x680] sm:$0xff]
  %v261 = vld [vmem:[%s1 + $0x688] sm:$0xff]
  %v262 = vld [vmem:[%s1 + $0x690] sm:$0xff]
  %v263 = vld [vmem:[%s1 + $0x698] sm:$0xff]
  %v264 = vld [vmem:[%s1 + $0x6a0] sm:$0xff]
  %v265 = vld [vmem:[%s1 + $0x6a8] sm:$0xff]
  %v266 = vld [vmem:[%s1 + $0x6b0] sm:$0xff]
  %v267 = vld [vmem:[%s1 + $0x6b8] sm:$0xff]
  %v268 = vld [vmem:[%s1 + $0x6c0] sm:$0xff]
  %v269 = vld [vmem:[%s1 + $0x6c8] sm:$0xff]
  %v270 = vld [vmem:[%s1 + $0x6d0] sm:$0xff]
  %v271 = vld [vmem:[%s1 + $0x6d8] sm:$0xff]
  %v272 = vld [vmem:[%s1 + $0x6e0] sm:$0xff]
  %v273 = vld [vmem:[%s1 + $0x6e8] sm:$0xff]
  %v274 = vld [vmem:[%s1 + $0x6f0] sm:$0xff]
  %v275 = vld [vmem:[%s1 + $0x6f8] sm:$0xff]
  %v276 = vld [vmem:[%s1 + $0x700] sm:$0xff]
  %v277 = vld [vmem:[%s1 + $0x708] sm:$0xff]
  %v278 = vld [vmem:[%s1 + $0x710] sm:$0xff]
  %v279 = vld [vmem:[%s1 + $0x718] sm:$0xff]
  %v280 = vld [vmem:[%s1 + $0x720] sm:$0xff]
  %v281 = vld [vmem:[%s1 + $0x728] sm:$0xff]
  %v282 = vld [vmem:[%s1 + $0x730] sm:$0xff]
  %v283 = vld [vmem:[%s1 + $0x738] sm:$0xff]
  %v284 = vld [vmem:[%s1 + $0x740] sm:$0xff]
  %v285 = vld [vmem:[%s1 + $0x748] sm:$0xff]
  %v286 = vld [vmem:[%s1 + $0x750] sm:$0xff]
  %v287 = vld [vmem:[%s1 + $0x758] sm:$0xff]
  %v288 = vld [vmem:[%s1 + $0x760] sm:$0xff]
  %v289 = vld [vmem:[%s1 + $0x768] sm:$0xff]
  %v290 = vld [vmem:[%s1 + $0x770] sm:$0xff]
  %v291 = vld [vmem:[%s1 + $0x778] sm:$0xff]
  %v292 = vld [vmem:[%s1 + $0x780] sm:$0xff]
  %v293 = vld [vmem:[%s1 + $0x788] sm:$0xff]
  %v294 = vld [vmem:[%s1 + $0x790] sm:$0xff]
  %v295 = vld [vmem:[%s1 + $0x798] sm:$0xff]
  %v296 = vld [vmem:[%s1 + $0x7a0] sm:$0xff]
  %v297 = vld [vmem:[%s1 + $0x7a8] sm:$0xff]
  %v298 = vld [vmem:[%s1 + $0x7b0] sm:$0xff]
  %v299 = vld [vmem:[%s1 + $0x7b8] sm:$0xff]
  %v300 = vld [vmem:[%s1 + $0x7c0] sm:$0xff]
  %v301 = vld [vmem:[%s1 + $0x7c8] sm:$0xff]
  %v302 = vld [vmem:[%s1 + $0x7d0] sm:$0xff]
  %v303 = vld [vmem:[%s1 + $0x7d8] sm:$0xff]
  %v304 = vld [vmem:[%s1 + $0x7e0] sm:$0xff]
  %v305 = vld [vmem:[%s1 + $0x7e8] sm:$0xff]
  %v306 = vld [vmem:[%s1 + $0x7f0] sm:$0xff]
  %v307 = vld [vmem:[%s1 + $0x7f8] sm:$0xff]
  %v308 = vld [vmem:[%s1 + $0x800] sm:$0xff]
  %v309 = vld [vmem:[%s1 + $0x808] sm:$0xff]
  %v310 = vld [vmem:[%s1 + $0x810] sm:$0xff]
  %v311 = vld [vmem:[%s1 + $0x818] sm:$0xff]
  %v312 = vld [vmem:[%s1 + $0x820] sm:$0xff]
  %v313 = vld [vmem:[%s1 + $0x828] sm:$0xff]
  %v314 = vld [vmem:[%s1 + $0x830] sm:$0xff]
  %v315 = vld [vmem:[%s1 + $0x838] sm:$0xff]
  %v316 = vld [vmem:[%s1 + $0x840] sm:$0xff]
  %v317 = vld [vmem:[%s1 + $0x848] sm:$0xff]
  %v318 = vld [vmem:[%s1 + $0x850] sm:$0xff]
  %v319 = vld [vmem:[%s1 + $0x858] sm:$0xff]
  %v320 = vld [vmem:[%s1 + $0x860] sm:$0xff]
  %v321 = vld [vmem:[%s1 + $0x868] sm:$0xff]
  %v322 = vld [vmem:[%s1 + $0x870] sm:$0xff]
  %v323 = vld [vmem:[%s1 + $0x878] sm:$0xff]
  %v324 = vld [vmem:[%s1 + $0x880] sm:$0xff]
  %v325 = vld [vmem:[%s1 + $0x888] sm:$0xff]
  %v326 = vld [vmem:[%s1 + $0x890] sm:$0xff]
  %v327 = vld [vmem:[%s1 + $0x898] sm:$0xff]
  %v328 = vld [vmem:[%s1 + $0x8a0] sm:$0xff]
  %v329 = vld [vmem:[%s1 + $0x8a8] sm:$0xff]
  %v330 = vld [vmem:[%s1 + $0x8b0] sm:$0xff]
  %v331 = vld [vmem:[%s1 + $0x8b8] sm:$0xff]
  %v332 = vld [vmem:[%s1 + $0x8c0] sm:$0xff]
  %v333 = vld [vmem:[%s1 + $0x8c8] sm:$0xff]
  %v334 = vld [vmem:[%s1 + $0x8d0] sm:$0xff]
  %v335 = vld [vmem:[%s1 + $0x8d8] sm:$0xff]
  %v336 = vld [vmem:[%s1 + $0x8e0] sm:$0xff]
  %v337 = vld [vmem:[%s1 + $0x8e8] sm:$0xff]
  %v338 = vld [vmem:[%s1 + $0x8f0] sm:$0xff]
  %v339 = vld [vmem:[%s1 + $0x8f8] sm:$0xff]
  %v340 = vld [vmem:[%s1 + $0x900] sm:$0xff]
  %v341 = vld [vmem:[%s1 + $0x908] sm:$0xff]
  %v342 = vld [vmem:[%s1 + $0x910] sm:$0xff]
  %v343 = vld [vmem:[%s1 + $0x918] sm:$0xff]
  %v344 = vld [vmem:[%s1 + $0x920] sm:$0xff]
  %v345 = vld [vmem:[%s1 + $0x928] sm:$0xff]
  %v346 = vld [vmem:[%s1 + $0x930] sm:$0xff]
  %v347 = vld [vmem:[%s1 + $0x938] sm:$0xff]
  %v348 = vld [vmem:[%s1 + $0x940] sm:$0xff]
  %v349 = vld [vmem:[%s1 + $0x948] sm:$0xff]
  %v350 = vld [vmem:[%s1 + $0x950] sm:$0xff]
  %v351 = vld [vmem:[%s1 + $0x958] sm:$0xff]
  %v352 = vld [vmem:[%s1 + $0x960] sm:$0xff]
  %v353 = vld [vmem:[%s1 + $0x968] sm:$0xff]
  %v354 = vld [vmem:[%s1 + $0x970] sm:$0xff]
  %v355 = vld [vmem:[%s1 + $0x978] sm:$0xff]
  %v356 = vld [vmem:[%s1 + $0x980] sm:$0xff]
  %v357 = vld [vmem:[%s1 + $0x988] sm:$0xff]
  %v358 = vld [vmem:[%s1 + $0x990] sm:$0xff]
  %v359 = vld [vmem:[%s1 + $0x998] sm:$0xff]
  %v360 = vld [vmem:[%s1 + $0x9a0] sm:$0xff]
  %v361 = vld [vmem:[%s1 + $0x9a8] sm:$0xff]
  %v362 = vld [vmem:[%s1 + $0x9b0] sm:$0xff]
  %v363 = vld [vmem:[%s1 + $0x9b8] sm:$0xff]
  %v364 = vld [vmem:[%s1 + $0x9c0] sm:$0xff]
  %v365 = vld [vmem:[%s1 + $0x9c8] sm:$0xff]
  %v366 = vld [vmem:[%s1 + $0x9d0] sm:$0xff]
  %v367 = vld [vmem:[%s1 + $0x9d8] sm:$0xff]
  %v368 = vld [vmem:[%s1 + $0x9e0] sm:$0xff]
  %v369 = vld [vmem:[%s1 + $0x9e8] sm:$0xff]
  %v370 = vld [vmem:[%s1 + $0x9f0] sm:$0xff]
  %v371 = vld [vmem:[%s1 + $0x9f8] sm:$0xff]
  %v372 = vld [vmem:[%s1 + $0xa00] sm:$0xff]
  %v373 = vld [vmem:[%s1 + $0xa08] sm:$0xff]
  %v374 = vld [vmem:[%s1 + $0xa10] sm:$0xff]
  %v375 = vld [vmem:[%s1 + $0xa18] sm:$0xff]
  %v376 = vld [vmem:[%s1 + $0xa20] sm:$0xff]
  %v377 = vld [vmem:[%s1 + $0xa28] sm:$0xff]
  %v378 = vld [vmem:[%s1 + $0xa30] sm:$0xff]
  %v379 = vld [vmem:[%s1 + $0xa38] sm:$0xff]
  %v380 = vld [vmem:[%s1 + $0xa40] sm:$0xff]
  %v381 = vld [vmem:[%s1 + $0xa48] sm:$0xff]
  %v382 = vld [vmem:[%s1 + $0xa50] sm:$0xff]
  %v383 = vld [vmem:[%s1 + $0xa58] sm:$0xff]
  %v384 = vld [vmem:[%s1 + $0xa60] sm:$0xff]
  %v385 = vld [vmem:[%s1 + $0xa68] sm:$0xff]
  %v386 = vld [vmem:[%s1 + $0xa70] sm:$0xff]
  %v387 = vld [vmem:[%s1 + $0xa78] sm:$0xff]
  %v388 = vld [vmem:[%s1 + $0xa80] sm:$0xff]
  %v389 = vld [vmem:[%s1 + $0xa88] sm:$0xff]
  %v390 = vld [vmem:[%s1 + $0xa90] sm:$0xff]
  %v391 = vld [vmem:[%s1 + $0xa98] sm:$0xff]
  %v392 = vld [vmem:[%s1 + $0xaa0] sm:$0xff]
  %v393 = vld [vmem:[%s1 + $0xaa8] sm:$0xff]
  %v394 = vld [vmem:[%s1 + $0xab0] sm:$0xff]
  %v395 = vld [vmem:[%s1 + $0xab8] sm:$0xff]
  %v396 = vld [vmem:[%s1 + $0xac0] sm:$0xff]
  %v397 = vld [vmem:[%s1 + $0xac8] sm:$0xff]
  %v398 = vld [vmem:[%s1 + $0xad0] sm:$0xff]
  %v399 = vld [vmem:[%s1 + $0xad8] sm:$0xff]
  %v400 = vld [vmem:[%s1 + $0xae0] sm:$0xff]
  %v401 = vld [vmem:[%s1 + $0xae8] sm:$0xff]
  %v402 = vld [vmem:[%s1 + $0xaf0] sm:$0xff]
  %v403 = vld [vmem:[%s1 + $0xaf8] sm:$0xff]
  %v404 = vld [vmem:[%s1 + $0xb00] sm:$0xff]
  %v405 = vld [vmem:[%s1 + $0xb08] sm:$0xff]
  %v406 = vld [vmem:[%s1 + $0xb10] sm:$0xff]
  %v407 = vld [vmem:[%s1 + $0xb18] sm:$0xff]
  %v408 = vld [vmem:[%s1 + $0xb20] sm:$0xff]
  %v409 = vld [vmem:[%s1 + $0xb28] sm:$0xff]
  %v410 = vld [vmem:[%s1 + $0xb30] sm:$0xff]
  %v411 = vld [vmem:[%s1 + $0xb38] sm:$0xff]
  %v412 = vld [vmem:[%s1 + $0xb40] sm:$0xff]
  %v413 = vld [vmem:[%s1 + $0xb48] sm:$0xff]
  %v414 = vld [vmem:[%s1 + $0xb50] sm:$0xff]
  %v415 = vld [vmem:[%s1 + $0xb58] sm:$0xff]
  %v416 = vld [vmem:[%s1 + $0xb60] sm:$0xff]
  %v417 = vld [vmem:[%s1 + $0xb68] sm:$0xff]
  %v418 = vld [vmem:[%s1 + $0xb70] sm:$0xff]
  %v419 = vld [vmem:[%s1 + $0xb78] sm:$0xff]
  %v420 = vld [vmem:[%s1 + $0xb80] sm:$0xff]
  %v421 = vld [vmem:[%s1 + $0xb88] sm:$0xff]
  %v422 = vld [vmem:[%s1 + $0xb90] sm:$0xff]
  %v423 = vld [vmem:[%s1 + $0xb98] sm:$0xff]
  %v424 = vld [vmem:[%s1 + $0xba0] sm:$0xff]
  %v425 = vld [vmem:[%s1 + $0xba8] sm:$0xff]
  %v426 = vld [vmem:[%s1 + $0xbb0] sm:$0xff]
  %v427 = vld [vmem:[%s1 + $0xbb8] sm:$0xff]
  %v428 = vld [vmem:[%s1 + $0xbc0] sm:$0xff]
  %v429 = vld [vmem:[%s1 + $0xbc8] sm:$0xff]
  %v430 = vld [vmem:[%s1 + $0xbd0] sm:$0xff]
  %v431 = vld [vmem:[%s1 + $0xbd8] sm:$0xff]
  %v432 = vld [vmem:[%s1 + $0xbe0] sm:$0xff]
  %v433 = vld [vmem:[%s1 + $0xbe8] sm:$0xff]
  %v434 = vld [vmem:[%s1 + $0xbf0] sm:$0xff]
  %v435 = vld [vmem:[%s1 + $0xbf8] sm:$0xff]
  %v436 = vld [vmem:[%s1 + $0xc00] sm:$0xff]
  %v437 = vld [vmem:[%s1 + $0xc08] sm:$0xff]
  %v438 = vld [vmem:[%s1 + $0xc10] sm:$0xff]
  %v439 = vld [vmem:[%s1 + $0xc18] sm:$0xff]
  %v440 = vld [vmem:[%s1 + $0xc20] sm:$0xff]
  %v441 = vld [vmem:[%s1 + $0xc28] sm:$0xff]
  %v442 = vld [vmem:[%s1 + $0xc30] sm:$0xff]
  %v443 = vld [vmem:[%s1 + $0xc38] sm:$0xff]
  %v444 = vld [vmem:[%s1 + $0xc40] sm:$0xff]
  %v445 = vld [vmem:[%s1 + $0xc48] sm:$0xff]
  %v446 = vld [vmem:[%s1 + $0xc50] sm:$0xff]
  %v447 = vld [vmem:[%s1 + $0xc58] sm:$0xff]
  %v448 = vld [vmem:[%s1 + $0xc60] sm:$0xff]
  %v449 = vld [vmem:[%s1 + $0xc68] sm:$0xff]
  %v450 = vld [vmem:[%s1 + $0xc70] sm:$0xff]
  %v451 = vld [vmem:[%s1 + $0xc78] sm:$0xff]
  %v452 = vld [vmem:[%s1 + $0xc80] sm:$0xff]
  %v453 = vld [vmem:[%s1 + $0xc88] sm:$0xff]
  %v454 = vld [vmem:[%s1 + $0xc90] sm:$0xff]
  %v455 = vld [vmem:[%s1 + $0xc98] sm:$0xff]
  %v456 = vld [vmem:[%s1 + $0xca0] sm:$0xff]
  %v457 = vld [vmem:[%s1 + $0xca8] sm:$0xff]
  %v458 = vld [vmem:[%s1 + $0xcb0] sm:$0xff]
  %v459 = vld [vmem:[%s1 + $0xcb8] sm:$0xff]
  %v460 = vld [vmem:[%s1 + $0xcc0] sm:$0xff]
  %v461 = vld [vmem:[%s1 + $0xcc8] sm:$0xff]
  %v462 = vld [vmem:[%s1 + $0xcd0] sm:$0xff]
  %v463 = vld [vmem:[%s1 + $0xcd8] sm:$0xff]
  %v464 = vld [vmem:[%s1 + $0xce0] sm:$0xff]
  %v465 = vld [vmem:[%s1 + $0xce8] sm:$0xff]
  %v466 = vld [vmem:[%s1 + $0xcf0] sm:$0xff]
  %v467 = vld [vmem:[%s1 + $0xcf8] sm:$0xff]
  %v468 = vld [vmem:[%s1 + $0xd00] sm:$0xff]
  %v469 = vld [vmem:[%s1 + $0xd08] sm:$0xff]
  %v470 = vld [vmem:[%s1 + $0xd10] sm:$0xff]
  %v471 = vld [vmem:[%s1 + $0xd18] sm:$0xff]
  %v472 = vld [vmem:[%s1 + $0xd20] sm:$0xff]
  %v473 = vld [vmem:[%s1 + $0xd28] sm:$0xff]
  %v474 = vld [vmem:[%s1 + $0xd30] sm:$0xff]
  %v475 = vld [vmem:[%s1 + $0xd38] sm:$0xff]
  %v476 = vld [vmem:[%s1 + $0xd40] sm:$0xff]
  %v477 = vld [vmem:[%s1 + $0xd48] sm:$0xff]
  %v478 = vld [vmem:[%s1 + $0xd50] sm:$0xff]
  %v479 = vld [vmem:[%s1 + $0xd58] sm:$0xff]
  %v480 = vld [vmem:[%s1 + $0xd60] sm:$0xff]
  %v481 = vld [vmem:[%s1 + $0xd68] sm:$0xff]
  %v482 = vld [vmem:[%s1 + $0xd70] sm:$0xff]
  %v483 = vld [vmem:[%s1 + $0xd78] sm:$0xff]
  %v484 = vld [vmem:[%s1 + $0xd80] sm:$0xff]
  %v485 = vld [vmem:[%s1 + $0xd88] sm:$0xff]
  %v486 = vld [vmem:[%s1 + $0xd90] sm:$0xff]
  %v487 = vld [vmem:[%s1 + $0xd98] sm:$0xff]
  %v488 = vld [vmem:[%s1 + $0xda0] sm:$0xff]
  %v489 = vld [vmem:[%s1 + $0xda8] sm:$0xff]
  %v490 = vld [vmem:[%s1 + $0xdb0] sm:$0xff]
  %v491 = vld [vmem:[%s1 + $0xdb8] sm:$0xff]
  %v492 = vld [vmem:[%s1 + $0xdc0] sm:$0xff]
  %v493 = vld [vmem:[%s1 + $0xdc8] sm:$0xff]
  %v494 = vld [vmem:[%s1 + $0xdd0] sm:$0xff]
  %v495 = vld [vmem:[%s1 + $0xdd8] sm:$0xff]
  %v496 = vld [vmem:[%s1 + $0xde0] sm:$0xff]
  %v497 = vld [vmem:[%s1 + $0xde8] sm:$0xff]
  %v498 = vld [vmem:[%s1 + $0xdf0] sm:$0xff]
  %v499 = vld [vmem:[%s1 + $0xdf8] sm:$0xff]
  %v500 = vld [vmem:[%s1 + $0xe00] sm:$0xff]
  %v501 = vld [vmem:[%s1 + $0xe08] sm:$0xff]
  %v502 = vld [vmem:[%s1 + $0xe10] sm:$0xff]
  %v503 = vld [vmem:[%s1 + $0xe18] sm:$0xff]
  %v504 = vld [vmem:[%s1 + $0xe20] sm:$0xff]
  %v505 = vld [vmem:[%s1 + $0xe28] sm:$0xff]
  %v506 = vld [vmem:[%s1 + $0xe30] sm:$0xff]
  %v507 = vld [vmem:[%s1 + $0xe38] sm:$0xff]
  %v508 = vld [vmem:[%s1 + $0xe40] sm:$0xff]
  %v509 = vld [vmem:[%s1 + $0xe48] sm:$0xff]
  %v510 = vld [vmem:[%s1 + $0xe50] sm:$0xff]
  %v511 = vld [vmem:[%s1 + $0xe58] sm:$0xff]
  %v512 = vld [vmem:[%s1 + $0xe60] sm:$0xff]
  %v513 = vld [vmem:[%s1 + $0xe68] sm:$0xff]
  %v514 = vld [vmem:[%s1 + $0xe70] sm:$0xff]
  %v515 = vld [vmem:[%s1 + $0xe78] sm:$0xff]
  %v516 = vld [vmem:[%s1 + $0xe80] sm:$0xff]
  %v517 = vld [vmem:[%s1 + $0xe88] sm:$0xff]
  %v518 = vld [vmem:[%s1 + $0xe90] sm:$0xff]
  %v519 = vld [vmem:[%s1 + $0xe98] sm:$0xff]
  %v520 = vld [vmem:[%s1 + $0xea0] sm:$0xff]
  %v521 = vld [vmem:[%s1 + $0xea8] sm:$0xff]
  %v522 = vld [vmem:[%s1 + $0xeb0] sm:$0xff]
  %v523 = vld [vmem:[%s1 + $0xeb8] sm:$0xff]
  %v524 = vld [vmem:[%s1 + $0xec0] sm:$0xff]
  %v525 = vld [vmem:[%s1 + $0xec8] sm:$0xff]
  %v526 = vld [vmem:[%s1 + $0xed0] sm:$0xff]
  %v527 = vld [vmem:[%s1 + $0xed8] sm:$0xff]
  %v528 = vld [vmem:[%s1 + $0xee0] sm:$0xff]
  %v529 = vld [vmem:[%s1 + $0xee8] sm:$0xff]
  %v530 = vld [vmem:[%s1 + $0xef0] sm:$0xff]
  %v531 = vld [vmem:[%s1 + $0xef8] sm:$0xff]
  %v532 = vld [vmem:[%s1 + $0xf00] sm:$0xff]
  %v533 = vld [vmem:[%s1 + $0xf08] sm:$0xff]
  %v534 = vld [vmem:[%s1 + $0xf10] sm:$0xff]
  %v535 = vld [vmem:[%s1 + $0xf18] sm:$0xff]
  %v536 = vld [vmem:[%s1 + $0xf20] sm:$0xff]
  %v537 = vld [vmem:[%s1 + $0xf28] sm:$0xff]
  %v538 = vld [vmem:[%s1 + $0xf30] sm:$0xff]
  %v539 = vld [vmem:[%s1 + $0xf38] sm:$0xff]
  %v540 = vld [vmem:[%s1 + $0xf40] sm:$0xff]
  %v541 = vld [vmem:[%s1 + $0xf48] sm:$0xff]
  %v542 = vld [vmem:[%s1 + $0xf50] sm:$0xff]
  %v543 = vld [vmem:[%s1 + $0xf58] sm:$0xff]
  %v544 = vld [vmem:[%s1 + $0xf60] sm:$0xff]
  %v545 = vld [vmem:[%s1 + $0xf68] sm:$0xff]
  %v546 = vld [vmem:[%s1 + $0xf70] sm:$0xff]
  %v547 = vld [vmem:[%s1 + $0xf78] sm:$0xff]
  %v548 = vld [vmem:[%s1 + $0xf80] sm:$0xff]
  %v549 = vld [vmem:[%s1 + $0xf88] sm:$0xff]
  %v550 = vld [vmem:[%s1 + $0xf90] sm:$0xff]
  %v551 = vld [vmem:[%s1 + $0xf98] sm:$0xff]
  %v552 = vld [vmem:[%s1 + $0xfa0] sm:$0xff]
  %v553 = vld [vmem:[%s1 + $0xfa8] sm:$0xff]
  %v554 = vld [vmem:[%s1 + $0xfb0] sm:$0xff]
  %v555 = vld [vmem:[%s1 + $0xfb8] sm:$0xff]
  %v556 = vld [vmem:[%s1 + $0xfc0] sm:$0xff]
  %v557 = vld [vmem:[%s1 + $0xfc8] sm:$0xff]
  %v558 = vld [vmem:[%s1 + $0xfd0] sm:$0xff]
  %v559 = vld [vmem:[%s1 + $0xfd8] sm:$0xff]
  %v560 = vld [vmem:[%s1 + $0xfe0] sm:$0xff]
  %v561 = vld [vmem:[%s1 + $0xfe8] sm:$0xff]
  %v562 = vld [vmem:[%s1 + $0xff0] sm:$0xff]
  %v563 = vld [vmem:[%s1 + $0xff8] sm:$0xff]
  %564 = vmatprep.subr.mxu0 %v53
  %565 = vmatpush1.msra.mxu0 %v52
  %566 = vmatprep.subr.mxu0 %v61
  %567 = vmatpush1.msra.mxu0 %v60
  %568 = vmatprep.subr.mxu0 %v69
  %569 = vmatpush1.msra.mxu0 %v68
  %570 = vmatprep.subr.mxu0 %v77
  %571 = vmatpush1.msra.mxu0 %v76
  %572 = vmatprep.subr.mxu0 %v85
  %573 = vmatpush1.msra.mxu0 %v84
  %574 = vmatprep.subr.mxu0 %v93
  %575 = vmatpush1.msra.mxu0 %v92
  %576 = vmatprep.subr.mxu0 %v101
  %577 = vmatpush1.msra.mxu0 %v100
  %578 = vmatprep.subr.mxu0 %v109
  %579 = vmatpush1.msra.mxu0 %v108
  %580 = vmatprep.subr.mxu0 %v117
  %581 = vmatpush1.msra.mxu0 %v116
  %582 = vmatprep.subr.mxu0 %v125
  %583 = vmatpush1.msra.mxu0 %v124
  %584 = vmatprep.subr.mxu0 %v133
  %585 = vmatpush1.msra.mxu0 %v132
  %586 = vmatprep.subr.mxu0 %v141
  %587 = vmatpush1.msra.mxu0 %v140
  %588 = vmatprep.subr.mxu0 %v149
  %589 = vmatpush1.msra.mxu0 %v148
  %590 = vmatprep.subr.mxu0 %v157
  %591 = vmatpush1.msra.mxu0 %v156
  %592 = vmatprep.subr.mxu0 %v165
  %593 = vmatpush1.msra.mxu0 %v164
  %594 = vmatprep.subr.mxu0 %v173
  %595 = vmatpush1.msra.mxu0 %v172
  %596 = vmatprep.subr.mxu0 %v181
  %597 = vmatpush1.msra.mxu0 %v180
  %598 = vmatprep.subr.mxu0 %v189
  %599 = vmatpush1.msra.mxu0 %v188
  %600 = vmatprep.subr.mxu0 %v197
  %601 = vmatpush1.msra.mxu0 %v196
  %602 = vmatprep.subr.mxu0 %v205
  %603 = vmatpush1.msra.mxu0 %v204
  %604 = vmatprep.subr.mxu0 %v213
  %605 = vmatpush1.msra.mxu0 %v212
  %606 = vmatprep.subr.mxu0 %v221
  %607 = vmatpush1.msra.mxu0 %v220
  %608 = vmatprep.subr.mxu0 %v229
  %609 = vmatpush1.msra.mxu0 %v228
  %610 = vmatprep.subr.mxu0 %v237
  %611 = vmatpush1.msra.mxu0 %v236
  %612 = vmatprep.subr.mxu0 %v245
  %613 = vmatpush1.msra.mxu0 %v244
  %614 = vmatprep.subr.mxu0 %v253
  %615 = vmatpush1.msra.mxu0 %v252
  %616 = vmatprep.subr.mxu0 %v261
  %617 = vmatpush1.msra.mxu0 %v260
  %618 = vmatprep.subr.mxu0 %v269
  %619 = vmatpush1.msra.mxu0 %v268
  %620 = vmatprep.subr.mxu0 %v277
  %621 = vmatpush1.msra.mxu0 %v276
  %622 = vmatprep.subr.mxu0 %v285
  %623 = vmatpush1.msra.mxu0 %v284
  %624 = vmatprep.subr.mxu0 %v293
  %625 = vmatpush1.msra.mxu0 %v292
  %626 = vmatprep.subr.mxu0 %v301
  %627 = vmatpush1.msra.mxu0 %v300
  %628 = vmatprep.mubr.f32.mxu0 %v45
  %629 = vmatmul.mubr.f32.gmra.mrb[0].mxu0 %v44
  %v630 = vpop.f32.mrb[0].mxu0
  %v631 = vadd.f32 0.0, %v630
  %v632 = vpop.f32.mrb[0].mxu0
  %v633 = vadd.f32 0.0, %v632
  %634 = vmatprep.mubr.f32.mxu0 %v49
  %635 = vmatmul.mubr.f32.gmra.mrb[0].mxu0 %v48
  %v636 = vpop.f32.mrb[0].mxu0
  %v637 = vadd.f32 0.0, %v636
  %v638 = vpop.f32.mrb[0].mxu0
  %v639 = vadd.f32 0.0, %v638
  %640 = vdwg.mxu0
  %641 = vmatprep.subr.mxu0 %v309
  %642 = vmatpush1.msra.mxu0 %v308
  %643 = vmatprep.subr.mxu0 %v317
  %644 = vmatpush1.msra.mxu0 %v316
  %645 = vmatprep.subr.mxu0 %v325
  %646 = vmatpush1.msra.mxu0 %v324
  %647 = vmatprep.subr.mxu0 %v333
  %648 = vmatpush1.msra.mxu0 %v332
  %649 = vmatprep.subr.mxu0 %v341
  %650 = vmatpush1.msra.mxu0 %v340
  %651 = vmatprep.subr.mxu0 %v349
  %652 = vmatpush1.msra.mxu0 %v348
  %653 = vmatprep.subr.mxu0 %v357
  %654 = vmatpush1.msra.mxu0 %v356
  %655 = vmatprep.subr.mxu0 %v365
  %656 = vmatpush1.msra.mxu0 %v364
  %657 = vmatprep.subr.mxu0 %v373
  %658 = vmatpush1.msra.mxu0 %v372
  %659 = vmatprep.subr.mxu0 %v381
  %660 = vmatpush1.msra.mxu0 %v380
  %661 = vmatprep.subr.mxu0 %v389
  %662 = vmatpush1.msra.mxu0 %v388
  %663 = vmatprep.subr.mxu0 %v397
  %664 = vmatpush1.msra.mxu0 %v396
  %665 = vmatprep.subr.mxu0 %v405
  %666 = vmatpush1.msra.mxu0 %v404
  %667 = vmatprep.subr.mxu0 %v413
  %668 = vmatpush1.msra.mxu0 %v412
  %669 = vmatprep.subr.mxu0 %v421
  %670 = vmatpush1.msra.mxu0 %v420
  %671 = vmatprep.subr.mxu0 %v429
  %672 = vmatpush1.msra.mxu0 %v428
  %673 = vmatprep.subr.mxu0 %v437
  %674 = vmatpush1.msra.mxu0 %v436
  %675 = vmatprep.subr.mxu0 %v445
  %676 = vmatpush1.msra.mxu0 %v444
  %677 = vmatprep.subr.mxu0 %v453
  %678 = vmatpush1.msra.mxu0 %v452
  %679 = vmatprep.subr.mxu0 %v461
  %680 = vmatpush1.msra.mxu0 %v460
  %681 = vmatprep.subr.mxu0 %v469
  %682 = vmatpush1.msra.mxu0 %v468
  %683 = vmatprep.subr.mxu0 %v477
  %684 = vmatpush1.msra.mxu0 %v476
  %685 = vmatprep.subr.mxu0 %v485
  %686 = vmatpush1.msra.mxu0 %v484
  %687 = vmatprep.subr.mxu0 %v493
  %688 = vmatpush1.msra.mxu0 %v492
  %689 = vmatprep.subr.mxu0 %v501
  %690 = vmatpush1.msra.mxu0 %v500
  %691 = vmatprep.subr.mxu0 %v509
  %692 = vmatpush1.msra.mxu0 %v508
  %693 = vmatprep.subr.mxu0 %v517
  %694 = vmatpush1.msra.mxu0 %v516
  %695 = vmatprep.subr.mxu0 %v525
  %696 = vmatpush1.msra.mxu0 %v524
  %697 = vmatprep.subr.mxu0 %v533
  %698 = vmatpush1.msra.mxu0 %v532
  %699 = vmatprep.subr.mxu0 %v541
  %700 = vmatpush1.msra.mxu0 %v540
  %701 = vmatprep.subr.mxu0 %v549
  %702 = vmatpush1.msra.mxu0 %v548
  %703 = vmatprep.subr.mxu0 %v557
  %704 = vmatpush1.msra.mxu0 %v556
  %705 = vmatprep.mubr.f32.mxu0 %v47
  %706 = vmatmul.mubr.f32.gmra.mrb[0].mxu0 %v46
  %v707 = vpop.f32.mrb[0].mxu0
  %v708 = vadd.f32 %v631, %v707
  %v709 = vpop.f32.mrb[0].mxu0
  %v710 = vadd.f32 %v633, %v709
  %711 = vmatprep.mubr.f32.mxu0 %v51
  %712 = vmatmul.mubr.f32.gmra.mrb[0].mxu0 %v50
  %v713 = vpop.f32.mrb[0].mxu0
  %v714 = vadd.f32 %v637, %v713
  %v715 = vpop.f32.mrb[0].mxu0
  %v716 = vadd.f32 %v639, %v715
  %717 = vdwg.mxu0
  %718 = vmatprep.subr.mxu0 %v55
  %719 = vmatpush1.msra.mxu0 %v54
  %720 = vmatprep.subr.mxu0 %v63
  %721 = vmatpush1.msra.mxu0 %v62
  %722 = vmatprep.subr.mxu0 %v71
  %723 = vmatpush1.msra.mxu0 %v70
  %724 = vmatprep.subr.mxu0 %v79
  %725 = vmatpush1.msra.mxu0 %v78
  %726 = vmatprep.subr.mxu0 %v87
  %727 = vmatpush1.msra.mxu0 %v86
  %728 = vmatprep.subr.mxu0 %v95
  %729 = vmatpush1.msra.mxu0 %v94
  %730 = vmatprep.subr.mxu0 %v103
  %731 = vmatpush1.msra.mxu0 %v102
  %732 = vmatprep.subr.mxu0 %v111
  %733 = vmatpush1.msra.mxu0 %v110
  %734 = vmatprep.subr.mxu0 %v119
  %735 = vmatpush1.msra.mxu0 %v118
  %736 = vmatprep.subr.mxu0 %v127
  %737 = vmatpush1.msra.mxu0 %v126
  %738 = vmatprep.subr.mxu0 %v135
  %739 = vmatpush1.msra.mxu0 %v134
  %740 = vmatprep.subr.mxu0 %v143
  %741 = vmatpush1.msra.mxu0 %v142
  %742 = vmatprep.subr.mxu0 %v151
  %743 = vmatpush1.msra.mxu0 %v150
  %744 = vmatprep.subr.mxu0 %v159
  %745 = vmatpush1.msra.mxu0 %v158
  %746 = vmatprep.subr.mxu0 %v167
  %747 = vmatpush1.msra.mxu0 %v166
  %748 = vmatprep.subr.mxu0 %v175
  %749 = vmatpush1.msra.mxu0 %v174
  %750 = vmatprep.subr.mxu0 %v183
  %751 = vmatpush1.msra.mxu0 %v182
  %752 = vmatprep.subr.mxu0 %v191
  %753 = vmatpush1.msra.mxu0 %v190
  %754 = vmatprep.subr.mxu0 %v199
  %755 = vmatpush1.msra.mxu0 %v198
  %756 = vmatprep.subr.mxu0 %v207
  %757 = vmatpush1.msra.mxu0 %v206
  %758 = vmatprep.subr.mxu0 %v215
  %759 = vmatpush1.msra.mxu0 %v214
  %760 = vmatprep.subr.mxu0 %v223
  %761 = vmatpush1.msra.mxu0 %v222
  %762 = vmatprep.subr.mxu0 %v231
  %763 = vmatpush1.msra.mxu0 %v230
  %764 = vmatprep.subr.mxu0 %v239
  %765 = vmatpush1.msra.mxu0 %v238
  %766 = vmatprep.subr.mxu0 %v247
  %767 = vmatpush1.msra.mxu0 %v246
  %768 = vmatprep.subr.mxu0 %v255
  %769 = vmatpush1.msra.mxu0 %v254
  %770 = vmatprep.subr.mxu0 %v263
  %771 = vmatpush1.msra.mxu0 %v262
  %772 = vmatprep.subr.mxu0 %v271
  %773 = vmatpush1.msra.mxu0 %v270
  %774 = vmatprep.subr.mxu0 %v279
  %775 = vmatpush1.msra.mxu0 %v278
  %776 = vmatprep.subr.mxu0 %v287
  %777 = vmatpush1.msra.mxu0 %v286
  %778 = vmatprep.subr.mxu0 %v295
  %779 = vmatpush1.msra.mxu0 %v294
  %780 = vmatprep.subr.mxu0 %v303
  %781 = vmatpush1.msra.mxu0 %v302
  %782 = vmatprep.mubr.f32.mxu0 %v45
  %783 = vmatmul.mubr.f32.gmra.mrb[0].mxu0 %v44
  %v784 = vpop.f32.mrb[0].mxu0
  %v785 = vadd.f32 0.0, %v784
  %v786 = vpop.f32.mrb[0].mxu0
  %v787 = vadd.f32 0.0, %v786
  %788 = vmatprep.mubr.f32.mxu0 %v49
  %789 = vmatmul.mubr.f32.gmra.mrb[0].mxu0 %v48
  %v790 = vpop.f32.mrb[0].mxu0
  %v791 = vadd.f32 0.0, %v790
  %v792 = vpop.f32.mrb[0].mxu0
  %v793 = vadd.f32 0.0, %v792
  %794 = vdwg.mxu0
  %795 = vmatprep.subr.mxu0 %v311
  %796 = vmatpush1.msra.mxu0 %v310
  %797 = vmatprep.subr.mxu0 %v319
  %798 = vmatpush1.msra.mxu0 %v318
  %799 = vmatprep.subr.mxu0 %v327
  %800 = vmatpush1.msra.mxu0 %v326
  %801 = vmatprep.subr.mxu0 %v335
  %802 = vmatpush1.msra.mxu0 %v334
  %803 = vmatprep.subr.mxu0 %v343
  %804 = vmatpush1.msra.mxu0 %v342
  %805 = vmatprep.subr.mxu0 %v351
  %806 = vmatpush1.msra.mxu0 %v350
  %807 = vmatprep.subr.mxu0 %v359
  %808 = vmatpush1.msra.mxu0 %v358
  %809 = vmatprep.subr.mxu0 %v367
  %810 = vmatpush1.msra.mxu0 %v366
  %811 = vmatprep.subr.mxu0 %v375
  %812 = vmatpush1.msra.mxu0 %v374
  %813 = vmatprep.subr.mxu0 %v383
  %814 = vmatpush1.msra.mxu0 %v382
  %815 = vmatprep.subr.mxu0 %v391
  %816 = vmatpush1.msra.mxu0 %v390
  %817 = vmatprep.subr.mxu0 %v399
  %818 = vmatpush1.msra.mxu0 %v398
  %819 = vmatprep.subr.mxu0 %v407
  %820 = vmatpush1.msra.mxu0 %v406
  %821 = vmatprep.subr.mxu0 %v415
  %822 = vmatpush1.msra.mxu0 %v414
  %823 = vmatprep.subr.mxu0 %v423
  %824 = vmatpush1.msra.mxu0 %v422
  %825 = vmatprep.subr.mxu0 %v431
  %826 = vmatpush1.msra.mxu0 %v430
  %827 = vmatprep.subr.mxu0 %v439
  %828 = vmatpush1.msra.mxu0 %v438
  %829 = vmatprep.subr.mxu0 %v447
  %830 = vmatpush1.msra.mxu0 %v446
  %831 = vmatprep.subr.mxu0 %v455
  %832 = vmatpush1.msra.mxu0 %v454
  %833 = vmatprep.subr.mxu0 %v463
  %834 = vmatpush1.msra.mxu0 %v462
  %835 = vmatprep.subr.mxu0 %v471
  %836 = vmatpush1.msra.mxu0 %v470
  %837 = vmatprep.subr.mxu0 %v479
  %838 = vmatpush1.msra.mxu0 %v478
  %839 = vmatprep.subr.mxu0 %v487
  %840 = vmatpush1.msra.mxu0 %v486
  %841 = vmatprep.subr.mxu0 %v495
  %842 = vmatpush1.msra.mxu0 %v494
  %843 = vmatprep.subr.mxu0 %v503
  %844 = vmatpush1.msra.mxu0 %v502
  %845 = vmatprep.subr.mxu0 %v511
  %846 = vmatpush1.msra.mxu0 %v510
  %847 = vmatprep.subr.mxu0 %v519
  %848 = vmatpush1.msra.mxu0 %v518
  %849 = vmatprep.subr.mxu0 %v527
  %850 = vmatpush1.msra.mxu0 %v526
  %851 = vmatprep.subr.mxu0 %v535
  %852 = vmatpush1.msra.mxu0 %v534
  %853 = vmatprep.subr.mxu0 %v543
  %854 = vmatpush1.msra.mxu0 %v542
  %855 = vmatprep.subr.mxu0 %v551
  %856 = vmatpush1.msra.mxu0 %v550
  %857 = vmatprep.subr.mxu0 %v559
  %858 = vmatpush1.msra.mxu0 %v558
  %859 = vmatprep.mubr.f32.mxu0 %v47
  %860 = vmatmul.mubr.f32.gmra.mrb[0].mxu0 %v46
  %v861 = vpop.f32.mrb[0].mxu0
  %v862 = vadd.f32 %v785, %v861
  %v863 = vpop.f32.mrb[0].mxu0
  %v864 = vadd.f32 %v787, %v863
  %865 = vmatprep.mubr.f32.mxu0 %v51
  %866 = vmatmul.mubr.f32.gmra.mrb[0].mxu0 %v50
  %v867 = vpop.f32.mrb[0].mxu0
  %v868 = vadd.f32 %v791, %v867
  %v869 = vpop.f32.mrb[0].mxu0
  %v870 = vadd.f32 %v793, %v869
  %871 = vdwg.mxu0
  %872 = vmatprep.subr.mxu0 %v57
  %873 = vmatpush1.msra.mxu0 %v56
  %874 = vmatprep.subr.mxu0 %v65
  %875 = vmatpush1.msra.mxu0 %v64
  %876 = vmatprep.subr.mxu0 %v73
  %877 = vmatpush1.msra.mxu0 %v72
  %878 = vmatprep.subr.mxu0 %v81
  %879 = vmatpush1.msra.mxu0 %v80
  %880 = vmatprep.subr.mxu0 %v89
  %881 = vmatpush1.msra.mxu0 %v88
  %882 = vmatprep.subr.mxu0 %v97
  %883 = vmatpush1.msra.mxu0 %v96
  %884 = vmatprep.subr.mxu0 %v105
  %885 = vmatpush1.msra.mxu0 %v104
  %886 = vmatprep.subr.mxu0 %v113
  %887 = vmatpush1.msra.mxu0 %v112
  %888 = vmatprep.subr.mxu0 %v121
  %889 = vmatpush1.msra.mxu0 %v120
  %890 = vmatprep.subr.mxu0 %v129
  %891 = vmatpush1.msra.mxu0 %v128
  %892 = vmatprep.subr.mxu0 %v137
  %893 = vmatpush1.msra.mxu0 %v136
  %894 = vmatprep.subr.mxu0 %v145
  %895 = vmatpush1.msra.mxu0 %v144
  %896 = vmatprep.subr.mxu0 %v153
  %897 = vmatpush1.msra.mxu0 %v152
  %898 = vmatprep.subr.mxu0 %v161
  %899 = vmatpush1.msra.mxu0 %v160
  %900 = vmatprep.subr.mxu0 %v169
  %901 = vmatpush1.msra.mxu0 %v168
  %902 = vmatprep.subr.mxu0 %v177
  %903 = vmatpush1.msra.mxu0 %v176
  %904 = vmatprep.subr.mxu0 %v185
  %905 = vmatpush1.msra.mxu0 %v184
  %906 = vmatprep.subr.mxu0 %v193
  %907 = vmatpush1.msra.mxu0 %v192
  %908 = vmatprep.subr.mxu0 %v201
  %909 = vmatpush1.msra.mxu0 %v200
  %910 = vmatprep.subr.mxu0 %v209
  %911 = vmatpush1.msra.mxu0 %v208
  %912 = vmatprep.subr.mxu0 %v217
  %913 = vmatpush1.msra.mxu0 %v216
  %914 = vmatprep.subr.mxu0 %v225
  %915 = vmatpush1.msra.mxu0 %v224
  %916 = vmatprep.subr.mxu0 %v233
  %917 = vmatpush1.msra.mxu0 %v232
  %918 = vmatprep.subr.mxu0 %v241
  %919 = vmatpush1.msra.mxu0 %v240
  %920 = vmatprep.subr.mxu0 %v249
  %921 = vmatpush1.msra.mxu0 %v248
  %922 = vmatprep.subr.mxu0 %v257
  %923 = vmatpush1.msra.mxu0 %v256
  %924 = vmatprep.subr.mxu0 %v265
  %925 = vmatpush1.msra.mxu0 %v264
  %926 = vmatprep.subr.mxu0 %v273
  %927 = vmatpush1.msra.mxu0 %v272
  %928 = vmatprep.subr.mxu0 %v281
  %929 = vmatpush1.msra.mxu0 %v280
  %930 = vmatprep.subr.mxu0 %v289
  %931 = vmatpush1.msra.mxu0 %v288
  %932 = vmatprep.subr.mxu0 %v297
  %933 = vmatpush1.msra.mxu0 %v296
  %934 = vmatprep.subr.mxu0 %v305
  %935 = vmatpush1.msra.mxu0 %v304
  %936 = vmatprep.mubr.f32.mxu0 %v45
  %937 = vmatmul.mubr.f32.gmra.mrb[0].mxu0 %v44
  %v938 = vpop.f32.mrb[0].mxu0
  %v939 = vadd.f32 0.0, %v938
  %v940 = vpop.f32.mrb[0].mxu0
  %v941 = vadd.f32 0.0, %v940
  %942 = vmatprep.mubr.f32.mxu0 %v49
  %943 = vmatmul.mubr.f32.gmra.mrb[0].mxu0 %v48
  %v944 = vpop.f32.mrb[0].mxu0
  %v945 = vadd.f32 0.0, %v944
  %v946 = vpop.f32.mrb[0].mxu0
  %v947 = vadd.f32 0.0, %v946
  %948 = vdwg.mxu0
  %949 = vmatprep.subr.mxu0 %v313
  %950 = vmatpush1.msra.mxu0 %v312
  %951 = vmatprep.subr.mxu0 %v321
  %952 = vmatpush1.msra.mxu0 %v320
  %953 = vmatprep.subr.mxu0 %v329
  %954 = vmatpush1.msra.mxu0 %v328
  %955 = vmatprep.subr.mxu0 %v337
  %956 = vmatpush1.msra.mxu0 %v336
  %957 = vmatprep.subr.mxu0 %v345
  %958 = vmatpush1.msra.mxu0 %v344
  %959 = vmatprep.subr.mxu0 %v353
  %960 = vmatpush1.msra.mxu0 %v352
  %961 = vmatprep.subr.mxu0 %v361
  %962 = vmatpush1.msra.mxu0 %v360
  %963 = vmatprep.subr.mxu0 %v369
  %964 = vmatpush1.msra.mxu0 %v368
  %965 = vmatprep.subr.mxu0 %v377
  %966 = vmatpush1.msra.mxu0 %v376
  %967 = vmatprep.subr.mxu0 %v385
  %968 = vmatpush1.msra.mxu0 %v384
  %969 = vmatprep.subr.mxu0 %v393
  %970 = vmatpush1.msra.mxu0 %v392
  %971 = vmatprep.subr.mxu0 %v401
  %972 = vmatpush1.msra.mxu0 %v400
  %973 = vmatprep.subr.mxu0 %v409
  %974 = vmatpush1.msra.mxu0 %v408
  %975 = vmatprep.subr.mxu0 %v417
  %976 = vmatpush1.msra.mxu0 %v416
  %977 = vmatprep.subr.mxu0 %v425
  %978 = vmatpush1.msra.mxu0 %v424
  %979 = vmatprep.subr.mxu0 %v433
  %980 = vmatpush1.msra.mxu0 %v432
  %981 = vmatprep.subr.mxu0 %v441
  %982 = vmatpush1.msra.mxu0 %v440
  %983 = vmatprep.subr.mxu0 %v449
  %984 = vmatpush1.msra.mxu0 %v448
  %985 = vmatprep.subr.mxu0 %v457
  %986 = vmatpush1.msra.mxu0 %v456
  %987 = vmatprep.subr.mxu0 %v465
  %988 = vmatpush1.msra.mxu0 %v464
  %989 = vmatprep.subr.mxu0 %v473
  %990 = vmatpush1.msra.mxu0 %v472
  %991 = vmatprep.subr.mxu0 %v481
  %992 = vmatpush1.msra.mxu0 %v480
  %993 = vmatprep.subr.mxu0 %v489
  %994 = vmatpush1.msra.mxu0 %v488
  %995 = vmatprep.subr.mxu0 %v497
  %996 = vmatpush1.msra.mxu0 %v496
  %997 = vmatprep.subr.mxu0 %v505
  %998 = vmatpush1.msra.mxu0 %v504
  %999 = vmatprep.subr.mxu0 %v513
  %1000 = vmatpush1.msra.mxu0 %v512
  %1001 = vmatprep.subr.mxu0 %v521
  %1002 = vmatpush1.msra.mxu0 %v520
  %1003 = vmatprep.subr.mxu0 %v529
  %1004 = vmatpush1.msra.mxu0 %v528
  %1005 = vmatprep.subr.mxu0 %v537
  %1006 = vmatpush1.msra.mxu0 %v536
  %1007 = vmatprep.subr.mxu0 %v545
  %1008 = vmatpush1.msra.mxu0 %v544
  %1009 = vmatprep.subr.mxu0 %v553
  %1010 = vmatpush1.msra.mxu0 %v552
  %1011 = vmatprep.subr.mxu0 %v561
  %1012 = vmatpush1.msra.mxu0 %v560
  %1013 = vmatprep.mubr.f32.mxu0 %v47
  %1014 = vmatmul.mubr.f32.gmra.mrb[0].mxu0 %v46
  %v1015 = vpop.f32.mrb[0].mxu0
  %v1016 = vadd.f32 %v939, %v1015
  %v1017 = vpop.f32.mrb[0].mxu0
  %v1018 = vadd.f32 %v941, %v1017
  %1019 = vmatprep.mubr.f32.mxu0 %v51
  %1020 = vmatmul.mubr.f32.gmra.mrb[0].mxu0 %v50
  %v1021 = vpop.f32.mrb[0].mxu0
  %v1022 = vadd.f32 %v945, %v1021
  %v1023 = vpop.f32.mrb[0].mxu0
  %v1024 = vadd.f32 %v947, %v1023
  %1025 = vdwg.mxu0
  %1026 = vmatprep.subr.mxu0 %v59
  %1027 = vmatpush1.msra.mxu0 %v58
  %1028 = vmatprep.subr.mxu0 %v67
  %1029 = vmatpush1.msra.mxu0 %v66
  %1030 = vmatprep.subr.mxu0 %v75
  %1031 = vmatpush1.msra.mxu0 %v74
  %1032 = vmatprep.subr.mxu0 %v83
  %1033 = vmatpush1.msra.mxu0 %v82
  %1034 = vmatprep.subr.mxu0 %v91
  %1035 = vmatpush1.msra.mxu0 %v90
  %1036 = vmatprep.subr.mxu0 %v99
  %1037 = vmatpush1.msra.mxu0 %v98
  %1038 = vmatprep.subr.mxu0 %v107
  %1039 = vmatpush1.msra.mxu0 %v106
  %1040 = vmatprep.subr.mxu0 %v115
  %1041 = vmatpush1.msra.mxu0 %v114
  %1042 = vmatprep.subr.mxu0 %v123
  %1043 = vmatpush1.msra.mxu0 %v122
  %1044 = vmatprep.subr.mxu0 %v131
  %1045 = vmatpush1.msra.mxu0 %v130
  %1046 = vmatprep.subr.mxu0 %v139
  %1047 = vmatpush1.msra.mxu0 %v138
  %1048 = vmatprep.subr.mxu0 %v147
  %1049 = vmatpush1.msra.mxu0 %v146
  %1050 = vmatprep.subr.mxu0 %v155
  %1051 = vmatpush1.msra.mxu0 %v154
  %1052 = vmatprep.subr.mxu0 %v163
  %1053 = vmatpush1.msra.mxu0 %v162
  %1054 = vmatprep.subr.mxu0 %v171
  %1055 = vmatpush1.msra.mxu0 %v170
  %1056 = vmatprep.subr.mxu0 %v179
  %1057 = vmatpush1.msra.mxu0 %v178
  %1058 = vmatprep.subr.mxu0 %v187
  %1059 = vmatpush1.msra.mxu0 %v186
  %1060 = vmatprep.subr.mxu0 %v195
  %1061 = vmatpush1.msra.mxu0 %v194
  %1062 = vmatprep.subr.mxu0 %v203
  %1063 = vmatpush1.msra.mxu0 %v202
  %1064 = vmatprep.subr.mxu0 %v211
  %1065 = vmatpush1.msra.mxu0 %v210
  %1066 = vmatprep.subr.mxu0 %v219
  %1067 = vmatpush1.msra.mxu0 %v218
  %1068 = vmatprep.subr.mxu0 %v227
  %1069 = vmatpush1.msra.mxu0 %v226
  %1070 = vmatprep.subr.mxu0 %v235
  %1071 = vmatpush1.msra.mxu0 %v234
  %1072 = vmatprep.subr.mxu0 %v243
  %1073 = vmatpush1.msra.mxu0 %v242
  %1074 = vmatprep.subr.mxu0 %v251
  %1075 = vmatpush1.msra.mxu0 %v250
  %1076 = vmatprep.subr.mxu0 %v259
  %1077 = vmatpush1.msra.mxu0 %v258
  %1078 = vmatprep.subr.mxu0 %v267
  %1079 = vmatpush1.msra.mxu0 %v266
  %1080 = vmatprep.subr.mxu0 %v275
  %1081 = vmatpush1.msra.mxu0 %v274
  %1082 = vmatprep.subr.mxu0 %v283
  %1083 = vmatpush1.msra.mxu0 %v282
  %1084 = vmatprep.subr.mxu0 %v291
  %1085 = vmatpush1.msra.mxu0 %v290
  %1086 = vmatprep.subr.mxu0 %v299
  %1087 = vmatpush1.msra.mxu0 %v298
  %1088 = vmatprep.subr.mxu0 %v307
  %1089 = vmatpush1.msra.mxu0 %v306
  %1090 = vmatprep.mubr.f32.mxu0 %v45
  %1091 = vmatmul.mubr.f32.gmra.mrb[0].mxu0 %v44
  %v1092 = vpop.f32.mrb[0].mxu0
  %v1093 = vadd.f32 0.0, %v1092
  %v1094 = vpop.f32.mrb[0].mxu0
  %v1095 = vadd.f32 0.0, %v1094
  %1096 = vmatprep.mubr.f32.mxu0 %v49
  %1097 = vmatmul.mubr.f32.gmra.mrb[0].mxu0 %v48
  %v1098 = vpop.f32.mrb[0].mxu0
  %v1099 = vadd.f32 0.0, %v1098
  %v1100 = vpop.f32.mrb[0].mxu0
  %v1101 = vadd.f32 0.0, %v1100
  %1102 = vdwg.mxu0
  %1103 = vmatprep.subr.mxu0 %v315
  %1104 = vmatpush1.msra.mxu0 %v314
  %1105 = vmatprep.subr.mxu0 %v323
  %1106 = vmatpush1.msra.mxu0 %v322
  %1107 = vmatprep.subr.mxu0 %v331
  %1108 = vmatpush1.msra.mxu0 %v330
  %1109 = vmatprep.subr.mxu0 %v339
  %1110 = vmatpush1.msra.mxu0 %v338
  %1111 = vmatprep.subr.mxu0 %v347
  %1112 = vmatpush1.msra.mxu0 %v346
  %1113 = vmatprep.subr.mxu0 %v355
  %1114 = vmatpush1.msra.mxu0 %v354
  %1115 = vmatprep.subr.mxu0 %v363
  %1116 = vmatpush1.msra.mxu0 %v362
  %1117 = vmatprep.subr.mxu0 %v371
  %1118 = vmatpush1.msra.mxu0 %v370
  %1119 = vmatprep.subr.mxu0 %v379
  %1120 = vmatpush1.msra.mxu0 %v378
  %1121 = vmatprep.subr.mxu0 %v387
  %1122 = vmatpush1.msra.mxu0 %v386
  %1123 = vmatprep.subr.mxu0 %v395
  %1124 = vmatpush1.msra.mxu0 %v394
  %1125 = vmatprep.subr.mxu0 %v403
  %1126 = vmatpush1.msra.mxu0 %v402
  %1127 = vmatprep.subr.mxu0 %v411
  %1128 = vmatpush1.msra.mxu0 %v410
  %1129 = vmatprep.subr.mxu0 %v419
  %1130 = vmatpush1.msra.mxu0 %v418
  %1131 = vmatprep.subr.mxu0 %v427
  %1132 = vmatpush1.msra.mxu0 %v426
  %1133 = vmatprep.subr.mxu0 %v435
  %1134 = vmatpush1.msra.mxu0 %v434
  %1135 = vmatprep.subr.mxu0 %v443
  %1136 = vmatpush1.msra.mxu0 %v442
  %1137 = vmatprep.subr.mxu0 %v451
  %1138 = vmatpush1.msra.mxu0 %v450
  %1139 = vmatprep.subr.mxu0 %v459
  %1140 = vmatpush1.msra.mxu0 %v458
  %1141 = vmatprep.subr.mxu0 %v467
  %1142 = vmatpush1.msra.mxu0 %v466
  %1143 = vmatprep.subr.mxu0 %v475
  %1144 = vmatpush1.msra.mxu0 %v474
  %1145 = vmatprep.subr.mxu0 %v483
  %1146 = vmatpush1.msra.mxu0 %v482
  %1147 = vmatprep.subr.mxu0 %v491
  %1148 = vmatpush1.msra.mxu0 %v490
  %1149 = vmatprep.subr.mxu0 %v499
  %1150 = vmatpush1.msra.mxu0 %v498
  %1151 = vmatprep.subr.mxu0 %v507
  %1152 = vmatpush1.msra.mxu0 %v506
  %1153 = vmatprep.subr.mxu0 %v515
  %1154 = vmatpush1.msra.mxu0 %v514
  %1155 = vmatprep.subr.mxu0 %v523
  %1156 = vmatpush1.msra.mxu0 %v522
  %1157 = vmatprep.subr.mxu0 %v531
  %1158 = vmatpush1.msra.mxu0 %v530
  %1159 = vmatprep.subr.mxu0 %v539
  %1160 = vmatpush1.msra.mxu0 %v538
  %1161 = vmatprep.subr.mxu0 %v547
  %1162 = vmatpush1.msra.mxu0 %v546
  %1163 = vmatprep.subr.mxu0 %v555
  %1164 = vmatpush1.msra.mxu0 %v554
  %1165 = vmatprep.subr.mxu0 %v563
  %1166 = vmatpush1.msra.mxu0 %v562
  %1167 = vmatprep.mubr.f32.mxu0 %v47
  %1168 = vmatmul.mubr.f32.gmra.mrb[0].mxu0 %v46
  %v1169 = vpop.f32.mrb[0].mxu0
  %v1170 = vadd.f32 %v1093, %v1169
  %v1171 = vpop.f32.mrb[0].mxu0
  %v1172 = vadd.f32 %v1095, %v1171
  %1173 = vmatprep.mubr.f32.mxu0 %v51
  %1174 = vmatmul.mubr.f32.gmra.mrb[0].mxu0 %v50
  %v1175 = vpop.f32.mrb[0].mxu0
  %v1176 = vadd.f32 %v1099, %v1175
  %v1177 = vpop.f32.mrb[0].mxu0
  %v1178 = vadd.f32 %v1101, %v1177
  %1179 = vdwg.mxu0
  %v1180 = vld [vmem:[%s5] sm:$0x3]
  %v1181 = vld [vmem:[%s6] sm:$0x3]
  %v1182 = vadd.f32 %v708, %v714
  %v1183 = vadd.f32 %v1182, %v862
  %v1184 = vadd.f32 %v1183, %v868
  %v1185 = vadd.f32 %v1184, %v1016
  %v1186 = vadd.f32 %v1185, %v1022
  %v1187 = vadd.f32 %v1186, %v1170
  %v1188 = vadd.f32 %v1187, %v1176
  %v1189 = vrot.slane %v1188, 4
  %v1190 = vadd.f32 %v1188, %v1189
  %v1191 = vrot.slane %v1190, 2
  %v1192 = vadd.f32 %v1190, %v1191
  %v1193 = vrot.slane %v1192, 1
  %v1194 = vadd.f32 %v1192, %v1193
  %v1195 = vadd.f32 %v710, %v716
  %v1196 = vadd.f32 %v1195, %v864
  %v1197 = vadd.f32 %v1196, %v870
  %v1198 = vadd.f32 %v1197, %v1018
  %v1199 = vadd.f32 %v1198, %v1024
  %v1200 = vadd.f32 %v1199, %v1172
  %v1201 = vadd.f32 %v1200, %v1178
  %v1202 = vrot.slane %v1201, 4
  %v1203 = vadd.f32 %v1201, %v1202
  %v1204 = vrot.slane %v1203, 2
  %v1205 = vadd.f32 %v1203, %v1204
  %v1206 = vrot.slane %v1205, 1
  %v1207 = vadd.f32 %v1205, %v1206
  %v1208 = vmul.f32 %v708, %v708
  %v1209 = vmul.f32 %v710, %v710
  %v1210 = vmul.f32 %v714, %v714
  %v1211 = vmul.f32 %v716, %v716
  %v1212 = vmul.f32 %v862, %v862
  %v1213 = vmul.f32 %v864, %v864
  %v1214 = vmul.f32 %v868, %v868
  %v1215 = vmul.f32 %v870, %v870
  %v1216 = vmul.f32 %v1016, %v1016
  %v1217 = vmul.f32 %v1018, %v1018
  %v1218 = vmul.f32 %v1022, %v1022
  %v1219 = vmul.f32 %v1024, %v1024
  %v1220 = vmul.f32 %v1170, %v1170
  %v1221 = vmul.f32 %v1172, %v1172
  %v1222 = vmul.f32 %v1176, %v1176
  %v1223 = vmul.f32 %v1178, %v1178
  %v1224 = vadd.f32 %v1208, %v1210
  %v1225 = vadd.f32 %v1224, %v1212
  %v1226 = vadd.f32 %v1225, %v1214
  %v1227 = vadd.f32 %v1226, %v1216
  %v1228 = vadd.f32 %v1227, %v1218
  %v1229 = vadd.f32 %v1228, %v1220
  %v1230 = vadd.f32 %v1229, %v1222
  %v1231 = vrot.slane %v1230, 4
  %v1232 = vadd.f32 %v1230, %v1231
  %v1233 = vrot.slane %v1232, 2
  %v1234 = vadd.f32 %v1232, %v1233
  %v1235 = vrot.slane %v1234, 1
  %v1236 = vadd.f32 %v1234, %v1235
  %v1237 = vadd.f32 %v1209, %v1211
  %v1238 = vadd.f32 %v1237, %v1213
  %v1239 = vadd.f32 %v1238, %v1215
  %v1240 = vadd.f32 %v1239, %v1217
  %v1241 = vadd.f32 %v1240, %v1219
  %v1242 = vadd.f32 %v1241, %v1221
  %v1243 = vadd.f32 %v1242, %v1223
  %v1244 = vrot.slane %v1243, 4
  %v1245 = vadd.f32 %v1243, %v1244
  %v1246 = vrot.slane %v1245, 2
  %v1247 = vadd.f32 %v1245, %v1246
  %v1248 = vrot.slane %v1247, 1
  %v1249 = vadd.f32 %v1247, %v1248
  %v1250 = vmul.f32 %v1194, 0.020833334
  %v1251 = vmul.f32 %v1207, 0.020833334
  %v1252 = vmul.f32 %v1236, 0.020833334
  %v1253 = vmul.f32 %v1249, 0.020833334
  %v1254 = vmul.f32 %v1250, %v1250
  %v1255 = vmul.f32 %v1251, %v1251
  %v1256 = vsub.f32 %v1252, %v1254
  %v1257 = vsub.f32 %v1253, %v1255
  %v1258 = vmax.f32 %v1256, 0.0
  %v1259 = vmax.f32 %v1257, 0.0
  %v1260 = vsub.f32 %v708, %v1250
  %v1261 = vsub.f32 %v710, %v1251
  %v1262 = vsub.f32 %v714, %v1250
  %v1263 = vsub.f32 %v716, %v1251
  %v1264 = vsub.f32 %v862, %v1250
  %v1265 = vsub.f32 %v864, %v1251
  %v1266 = vsub.f32 %v868, %v1250
  %v1267 = vsub.f32 %v870, %v1251
  %v1268 = vsub.f32 %v1016, %v1250
  %v1269 = vsub.f32 %v1018, %v1251
  %v1270 = vsub.f32 %v1022, %v1250
  %v1271 = vsub.f32 %v1024, %v1251
  %v1272 = vsub.f32 %v1170, %v1250
  %v1273 = vsub.f32 %v1172, %v1251
  %v1274 = vsub.f32 %v1176, %v1250
  %v1275 = vsub.f32 %v1178, %v1251
  %v1276 = vadd.f32 %v1258, 1e-05
  %v1277 = vadd.f32 %v1259, 1e-05
  %v1278 = vrsqrt.pop %v1276
  %v1279 = vrsqrt.pop %v1277
  %v1280 = vmul.f32 %v1260, %v1278
  %v1281 = vmul.f32 %v1261, %v1279
  %v1282 = vmul.f32 %v1262, %v1278
  %v1283 = vmul.f32 %v1263, %v1279
  %v1284 = vmul.f32 %v1264, %v1278
  %v1285 = vmul.f32 %v1265, %v1279
  %v1286 = vmul.f32 %v1266, %v1278
  %v1287 = vmul.f32 %v1267, %v1279
  %v1288 = vmul.f32 %v1268, %v1278
  %v1289 = vmul.f32 %v1269, %v1279
  %v1290 = vmul.f32 %v1270, %v1278
  %v1291 = vmul.f32 %v1271, %v1279
  %v1292 = vmul.f32 %v1272, %v1278
  %v1293 = vmul.f32 %v1273, %v1279
  %v1294 = vmul.f32 %v1274, %v1278
  %v1295 = vmul.f32 %v1275, %v1279
  %v1297 = vlaneseq
  %v1298 = vshrl.u32 %v1297, 7
  %v1299 = vsub.s32 0, %v1298
  %v1300 = vrot.slane %v1180, %v1299
  %v1301 = vlaneseq
  %v1302 = vshrl.u32 %v1301, 7
  %v1303 = vsub.s32 1, %v1302
  %v1304 = vrot.slane %v1180, %v1303
  %v1307 = vmul.f32 %v1280, %v1300
  %v1308 = vmul.f32 %v1281, %v1304
  %v1309 = vmul.f32 %v1282, %v1300
  %v1310 = vmul.f32 %v1283, %v1304
  %v1311 = vmul.f32 %v1284, %v1300
  %v1312 = vmul.f32 %v1285, %v1304
  %v1313 = vmul.f32 %v1286, %v1300
  %v1314 = vmul.f32 %v1287, %v1304
  %v1315 = vmul.f32 %v1288, %v1300
  %v1316 = vmul.f32 %v1289, %v1304
  %v1317 = vmul.f32 %v1290, %v1300
  %v1318 = vmul.f32 %v1291, %v1304
  %v1319 = vmul.f32 %v1292, %v1300
  %v1320 = vmul.f32 %v1293, %v1304
  %v1321 = vmul.f32 %v1294, %v1300
  %v1322 = vmul.f32 %v1295, %v1304
  %v1324 = vlaneseq
  %v1325 = vshrl.u32 %v1324, 7
  %v1326 = vsub.s32 0, %v1325
  %v1327 = vrot.slane %v1181, %v1326
  %v1328 = vlaneseq
  %v1329 = vshrl.u32 %v1328, 7
  %v1330 = vsub.s32 1, %v1329
  %v1331 = vrot.slane %v1181, %v1330
  %v1334 = vadd.f32 %v1307, %v1327
  %v1335 = vadd.f32 %v1308, %v1331
  %v1336 = vadd.f32 %v1309, %v1327
  %v1337 = vadd.f32 %v1310, %v1331
  %v1338 = vadd.f32 %v1311, %v1327
  %v1339 = vadd.f32 %v1312, %v1331
  %v1340 = vadd.f32 %v1313, %v1327
  %v1341 = vadd.f32 %v1314, %v1331
  %v1342 = vadd.f32 %v1315, %v1327
  %v1343 = vadd.f32 %v1316, %v1331
  %v1344 = vadd.f32 %v1317, %v1327
  %v1345 = vadd.f32 %v1318, %v1331
  %v1346 = vadd.f32 %v1319, %v1327
  %v1347 = vadd.f32 %v1320, %v1331
  %v1348 = vadd.f32 %v1321, %v1327
  %v1349 = vadd.f32 %v1322, %v1331
  %v1350 = vmax.f32 %v1334, 0.0
  %v1351 = vmax.f32 %v1335, 0.0
  %v1352 = vmax.f32 %v1336, 0.0
  %v1353 = vmax.f32 %v1337, 0.0
  %v1354 = vmax.f32 %v1338, 0.0
  %v1355 = vmax.f32 %v1339, 0.0
  %v1356 = vmax.f32 %v1340, 0.0
  %v1357 = vmax.f32 %v1341, 0.0
  %v1358 = vmax.f32 %v1342, 0.0
  %v1359 = vmax.f32 %v1343, 0.0
  %v1360 = vmax.f32 %v1344, 0.0
  %v1361 = vmax.f32 %v1345, 0.0
  %v1362 = vmax.f32 %v1346, 0.0
  %v1363 = vmax.f32 %v1347, 0.0
  %v1364 = vmax.f32 %v1348, 0.0
  %v1365 = vmax.f32 %v1349, 0.0
  %v1366 = vlaneseq
  %v1367 = vshrl.u32 %v1366, 7
  %v1368 = vadd.s32 %v1367, 8
  %v1369 = vadd.s32 %v1367, 16
  %v1370 = vadd.s32 %v1367, 24
  %v1371 = vadd.s32 %v1367, 32
  %v1372 = vadd.s32 %v1367, 40
  %v1373 = vadd.s32 %v1367, 48
  %v1374 = vadd.s32 %v1367, 56
  %vm1375 = vcmp.lt.s32.totalorder %v1367, 0
  %v1376 = vsub.s32 0, %v1367
  %v1377 = vsel %vm1375, %v1376, %v1367
  %v1378 = vshrl.u32 %v1377, 4
  %v1379 = vand.u32 %v1377, 15
  %v1380 = vsub.s32 0, %v1379
  %v1381 = vsel %vm1375, %v1380, %v1379
  %vm1382 = vcmp.lt.s32.totalorder %v1368, 0
  %v1383 = vsub.s32 0, %v1368
  %v1384 = vsel %vm1382, %v1383, %v1368
  %v1385 = vshrl.u32 %v1384, 4
  %v1386 = vand.u32 %v1384, 15
  %v1387 = vsub.s32 0, %v1386
  %v1388 = vsel %vm1382, %v1387, %v1386
  %vm1389 = vcmp.lt.s32.totalorder %v1369, 0
  %v1390 = vsub.s32 0, %v1369
  %v1391 = vsel %vm1389, %v1390, %v1369
  %v1392 = vshrl.u32 %v1391, 4
  %v1393 = vand.u32 %v1391, 15
  %v1394 = vsub.s32 0, %v1393
  %v1395 = vsel %vm1389, %v1394, %v1393
  %vm1396 = vcmp.lt.s32.totalorder %v1370, 0
  %v1397 = vsub.s32 0, %v1370
  %v1398 = vsel %vm1396, %v1397, %v1370
  %v1399 = vshrl.u32 %v1398, 4
  %v1400 = vand.u32 %v1398, 15
  %v1401 = vsub.s32 0, %v1400
  %v1402 = vsel %vm1396, %v1401, %v1400
  %vm1403 = vcmp.lt.s32.totalorder %v1371, 0
  %v1404 = vsub.s32 0, %v1371
  %v1405 = vsel %vm1403, %v1404, %v1371
  %v1406 = vshrl.u32 %v1405, 4
  %v1407 = vand.u32 %v1405, 15
  %v1408 = vsub.s32 0, %v1407
  %v1409 = vsel %vm1403, %v1408, %v1407
  %vm1410 = vcmp.lt.s32.totalorder %v1372, 0
  %v1411 = vsub.s32 0, %v1372
  %v1412 = vsel %vm1410, %v1411, %v1372
  %v1413 = vshrl.u32 %v1412, 4
  %v1414 = vand.u32 %v1412, 15
  %v1415 = vsub.s32 0, %v1414
  %v1416 = vsel %vm1410, %v1415, %v1414
  %vm1417 = vcmp.lt.s32.totalorder %v1373, 0
  %v1418 = vsub.s32 0, %v1373
  %v1419 = vsel %vm1417, %v1418, %v1373
  %v1420 = vshrl.u32 %v1419, 4
  %v1421 = vand.u32 %v1419, 15
  %v1422 = vsub.s32 0, %v1421
  %v1423 = vsel %vm1417, %v1422, %v1421
  %vm1424 = vcmp.lt.s32.totalorder %v1374, 0
  %v1425 = vsub.s32 0, %v1374
  %v1426 = vsel %vm1424, %v1425, %v1374
  %v1427 = vshrl.u32 %v1426, 4
  %v1428 = vand.u32 %v1426, 15
  %v1429 = vsub.s32 0, %v1428
  %v1430 = vsel %vm1424, %v1429, %v1428
  %vm1431 = vcmp.ne.s32.totalorder %v1381, 0
  %vm1432 = vcmp.ne.s32.totalorder %v1388, 0
  %vm1433 = vcmp.ne.s32.totalorder %v1395, 0
  %vm1434 = vcmp.ne.s32.totalorder %v1402, 0
  %vm1435 = vcmp.ne.s32.totalorder %v1409, 0
  %vm1436 = vcmp.ne.s32.totalorder %v1416, 0
  %vm1437 = vcmp.ne.s32.totalorder %v1423, 0
  %vm1438 = vcmp.ne.s32.totalorder %v1430, 0
  %vm1439 = vcmp.lt.s32.totalorder %v1381, 0
  %vm1440 = vcmp.lt.s32.totalorder %v1388, 0
  %vm1441 = vcmp.lt.s32.totalorder %v1395, 0
  %vm1442 = vcmp.lt.s32.totalorder %v1402, 0
  %vm1443 = vcmp.lt.s32.totalorder %v1409, 0
  %vm1444 = vcmp.lt.s32.totalorder %v1416, 0
  %vm1445 = vcmp.lt.s32.totalorder %v1423, 0
  %vm1446 = vcmp.lt.s32.totalorder %v1430, 0
  %vm1447 = vmand %vm1439, %vm1431
  %vm1448 = vmand %vm1440, %vm1432
  %vm1449 = vmand %vm1441, %vm1433
  %vm1450 = vmand %vm1442, %vm1434
  %vm1451 = vmand %vm1443, %vm1435
  %vm1452 = vmand %vm1444, %vm1436
  %vm1453 = vmand %vm1445, %vm1437
  %vm1454 = vmand %vm1446, %vm1438
  %v1455 = vadd.s32 %v1381, 16
  %v1456 = vadd.s32 %v1388, 16
  %v1457 = vadd.s32 %v1395, 16
  %v1458 = vadd.s32 %v1402, 16
  %v1459 = vadd.s32 %v1409, 16
  %v1460 = vadd.s32 %v1416, 16
  %v1461 = vadd.s32 %v1423, 16
  %v1462 = vadd.s32 %v1430, 16
  %v1463 = vsel %vm1447, %v1455, %v1381
  %v1464 = vsel %vm1448, %v1456, %v1388
  %v1465 = vsel %vm1449, %v1457, %v1395
  %v1466 = vsel %vm1450, %v1458, %v1402
  %v1467 = vsel %vm1451, %v1459, %v1409
  %v1468 = vsel %vm1452, %v1460, %v1416
  %v1469 = vsel %vm1453, %v1461, %v1423
  %v1470 = vsel %vm1454, %v1462, %v1430
  %vm1471 = vcmp.lt.s32.totalorder %v1463, 12
  %vm1472 = vcmp.lt.s32.totalorder %v1464, 12
  %vm1473 = vcmp.lt.s32.totalorder %v1465, 12
  %vm1474 = vcmp.lt.s32.totalorder %v1466, 12
  %vm1475 = vcmp.lt.s32.totalorder %v1467, 12
  %vm1476 = vcmp.lt.s32.totalorder %v1468, 12
  %vm1477 = vcmp.lt.s32.totalorder %v1469, 12
  %vm1478 = vcmp.lt.s32.totalorder %v1470, 12
  %v1479 = vsel %vm1471, 1, 0
  %v1480 = vsel %vm1472, 1, 0
  %v1481 = vsel %vm1473, 1, 0
  %v1482 = vsel %vm1474, 1, 0
  %v1483 = vsel %vm1475, 1, 0
  %v1484 = vsel %vm1476, 1, 0
  %v1485 = vsel %vm1477, 1, 0
  %v1486 = vsel %vm1478, 1, 0
  %vm1487 = vcmp.eq.s32.totalorder %v1479, 1
  %vm1488 = vcmp.eq.s32.totalorder %v1480, 1
  %vm1489 = vcmp.eq.s32.totalorder %v1481, 1
  %vm1490 = vcmp.eq.s32.totalorder %v1482, 1
  %vm1491 = vcmp.eq.s32.totalorder %v1483, 1
  %vm1492 = vcmp.eq.s32.totalorder %v1484, 1
  %vm1493 = vcmp.eq.s32.totalorder %v1485, 1
  %vm1494 = vcmp.eq.s32.totalorder %v1486, 1
  %v1495 = vsel %vm1487, %v1350, 0.0
  %v1496 = vsel %vm1487, %v1351, 0.0
  %v1497 = vsel %vm1488, %v1352, 0.0
  %v1498 = vsel %vm1488, %v1353, 0.0
  %v1499 = vsel %vm1489, %v1354, 0.0
  %v1500 = vsel %vm1489, %v1355, 0.0
  %v1501 = vsel %vm1490, %v1356, 0.0
  %v1502 = vsel %vm1490, %v1357, 0.0
  %v1503 = vsel %vm1491, %v1358, 0.0
  %v1504 = vsel %vm1491, %v1359, 0.0
  %v1505 = vsel %vm1492, %v1360, 0.0
  %v1506 = vsel %vm1492, %v1361, 0.0
  %v1507 = vsel %vm1493, %v1362, 0.0
  %v1508 = vsel %vm1493, %v1363, 0.0
  %v1509 = vsel %vm1494, %v1364, 0.0
  %v1510 = vsel %vm1494, %v1365, 0.0
  %v1511 = vld [vmem:[%s2] sm:$0xff]
  %v1512 = vld [vmem:[%s2 + $0x8] sm:$0xff]
  %v1513 = vld [vmem:[%s2 + $0x10] sm:$0xff]
  %v1514 = vld [vmem:[%s2 + $0x18] sm:$0xff]
  %v1515 = vld [vmem:[%s2 + $0x20] sm:$0xff]
  %v1516 = vld [vmem:[%s2 + $0x28] sm:$0xff]
  %v1517 = vld [vmem:[%s2 + $0x30] sm:$0xff]
  %v1518 = vld [vmem:[%s2 + $0x38] sm:$0xff]
  %v1519 = vld [vmem:[%s2 + $0x40] sm:$0xff]
  %v1520 = vld [vmem:[%s2 + $0x48] sm:$0xff]
  %v1521 = vld [vmem:[%s2 + $0x50] sm:$0xff]
  %v1522 = vld [vmem:[%s2 + $0x58] sm:$0xff]
  %v1523 = vld [vmem:[%s2 + $0x60] sm:$0xff]
  %v1524 = vld [vmem:[%s2 + $0x68] sm:$0xff]
  %v1525 = vld [vmem:[%s2 + $0x70] sm:$0xff]
  %v1526 = vld [vmem:[%s2 + $0x78] sm:$0xff]
  %v1527 = vld [vmem:[%s2 + $0x80] sm:$0xff]
  %v1528 = vld [vmem:[%s2 + $0x88] sm:$0xff]
  %v1529 = vld [vmem:[%s2 + $0x90] sm:$0xff]
  %v1530 = vld [vmem:[%s2 + $0x98] sm:$0xff]
  %v1531 = vld [vmem:[%s2 + $0xa0] sm:$0xff]
  %v1532 = vld [vmem:[%s2 + $0xa8] sm:$0xff]
  %v1533 = vld [vmem:[%s2 + $0xb0] sm:$0xff]
  %v1534 = vld [vmem:[%s2 + $0xb8] sm:$0xff]
  %v1535 = vld [vmem:[%s2 + $0xc0] sm:$0xff]
  %v1536 = vld [vmem:[%s2 + $0xc8] sm:$0xff]
  %v1537 = vld [vmem:[%s2 + $0xd0] sm:$0xff]
  %v1538 = vld [vmem:[%s2 + $0xd8] sm:$0xff]
  %v1539 = vld [vmem:[%s2 + $0xe0] sm:$0xff]
  %v1540 = vld [vmem:[%s2 + $0xe8] sm:$0xff]
  %v1541 = vld [vmem:[%s2 + $0xf0] sm:$0xff]
  %v1542 = vld [vmem:[%s2 + $0xf8] sm:$0xff]
  %v1543 = vld [vmem:[%s2 + $0x100] sm:$0xff]
  %v1544 = vld [vmem:[%s2 + $0x108] sm:$0xff]
  %v1545 = vld [vmem:[%s2 + $0x110] sm:$0xff]
  %v1546 = vld [vmem:[%s2 + $0x118] sm:$0xff]
  %v1547 = vld [vmem:[%s2 + $0x120] sm:$0xff]
  %v1548 = vld [vmem:[%s2 + $0x128] sm:$0xff]
  %v1549 = vld [vmem:[%s2 + $0x130] sm:$0xff]
  %v1550 = vld [vmem:[%s2 + $0x138] sm:$0xff]
  %v1551 = vld [vmem:[%s2 + $0x140] sm:$0xff]
  %v1552 = vld [vmem:[%s2 + $0x148] sm:$0xff]
  %v1553 = vld [vmem:[%s2 + $0x150] sm:$0xff]
  %v1554 = vld [vmem:[%s2 + $0x158] sm:$0xff]
  %v1555 = vld [vmem:[%s2 + $0x160] sm:$0xff]
  %v1556 = vld [vmem:[%s2 + $0x168] sm:$0xff]
  %v1557 = vld [vmem:[%s2 + $0x170] sm:$0xff]
  %v1558 = vld [vmem:[%s2 + $0x178] sm:$0xff]
  %v1559 = vld [vmem:[%s2 + $0x180] sm:$0xff]
  %v1560 = vld [vmem:[%s2 + $0x188] sm:$0xff]
  %v1561 = vld [vmem:[%s2 + $0x190] sm:$0xff]
  %v1562 = vld [vmem:[%s2 + $0x198] sm:$0xff]
  %v1563 = vld [vmem:[%s2 + $0x1a0] sm:$0xff]
  %v1564 = vld [vmem:[%s2 + $0x1a8] sm:$0xff]
  %v1565 = vld [vmem:[%s2 + $0x1b0] sm:$0xff]
  %v1566 = vld [vmem:[%s2 + $0x1b8] sm:$0xff]
  %v1567 = vld [vmem:[%s2 + $0x1c0] sm:$0xff]
  %v1568 = vld [vmem:[%s2 + $0x1c8] sm:$0xff]
  %v1569 = vld [vmem:[%s2 + $0x1d0] sm:$0xff]
  %v1570 = vld [vmem:[%s2 + $0x1d8] sm:$0xff]
  %v1571 = vld [vmem:[%s2 + $0x1e0] sm:$0xff]
  %v1572 = vld [vmem:[%s2 + $0x1e8] sm:$0xff]
  %v1573 = vld [vmem:[%s2 + $0x1f0] sm:$0xff]
  %v1574 = vld [vmem:[%s2 + $0x1f8] sm:$0xff]
  %v1575 = vld [vmem:[%s2 + $0x200] sm:$0xff]
  %v1576 = vld [vmem:[%s2 + $0x208] sm:$0xff]
  %v1577 = vld [vmem:[%s2 + $0x210] sm:$0xff]
  %v1578 = vld [vmem:[%s2 + $0x218] sm:$0xff]
  %v1579 = vld [vmem:[%s2 + $0x220] sm:$0xff]
  %v1580 = vld [vmem:[%s2 + $0x228] sm:$0xff]
  %v1581 = vld [vmem:[%s2 + $0x230] sm:$0xff]
  %v1582 = vld [vmem:[%s2 + $0x238] sm:$0xff]
  %v1583 = vld [vmem:[%s2 + $0x240] sm:$0xff]
  %v1584 = vld [vmem:[%s2 + $0x248] sm:$0xff]
  %v1585 = vld [vmem:[%s2 + $0x250] sm:$0xff]
  %v1586 = vld [vmem:[%s2 + $0x258] sm:$0xff]
  %v1587 = vld [vmem:[%s2 + $0x260] sm:$0xff]
  %v1588 = vld [vmem:[%s2 + $0x268] sm:$0xff]
  %v1589 = vld [vmem:[%s2 + $0x270] sm:$0xff]
  %v1590 = vld [vmem:[%s2 + $0x278] sm:$0xff]
  %v1591 = vld [vmem:[%s2 + $0x280] sm:$0xff]
  %v1592 = vld [vmem:[%s2 + $0x288] sm:$0xff]
  %v1593 = vld [vmem:[%s2 + $0x290] sm:$0xff]
  %v1594 = vld [vmem:[%s2 + $0x298] sm:$0xff]
  %v1595 = vld [vmem:[%s2 + $0x2a0] sm:$0xff]
  %v1596 = vld [vmem:[%s2 + $0x2a8] sm:$0xff]
  %v1597 = vld [vmem:[%s2 + $0x2b0] sm:$0xff]
  %v1598 = vld [vmem:[%s2 + $0x2b8] sm:$0xff]
  %v1599 = vld [vmem:[%s2 + $0x2c0] sm:$0xff]
  %v1600 = vld [vmem:[%s2 + $0x2c8] sm:$0xff]
  %v1601 = vld [vmem:[%s2 + $0x2d0] sm:$0xff]
  %v1602 = vld [vmem:[%s2 + $0x2d8] sm:$0xff]
  %v1603 = vld [vmem:[%s2 + $0x2e0] sm:$0xff]
  %v1604 = vld [vmem:[%s2 + $0x2e8] sm:$0xff]
  %v1605 = vld [vmem:[%s2 + $0x2f0] sm:$0xff]
  %v1606 = vld [vmem:[%s2 + $0x2f8] sm:$0xff]
  %v1607 = vld [vmem:[%s2 + $0x300] sm:$0xff]
  %v1608 = vld [vmem:[%s2 + $0x308] sm:$0xff]
  %v1609 = vld [vmem:[%s2 + $0x310] sm:$0xff]
  %v1610 = vld [vmem:[%s2 + $0x318] sm:$0xff]
  %v1611 = vld [vmem:[%s2 + $0x320] sm:$0xff]
  %v1612 = vld [vmem:[%s2 + $0x328] sm:$0xff]
  %v1613 = vld [vmem:[%s2 + $0x330] sm:$0xff]
  %v1614 = vld [vmem:[%s2 + $0x338] sm:$0xff]
  %v1615 = vld [vmem:[%s2 + $0x340] sm:$0xff]
  %v1616 = vld [vmem:[%s2 + $0x348] sm:$0xff]
  %v1617 = vld [vmem:[%s2 + $0x350] sm:$0xff]
  %v1618 = vld [vmem:[%s2 + $0x358] sm:$0xff]
  %v1619 = vld [vmem:[%s2 + $0x360] sm:$0xff]
  %v1620 = vld [vmem:[%s2 + $0x368] sm:$0xff]
  %v1621 = vld [vmem:[%s2 + $0x370] sm:$0xff]
  %v1622 = vld [vmem:[%s2 + $0x378] sm:$0xff]
  %v1623 = vld [vmem:[%s2 + $0x380] sm:$0xff]
  %v1624 = vld [vmem:[%s2 + $0x388] sm:$0xff]
  %v1625 = vld [vmem:[%s2 + $0x390] sm:$0xff]
  %v1626 = vld [vmem:[%s2 + $0x398] sm:$0xff]
  %v1627 = vld [vmem:[%s2 + $0x3a0] sm:$0xff]
  %v1628 = vld [vmem:[%s2 + $0x3a8] sm:$0xff]
  %v1629 = vld [vmem:[%s2 + $0x3b0] sm:$0xff]
  %v1630 = vld [vmem:[%s2 + $0x3b8] sm:$0xff]
  %v1631 = vld [vmem:[%s2 + $0x3c0] sm:$0xff]
  %v1632 = vld [vmem:[%s2 + $0x3c8] sm:$0xff]
  %v1633 = vld [vmem:[%s2 + $0x3d0] sm:$0xff]
  %v1634 = vld [vmem:[%s2 + $0x3d8] sm:$0xff]
  %v1635 = vld [vmem:[%s2 + $0x3e0] sm:$0xff]
  %v1636 = vld [vmem:[%s2 + $0x3e8] sm:$0xff]
  %v1637 = vld [vmem:[%s2 + $0x3f0] sm:$0xff]
  %v1638 = vld [vmem:[%s2 + $0x3f8] sm:$0xff]
  %1639 = vmatprep.subr.mxu0 %v1512
  %1640 = vmatpush1.msra.mxu0 %v1511
  %1641 = vmatprep.subr.mxu0 %v1516
  %1642 = vmatpush1.msra.mxu0 %v1515
  %1643 = vmatprep.subr.mxu0 %v1520
  %1644 = vmatpush1.msra.mxu0 %v1519
  %1645 = vmatprep.subr.mxu0 %v1524
  %1646 = vmatpush1.msra.mxu0 %v1523
  %1647 = vmatprep.subr.mxu0 %v1528
  %1648 = vmatpush1.msra.mxu0 %v1527
  %1649 = vmatprep.subr.mxu0 %v1532
  %1650 = vmatpush1.msra.mxu0 %v1531
  %1651 = vmatprep.subr.mxu0 %v1536
  %1652 = vmatpush1.msra.mxu0 %v1535
  %1653 = vmatprep.subr.mxu0 %v1540
  %1654 = vmatpush1.msra.mxu0 %v1539
  %1655 = vmatprep.subr.mxu0 %v1544
  %1656 = vmatpush1.msra.mxu0 %v1543
  %1657 = vmatprep.subr.mxu0 %v1548
  %1658 = vmatpush1.msra.mxu0 %v1547
  %1659 = vmatprep.subr.mxu0 %v1552
  %1660 = vmatpush1.msra.mxu0 %v1551
  %1661 = vmatprep.subr.mxu0 %v1556
  %1662 = vmatpush1.msra.mxu0 %v1555
  %1663 = vmatprep.subr.mxu0 %v1560
  %1664 = vmatpush1.msra.mxu0 %v1559
  %1665 = vmatprep.subr.mxu0 %v1564
  %1666 = vmatpush1.msra.mxu0 %v1563
  %1667 = vmatprep.subr.mxu0 %v1568
  %1668 = vmatpush1.msra.mxu0 %v1567
  %1669 = vmatprep.subr.mxu0 %v1572
  %1670 = vmatpush1.msra.mxu0 %v1571
  %1671 = vmatprep.subr.mxu0 %v1576
  %1672 = vmatpush1.msra.mxu0 %v1575
  %1673 = vmatprep.subr.mxu0 %v1580
  %1674 = vmatpush1.msra.mxu0 %v1579
  %1675 = vmatprep.subr.mxu0 %v1584
  %1676 = vmatpush1.msra.mxu0 %v1583
  %1677 = vmatprep.subr.mxu0 %v1588
  %1678 = vmatpush1.msra.mxu0 %v1587
  %1679 = vmatprep.subr.mxu0 %v1592
  %1680 = vmatpush1.msra.mxu0 %v1591
  %1681 = vmatprep.subr.mxu0 %v1596
  %1682 = vmatpush1.msra.mxu0 %v1595
  %1683 = vmatprep.subr.mxu0 %v1600
  %1684 = vmatpush1.msra.mxu0 %v1599
  %1685 = vmatprep.subr.mxu0 %v1604
  %1686 = vmatpush1.msra.mxu0 %v1603
  %1687 = vmatprep.subr.mxu0 %v1608
  %1688 = vmatpush1.msra.mxu0 %v1607
  %1689 = vmatprep.subr.mxu0 %v1612
  %1690 = vmatpush1.msra.mxu0 %v1611
  %1691 = vmatprep.subr.mxu0 %v1616
  %1692 = vmatpush1.msra.mxu0 %v1615
  %1693 = vmatprep.subr.mxu0 %v1620
  %1694 = vmatpush1.msra.mxu0 %v1619
  %1695 = vmatprep.subr.mxu0 %v1624
  %1696 = vmatpush1.msra.mxu0 %v1623
  %1697 = vmatprep.subr.mxu0 %v1628
  %1698 = vmatpush1.msra.mxu0 %v1627
  %1699 = vmatprep.subr.mxu0 %v1632
  %1700 = vmatpush1.msra.mxu0 %v1631
  %1701 = vmatprep.subr.mxu0 %v1636
  %1702 = vmatpush1.msra.mxu0 %v1635
  %1703 = vmatprep.mubr.f32.mxu0 %v1496
  %1704 = vmatmul.mubr.f32.gmra.mrb[0].mxu0 %v1495
  %v1705 = vpop.f32.mrb[0].mxu0
  %v1706 = vadd.f32 0.0, %v1705
  %v1707 = vpop.f32.mrb[0].mxu0
  %v1708 = vadd.f32 0.0, %v1707
  %1709 = vmatprep.mubr.f32.mxu0 %v1498
  %1710 = vmatmul.mubr.f32.gmra.mrb[0].mxu0 %v1497
  %v1711 = vpop.f32.mrb[0].mxu0
  %v1712 = vadd.f32 0.0, %v1711
  %v1713 = vpop.f32.mrb[0].mxu0
  %v1714 = vadd.f32 0.0, %v1713
  %1715 = vmatprep.mubr.f32.mxu0 %v1500
  %1716 = vmatmul.mubr.f32.gmra.mrb[0].mxu0 %v1499
  %v1717 = vpop.f32.mrb[0].mxu0
  %v1718 = vadd.f32 0.0, %v1717
  %v1719 = vpop.f32.mrb[0].mxu0
  %v1720 = vadd.f32 0.0, %v1719
  %1721 = vmatprep.mubr.f32.mxu0 %v1502
  %1722 = vmatmul.mubr.f32.gmra.mrb[0].mxu0 %v1501
  %v1723 = vpop.f32.mrb[0].mxu0
  %v1724 = vadd.f32 0.0, %v1723
  %v1725 = vpop.f32.mrb[0].mxu0
  %v1726 = vadd.f32 0.0, %v1725
  %1727 = vmatprep.mubr.f32.mxu0 %v1504
  %1728 = vmatmul.mubr.f32.gmra.mrb[0].mxu0 %v1503
  %v1729 = vpop.f32.mrb[0].mxu0
  %v1730 = vadd.f32 0.0, %v1729
  %v1731 = vpop.f32.mrb[0].mxu0
  %v1732 = vadd.f32 0.0, %v1731
  %1733 = vmatprep.mubr.f32.mxu0 %v1506
  %1734 = vmatmul.mubr.f32.gmra.mrb[0].mxu0 %v1505
  %v1735 = vpop.f32.mrb[0].mxu0
  %v1736 = vadd.f32 0.0, %v1735
  %v1737 = vpop.f32.mrb[0].mxu0
  %v1738 = vadd.f32 0.0, %v1737
  %1739 = vmatprep.mubr.f32.mxu0 %v1508
  %1740 = vmatmul.mubr.f32.gmra.mrb[0].mxu0 %v1507
  %v1741 = vpop.f32.mrb[0].mxu0
  %v1742 = vadd.f32 0.0, %v1741
  %v1743 = vpop.f32.mrb[0].mxu0
  %v1744 = vadd.f32 0.0, %v1743
  %1745 = vmatprep.mubr.f32.mxu0 %v1510
  %1746 = vmatmul.mubr.f32.gmra.mrb[0].mxu0 %v1509
  %v1747 = vpop.f32.mrb[0].mxu0
  %v1748 = vadd.f32 0.0, %v1747
  %v1749 = vpop.f32.mrb[0].mxu0
  %v1750 = vadd.f32 0.0, %v1749
  %1751 = vdwg.mxu0
  %1752 = vmatprep.subr.mxu0 %v1514
  %1753 = vmatpush1.msra.mxu0 %v1513
  %1754 = vmatprep.subr.mxu0 %v1518
  %1755 = vmatpush1.msra.mxu0 %v1517
  %1756 = vmatprep.subr.mxu0 %v1522
  %1757 = vmatpush1.msra.mxu0 %v1521
  %1758 = vmatprep.subr.mxu0 %v1526
  %1759 = vmatpush1.msra.mxu0 %v1525
  %1760 = vmatprep.subr.mxu0 %v1530
  %1761 = vmatpush1.msra.mxu0 %v1529
  %1762 = vmatprep.subr.mxu0 %v1534
  %1763 = vmatpush1.msra.mxu0 %v1533
  %1764 = vmatprep.subr.mxu0 %v1538
  %1765 = vmatpush1.msra.mxu0 %v1537
  %1766 = vmatprep.subr.mxu0 %v1542
  %1767 = vmatpush1.msra.mxu0 %v1541
  %1768 = vmatprep.subr.mxu0 %v1546
  %1769 = vmatpush1.msra.mxu0 %v1545
  %1770 = vmatprep.subr.mxu0 %v1550
  %1771 = vmatpush1.msra.mxu0 %v1549
  %1772 = vmatprep.subr.mxu0 %v1554
  %1773 = vmatpush1.msra.mxu0 %v1553
  %1774 = vmatprep.subr.mxu0 %v1558
  %1775 = vmatpush1.msra.mxu0 %v1557
  %1776 = vmatprep.subr.mxu0 %v1562
  %1777 = vmatpush1.msra.mxu0 %v1561
  %1778 = vmatprep.subr.mxu0 %v1566
  %1779 = vmatpush1.msra.mxu0 %v1565
  %1780 = vmatprep.subr.mxu0 %v1570
  %1781 = vmatpush1.msra.mxu0 %v1569
  %1782 = vmatprep.subr.mxu0 %v1574
  %1783 = vmatpush1.msra.mxu0 %v1573
  %1784 = vmatprep.subr.mxu0 %v1578
  %1785 = vmatpush1.msra.mxu0 %v1577
  %1786 = vmatprep.subr.mxu0 %v1582
  %1787 = vmatpush1.msra.mxu0 %v1581
  %1788 = vmatprep.subr.mxu0 %v1586
  %1789 = vmatpush1.msra.mxu0 %v1585
  %1790 = vmatprep.subr.mxu0 %v1590
  %1791 = vmatpush1.msra.mxu0 %v1589
  %1792 = vmatprep.subr.mxu0 %v1594
  %1793 = vmatpush1.msra.mxu0 %v1593
  %1794 = vmatprep.subr.mxu0 %v1598
  %1795 = vmatpush1.msra.mxu0 %v1597
  %1796 = vmatprep.subr.mxu0 %v1602
  %1797 = vmatpush1.msra.mxu0 %v1601
  %1798 = vmatprep.subr.mxu0 %v1606
  %1799 = vmatpush1.msra.mxu0 %v1605
  %1800 = vmatprep.subr.mxu0 %v1610
  %1801 = vmatpush1.msra.mxu0 %v1609
  %1802 = vmatprep.subr.mxu0 %v1614
  %1803 = vmatpush1.msra.mxu0 %v1613
  %1804 = vmatprep.subr.mxu0 %v1618
  %1805 = vmatpush1.msra.mxu0 %v1617
  %1806 = vmatprep.subr.mxu0 %v1622
  %1807 = vmatpush1.msra.mxu0 %v1621
  %1808 = vmatprep.subr.mxu0 %v1626
  %1809 = vmatpush1.msra.mxu0 %v1625
  %1810 = vmatprep.subr.mxu0 %v1630
  %1811 = vmatpush1.msra.mxu0 %v1629
  %1812 = vmatprep.subr.mxu0 %v1634
  %1813 = vmatpush1.msra.mxu0 %v1633
  %1814 = vmatprep.subr.mxu0 %v1638
  %1815 = vmatpush1.msra.mxu0 %v1637
  %1816 = vmatprep.mubr.f32.mxu0 %v1496
  %1817 = vmatmul.mubr.f32.gmra.mrb[0].mxu0 %v1495
  %v1818 = vpop.f32.mrb[0].mxu0
  %v1819 = vadd.f32 0.0, %v1818
  %v1820 = vpop.f32.mrb[0].mxu0
  %v1821 = vadd.f32 0.0, %v1820
  %1822 = vmatprep.mubr.f32.mxu0 %v1498
  %1823 = vmatmul.mubr.f32.gmra.mrb[0].mxu0 %v1497
  %v1824 = vpop.f32.mrb[0].mxu0
  %v1825 = vadd.f32 0.0, %v1824
  %v1826 = vpop.f32.mrb[0].mxu0
  %v1827 = vadd.f32 0.0, %v1826
  %1828 = vmatprep.mubr.f32.mxu0 %v1500
  %1829 = vmatmul.mubr.f32.gmra.mrb[0].mxu0 %v1499
  %v1830 = vpop.f32.mrb[0].mxu0
  %v1831 = vadd.f32 0.0, %v1830
  %v1832 = vpop.f32.mrb[0].mxu0
  %v1833 = vadd.f32 0.0, %v1832
  %1834 = vmatprep.mubr.f32.mxu0 %v1502
  %1835 = vmatmul.mubr.f32.gmra.mrb[0].mxu0 %v1501
  %v1836 = vpop.f32.mrb[0].mxu0
  %v1837 = vadd.f32 0.0, %v1836
  %v1838 = vpop.f32.mrb[0].mxu0
  %v1839 = vadd.f32 0.0, %v1838
  %1840 = vmatprep.mubr.f32.mxu0 %v1504
  %1841 = vmatmul.mubr.f32.gmra.mrb[0].mxu0 %v1503
  %v1842 = vpop.f32.mrb[0].mxu0
  %v1843 = vadd.f32 0.0, %v1842
  %v1844 = vpop.f32.mrb[0].mxu0
  %v1845 = vadd.f32 0.0, %v1844
  %1846 = vmatprep.mubr.f32.mxu0 %v1506
  %1847 = vmatmul.mubr.f32.gmra.mrb[0].mxu0 %v1505
  %v1848 = vpop.f32.mrb[0].mxu0
  %v1849 = vadd.f32 0.0, %v1848
  %v1850 = vpop.f32.mrb[0].mxu0
  %v1851 = vadd.f32 0.0, %v1850
  %1852 = vmatprep.mubr.f32.mxu0 %v1508
  %1853 = vmatmul.mubr.f32.gmra.mrb[0].mxu0 %v1507
  %v1854 = vpop.f32.mrb[0].mxu0
  %v1855 = vadd.f32 0.0, %v1854
  %v1856 = vpop.f32.mrb[0].mxu0
  %v1857 = vadd.f32 0.0, %v1856
  %1858 = vmatprep.mubr.f32.mxu0 %v1510
  %1859 = vmatmul.mubr.f32.gmra.mrb[0].mxu0 %v1509
  %v1860 = vpop.f32.mrb[0].mxu0
  %v1861 = vadd.f32 0.0, %v1860
  %v1862 = vpop.f32.mrb[0].mxu0
  %v1863 = vadd.f32 0.0, %v1862
  %1864 = vdwg.mxu0
  %v1865 = vld [vmem:[%s7] sm:$0x1]
  %v1866 = vld [vmem:[%s8] sm:$0x1]
  %v1867 = vadd.f32 %v1706, %v1712
  %v1868 = vadd.f32 %v1867, %v1718
  %v1869 = vadd.f32 %v1868, %v1724
  %v1870 = vadd.f32 %v1869, %v1730
  %v1871 = vadd.f32 %v1870, %v1736
  %v1872 = vadd.f32 %v1871, %v1742
  %v1873 = vadd.f32 %v1872, %v1748
  %v1874 = vadd.f32 %v1873, %v1708
  %v1875 = vadd.f32 %v1874, %v1714
  %v1876 = vadd.f32 %v1875, %v1720
  %v1877 = vadd.f32 %v1876, %v1726
  %v1878 = vadd.f32 %v1877, %v1732
  %v1879 = vadd.f32 %v1878, %v1738
  %v1880 = vadd.f32 %v1879, %v1744
  %v1881 = vadd.f32 %v1880, %v1750
  %v1882 = vadd.f32 %v1881, %v1819
  %v1883 = vadd.f32 %v1882, %v1825
  %v1884 = vadd.f32 %v1883, %v1831
  %v1885 = vadd.f32 %v1884, %v1837
  %v1886 = vadd.f32 %v1885, %v1843
  %v1887 = vadd.f32 %v1886, %v1849
  %v1888 = vadd.f32 %v1887, %v1855
  %v1889 = vadd.f32 %v1888, %v1861
  %v1890 = vadd.f32 %v1889, %v1821
  %v1891 = vadd.f32 %v1890, %v1827
  %v1892 = vadd.f32 %v1891, %v1833
  %v1893 = vadd.f32 %v1892, %v1839
  %v1894 = vadd.f32 %v1893, %v1845
  %v1895 = vadd.f32 %v1894, %v1851
  %v1896 = vadd.f32 %v1895, %v1857
  %v1897 = vadd.f32 %v1896, %v1863
  %v1898 = vrot.slane %v1897, 4
  %v1899 = vadd.f32 %v1897, %v1898
  %v1900 = vrot.slane %v1899, 2
  %v1901 = vadd.f32 %v1899, %v1900
  %v1902 = vrot.slane %v1901, 1
  %v1903 = vadd.f32 %v1901, %v1902
  %v1904 = vmul.f32 %v1706, %v1706
  %v1905 = vmul.f32 %v1712, %v1712
  %v1906 = vmul.f32 %v1718, %v1718
  %v1907 = vmul.f32 %v1724, %v1724
  %v1908 = vmul.f32 %v1730, %v1730
  %v1909 = vmul.f32 %v1736, %v1736
  %v1910 = vmul.f32 %v1742, %v1742
  %v1911 = vmul.f32 %v1748, %v1748
  %v1912 = vmul.f32 %v1708, %v1708
  %v1913 = vmul.f32 %v1714, %v1714
  %v1914 = vmul.f32 %v1720, %v1720
  %v1915 = vmul.f32 %v1726, %v1726
  %v1916 = vmul.f32 %v1732, %v1732
  %v1917 = vmul.f32 %v1738, %v1738
  %v1918 = vmul.f32 %v1744, %v1744
  %v1919 = vmul.f32 %v1750, %v1750
  %v1920 = vmul.f32 %v1819, %v1819
  %v1921 = vmul.f32 %v1825, %v1825
  %v1922 = vmul.f32 %v1831, %v1831
  %v1923 = vmul.f32 %v1837, %v1837
  %v1924 = vmul.f32 %v1843, %v1843
  %v1925 = vmul.f32 %v1849, %v1849
  %v1926 = vmul.f32 %v1855, %v1855
  %v1927 = vmul.f32 %v1861, %v1861
  %v1928 = vmul.f32 %v1821, %v1821
  %v1929 = vmul.f32 %v1827, %v1827
  %v1930 = vmul.f32 %v1833, %v1833
  %v1931 = vmul.f32 %v1839, %v1839
  %v1932 = vmul.f32 %v1845, %v1845
  %v1933 = vmul.f32 %v1851, %v1851
  %v1934 = vmul.f32 %v1857, %v1857
  %v1935 = vmul.f32 %v1863, %v1863
  %v1936 = vadd.f32 %v1904, %v1905
  %v1937 = vadd.f32 %v1936, %v1906
  %v1938 = vadd.f32 %v1937, %v1907
  %v1939 = vadd.f32 %v1938, %v1908
  %v1940 = vadd.f32 %v1939, %v1909
  %v1941 = vadd.f32 %v1940, %v1910
  %v1942 = vadd.f32 %v1941, %v1911
  %v1943 = vadd.f32 %v1942, %v1912
  %v1944 = vadd.f32 %v1943, %v1913
  %v1945 = vadd.f32 %v1944, %v1914
  %v1946 = vadd.f32 %v1945, %v1915
  %v1947 = vadd.f32 %v1946, %v1916
  %v1948 = vadd.f32 %v1947, %v1917
  %v1949 = vadd.f32 %v1948, %v1918
  %v1950 = vadd.f32 %v1949, %v1919
  %v1951 = vadd.f32 %v1950, %v1920
  %v1952 = vadd.f32 %v1951, %v1921
  %v1953 = vadd.f32 %v1952, %v1922
  %v1954 = vadd.f32 %v1953, %v1923
  %v1955 = vadd.f32 %v1954, %v1924
  %v1956 = vadd.f32 %v1955, %v1925
  %v1957 = vadd.f32 %v1956, %v1926
  %v1958 = vadd.f32 %v1957, %v1927
  %v1959 = vadd.f32 %v1958, %v1928
  %v1960 = vadd.f32 %v1959, %v1929
  %v1961 = vadd.f32 %v1960, %v1930
  %v1962 = vadd.f32 %v1961, %v1931
  %v1963 = vadd.f32 %v1962, %v1932
  %v1964 = vadd.f32 %v1963, %v1933
  %v1965 = vadd.f32 %v1964, %v1934
  %v1966 = vadd.f32 %v1965, %v1935
  %v1967 = vrot.slane %v1966, 4
  %v1968 = vadd.f32 %v1966, %v1967
  %v1969 = vrot.slane %v1968, 2
  %v1970 = vadd.f32 %v1968, %v1969
  %v1971 = vrot.slane %v1970, 1
  %v1972 = vadd.f32 %v1970, %v1971
  %v1973 = vmul.f32 %v1903, 0.0052083335
  %v1974 = vmul.f32 %v1972, 0.0052083335
  %v1975 = vmul.f32 %v1973, %v1973
  %v1976 = vsub.f32 %v1974, %v1975
  %v1977 = vmax.f32 %v1976, 0.0
  %v1978 = vsub.f32 %v1706, %v1973
  %v1979 = vsub.f32 %v1712, %v1973
  %v1980 = vsub.f32 %v1718, %v1973
  %v1981 = vsub.f32 %v1724, %v1973
  %v1982 = vsub.f32 %v1730, %v1973
  %v1983 = vsub.f32 %v1736, %v1973
  %v1984 = vsub.f32 %v1742, %v1973
  %v1985 = vsub.f32 %v1748, %v1973
  %v1986 = vsub.f32 %v1708, %v1973
  %v1987 = vsub.f32 %v1714, %v1973
  %v1988 = vsub.f32 %v1720, %v1973
  %v1989 = vsub.f32 %v1726, %v1973
  %v1990 = vsub.f32 %v1732, %v1973
  %v1991 = vsub.f32 %v1738, %v1973
  %v1992 = vsub.f32 %v1744, %v1973
  %v1993 = vsub.f32 %v1750, %v1973
  %v1994 = vsub.f32 %v1819, %v1973
  %v1995 = vsub.f32 %v1825, %v1973
  %v1996 = vsub.f32 %v1831, %v1973
  %v1997 = vsub.f32 %v1837, %v1973
  %v1998 = vsub.f32 %v1843, %v1973
  %v1999 = vsub.f32 %v1849, %v1973
  %v2000 = vsub.f32 %v1855, %v1973
  %v2001 = vsub.f32 %v1861, %v1973
  %v2002 = vsub.f32 %v1821, %v1973
  %v2003 = vsub.f32 %v1827, %v1973
  %v2004 = vsub.f32 %v1833, %v1973
  %v2005 = vsub.f32 %v1839, %v1973
  %v2006 = vsub.f32 %v1845, %v1973
  %v2007 = vsub.f32 %v1851, %v1973
  %v2008 = vsub.f32 %v1857, %v1973
  %v2009 = vsub.f32 %v1863, %v1973
  %v2010 = vadd.f32 %v1977, 1e-05
  %v2011 = vrsqrt.pop %v2010
  %v2012 = vmul.f32 %v1978, %v2011
  %v2013 = vmul.f32 %v1979, %v2011
  %v2014 = vmul.f32 %v1980, %v2011
  %v2015 = vmul.f32 %v1981, %v2011
  %v2016 = vmul.f32 %v1982, %v2011
  %v2017 = vmul.f32 %v1983, %v2011
  %v2018 = vmul.f32 %v1984, %v2011
  %v2019 = vmul.f32 %v1985, %v2011
  %v2020 = vmul.f32 %v1986, %v2011
  %v2021 = vmul.f32 %v1987, %v2011
  %v2022 = vmul.f32 %v1988, %v2011
  %v2023 = vmul.f32 %v1989, %v2011
  %v2024 = vmul.f32 %v1990, %v2011
  %v2025 = vmul.f32 %v1991, %v2011
  %v2026 = vmul.f32 %v1992, %v2011
  %v2027 = vmul.f32 %v1993, %v2011
  %v2028 = vmul.f32 %v1994, %v2011
  %v2029 = vmul.f32 %v1995, %v2011
  %v2030 = vmul.f32 %v1996, %v2011
  %v2031 = vmul.f32 %v1997, %v2011
  %v2032 = vmul.f32 %v1998, %v2011
  %v2033 = vmul.f32 %v1999, %v2011
  %v2034 = vmul.f32 %v2000, %v2011
  %v2035 = vmul.f32 %v2001, %v2011
  %v2036 = vmul.f32 %v2002, %v2011
  %v2037 = vmul.f32 %v2003, %v2011
  %v2038 = vmul.f32 %v2004, %v2011
  %v2039 = vmul.f32 %v2005, %v2011
  %v2040 = vmul.f32 %v2006, %v2011
  %v2041 = vmul.f32 %v2007, %v2011
  %v2042 = vmul.f32 %v2008, %v2011
  %v2043 = vmul.f32 %v2009, %v2011
  %v2045 = vlaneseq
  %v2046 = vshrl.u32 %v2045, 7
  %v2047 = vsub.s32 0, %v2046
  %v2048 = vrot.slane %v1865, %v2047
  %v2050 = vmul.f32 %v2012, %v2048
  %v2051 = vmul.f32 %v2013, %v2048
  %v2052 = vmul.f32 %v2014, %v2048
  %v2053 = vmul.f32 %v2015, %v2048
  %v2054 = vmul.f32 %v2016, %v2048
  %v2055 = vmul.f32 %v2017, %v2048
  %v2056 = vmul.f32 %v2018, %v2048
  %v2057 = vmul.f32 %v2019, %v2048
  %v2058 = vmul.f32 %v2020, %v2048
  %v2059 = vmul.f32 %v2021, %v2048
  %v2060 = vmul.f32 %v2022, %v2048
  %v2061 = vmul.f32 %v2023, %v2048
  %v2062 = vmul.f32 %v2024, %v2048
  %v2063 = vmul.f32 %v2025, %v2048
  %v2064 = vmul.f32 %v2026, %v2048
  %v2065 = vmul.f32 %v2027, %v2048
  %v2066 = vmul.f32 %v2028, %v2048
  %v2067 = vmul.f32 %v2029, %v2048
  %v2068 = vmul.f32 %v2030, %v2048
  %v2069 = vmul.f32 %v2031, %v2048
  %v2070 = vmul.f32 %v2032, %v2048
  %v2071 = vmul.f32 %v2033, %v2048
  %v2072 = vmul.f32 %v2034, %v2048
  %v2073 = vmul.f32 %v2035, %v2048
  %v2074 = vmul.f32 %v2036, %v2048
  %v2075 = vmul.f32 %v2037, %v2048
  %v2076 = vmul.f32 %v2038, %v2048
  %v2077 = vmul.f32 %v2039, %v2048
  %v2078 = vmul.f32 %v2040, %v2048
  %v2079 = vmul.f32 %v2041, %v2048
  %v2080 = vmul.f32 %v2042, %v2048
  %v2081 = vmul.f32 %v2043, %v2048
  %v2083 = vlaneseq
  %v2084 = vshrl.u32 %v2083, 7
  %v2085 = vsub.s32 0, %v2084
  %v2086 = vrot.slane %v1866, %v2085
  %v2088 = vadd.f32 %v2050, %v2086
  %v2089 = vadd.f32 %v2051, %v2086
  %v2090 = vadd.f32 %v2052, %v2086
  %v2091 = vadd.f32 %v2053, %v2086
  %v2092 = vadd.f32 %v2054, %v2086
  %v2093 = vadd.f32 %v2055, %v2086
  %v2094 = vadd.f32 %v2056, %v2086
  %v2095 = vadd.f32 %v2057, %v2086
  %v2096 = vadd.f32 %v2058, %v2086
  %v2097 = vadd.f32 %v2059, %v2086
  %v2098 = vadd.f32 %v2060, %v2086
  %v2099 = vadd.f32 %v2061, %v2086
  %v2100 = vadd.f32 %v2062, %v2086
  %v2101 = vadd.f32 %v2063, %v2086
  %v2102 = vadd.f32 %v2064, %v2086
  %v2103 = vadd.f32 %v2065, %v2086
  %v2104 = vadd.f32 %v2066, %v2086
  %v2105 = vadd.f32 %v2067, %v2086
  %v2106 = vadd.f32 %v2068, %v2086
  %v2107 = vadd.f32 %v2069, %v2086
  %v2108 = vadd.f32 %v2070, %v2086
  %v2109 = vadd.f32 %v2071, %v2086
  %v2110 = vadd.f32 %v2072, %v2086
  %v2111 = vadd.f32 %v2073, %v2086
  %v2112 = vadd.f32 %v2074, %v2086
  %v2113 = vadd.f32 %v2075, %v2086
  %v2114 = vadd.f32 %v2076, %v2086
  %v2115 = vadd.f32 %v2077, %v2086
  %v2116 = vadd.f32 %v2078, %v2086
  %v2117 = vadd.f32 %v2079, %v2086
  %v2118 = vadd.f32 %v2080, %v2086
  %v2119 = vadd.f32 %v2081, %v2086
  %v2120 = vmax.f32 %v2088, 0.0
  %v2121 = vmax.f32 %v2089, 0.0
  %v2122 = vmax.f32 %v2090, 0.0
  %v2123 = vmax.f32 %v2091, 0.0
  %v2124 = vmax.f32 %v2092, 0.0
  %v2125 = vmax.f32 %v2093, 0.0
  %v2126 = vmax.f32 %v2094, 0.0
  %v2127 = vmax.f32 %v2095, 0.0
  %v2128 = vmax.f32 %v2096, 0.0
  %v2129 = vmax.f32 %v2097, 0.0
  %v2130 = vmax.f32 %v2098, 0.0
  %v2131 = vmax.f32 %v2099, 0.0
  %v2132 = vmax.f32 %v2100, 0.0
  %v2133 = vmax.f32 %v2101, 0.0
  %v2134 = vmax.f32 %v2102, 0.0
  %v2135 = vmax.f32 %v2103, 0.0
  %v2136 = vmax.f32 %v2104, 0.0
  %v2137 = vmax.f32 %v2105, 0.0
  %v2138 = vmax.f32 %v2106, 0.0
  %v2139 = vmax.f32 %v2107, 0.0
  %v2140 = vmax.f32 %v2108, 0.0
  %v2141 = vmax.f32 %v2109, 0.0
  %v2142 = vmax.f32 %v2110, 0.0
  %v2143 = vmax.f32 %v2111, 0.0
  %v2144 = vmax.f32 %v2112, 0.0
  %v2145 = vmax.f32 %v2113, 0.0
  %v2146 = vmax.f32 %v2114, 0.0
  %v2147 = vmax.f32 %v2115, 0.0
  %v2148 = vmax.f32 %v2116, 0.0
  %v2149 = vmax.f32 %v2117, 0.0
  %v2150 = vmax.f32 %v2118, 0.0
  %v2151 = vmax.f32 %v2119, 0.0
  %v2152 = vadd.s32 %v1367, 64
  %v2153 = vadd.s32 %v1367, 72
  %v2154 = vadd.s32 %v1367, 80
  %v2155 = vadd.s32 %v1367, 88
  %v2156 = vadd.s32 %v1367, 96
  %v2157 = vadd.s32 %v1367, 104
  %v2158 = vadd.s32 %v1367, 112
  %v2159 = vadd.s32 %v1367, 120
  %v2160 = vadd.s32 %v1367, 128
  %v2161 = vadd.s32 %v1367, 136
  %v2162 = vadd.s32 %v1367, 144
  %v2163 = vadd.s32 %v1367, 152
  %v2164 = vadd.s32 %v1367, 160
  %v2165 = vadd.s32 %v1367, 168
  %v2166 = vadd.s32 %v1367, 176
  %v2167 = vadd.s32 %v1367, 184
  %v2168 = vadd.s32 %v1367, 192
  %v2169 = vadd.s32 %v1367, 200
  %v2170 = vadd.s32 %v1367, 208
  %v2171 = vadd.s32 %v1367, 216
  %v2172 = vadd.s32 %v1367, 224
  %v2173 = vadd.s32 %v1367, 232
  %v2174 = vadd.s32 %v1367, 240
  %v2175 = vadd.s32 %v1367, 248
  %vm2176 = vcmp.lt.s32.totalorder %v2152, 0
  %v2177 = vsub.s32 0, %v2152
  %v2178 = vsel %vm2176, %v2177, %v2152
  %v2179 = vshrl.u32 %v2178, 4
  %v2180 = vand.u32 %v2178, 15
  %v2181 = vsub.s32 0, %v2180
  %v2182 = vsel %vm2176, %v2181, %v2180
  %vm2183 = vcmp.lt.s32.totalorder %v2153, 0
  %v2184 = vsub.s32 0, %v2153
  %v2185 = vsel %vm2183, %v2184, %v2153
  %v2186 = vshrl.u32 %v2185, 4
  %v2187 = vand.u32 %v2185, 15
  %v2188 = vsub.s32 0, %v2187
  %v2189 = vsel %vm2183, %v2188, %v2187
  %vm2190 = vcmp.lt.s32.totalorder %v2154, 0
  %v2191 = vsub.s32 0, %v2154
  %v2192 = vsel %vm2190, %v2191, %v2154
  %v2193 = vshrl.u32 %v2192, 4
  %v2194 = vand.u32 %v2192, 15
  %v2195 = vsub.s32 0, %v2194
  %v2196 = vsel %vm2190, %v2195, %v2194
  %vm2197 = vcmp.lt.s32.totalorder %v2155, 0
  %v2198 = vsub.s32 0, %v2155
  %v2199 = vsel %vm2197, %v2198, %v2155
  %v2200 = vshrl.u32 %v2199, 4
  %v2201 = vand.u32 %v2199, 15
  %v2202 = vsub.s32 0, %v2201
  %v2203 = vsel %vm2197, %v2202, %v2201
  %vm2204 = vcmp.lt.s32.totalorder %v2156, 0
  %v2205 = vsub.s32 0, %v2156
  %v2206 = vsel %vm2204, %v2205, %v2156
  %v2207 = vshrl.u32 %v2206, 4
  %v2208 = vand.u32 %v2206, 15
  %v2209 = vsub.s32 0, %v2208
  %v2210 = vsel %vm2204, %v2209, %v2208
  %vm2211 = vcmp.lt.s32.totalorder %v2157, 0
  %v2212 = vsub.s32 0, %v2157
  %v2213 = vsel %vm2211, %v2212, %v2157
  %v2214 = vshrl.u32 %v2213, 4
  %v2215 = vand.u32 %v2213, 15
  %v2216 = vsub.s32 0, %v2215
  %v2217 = vsel %vm2211, %v2216, %v2215
  %vm2218 = vcmp.lt.s32.totalorder %v2158, 0
  %v2219 = vsub.s32 0, %v2158
  %v2220 = vsel %vm2218, %v2219, %v2158
  %v2221 = vshrl.u32 %v2220, 4
  %v2222 = vand.u32 %v2220, 15
  %v2223 = vsub.s32 0, %v2222
  %v2224 = vsel %vm2218, %v2223, %v2222
  %vm2225 = vcmp.lt.s32.totalorder %v2159, 0
  %v2226 = vsub.s32 0, %v2159
  %v2227 = vsel %vm2225, %v2226, %v2159
  %v2228 = vshrl.u32 %v2227, 4
  %v2229 = vand.u32 %v2227, 15
  %v2230 = vsub.s32 0, %v2229
  %v2231 = vsel %vm2225, %v2230, %v2229
  %vm2232 = vcmp.lt.s32.totalorder %v2160, 0
  %v2233 = vsub.s32 0, %v2160
  %v2234 = vsel %vm2232, %v2233, %v2160
  %v2235 = vshrl.u32 %v2234, 4
  %v2236 = vand.u32 %v2234, 15
  %v2237 = vsub.s32 0, %v2236
  %v2238 = vsel %vm2232, %v2237, %v2236
  %vm2239 = vcmp.lt.s32.totalorder %v2161, 0
  %v2240 = vsub.s32 0, %v2161
  %v2241 = vsel %vm2239, %v2240, %v2161
  %v2242 = vshrl.u32 %v2241, 4
  %v2243 = vand.u32 %v2241, 15
  %v2244 = vsub.s32 0, %v2243
  %v2245 = vsel %vm2239, %v2244, %v2243
  %vm2246 = vcmp.lt.s32.totalorder %v2162, 0
  %v2247 = vsub.s32 0, %v2162
  %v2248 = vsel %vm2246, %v2247, %v2162
  %v2249 = vshrl.u32 %v2248, 4
  %v2250 = vand.u32 %v2248, 15
  %v2251 = vsub.s32 0, %v2250
  %v2252 = vsel %vm2246, %v2251, %v2250
  %vm2253 = vcmp.lt.s32.totalorder %v2163, 0
  %v2254 = vsub.s32 0, %v2163
  %v2255 = vsel %vm2253, %v2254, %v2163
  %v2256 = vshrl.u32 %v2255, 4
  %v2257 = vand.u32 %v2255, 15
  %v2258 = vsub.s32 0, %v2257
  %v2259 = vsel %vm2253, %v2258, %v2257
  %vm2260 = vcmp.lt.s32.totalorder %v2164, 0
  %v2261 = vsub.s32 0, %v2164
  %v2262 = vsel %vm2260, %v2261, %v2164
  %v2263 = vshrl.u32 %v2262, 4
  %v2264 = vand.u32 %v2262, 15
  %v2265 = vsub.s32 0, %v2264
  %v2266 = vsel %vm2260, %v2265, %v2264
  %vm2267 = vcmp.lt.s32.totalorder %v2165, 0
  %v2268 = vsub.s32 0, %v2165
  %v2269 = vsel %vm2267, %v2268, %v2165
  %v2270 = vshrl.u32 %v2269, 4
  %v2271 = vand.u32 %v2269, 15
  %v2272 = vsub.s32 0, %v2271
  %v2273 = vsel %vm2267, %v2272, %v2271
  %vm2274 = vcmp.lt.s32.totalorder %v2166, 0
  %v2275 = vsub.s32 0, %v2166
  %v2276 = vsel %vm2274, %v2275, %v2166
  %v2277 = vshrl.u32 %v2276, 4
  %v2278 = vand.u32 %v2276, 15
  %v2279 = vsub.s32 0, %v2278
  %v2280 = vsel %vm2274, %v2279, %v2278
  %vm2281 = vcmp.lt.s32.totalorder %v2167, 0
  %v2282 = vsub.s32 0, %v2167
  %v2283 = vsel %vm2281, %v2282, %v2167
  %v2284 = vshrl.u32 %v2283, 4
  %v2285 = vand.u32 %v2283, 15
  %v2286 = vsub.s32 0, %v2285
  %v2287 = vsel %vm2281, %v2286, %v2285
  %vm2288 = vcmp.lt.s32.totalorder %v2168, 0
  %v2289 = vsub.s32 0, %v2168
  %v2290 = vsel %vm2288, %v2289, %v2168
  %v2291 = vshrl.u32 %v2290, 4
  %v2292 = vand.u32 %v2290, 15
  %v2293 = vsub.s32 0, %v2292
  %v2294 = vsel %vm2288, %v2293, %v2292
  %vm2295 = vcmp.lt.s32.totalorder %v2169, 0
  %v2296 = vsub.s32 0, %v2169
  %v2297 = vsel %vm2295, %v2296, %v2169
  %v2298 = vshrl.u32 %v2297, 4
  %v2299 = vand.u32 %v2297, 15
  %v2300 = vsub.s32 0, %v2299
  %v2301 = vsel %vm2295, %v2300, %v2299
  %vm2302 = vcmp.lt.s32.totalorder %v2170, 0
  %v2303 = vsub.s32 0, %v2170
  %v2304 = vsel %vm2302, %v2303, %v2170
  %v2305 = vshrl.u32 %v2304, 4
  %v2306 = vand.u32 %v2304, 15
  %v2307 = vsub.s32 0, %v2306
  %v2308 = vsel %vm2302, %v2307, %v2306
  %vm2309 = vcmp.lt.s32.totalorder %v2171, 0
  %v2310 = vsub.s32 0, %v2171
  %v2311 = vsel %vm2309, %v2310, %v2171
  %v2312 = vshrl.u32 %v2311, 4
  %v2313 = vand.u32 %v2311, 15
  %v2314 = vsub.s32 0, %v2313
  %v2315 = vsel %vm2309, %v2314, %v2313
  %vm2316 = vcmp.lt.s32.totalorder %v2172, 0
  %v2317 = vsub.s32 0, %v2172
  %v2318 = vsel %vm2316, %v2317, %v2172
  %v2319 = vshrl.u32 %v2318, 4
  %v2320 = vand.u32 %v2318, 15
  %v2321 = vsub.s32 0, %v2320
  %v2322 = vsel %vm2316, %v2321, %v2320
  %vm2323 = vcmp.lt.s32.totalorder %v2173, 0
  %v2324 = vsub.s32 0, %v2173
  %v2325 = vsel %vm2323, %v2324, %v2173
  %v2326 = vshrl.u32 %v2325, 4
  %v2327 = vand.u32 %v2325, 15
  %v2328 = vsub.s32 0, %v2327
  %v2329 = vsel %vm2323, %v2328, %v2327
  %vm2330 = vcmp.lt.s32.totalorder %v2174, 0
  %v2331 = vsub.s32 0, %v2174
  %v2332 = vsel %vm2330, %v2331, %v2174
  %v2333 = vshrl.u32 %v2332, 4
  %v2334 = vand.u32 %v2332, 15
  %v2335 = vsub.s32 0, %v2334
  %v2336 = vsel %vm2330, %v2335, %v2334
  %vm2337 = vcmp.lt.s32.totalorder %v2175, 0
  %v2338 = vsub.s32 0, %v2175
  %v2339 = vsel %vm2337, %v2338, %v2175
  %v2340 = vshrl.u32 %v2339, 4
  %v2341 = vand.u32 %v2339, 15
  %v2342 = vsub.s32 0, %v2341
  %v2343 = vsel %vm2337, %v2342, %v2341
  %vm2344 = vcmp.ne.s32.totalorder %v2182, 0
  %vm2345 = vcmp.ne.s32.totalorder %v2189, 0
  %vm2346 = vcmp.ne.s32.totalorder %v2196, 0
  %vm2347 = vcmp.ne.s32.totalorder %v2203, 0
  %vm2348 = vcmp.ne.s32.totalorder %v2210, 0
  %vm2349 = vcmp.ne.s32.totalorder %v2217, 0
  %vm2350 = vcmp.ne.s32.totalorder %v2224, 0
  %vm2351 = vcmp.ne.s32.totalorder %v2231, 0
  %vm2352 = vcmp.ne.s32.totalorder %v2238, 0
  %vm2353 = vcmp.ne.s32.totalorder %v2245, 0
  %vm2354 = vcmp.ne.s32.totalorder %v2252, 0
  %vm2355 = vcmp.ne.s32.totalorder %v2259, 0
  %vm2356 = vcmp.ne.s32.totalorder %v2266, 0
  %vm2357 = vcmp.ne.s32.totalorder %v2273, 0
  %vm2358 = vcmp.ne.s32.totalorder %v2280, 0
  %vm2359 = vcmp.ne.s32.totalorder %v2287, 0
  %vm2360 = vcmp.ne.s32.totalorder %v2294, 0
  %vm2361 = vcmp.ne.s32.totalorder %v2301, 0
  %vm2362 = vcmp.ne.s32.totalorder %v2308, 0
  %vm2363 = vcmp.ne.s32.totalorder %v2315, 0
  %vm2364 = vcmp.ne.s32.totalorder %v2322, 0
  %vm2365 = vcmp.ne.s32.totalorder %v2329, 0
  %vm2366 = vcmp.ne.s32.totalorder %v2336, 0
  %vm2367 = vcmp.ne.s32.totalorder %v2343, 0
  %vm2368 = vcmp.lt.s32.totalorder %v2182, 0
  %vm2369 = vcmp.lt.s32.totalorder %v2189, 0
  %vm2370 = vcmp.lt.s32.totalorder %v2196, 0
  %vm2371 = vcmp.lt.s32.totalorder %v2203, 0
  %vm2372 = vcmp.lt.s32.totalorder %v2210, 0
  %vm2373 = vcmp.lt.s32.totalorder %v2217, 0
  %vm2374 = vcmp.lt.s32.totalorder %v2224, 0
  %vm2375 = vcmp.lt.s32.totalorder %v2231, 0
  %vm2376 = vcmp.lt.s32.totalorder %v2238, 0
  %vm2377 = vcmp.lt.s32.totalorder %v2245, 0
  %vm2378 = vcmp.lt.s32.totalorder %v2252, 0
  %vm2379 = vcmp.lt.s32.totalorder %v2259, 0
  %vm2380 = vcmp.lt.s32.totalorder %v2266, 0
  %vm2381 = vcmp.lt.s32.totalorder %v2273, 0
  %vm2382 = vcmp.lt.s32.totalorder %v2280, 0
  %vm2383 = vcmp.lt.s32.totalorder %v2287, 0
  %vm2384 = vcmp.lt.s32.totalorder %v2294, 0
  %vm2385 = vcmp.lt.s32.totalorder %v2301, 0
  %vm2386 = vcmp.lt.s32.totalorder %v2308, 0
  %vm2387 = vcmp.lt.s32.totalorder %v2315, 0
  %vm2388 = vcmp.lt.s32.totalorder %v2322, 0
  %vm2389 = vcmp.lt.s32.totalorder %v2329, 0
  %vm2390 = vcmp.lt.s32.totalorder %v2336, 0
  %vm2391 = vcmp.lt.s32.totalorder %v2343, 0
  %vm2392 = vmand %vm2368, %vm2344
  %vm2393 = vmand %vm2369, %vm2345
  %vm2394 = vmand %vm2370, %vm2346
  %vm2395 = vmand %vm2371, %vm2347
  %vm2396 = vmand %vm2372, %vm2348
  %vm2397 = vmand %vm2373, %vm2349
  %vm2398 = vmand %vm2374, %vm2350
  %vm2399 = vmand %vm2375, %vm2351
  %vm2400 = vmand %vm2376, %vm2352
  %vm2401 = vmand %vm2377, %vm2353
  %vm2402 = vmand %vm2378, %vm2354
  %vm2403 = vmand %vm2379, %vm2355
  %vm2404 = vmand %vm2380, %vm2356
  %vm2405 = vmand %vm2381, %vm2357
  %vm2406 = vmand %vm2382, %vm2358
  %vm2407 = vmand %vm2383, %vm2359
  %vm2408 = vmand %vm2384, %vm2360
  %vm2409 = vmand %vm2385, %vm2361
  %vm2410 = vmand %vm2386, %vm2362
  %vm2411 = vmand %vm2387, %vm2363
  %vm2412 = vmand %vm2388, %vm2364
  %vm2413 = vmand %vm2389, %vm2365
  %vm2414 = vmand %vm2390, %vm2366
  %vm2415 = vmand %vm2391, %vm2367
  %v2416 = vadd.s32 %v2182, 16
  %v2417 = vadd.s32 %v2189, 16
  %v2418 = vadd.s32 %v2196, 16
  %v2419 = vadd.s32 %v2203, 16
  %v2420 = vadd.s32 %v2210, 16
  %v2421 = vadd.s32 %v2217, 16
  %v2422 = vadd.s32 %v2224, 16
  %v2423 = vadd.s32 %v2231, 16
  %v2424 = vadd.s32 %v2238, 16
  %v2425 = vadd.s32 %v2245, 16
  %v2426 = vadd.s32 %v2252, 16
  %v2427 = vadd.s32 %v2259, 16
  %v2428 = vadd.s32 %v2266, 16
  %v2429 = vadd.s32 %v2273, 16
  %v2430 = vadd.s32 %v2280, 16
  %v2431 = vadd.s32 %v2287, 16
  %v2432 = vadd.s32 %v2294, 16
  %v2433 = vadd.s32 %v2301, 16
  %v2434 = vadd.s32 %v2308, 16
  %v2435 = vadd.s32 %v2315, 16
  %v2436 = vadd.s32 %v2322, 16
  %v2437 = vadd.s32 %v2329, 16
  %v2438 = vadd.s32 %v2336, 16
  %v2439 = vadd.s32 %v2343, 16
  %v2440 = vsel %vm2392, %v2416, %v2182
  %v2441 = vsel %vm2393, %v2417, %v2189
  %v2442 = vsel %vm2394, %v2418, %v2196
  %v2443 = vsel %vm2395, %v2419, %v2203
  %v2444 = vsel %vm2396, %v2420, %v2210
  %v2445 = vsel %vm2397, %v2421, %v2217
  %v2446 = vsel %vm2398, %v2422, %v2224
  %v2447 = vsel %vm2399, %v2423, %v2231
  %v2448 = vsel %vm2400, %v2424, %v2238
  %v2449 = vsel %vm2401, %v2425, %v2245
  %v2450 = vsel %vm2402, %v2426, %v2252
  %v2451 = vsel %vm2403, %v2427, %v2259
  %v2452 = vsel %vm2404, %v2428, %v2266
  %v2453 = vsel %vm2405, %v2429, %v2273
  %v2454 = vsel %vm2406, %v2430, %v2280
  %v2455 = vsel %vm2407, %v2431, %v2287
  %v2456 = vsel %vm2408, %v2432, %v2294
  %v2457 = vsel %vm2409, %v2433, %v2301
  %v2458 = vsel %vm2410, %v2434, %v2308
  %v2459 = vsel %vm2411, %v2435, %v2315
  %v2460 = vsel %vm2412, %v2436, %v2322
  %v2461 = vsel %vm2413, %v2437, %v2329
  %v2462 = vsel %vm2414, %v2438, %v2336
  %v2463 = vsel %vm2415, %v2439, %v2343
  %vm2464 = vcmp.lt.s32.totalorder %v2440, 12
  %vm2465 = vcmp.lt.s32.totalorder %v2441, 12
  %vm2466 = vcmp.lt.s32.totalorder %v2442, 12
  %vm2467 = vcmp.lt.s32.totalorder %v2443, 12
  %vm2468 = vcmp.lt.s32.totalorder %v2444, 12
  %vm2469 = vcmp.lt.s32.totalorder %v2445, 12
  %vm2470 = vcmp.lt.s32.totalorder %v2446, 12
  %vm2471 = vcmp.lt.s32.totalorder %v2447, 12
  %vm2472 = vcmp.lt.s32.totalorder %v2448, 12
  %vm2473 = vcmp.lt.s32.totalorder %v2449, 12
  %vm2474 = vcmp.lt.s32.totalorder %v2450, 12
  %vm2475 = vcmp.lt.s32.totalorder %v2451, 12
  %vm2476 = vcmp.lt.s32.totalorder %v2452, 12
  %vm2477 = vcmp.lt.s32.totalorder %v2453, 12
  %vm2478 = vcmp.lt.s32.totalorder %v2454, 12
  %vm2479 = vcmp.lt.s32.totalorder %v2455, 12
  %vm2480 = vcmp.lt.s32.totalorder %v2456, 12
  %vm2481 = vcmp.lt.s32.totalorder %v2457, 12
  %vm2482 = vcmp.lt.s32.totalorder %v2458, 12
  %vm2483 = vcmp.lt.s32.totalorder %v2459, 12
  %vm2484 = vcmp.lt.s32.totalorder %v2460, 12
  %vm2485 = vcmp.lt.s32.totalorder %v2461, 12
  %vm2486 = vcmp.lt.s32.totalorder %v2462, 12
  %vm2487 = vcmp.lt.s32.totalorder %v2463, 12
  %v2488 = vsel %vm2464, 1, 0
  %v2489 = vsel %vm2465, 1, 0
  %v2490 = vsel %vm2466, 1, 0
  %v2491 = vsel %vm2467, 1, 0
  %v2492 = vsel %vm2468, 1, 0
  %v2493 = vsel %vm2469, 1, 0
  %v2494 = vsel %vm2470, 1, 0
  %v2495 = vsel %vm2471, 1, 0
  %v2496 = vsel %vm2472, 1, 0
  %v2497 = vsel %vm2473, 1, 0
  %v2498 = vsel %vm2474, 1, 0
  %v2499 = vsel %vm2475, 1, 0
  %v2500 = vsel %vm2476, 1, 0
  %v2501 = vsel %vm2477, 1, 0
  %v2502 = vsel %vm2478, 1, 0
  %v2503 = vsel %vm2479, 1, 0
  %v2504 = vsel %vm2480, 1, 0
  %v2505 = vsel %vm2481, 1, 0
  %v2506 = vsel %vm2482, 1, 0
  %v2507 = vsel %vm2483, 1, 0
  %v2508 = vsel %vm2484, 1, 0
  %v2509 = vsel %vm2485, 1, 0
  %v2510 = vsel %vm2486, 1, 0
  %v2511 = vsel %vm2487, 1, 0
  %vm2512 = vcmp.eq.s32.totalorder %v2488, 1
  %vm2513 = vcmp.eq.s32.totalorder %v2489, 1
  %vm2514 = vcmp.eq.s32.totalorder %v2490, 1
  %vm2515 = vcmp.eq.s32.totalorder %v2491, 1
  %vm2516 = vcmp.eq.s32.totalorder %v2492, 1
  %vm2517 = vcmp.eq.s32.totalorder %v2493, 1
  %vm2518 = vcmp.eq.s32.totalorder %v2494, 1
  %vm2519 = vcmp.eq.s32.totalorder %v2495, 1
  %vm2520 = vcmp.eq.s32.totalorder %v2496, 1
  %vm2521 = vcmp.eq.s32.totalorder %v2497, 1
  %vm2522 = vcmp.eq.s32.totalorder %v2498, 1
  %vm2523 = vcmp.eq.s32.totalorder %v2499, 1
  %vm2524 = vcmp.eq.s32.totalorder %v2500, 1
  %vm2525 = vcmp.eq.s32.totalorder %v2501, 1
  %vm2526 = vcmp.eq.s32.totalorder %v2502, 1
  %vm2527 = vcmp.eq.s32.totalorder %v2503, 1
  %vm2528 = vcmp.eq.s32.totalorder %v2504, 1
  %vm2529 = vcmp.eq.s32.totalorder %v2505, 1
  %vm2530 = vcmp.eq.s32.totalorder %v2506, 1
  %vm2531 = vcmp.eq.s32.totalorder %v2507, 1
  %vm2532 = vcmp.eq.s32.totalorder %v2508, 1
  %vm2533 = vcmp.eq.s32.totalorder %v2509, 1
  %vm2534 = vcmp.eq.s32.totalorder %v2510, 1
  %vm2535 = vcmp.eq.s32.totalorder %v2511, 1
  %v2536 = vsel %vm1487, %v2120, 0.0
  %v2537 = vsel %vm1488, %v2121, 0.0
  %v2538 = vsel %vm1489, %v2122, 0.0
  %v2539 = vsel %vm1490, %v2123, 0.0
  %v2540 = vsel %vm1491, %v2124, 0.0
  %v2541 = vsel %vm1492, %v2125, 0.0
  %v2542 = vsel %vm1493, %v2126, 0.0
  %v2543 = vsel %vm1494, %v2127, 0.0
  %v2544 = vsel %vm2512, %v2128, 0.0
  %v2545 = vsel %vm2513, %v2129, 0.0
  %v2546 = vsel %vm2514, %v2130, 0.0
  %v2547 = vsel %vm2515, %v2131, 0.0
  %v2548 = vsel %vm2516, %v2132, 0.0
  %v2549 = vsel %vm2517, %v2133, 0.0
  %v2550 = vsel %vm2518, %v2134, 0.0
  %v2551 = vsel %vm2519, %v2135, 0.0
  %v2552 = vsel %vm2520, %v2136, 0.0
  %v2553 = vsel %vm2521, %v2137, 0.0
  %v2554 = vsel %vm2522, %v2138, 0.0
  %v2555 = vsel %vm2523, %v2139, 0.0
  %v2556 = vsel %vm2524, %v2140, 0.0
  %v2557 = vsel %vm2525, %v2141, 0.0
  %v2558 = vsel %vm2526, %v2142, 0.0
  %v2559 = vsel %vm2527, %v2143, 0.0
  %v2560 = vsel %vm2528, %v2144, 0.0
  %v2561 = vsel %vm2529, %v2145, 0.0
  %v2562 = vsel %vm2530, %v2146, 0.0
  %v2563 = vsel %vm2531, %v2147, 0.0
  %v2564 = vsel %vm2532, %v2148, 0.0
  %v2565 = vsel %vm2533, %v2149, 0.0
  %v2566 = vsel %vm2534, %v2150, 0.0
  %v2567 = vsel %vm2535, %v2151, 0.0
  %v2568 = vld [vmem:[%s3] sm:$0xff]
  %v2569 = vld [vmem:[%s3 + $0x8] sm:$0xff]
  %v2570 = vld [vmem:[%s3 + $0x10] sm:$0xff]
  %v2571 = vld [vmem:[%s3 + $0x18] sm:$0xff]
  %v2572 = vld [vmem:[%s3 + $0x20] sm:$0xff]
  %v2573 = vld [vmem:[%s3 + $0x28] sm:$0xff]
  %v2574 = vld [vmem:[%s3 + $0x30] sm:$0xff]
  %v2575 = vld [vmem:[%s3 + $0x38] sm:$0xff]
  %v2576 = vld [vmem:[%s3 + $0x40] sm:$0xff]
  %v2577 = vld [vmem:[%s3 + $0x48] sm:$0xff]
  %v2578 = vld [vmem:[%s3 + $0x50] sm:$0xff]
  %v2579 = vld [vmem:[%s3 + $0x58] sm:$0xff]
  %v2580 = vld [vmem:[%s3 + $0x60] sm:$0xff]
  %v2581 = vld [vmem:[%s3 + $0x68] sm:$0xff]
  %v2582 = vld [vmem:[%s3 + $0x70] sm:$0xff]
  %v2583 = vld [vmem:[%s3 + $0x78] sm:$0xff]
  %2584 = vmatprep.subr.mxu0 0.0
  %2585 = vmatpush1.msra.mxu0 %v2568
  %2586 = vmatprep.subr.mxu0 0.0
  %2587 = vmatpush1.msra.mxu0 %v2569
  %2588 = vmatprep.subr.mxu0 0.0
  %2589 = vmatpush1.msra.mxu0 %v2570
  %2590 = vmatprep.subr.mxu0 0.0
  %2591 = vmatpush1.msra.mxu0 %v2571
  %2592 = vmatprep.subr.mxu0 0.0
  %2593 = vmatpush1.msra.mxu0 %v2572
  %2594 = vmatprep.subr.mxu0 0.0
  %2595 = vmatpush1.msra.mxu0 %v2573
  %2596 = vmatprep.subr.mxu0 0.0
  %2597 = vmatpush1.msra.mxu0 %v2574
  %2598 = vmatprep.subr.mxu0 0.0
  %2599 = vmatpush1.msra.mxu0 %v2575
  %2600 = vmatprep.subr.mxu0 0.0
  %2601 = vmatpush1.msra.mxu0 %v2576
  %2602 = vmatprep.subr.mxu0 0.0
  %2603 = vmatpush1.msra.mxu0 %v2577
  %2604 = vmatprep.subr.mxu0 0.0
  %2605 = vmatpush1.msra.mxu0 %v2578
  %2606 = vmatprep.subr.mxu0 0.0
  %2607 = vmatpush1.msra.mxu0 %v2579
  %2608 = vmatprep.subr.mxu0 0.0
  %2609 = vmatpush1.msra.mxu0 %v2580
  %2610 = vmatprep.subr.mxu0 0.0
  %2611 = vmatpush1.msra.mxu0 %v2581
  %2612 = vmatprep.subr.mxu0 0.0
  %2613 = vmatpush1.msra.mxu0 %v2582
  %2614 = vmatprep.subr.mxu0 0.0
  %2615 = vmatpush1.msra.mxu0 %v2583
  %2616 = vmatprep.subr.mxu0 0.0
  %2617 = vmatpush1.msra.mxu0 0.0
  %2618 = vmatprep.subr.mxu0 0.0
  %2619 = vmatpush1.msra.mxu0 0.0
  %2620 = vmatprep.subr.mxu0 0.0
  %2621 = vmatpush1.msra.mxu0 0.0
  %2622 = vmatprep.subr.mxu0 0.0
  %2623 = vmatpush1.msra.mxu0 0.0
  %2624 = vmatprep.subr.mxu0 0.0
  %2625 = vmatpush1.msra.mxu0 0.0
  %2626 = vmatprep.subr.mxu0 0.0
  %2627 = vmatpush1.msra.mxu0 0.0
  %2628 = vmatprep.subr.mxu0 0.0
  %2629 = vmatpush1.msra.mxu0 0.0
  %2630 = vmatprep.subr.mxu0 0.0
  %2631 = vmatpush1.msra.mxu0 0.0
  %2632 = vmatprep.subr.mxu0 0.0
  %2633 = vmatpush1.msra.mxu0 0.0
  %2634 = vmatprep.subr.mxu0 0.0
  %2635 = vmatpush1.msra.mxu0 0.0
  %2636 = vmatprep.subr.mxu0 0.0
  %2637 = vmatpush1.msra.mxu0 0.0
  %2638 = vmatprep.subr.mxu0 0.0
  %2639 = vmatpush1.msra.mxu0 0.0
  %2640 = vmatprep.subr.mxu0 0.0
  %2641 = vmatpush1.msra.mxu0 0.0
  %2642 = vmatprep.subr.mxu0 0.0
  %2643 = vmatpush1.msra.mxu0 0.0
  %2644 = vmatprep.subr.mxu0 0.0
  %2645 = vmatpush1.msra.mxu0 0.0
  %2646 = vmatprep.subr.mxu0 0.0
  %2647 = vmatpush1.msra.mxu0 0.0
  %2648 = vmatprep.mubr.f32.mxu0 0.0
  %2649 = vmatmul.mubr.f32.gmra.mrb[0].mxu0 %v2536
  %v2650 = vpop.f32.mrb[0].mxu0
  %v2651 = vadd.f32 0.0, %v2650
  %v2652 = vpop.f32.mrb[0].mxu0
  %2653 = vmatprep.mubr.f32.mxu0 0.0
  %2654 = vmatmul.mubr.f32.gmra.mrb[0].mxu0 %v2537
  %v2655 = vpop.f32.mrb[0].mxu0
  %v2656 = vadd.f32 0.0, %v2655
  %v2657 = vpop.f32.mrb[0].mxu0
  %2658 = vmatprep.mubr.f32.mxu0 0.0
  %2659 = vmatmul.mubr.f32.gmra.mrb[0].mxu0 %v2538
  %v2660 = vpop.f32.mrb[0].mxu0
  %v2661 = vadd.f32 0.0, %v2660
  %v2662 = vpop.f32.mrb[0].mxu0
  %2663 = vmatprep.mubr.f32.mxu0 0.0
  %2664 = vmatmul.mubr.f32.gmra.mrb[0].mxu0 %v2539
  %v2665 = vpop.f32.mrb[0].mxu0
  %v2666 = vadd.f32 0.0, %v2665
  %v2667 = vpop.f32.mrb[0].mxu0
  %2668 = vmatprep.mubr.f32.mxu0 0.0
  %2669 = vmatmul.mubr.f32.gmra.mrb[0].mxu0 %v2540
  %v2670 = vpop.f32.mrb[0].mxu0
  %v2671 = vadd.f32 0.0, %v2670
  %v2672 = vpop.f32.mrb[0].mxu0
  %2673 = vmatprep.mubr.f32.mxu0 0.0
  %2674 = vmatmul.mubr.f32.gmra.mrb[0].mxu0 %v2541
  %v2675 = vpop.f32.mrb[0].mxu0
  %v2676 = vadd.f32 0.0, %v2675
  %v2677 = vpop.f32.mrb[0].mxu0
  %2678 = vmatprep.mubr.f32.mxu0 0.0
  %2679 = vmatmul.mubr.f32.gmra.mrb[0].mxu0 %v2542
  %v2680 = vpop.f32.mrb[0].mxu0
  %v2681 = vadd.f32 0.0, %v2680
  %v2682 = vpop.f32.mrb[0].mxu0
  %2683 = vmatprep.mubr.f32.mxu0 0.0
  %2684 = vmatmul.mubr.f32.gmra.mrb[0].mxu0 %v2543
  %v2685 = vpop.f32.mrb[0].mxu0
  %v2686 = vadd.f32 0.0, %v2685
  %v2687 = vpop.f32.mrb[0].mxu0
  %2688 = vmatprep.mubr.f32.mxu0 0.0
  %2689 = vmatmul.mubr.f32.gmra.mrb[0].mxu0 %v2544
  %v2690 = vpop.f32.mrb[0].mxu0
  %v2691 = vadd.f32 0.0, %v2690
  %v2692 = vpop.f32.mrb[0].mxu0
  %2693 = vmatprep.mubr.f32.mxu0 0.0
  %2694 = vmatmul.mubr.f32.gmra.mrb[0].mxu0 %v2545
  %v2695 = vpop.f32.mrb[0].mxu0
  %v2696 = vadd.f32 0.0, %v2695
  %v2697 = vpop.f32.mrb[0].mxu0
  %2698 = vmatprep.mubr.f32.mxu0 0.0
  %2699 = vmatmul.mubr.f32.gmra.mrb[0].mxu0 %v2546
  %v2700 = vpop.f32.mrb[0].mxu0
  %v2701 = vadd.f32 0.0, %v2700
  %v2702 = vpop.f32.mrb[0].mxu0
  %2703 = vmatprep.mubr.f32.mxu0 0.0
  %2704 = vmatmul.mubr.f32.gmra.mrb[0].mxu0 %v2547
  %v2705 = vpop.f32.mrb[0].mxu0
  %v2706 = vadd.f32 0.0, %v2705
  %v2707 = vpop.f32.mrb[0].mxu0
  %2708 = vmatprep.mubr.f32.mxu0 0.0
  %2709 = vmatmul.mubr.f32.gmra.mrb[0].mxu0 %v2548
  %v2710 = vpop.f32.mrb[0].mxu0
  %v2711 = vadd.f32 0.0, %v2710
  %v2712 = vpop.f32.mrb[0].mxu0
  %2713 = vmatprep.mubr.f32.mxu0 0.0
  %2714 = vmatmul.mubr.f32.gmra.mrb[0].mxu0 %v2549
  %v2715 = vpop.f32.mrb[0].mxu0
  %v2716 = vadd.f32 0.0, %v2715
  %v2717 = vpop.f32.mrb[0].mxu0
  %2718 = vmatprep.mubr.f32.mxu0 0.0
  %2719 = vmatmul.mubr.f32.gmra.mrb[0].mxu0 %v2550
  %v2720 = vpop.f32.mrb[0].mxu0
  %v2721 = vadd.f32 0.0, %v2720
  %v2722 = vpop.f32.mrb[0].mxu0
  %2723 = vmatprep.mubr.f32.mxu0 0.0
  %2724 = vmatmul.mubr.f32.gmra.mrb[0].mxu0 %v2551
  %v2725 = vpop.f32.mrb[0].mxu0
  %v2726 = vadd.f32 0.0, %v2725
  %v2727 = vpop.f32.mrb[0].mxu0
  %2728 = vmatprep.mubr.f32.mxu0 0.0
  %2729 = vmatmul.mubr.f32.gmra.mrb[0].mxu0 %v2552
  %v2730 = vpop.f32.mrb[0].mxu0
  %v2731 = vadd.f32 0.0, %v2730
  %v2732 = vpop.f32.mrb[0].mxu0
  %2733 = vmatprep.mubr.f32.mxu0 0.0
  %2734 = vmatmul.mubr.f32.gmra.mrb[0].mxu0 %v2553
  %v2735 = vpop.f32.mrb[0].mxu0
  %v2736 = vadd.f32 0.0, %v2735
  %v2737 = vpop.f32.mrb[0].mxu0
  %2738 = vmatprep.mubr.f32.mxu0 0.0
  %2739 = vmatmul.mubr.f32.gmra.mrb[0].mxu0 %v2554
  %v2740 = vpop.f32.mrb[0].mxu0
  %v2741 = vadd.f32 0.0, %v2740
  %v2742 = vpop.f32.mrb[0].mxu0
  %2743 = vmatprep.mubr.f32.mxu0 0.0
  %2744 = vmatmul.mubr.f32.gmra.mrb[0].mxu0 %v2555
  %v2745 = vpop.f32.mrb[0].mxu0
  %v2746 = vadd.f32 0.0, %v2745
  %v2747 = vpop.f32.mrb[0].mxu0
  %2748 = vmatprep.mubr.f32.mxu0 0.0
  %2749 = vmatmul.mubr.f32.gmra.mrb[0].mxu0 %v2556
  %v2750 = vpop.f32.mrb[0].mxu0
  %v2751 = vadd.f32 0.0, %v2750
  %v2752 = vpop.f32.mrb[0].mxu0
  %2753 = vmatprep.mubr.f32.mxu0 0.0
  %2754 = vmatmul.mubr.f32.gmra.mrb[0].mxu0 %v2557
  %v2755 = vpop.f32.mrb[0].mxu0
  %v2756 = vadd.f32 0.0, %v2755
  %v2757 = vpop.f32.mrb[0].mxu0
  %2758 = vmatprep.mubr.f32.mxu0 0.0
  %2759 = vmatmul.mubr.f32.gmra.mrb[0].mxu0 %v2558
  %v2760 = vpop.f32.mrb[0].mxu0
  %v2761 = vadd.f32 0.0, %v2760
  %v2762 = vpop.f32.mrb[0].mxu0
  %2763 = vmatprep.mubr.f32.mxu0 0.0
  %2764 = vmatmul.mubr.f32.gmra.mrb[0].mxu0 %v2559
  %v2765 = vpop.f32.mrb[0].mxu0
  %v2766 = vadd.f32 0.0, %v2765
  %v2767 = vpop.f32.mrb[0].mxu0
  %2768 = vmatprep.mubr.f32.mxu0 0.0
  %2769 = vmatmul.mubr.f32.gmra.mrb[0].mxu0 %v2560
  %v2770 = vpop.f32.mrb[0].mxu0
  %v2771 = vadd.f32 0.0, %v2770
  %v2772 = vpop.f32.mrb[0].mxu0
  %2773 = vmatprep.mubr.f32.mxu0 0.0
  %2774 = vmatmul.mubr.f32.gmra.mrb[0].mxu0 %v2561
  %v2775 = vpop.f32.mrb[0].mxu0
  %v2776 = vadd.f32 0.0, %v2775
  %v2777 = vpop.f32.mrb[0].mxu0
  %2778 = vmatprep.mubr.f32.mxu0 0.0
  %2779 = vmatmul.mubr.f32.gmra.mrb[0].mxu0 %v2562
  %v2780 = vpop.f32.mrb[0].mxu0
  %v2781 = vadd.f32 0.0, %v2780
  %v2782 = vpop.f32.mrb[0].mxu0
  %2783 = vmatprep.mubr.f32.mxu0 0.0
  %2784 = vmatmul.mubr.f32.gmra.mrb[0].mxu0 %v2563
  %v2785 = vpop.f32.mrb[0].mxu0
  %v2786 = vadd.f32 0.0, %v2785
  %v2787 = vpop.f32.mrb[0].mxu0
  %2788 = vmatprep.mubr.f32.mxu0 0.0
  %2789 = vmatmul.mubr.f32.gmra.mrb[0].mxu0 %v2564
  %v2790 = vpop.f32.mrb[0].mxu0
  %v2791 = vadd.f32 0.0, %v2790
  %v2792 = vpop.f32.mrb[0].mxu0
  %2793 = vmatprep.mubr.f32.mxu0 0.0
  %2794 = vmatmul.mubr.f32.gmra.mrb[0].mxu0 %v2565
  %v2795 = vpop.f32.mrb[0].mxu0
  %v2796 = vadd.f32 0.0, %v2795
  %v2797 = vpop.f32.mrb[0].mxu0
  %2798 = vmatprep.mubr.f32.mxu0 0.0
  %2799 = vmatmul.mubr.f32.gmra.mrb[0].mxu0 %v2566
  %v2800 = vpop.f32.mrb[0].mxu0
  %v2801 = vadd.f32 0.0, %v2800
  %v2802 = vpop.f32.mrb[0].mxu0
  %2803 = vmatprep.mubr.f32.mxu0 0.0
  %2804 = vmatmul.mubr.f32.gmra.mrb[0].mxu0 %v2567
  %v2805 = vpop.f32.mrb[0].mxu0
  %v2806 = vadd.f32 0.0, %v2805
  %v2807 = vpop.f32.mrb[0].mxu0
  %2808 = vdwg.mxu0
  %s2809 = scalar_lea.vmem %s3, 128
  %v2810 = vld [vmem:[%s2809] sm:$0xff]
  %v2811 = vld [vmem:[%s2809 + $0x8] sm:$0xff]
  %v2812 = vld [vmem:[%s2809 + $0x10] sm:$0xff]
  %v2813 = vld [vmem:[%s2809 + $0x18] sm:$0xff]
  %v2814 = vld [vmem:[%s2809 + $0x20] sm:$0xff]
  %v2815 = vld [vmem:[%s2809 + $0x28] sm:$0xff]
  %v2816 = vld [vmem:[%s2809 + $0x30] sm:$0xff]
  %v2817 = vld [vmem:[%s2809 + $0x38] sm:$0xff]
  %v2818 = vld [vmem:[%s2809 + $0x40] sm:$0xff]
  %v2819 = vld [vmem:[%s2809 + $0x48] sm:$0xff]
  %v2820 = vld [vmem:[%s2809 + $0x50] sm:$0xff]
  %v2821 = vld [vmem:[%s2809 + $0x58] sm:$0xff]
  %v2822 = vld [vmem:[%s2809 + $0x60] sm:$0xff]
  %v2823 = vld [vmem:[%s2809 + $0x68] sm:$0xff]
  %v2824 = vld [vmem:[%s2809 + $0x70] sm:$0xff]
  %v2825 = vld [vmem:[%s2809 + $0x78] sm:$0xff]
  %2826 = vmatprep.subr.mxu0 0.0
  %2827 = vmatpush1.msra.mxu0 %v2810
  %2828 = vmatprep.subr.mxu0 0.0
  %2829 = vmatpush1.msra.mxu0 %v2811
  %2830 = vmatprep.subr.mxu0 0.0
  %2831 = vmatpush1.msra.mxu0 %v2812
  %2832 = vmatprep.subr.mxu0 0.0
  %2833 = vmatpush1.msra.mxu0 %v2813
  %2834 = vmatprep.subr.mxu0 0.0
  %2835 = vmatpush1.msra.mxu0 %v2814
  %2836 = vmatprep.subr.mxu0 0.0
  %2837 = vmatpush1.msra.mxu0 %v2815
  %2838 = vmatprep.subr.mxu0 0.0
  %2839 = vmatpush1.msra.mxu0 %v2816
  %2840 = vmatprep.subr.mxu0 0.0
  %2841 = vmatpush1.msra.mxu0 %v2817
  %2842 = vmatprep.subr.mxu0 0.0
  %2843 = vmatpush1.msra.mxu0 %v2818
  %2844 = vmatprep.subr.mxu0 0.0
  %2845 = vmatpush1.msra.mxu0 %v2819
  %2846 = vmatprep.subr.mxu0 0.0
  %2847 = vmatpush1.msra.mxu0 %v2820
  %2848 = vmatprep.subr.mxu0 0.0
  %2849 = vmatpush1.msra.mxu0 %v2821
  %2850 = vmatprep.subr.mxu0 0.0
  %2851 = vmatpush1.msra.mxu0 %v2822
  %2852 = vmatprep.subr.mxu0 0.0
  %2853 = vmatpush1.msra.mxu0 %v2823
  %2854 = vmatprep.subr.mxu0 0.0
  %2855 = vmatpush1.msra.mxu0 %v2824
  %2856 = vmatprep.subr.mxu0 0.0
  %2857 = vmatpush1.msra.mxu0 %v2825
  %2858 = vmatprep.subr.mxu0 0.0
  %2859 = vmatpush1.msra.mxu0 0.0
  %2860 = vmatprep.subr.mxu0 0.0
  %2861 = vmatpush1.msra.mxu0 0.0
  %2862 = vmatprep.subr.mxu0 0.0
  %2863 = vmatpush1.msra.mxu0 0.0
  %2864 = vmatprep.subr.mxu0 0.0
  %2865 = vmatpush1.msra.mxu0 0.0
  %2866 = vmatprep.subr.mxu0 0.0
  %2867 = vmatpush1.msra.mxu0 0.0
  %2868 = vmatprep.subr.mxu0 0.0
  %2869 = vmatpush1.msra.mxu0 0.0
  %2870 = vmatprep.subr.mxu0 0.0
  %2871 = vmatpush1.msra.mxu0 0.0
  %2872 = vmatprep.subr.mxu0 0.0
  %2873 = vmatpush1.msra.mxu0 0.0
  %2874 = vmatprep.subr.mxu0 0.0
  %2875 = vmatpush1.msra.mxu0 0.0
  %2876 = vmatprep.subr.mxu0 0.0
  %2877 = vmatpush1.msra.mxu0 0.0
  %2878 = vmatprep.subr.mxu0 0.0
  %2879 = vmatpush1.msra.mxu0 0.0
  %2880 = vmatprep.subr.mxu0 0.0
  %2881 = vmatpush1.msra.mxu0 0.0
  %2882 = vmatprep.subr.mxu0 0.0
  %2883 = vmatpush1.msra.mxu0 0.0
  %2884 = vmatprep.subr.mxu0 0.0
  %2885 = vmatpush1.msra.mxu0 0.0
  %2886 = vmatprep.subr.mxu0 0.0
  %2887 = vmatpush1.msra.mxu0 0.0
  %2888 = vmatprep.subr.mxu0 0.0
  %2889 = vmatpush1.msra.mxu0 0.0
  %2890 = vmatprep.mubr.f32.mxu0 0.0
  %2891 = vmatmul.mubr.f32.gmra.mrb[0].mxu0 %v2536
  %v2892 = vpop.f32.mrb[0].mxu0
  %v2893 = vadd.f32 0.0, %v2892
  %v2894 = vpop.f32.mrb[0].mxu0
  %2895 = vmatprep.mubr.f32.mxu0 0.0
  %2896 = vmatmul.mubr.f32.gmra.mrb[0].mxu0 %v2537
  %v2897 = vpop.f32.mrb[0].mxu0
  %v2898 = vadd.f32 0.0, %v2897
  %v2899 = vpop.f32.mrb[0].mxu0
  %2900 = vmatprep.mubr.f32.mxu0 0.0
  %2901 = vmatmul.mubr.f32.gmra.mrb[0].mxu0 %v2538
  %v2902 = vpop.f32.mrb[0].mxu0
  %v2903 = vadd.f32 0.0, %v2902
  %v2904 = vpop.f32.mrb[0].mxu0
  %2905 = vmatprep.mubr.f32.mxu0 0.0
  %2906 = vmatmul.mubr.f32.gmra.mrb[0].mxu0 %v2539
  %v2907 = vpop.f32.mrb[0].mxu0
  %v2908 = vadd.f32 0.0, %v2907
  %v2909 = vpop.f32.mrb[0].mxu0
  %2910 = vmatprep.mubr.f32.mxu0 0.0
  %2911 = vmatmul.mubr.f32.gmra.mrb[0].mxu0 %v2540
  %v2912 = vpop.f32.mrb[0].mxu0
  %v2913 = vadd.f32 0.0, %v2912
  %v2914 = vpop.f32.mrb[0].mxu0
  %2915 = vmatprep.mubr.f32.mxu0 0.0
  %2916 = vmatmul.mubr.f32.gmra.mrb[0].mxu0 %v2541
  %v2917 = vpop.f32.mrb[0].mxu0
  %v2918 = vadd.f32 0.0, %v2917
  %v2919 = vpop.f32.mrb[0].mxu0
  %2920 = vmatprep.mubr.f32.mxu0 0.0
  %2921 = vmatmul.mubr.f32.gmra.mrb[0].mxu0 %v2542
  %v2922 = vpop.f32.mrb[0].mxu0
  %v2923 = vadd.f32 0.0, %v2922
  %v2924 = vpop.f32.mrb[0].mxu0
  %2925 = vmatprep.mubr.f32.mxu0 0.0
  %2926 = vmatmul.mubr.f32.gmra.mrb[0].mxu0 %v2543
  %v2927 = vpop.f32.mrb[0].mxu0
  %v2928 = vadd.f32 0.0, %v2927
  %v2929 = vpop.f32.mrb[0].mxu0
  %2930 = vmatprep.mubr.f32.mxu0 0.0
  %2931 = vmatmul.mubr.f32.gmra.mrb[0].mxu0 %v2544
  %v2932 = vpop.f32.mrb[0].mxu0
  %v2933 = vadd.f32 0.0, %v2932
  %v2934 = vpop.f32.mrb[0].mxu0
  %2935 = vmatprep.mubr.f32.mxu0 0.0
  %2936 = vmatmul.mubr.f32.gmra.mrb[0].mxu0 %v2545
  %v2937 = vpop.f32.mrb[0].mxu0
  %v2938 = vadd.f32 0.0, %v2937
  %v2939 = vpop.f32.mrb[0].mxu0
  %2940 = vmatprep.mubr.f32.mxu0 0.0
  %2941 = vmatmul.mubr.f32.gmra.mrb[0].mxu0 %v2546
  %v2942 = vpop.f32.mrb[0].mxu0
  %v2943 = vadd.f32 0.0, %v2942
  %v2944 = vpop.f32.mrb[0].mxu0
  %2945 = vmatprep.mubr.f32.mxu0 0.0
  %2946 = vmatmul.mubr.f32.gmra.mrb[0].mxu0 %v2547
  %v2947 = vpop.f32.mrb[0].mxu0
  %v2948 = vadd.f32 0.0, %v2947
  %v2949 = vpop.f32.mrb[0].mxu0
  %2950 = vmatprep.mubr.f32.mxu0 0.0
  %2951 = vmatmul.mubr.f32.gmra.mrb[0].mxu0 %v2548
  %v2952 = vpop.f32.mrb[0].mxu0
  %v2953 = vadd.f32 0.0, %v2952
  %v2954 = vpop.f32.mrb[0].mxu0
  %2955 = vmatprep.mubr.f32.mxu0 0.0
  %2956 = vmatmul.mubr.f32.gmra.mrb[0].mxu0 %v2549
  %v2957 = vpop.f32.mrb[0].mxu0
  %v2958 = vadd.f32 0.0, %v2957
  %v2959 = vpop.f32.mrb[0].mxu0
  %2960 = vmatprep.mubr.f32.mxu0 0.0
  %2961 = vmatmul.mubr.f32.gmra.mrb[0].mxu0 %v2550
  %v2962 = vpop.f32.mrb[0].mxu0
  %v2963 = vadd.f32 0.0, %v2962
  %v2964 = vpop.f32.mrb[0].mxu0
  %2965 = vmatprep.mubr.f32.mxu0 0.0
  %2966 = vmatmul.mubr.f32.gmra.mrb[0].mxu0 %v2551
  %v2967 = vpop.f32.mrb[0].mxu0
  %v2968 = vadd.f32 0.0, %v2967
  %v2969 = vpop.f32.mrb[0].mxu0
  %2970 = vmatprep.mubr.f32.mxu0 0.0
  %2971 = vmatmul.mubr.f32.gmra.mrb[0].mxu0 %v2552
  %v2972 = vpop.f32.mrb[0].mxu0
  %v2973 = vadd.f32 0.0, %v2972
  %v2974 = vpop.f32.mrb[0].mxu0
  %2975 = vmatprep.mubr.f32.mxu0 0.0
  %2976 = vmatmul.mubr.f32.gmra.mrb[0].mxu0 %v2553
  %v2977 = vpop.f32.mrb[0].mxu0
  %v2978 = vadd.f32 0.0, %v2977
  %v2979 = vpop.f32.mrb[0].mxu0
  %2980 = vmatprep.mubr.f32.mxu0 0.0
  %2981 = vmatmul.mubr.f32.gmra.mrb[0].mxu0 %v2554
  %v2982 = vpop.f32.mrb[0].mxu0
  %v2983 = vadd.f32 0.0, %v2982
  %v2984 = vpop.f32.mrb[0].mxu0
  %2985 = vmatprep.mubr.f32.mxu0 0.0
  %2986 = vmatmul.mubr.f32.gmra.mrb[0].mxu0 %v2555
  %v2987 = vpop.f32.mrb[0].mxu0
  %v2988 = vadd.f32 0.0, %v2987
  %v2989 = vpop.f32.mrb[0].mxu0
  %2990 = vmatprep.mubr.f32.mxu0 0.0
  %2991 = vmatmul.mubr.f32.gmra.mrb[0].mxu0 %v2556
  %v2992 = vpop.f32.mrb[0].mxu0
  %v2993 = vadd.f32 0.0, %v2992
  %v2994 = vpop.f32.mrb[0].mxu0
  %2995 = vmatprep.mubr.f32.mxu0 0.0
  %2996 = vmatmul.mubr.f32.gmra.mrb[0].mxu0 %v2557
  %v2997 = vpop.f32.mrb[0].mxu0
  %v2998 = vadd.f32 0.0, %v2997
  %v2999 = vpop.f32.mrb[0].mxu0
  %3000 = vmatprep.mubr.f32.mxu0 0.0
  %3001 = vmatmul.mubr.f32.gmra.mrb[0].mxu0 %v2558
  %v3002 = vpop.f32.mrb[0].mxu0
  %v3003 = vadd.f32 0.0, %v3002
  %v3004 = vpop.f32.mrb[0].mxu0
  %3005 = vmatprep.mubr.f32.mxu0 0.0
  %3006 = vmatmul.mubr.f32.gmra.mrb[0].mxu0 %v2559
  %v3007 = vpop.f32.mrb[0].mxu0
  %v3008 = vadd.f32 0.0, %v3007
  %v3009 = vpop.f32.mrb[0].mxu0
  %3010 = vmatprep.mubr.f32.mxu0 0.0
  %3011 = vmatmul.mubr.f32.gmra.mrb[0].mxu0 %v2560
  %v3012 = vpop.f32.mrb[0].mxu0
  %v3013 = vadd.f32 0.0, %v3012
  %v3014 = vpop.f32.mrb[0].mxu0
  %3015 = vmatprep.mubr.f32.mxu0 0.0
  %3016 = vmatmul.mubr.f32.gmra.mrb[0].mxu0 %v2561
  %v3017 = vpop.f32.mrb[0].mxu0
  %v3018 = vadd.f32 0.0, %v3017
  %v3019 = vpop.f32.mrb[0].mxu0
  %3020 = vmatprep.mubr.f32.mxu0 0.0
  %3021 = vmatmul.mubr.f32.gmra.mrb[0].mxu0 %v2562
  %v3022 = vpop.f32.mrb[0].mxu0
  %v3023 = vadd.f32 0.0, %v3022
  %v3024 = vpop.f32.mrb[0].mxu0
  %3025 = vmatprep.mubr.f32.mxu0 0.0
  %3026 = vmatmul.mubr.f32.gmra.mrb[0].mxu0 %v2563
  %v3027 = vpop.f32.mrb[0].mxu0
  %v3028 = vadd.f32 0.0, %v3027
  %v3029 = vpop.f32.mrb[0].mxu0
  %3030 = vmatprep.mubr.f32.mxu0 0.0
  %3031 = vmatmul.mubr.f32.gmra.mrb[0].mxu0 %v2564
  %v3032 = vpop.f32.mrb[0].mxu0
  %v3033 = vadd.f32 0.0, %v3032
  %v3034 = vpop.f32.mrb[0].mxu0
  %3035 = vmatprep.mubr.f32.mxu0 0.0
  %3036 = vmatmul.mubr.f32.gmra.mrb[0].mxu0 %v2565
  %v3037 = vpop.f32.mrb[0].mxu0
  %v3038 = vadd.f32 0.0, %v3037
  %v3039 = vpop.f32.mrb[0].mxu0
  %3040 = vmatprep.mubr.f32.mxu0 0.0
  %3041 = vmatmul.mubr.f32.gmra.mrb[0].mxu0 %v2566
  %v3042 = vpop.f32.mrb[0].mxu0
  %v3043 = vadd.f32 0.0, %v3042
  %v3044 = vpop.f32.mrb[0].mxu0
  %3045 = vmatprep.mubr.f32.mxu0 0.0
  %3046 = vmatmul.mubr.f32.gmra.mrb[0].mxu0 %v2567
  %v3047 = vpop.f32.mrb[0].mxu0
  %v3048 = vadd.f32 0.0, %v3047
  %v3049 = vpop.f32.mrb[0].mxu0
  %3050 = vdwg.mxu0
  %v3051 = vld [vmem:[%s9] sm:$0x1]
  %v3052 = vld [vmem:[%s10] sm:$0x1]
  %vm3053 = vcmask 523264
  %v3054 = vsel %vm3053, %v2651, 0.0
  %v3055 = vsel %vm3053, %v2656, 0.0
  %v3056 = vadd.f32 %v3054, %v3055
  %v3057 = vsel %vm3053, %v2661, 0.0
  %v3058 = vadd.f32 %v3056, %v3057
  %v3059 = vsel %vm3053, %v2666, 0.0
  %v3060 = vadd.f32 %v3058, %v3059
  %v3061 = vsel %vm3053, %v2671, 0.0
  %v3062 = vadd.f32 %v3060, %v3061
  %v3063 = vsel %vm3053, %v2676, 0.0
  %v3064 = vadd.f32 %v3062, %v3063
  %v3065 = vsel %vm3053, %v2681, 0.0
  %v3066 = vadd.f32 %v3064, %v3065
  %v3067 = vsel %vm3053, %v2686, 0.0
  %v3068 = vadd.f32 %v3066, %v3067
  %v3069 = vsel %vm3053, %v2691, 0.0
  %v3070 = vadd.f32 %v3068, %v3069
  %v3071 = vsel %vm3053, %v2696, 0.0
  %v3072 = vadd.f32 %v3070, %v3071
  %v3073 = vsel %vm3053, %v2701, 0.0
  %v3074 = vadd.f32 %v3072, %v3073
  %v3075 = vsel %vm3053, %v2706, 0.0
  %v3076 = vadd.f32 %v3074, %v3075
  %v3077 = vsel %vm3053, %v2711, 0.0
  %v3078 = vadd.f32 %v3076, %v3077
  %v3079 = vsel %vm3053, %v2716, 0.0
  %v3080 = vadd.f32 %v3078, %v3079
  %v3081 = vsel %vm3053, %v2721, 0.0
  %v3082 = vadd.f32 %v3080, %v3081
  %v3083 = vsel %vm3053, %v2726, 0.0
  %v3084 = vadd.f32 %v3082, %v3083
  %v3085 = vsel %vm3053, %v2731, 0.0
  %v3086 = vadd.f32 %v3084, %v3085
  %v3087 = vsel %vm3053, %v2736, 0.0
  %v3088 = vadd.f32 %v3086, %v3087
  %v3089 = vsel %vm3053, %v2741, 0.0
  %v3090 = vadd.f32 %v3088, %v3089
  %v3091 = vsel %vm3053, %v2746, 0.0
  %v3092 = vadd.f32 %v3090, %v3091
  %v3093 = vsel %vm3053, %v2751, 0.0
  %v3094 = vadd.f32 %v3092, %v3093
  %v3095 = vsel %vm3053, %v2756, 0.0
  %v3096 = vadd.f32 %v3094, %v3095
  %v3097 = vsel %vm3053, %v2761, 0.0
  %v3098 = vadd.f32 %v3096, %v3097
  %v3099 = vsel %vm3053, %v2766, 0.0
  %v3100 = vadd.f32 %v3098, %v3099
  %v3101 = vsel %vm3053, %v2771, 0.0
  %v3102 = vadd.f32 %v3100, %v3101
  %v3103 = vsel %vm3053, %v2776, 0.0
  %v3104 = vadd.f32 %v3102, %v3103
  %v3105 = vsel %vm3053, %v2781, 0.0
  %v3106 = vadd.f32 %v3104, %v3105
  %v3107 = vsel %vm3053, %v2786, 0.0
  %v3108 = vadd.f32 %v3106, %v3107
  %v3109 = vsel %vm3053, %v2791, 0.0
  %v3110 = vadd.f32 %v3108, %v3109
  %v3111 = vsel %vm3053, %v2796, 0.0
  %v3112 = vadd.f32 %v3110, %v3111
  %v3113 = vsel %vm3053, %v2801, 0.0
  %v3114 = vadd.f32 %v3112, %v3113
  %v3115 = vsel %vm3053, %v2806, 0.0
  %v3116 = vadd.f32 %v3114, %v3115
  %v3117 = vsel %vm3053, %v2893, 0.0
  %v3118 = vadd.f32 %v3116, %v3117
  %v3119 = vsel %vm3053, %v2898, 0.0
  %v3120 = vadd.f32 %v3118, %v3119
  %v3121 = vsel %vm3053, %v2903, 0.0
  %v3122 = vadd.f32 %v3120, %v3121
  %v3123 = vsel %vm3053, %v2908, 0.0
  %v3124 = vadd.f32 %v3122, %v3123
  %v3125 = vsel %vm3053, %v2913, 0.0
  %v3126 = vadd.f32 %v3124, %v3125
  %v3127 = vsel %vm3053, %v2918, 0.0
  %v3128 = vadd.f32 %v3126, %v3127
  %v3129 = vsel %vm3053, %v2923, 0.0
  %v3130 = vadd.f32 %v3128, %v3129
  %v3131 = vsel %vm3053, %v2928, 0.0
  %v3132 = vadd.f32 %v3130, %v3131
  %v3133 = vsel %vm3053, %v2933, 0.0
  %v3134 = vadd.f32 %v3132, %v3133
  %v3135 = vsel %vm3053, %v2938, 0.0
  %v3136 = vadd.f32 %v3134, %v3135
  %v3137 = vsel %vm3053, %v2943, 0.0
  %v3138 = vadd.f32 %v3136, %v3137
  %v3139 = vsel %vm3053, %v2948, 0.0
  %v3140 = vadd.f32 %v3138, %v3139
  %v3141 = vsel %vm3053, %v2953, 0.0
  %v3142 = vadd.f32 %v3140, %v3141
  %v3143 = vsel %vm3053, %v2958, 0.0
  %v3144 = vadd.f32 %v3142, %v3143
  %v3145 = vsel %vm3053, %v2963, 0.0
  %v3146 = vadd.f32 %v3144, %v3145
  %v3147 = vsel %vm3053, %v2968, 0.0
  %v3148 = vadd.f32 %v3146, %v3147
  %v3149 = vsel %vm3053, %v2973, 0.0
  %v3150 = vadd.f32 %v3148, %v3149
  %v3151 = vsel %vm3053, %v2978, 0.0
  %v3152 = vadd.f32 %v3150, %v3151
  %v3153 = vsel %vm3053, %v2983, 0.0
  %v3154 = vadd.f32 %v3152, %v3153
  %v3155 = vsel %vm3053, %v2988, 0.0
  %v3156 = vadd.f32 %v3154, %v3155
  %v3157 = vsel %vm3053, %v2993, 0.0
  %v3158 = vadd.f32 %v3156, %v3157
  %v3159 = vsel %vm3053, %v2998, 0.0
  %v3160 = vadd.f32 %v3158, %v3159
  %v3161 = vsel %vm3053, %v3003, 0.0
  %v3162 = vadd.f32 %v3160, %v3161
  %v3163 = vsel %vm3053, %v3008, 0.0
  %v3164 = vadd.f32 %v3162, %v3163
  %v3165 = vsel %vm3053, %v3013, 0.0
  %v3166 = vadd.f32 %v3164, %v3165
  %v3167 = vsel %vm3053, %v3018, 0.0
  %v3168 = vadd.f32 %v3166, %v3167
  %v3169 = vsel %vm3053, %v3023, 0.0
  %v3170 = vadd.f32 %v3168, %v3169
  %v3171 = vsel %vm3053, %v3028, 0.0
  %v3172 = vadd.f32 %v3170, %v3171
  %v3173 = vsel %vm3053, %v3033, 0.0
  %v3174 = vadd.f32 %v3172, %v3173
  %v3175 = vsel %vm3053, %v3038, 0.0
  %v3176 = vadd.f32 %v3174, %v3175
  %v3177 = vsel %vm3053, %v3043, 0.0
  %v3178 = vadd.f32 %v3176, %v3177
  %v3179 = vsel %vm3053, %v3048, 0.0
  %v3180 = vadd.f32 %v3178, %v3179
  %v3181 = vrot.slane %v3180, 4
  %v3182 = vadd.f32 %v3180, %v3181
  %v3183 = vrot.slane %v3182, 2
  %v3184 = vadd.f32 %v3182, %v3183
  %v3185 = vrot.slane %v3184, 1
  %v3186 = vadd.f32 %v3184, %v3185
  %v3187 = vmul.f32 %v2651, %v2651
  %v3188 = vmul.f32 %v2656, %v2656
  %v3189 = vmul.f32 %v2661, %v2661
  %v3190 = vmul.f32 %v2666, %v2666
  %v3191 = vmul.f32 %v2671, %v2671
  %v3192 = vmul.f32 %v2676, %v2676
  %v3193 = vmul.f32 %v2681, %v2681
  %v3194 = vmul.f32 %v2686, %v2686
  %v3195 = vmul.f32 %v2691, %v2691
  %v3196 = vmul.f32 %v2696, %v2696
  %v3197 = vmul.f32 %v2701, %v2701
  %v3198 = vmul.f32 %v2706, %v2706
  %v3199 = vmul.f32 %v2711, %v2711
  %v3200 = vmul.f32 %v2716, %v2716
  %v3201 = vmul.f32 %v2721, %v2721
  %v3202 = vmul.f32 %v2726, %v2726
  %v3203 = vmul.f32 %v2731, %v2731
  %v3204 = vmul.f32 %v2736, %v2736
  %v3205 = vmul.f32 %v2741, %v2741
  %v3206 = vmul.f32 %v2746, %v2746
  %v3207 = vmul.f32 %v2751, %v2751
  %v3208 = vmul.f32 %v2756, %v2756
  %v3209 = vmul.f32 %v2761, %v2761
  %v3210 = vmul.f32 %v2766, %v2766
  %v3211 = vmul.f32 %v2771, %v2771
  %v3212 = vmul.f32 %v2776, %v2776
  %v3213 = vmul.f32 %v2781, %v2781
  %v3214 = vmul.f32 %v2786, %v2786
  %v3215 = vmul.f32 %v2791, %v2791
  %v3216 = vmul.f32 %v2796, %v2796
  %v3217 = vmul.f32 %v2801, %v2801
  %v3218 = vmul.f32 %v2806, %v2806
  %v3219 = vmul.f32 %v2893, %v2893
  %v3220 = vmul.f32 %v2898, %v2898
  %v3221 = vmul.f32 %v2903, %v2903
  %v3222 = vmul.f32 %v2908, %v2908
  %v3223 = vmul.f32 %v2913, %v2913
  %v3224 = vmul.f32 %v2918, %v2918
  %v3225 = vmul.f32 %v2923, %v2923
  %v3226 = vmul.f32 %v2928, %v2928
  %v3227 = vmul.f32 %v2933, %v2933
  %v3228 = vmul.f32 %v2938, %v2938
  %v3229 = vmul.f32 %v2943, %v2943
  %v3230 = vmul.f32 %v2948, %v2948
  %v3231 = vmul.f32 %v2953, %v2953
  %v3232 = vmul.f32 %v2958, %v2958
  %v3233 = vmul.f32 %v2963, %v2963
  %v3234 = vmul.f32 %v2968, %v2968
  %v3235 = vmul.f32 %v2973, %v2973
  %v3236 = vmul.f32 %v2978, %v2978
  %v3237 = vmul.f32 %v2983, %v2983
  %v3238 = vmul.f32 %v2988, %v2988
  %v3239 = vmul.f32 %v2993, %v2993
  %v3240 = vmul.f32 %v2998, %v2998
  %v3241 = vmul.f32 %v3003, %v3003
  %v3242 = vmul.f32 %v3008, %v3008
  %v3243 = vmul.f32 %v3013, %v3013
  %v3244 = vmul.f32 %v3018, %v3018
  %v3245 = vmul.f32 %v3023, %v3023
  %v3246 = vmul.f32 %v3028, %v3028
  %v3247 = vmul.f32 %v3033, %v3033
  %v3248 = vmul.f32 %v3038, %v3038
  %v3249 = vmul.f32 %v3043, %v3043
  %v3250 = vmul.f32 %v3048, %v3048
  %v3251 = vsel %vm3053, %v3187, 0.0
  %v3252 = vsel %vm3053, %v3188, 0.0
  %v3253 = vadd.f32 %v3251, %v3252
  %v3254 = vsel %vm3053, %v3189, 0.0
  %v3255 = vadd.f32 %v3253, %v3254
  %v3256 = vsel %vm3053, %v3190, 0.0
  %v3257 = vadd.f32 %v3255, %v3256
  %v3258 = vsel %vm3053, %v3191, 0.0
  %v3259 = vadd.f32 %v3257, %v3258
  %v3260 = vsel %vm3053, %v3192, 0.0
  %v3261 = vadd.f32 %v3259, %v3260
  %v3262 = vsel %vm3053, %v3193, 0.0
  %v3263 = vadd.f32 %v3261, %v3262
  %v3264 = vsel %vm3053, %v3194, 0.0
  %v3265 = vadd.f32 %v3263, %v3264
  %v3266 = vsel %vm3053, %v3195, 0.0
  %v3267 = vadd.f32 %v3265, %v3266
  %v3268 = vsel %vm3053, %v3196, 0.0
  %v3269 = vadd.f32 %v3267, %v3268
  %v3270 = vsel %vm3053, %v3197, 0.0
  %v3271 = vadd.f32 %v3269, %v3270
  %v3272 = vsel %vm3053, %v3198, 0.0
  %v3273 = vadd.f32 %v3271, %v3272
  %v3274 = vsel %vm3053, %v3199, 0.0
  %v3275 = vadd.f32 %v3273, %v3274
  %v3276 = vsel %vm3053, %v3200, 0.0
  %v3277 = vadd.f32 %v3275, %v3276
  %v3278 = vsel %vm3053, %v3201, 0.0
  %v3279 = vadd.f32 %v3277, %v3278
  %v3280 = vsel %vm3053, %v3202, 0.0
  %v3281 = vadd.f32 %v3279, %v3280
  %v3282 = vsel %vm3053, %v3203, 0.0
  %v3283 = vadd.f32 %v3281, %v3282
  %v3284 = vsel %vm3053, %v3204, 0.0
  %v3285 = vadd.f32 %v3283, %v3284
  %v3286 = vsel %vm3053, %v3205, 0.0
  %v3287 = vadd.f32 %v3285, %v3286
  %v3288 = vsel %vm3053, %v3206, 0.0
  %v3289 = vadd.f32 %v3287, %v3288
  %v3290 = vsel %vm3053, %v3207, 0.0
  %v3291 = vadd.f32 %v3289, %v3290
  %v3292 = vsel %vm3053, %v3208, 0.0
  %v3293 = vadd.f32 %v3291, %v3292
  %v3294 = vsel %vm3053, %v3209, 0.0
  %v3295 = vadd.f32 %v3293, %v3294
  %v3296 = vsel %vm3053, %v3210, 0.0
  %v3297 = vadd.f32 %v3295, %v3296
  %v3298 = vsel %vm3053, %v3211, 0.0
  %v3299 = vadd.f32 %v3297, %v3298
  %v3300 = vsel %vm3053, %v3212, 0.0
  %v3301 = vadd.f32 %v3299, %v3300
  %v3302 = vsel %vm3053, %v3213, 0.0
  %v3303 = vadd.f32 %v3301, %v3302
  %v3304 = vsel %vm3053, %v3214, 0.0
  %v3305 = vadd.f32 %v3303, %v3304
  %v3306 = vsel %vm3053, %v3215, 0.0
  %v3307 = vadd.f32 %v3305, %v3306
  %v3308 = vsel %vm3053, %v3216, 0.0
  %v3309 = vadd.f32 %v3307, %v3308
  %v3310 = vsel %vm3053, %v3217, 0.0
  %v3311 = vadd.f32 %v3309, %v3310
  %v3312 = vsel %vm3053, %v3218, 0.0
  %v3313 = vadd.f32 %v3311, %v3312
  %v3314 = vsel %vm3053, %v3219, 0.0
  %v3315 = vadd.f32 %v3313, %v3314
  %v3316 = vsel %vm3053, %v3220, 0.0
  %v3317 = vadd.f32 %v3315, %v3316
  %v3318 = vsel %vm3053, %v3221, 0.0
  %v3319 = vadd.f32 %v3317, %v3318
  %v3320 = vsel %vm3053, %v3222, 0.0
  %v3321 = vadd.f32 %v3319, %v3320
  %v3322 = vsel %vm3053, %v3223, 0.0
  %v3323 = vadd.f32 %v3321, %v3322
  %v3324 = vsel %vm3053, %v3224, 0.0
  %v3325 = vadd.f32 %v3323, %v3324
  %v3326 = vsel %vm3053, %v3225, 0.0
  %v3327 = vadd.f32 %v3325, %v3326
  %v3328 = vsel %vm3053, %v3226, 0.0
  %v3329 = vadd.f32 %v3327, %v3328
  %v3330 = vsel %vm3053, %v3227, 0.0
  %v3331 = vadd.f32 %v3329, %v3330
  %v3332 = vsel %vm3053, %v3228, 0.0
  %v3333 = vadd.f32 %v3331, %v3332
  %v3334 = vsel %vm3053, %v3229, 0.0
  %v3335 = vadd.f32 %v3333, %v3334
  %v3336 = vsel %vm3053, %v3230, 0.0
  %v3337 = vadd.f32 %v3335, %v3336
  %v3338 = vsel %vm3053, %v3231, 0.0
  %v3339 = vadd.f32 %v3337, %v3338
  %v3340 = vsel %vm3053, %v3232, 0.0
  %v3341 = vadd.f32 %v3339, %v3340
  %v3342 = vsel %vm3053, %v3233, 0.0
  %v3343 = vadd.f32 %v3341, %v3342
  %v3344 = vsel %vm3053, %v3234, 0.0
  %v3345 = vadd.f32 %v3343, %v3344
  %v3346 = vsel %vm3053, %v3235, 0.0
  %v3347 = vadd.f32 %v3345, %v3346
  %v3348 = vsel %vm3053, %v3236, 0.0
  %v3349 = vadd.f32 %v3347, %v3348
  %v3350 = vsel %vm3053, %v3237, 0.0
  %v3351 = vadd.f32 %v3349, %v3350
  %v3352 = vsel %vm3053, %v3238, 0.0
  %v3353 = vadd.f32 %v3351, %v3352
  %v3354 = vsel %vm3053, %v3239, 0.0
  %v3355 = vadd.f32 %v3353, %v3354
  %v3356 = vsel %vm3053, %v3240, 0.0
  %v3357 = vadd.f32 %v3355, %v3356
  %v3358 = vsel %vm3053, %v3241, 0.0
  %v3359 = vadd.f32 %v3357, %v3358
  %v3360 = vsel %vm3053, %v3242, 0.0
  %v3361 = vadd.f32 %v3359, %v3360
  %v3362 = vsel %vm3053, %v3243, 0.0
  %v3363 = vadd.f32 %v3361, %v3362
  %v3364 = vsel %vm3053, %v3244, 0.0
  %v3365 = vadd.f32 %v3363, %v3364
  %v3366 = vsel %vm3053, %v3245, 0.0
  %v3367 = vadd.f32 %v3365, %v3366
  %v3368 = vsel %vm3053, %v3246, 0.0
  %v3369 = vadd.f32 %v3367, %v3368
  %v3370 = vsel %vm3053, %v3247, 0.0
  %v3371 = vadd.f32 %v3369, %v3370
  %v3372 = vsel %vm3053, %v3248, 0.0
  %v3373 = vadd.f32 %v3371, %v3372
  %v3374 = vsel %vm3053, %v3249, 0.0
  %v3375 = vadd.f32 %v3373, %v3374
  %v3376 = vsel %vm3053, %v3250, 0.0
  %v3377 = vadd.f32 %v3375, %v3376
  %v3378 = vrot.slane %v3377, 4
  %v3379 = vadd.f32 %v3377, %v3378
  %v3380 = vrot.slane %v3379, 2
  %v3381 = vadd.f32 %v3379, %v3380
  %v3382 = vrot.slane %v3381, 1
  %v3383 = vadd.f32 %v3381, %v3382
  %v3384 = vmul.f32 %v3186, 0.0026041667
  %v3385 = vmul.f32 %v3383, 0.0026041667
  %v3386 = vmul.f32 %v3384, %v3384
  %v3387 = vsub.f32 %v3385, %v3386
  %v3388 = vmax.f32 %v3387, 0.0
  %v3389 = vsub.f32 %v2651, %v3384
  %v3390 = vsub.f32 %v2656, %v3384
  %v3391 = vsub.f32 %v2661, %v3384
  %v3392 = vsub.f32 %v2666, %v3384
  %v3393 = vsub.f32 %v2671, %v3384
  %v3394 = vsub.f32 %v2676, %v3384
  %v3395 = vsub.f32 %v2681, %v3384
  %v3396 = vsub.f32 %v2686, %v3384
  %v3397 = vsub.f32 %v2691, %v3384
  %v3398 = vsub.f32 %v2696, %v3384
  %v3399 = vsub.f32 %v2701, %v3384
  %v3400 = vsub.f32 %v2706, %v3384
  %v3401 = vsub.f32 %v2711, %v3384
  %v3402 = vsub.f32 %v2716, %v3384
  %v3403 = vsub.f32 %v2721, %v3384
  %v3404 = vsub.f32 %v2726, %v3384
  %v3405 = vsub.f32 %v2731, %v3384
  %v3406 = vsub.f32 %v2736, %v3384
  %v3407 = vsub.f32 %v2741, %v3384
  %v3408 = vsub.f32 %v2746, %v3384
  %v3409 = vsub.f32 %v2751, %v3384
  %v3410 = vsub.f32 %v2756, %v3384
  %v3411 = vsub.f32 %v2761, %v3384
  %v3412 = vsub.f32 %v2766, %v3384
  %v3413 = vsub.f32 %v2771, %v3384
  %v3414 = vsub.f32 %v2776, %v3384
  %v3415 = vsub.f32 %v2781, %v3384
  %v3416 = vsub.f32 %v2786, %v3384
  %v3417 = vsub.f32 %v2791, %v3384
  %v3418 = vsub.f32 %v2796, %v3384
  %v3419 = vsub.f32 %v2801, %v3384
  %v3420 = vsub.f32 %v2806, %v3384
  %v3421 = vsub.f32 %v2893, %v3384
  %v3422 = vsub.f32 %v2898, %v3384
  %v3423 = vsub.f32 %v2903, %v3384
  %v3424 = vsub.f32 %v2908, %v3384
  %v3425 = vsub.f32 %v2913, %v3384
  %v3426 = vsub.f32 %v2918, %v3384
  %v3427 = vsub.f32 %v2923, %v3384
  %v3428 = vsub.f32 %v2928, %v3384
  %v3429 = vsub.f32 %v2933, %v3384
  %v3430 = vsub.f32 %v2938, %v3384
  %v3431 = vsub.f32 %v2943, %v3384
  %v3432 = vsub.f32 %v2948, %v3384
  %v3433 = vsub.f32 %v2953, %v3384
  %v3434 = vsub.f32 %v2958, %v3384
  %v3435 = vsub.f32 %v2963, %v3384
  %v3436 = vsub.f32 %v2968, %v3384
  %v3437 = vsub.f32 %v2973, %v3384
  %v3438 = vsub.f32 %v2978, %v3384
  %v3439 = vsub.f32 %v2983, %v3384
  %v3440 = vsub.f32 %v2988, %v3384
  %v3441 = vsub.f32 %v2993, %v3384
  %v3442 = vsub.f32 %v2998, %v3384
  %v3443 = vsub.f32 %v3003, %v3384
  %v3444 = vsub.f32 %v3008, %v3384
  %v3445 = vsub.f32 %v3013, %v3384
  %v3446 = vsub.f32 %v3018, %v3384
  %v3447 = vsub.f32 %v3023, %v3384
  %v3448 = vsub.f32 %v3028, %v3384
  %v3449 = vsub.f32 %v3033, %v3384
  %v3450 = vsub.f32 %v3038, %v3384
  %v3451 = vsub.f32 %v3043, %v3384
  %v3452 = vsub.f32 %v3048, %v3384
  %v3453 = vadd.f32 %v3388, 1e-05
  %v3454 = vrsqrt.pop %v3453
  %v3455 = vmul.f32 %v3389, %v3454
  %v3456 = vmul.f32 %v3390, %v3454
  %v3457 = vmul.f32 %v3391, %v3454
  %v3458 = vmul.f32 %v3392, %v3454
  %v3459 = vmul.f32 %v3393, %v3454
  %v3460 = vmul.f32 %v3394, %v3454
  %v3461 = vmul.f32 %v3395, %v3454
  %v3462 = vmul.f32 %v3396, %v3454
  %v3463 = vmul.f32 %v3397, %v3454
  %v3464 = vmul.f32 %v3398, %v3454
  %v3465 = vmul.f32 %v3399, %v3454
  %v3466 = vmul.f32 %v3400, %v3454
  %v3467 = vmul.f32 %v3401, %v3454
  %v3468 = vmul.f32 %v3402, %v3454
  %v3469 = vmul.f32 %v3403, %v3454
  %v3470 = vmul.f32 %v3404, %v3454
  %v3471 = vmul.f32 %v3405, %v3454
  %v3472 = vmul.f32 %v3406, %v3454
  %v3473 = vmul.f32 %v3407, %v3454
  %v3474 = vmul.f32 %v3408, %v3454
  %v3475 = vmul.f32 %v3409, %v3454
  %v3476 = vmul.f32 %v3410, %v3454
  %v3477 = vmul.f32 %v3411, %v3454
  %v3478 = vmul.f32 %v3412, %v3454
  %v3479 = vmul.f32 %v3413, %v3454
  %v3480 = vmul.f32 %v3414, %v3454
  %v3481 = vmul.f32 %v3415, %v3454
  %v3482 = vmul.f32 %v3416, %v3454
  %v3483 = vmul.f32 %v3417, %v3454
  %v3484 = vmul.f32 %v3418, %v3454
  %v3485 = vmul.f32 %v3419, %v3454
  %v3486 = vmul.f32 %v3420, %v3454
  %v3487 = vmul.f32 %v3421, %v3454
  %v3488 = vmul.f32 %v3422, %v3454
  %v3489 = vmul.f32 %v3423, %v3454
  %v3490 = vmul.f32 %v3424, %v3454
  %v3491 = vmul.f32 %v3425, %v3454
  %v3492 = vmul.f32 %v3426, %v3454
  %v3493 = vmul.f32 %v3427, %v3454
  %v3494 = vmul.f32 %v3428, %v3454
  %v3495 = vmul.f32 %v3429, %v3454
  %v3496 = vmul.f32 %v3430, %v3454
  %v3497 = vmul.f32 %v3431, %v3454
  %v3498 = vmul.f32 %v3432, %v3454
  %v3499 = vmul.f32 %v3433, %v3454
  %v3500 = vmul.f32 %v3434, %v3454
  %v3501 = vmul.f32 %v3435, %v3454
  %v3502 = vmul.f32 %v3436, %v3454
  %v3503 = vmul.f32 %v3437, %v3454
  %v3504 = vmul.f32 %v3438, %v3454
  %v3505 = vmul.f32 %v3439, %v3454
  %v3506 = vmul.f32 %v3440, %v3454
  %v3507 = vmul.f32 %v3441, %v3454
  %v3508 = vmul.f32 %v3442, %v3454
  %v3509 = vmul.f32 %v3443, %v3454
  %v3510 = vmul.f32 %v3444, %v3454
  %v3511 = vmul.f32 %v3445, %v3454
  %v3512 = vmul.f32 %v3446, %v3454
  %v3513 = vmul.f32 %v3447, %v3454
  %v3514 = vmul.f32 %v3448, %v3454
  %v3515 = vmul.f32 %v3449, %v3454
  %v3516 = vmul.f32 %v3450, %v3454
  %v3517 = vmul.f32 %v3451, %v3454
  %v3518 = vmul.f32 %v3452, %v3454
  %v3520 = vlaneseq
  %v3521 = vshrl.u32 %v3520, 7
  %v3522 = vsub.s32 0, %v3521
  %v3523 = vrot.slane %v3051, %v3522
  %v3525 = vmul.f32 %v3455, %v3523
  %v3526 = vmul.f32 %v3456, %v3523
  %v3527 = vmul.f32 %v3457, %v3523
  %v3528 = vmul.f32 %v3458, %v3523
  %v3529 = vmul.f32 %v3459, %v3523
  %v3530 = vmul.f32 %v3460, %v3523
  %v3531 = vmul.f32 %v3461, %v3523
  %v3532 = vmul.f32 %v3462, %v3523
  %v3533 = vmul.f32 %v3463, %v3523
  %v3534 = vmul.f32 %v3464, %v3523
  %v3535 = vmul.f32 %v3465, %v3523
  %v3536 = vmul.f32 %v3466, %v3523
  %v3537 = vmul.f32 %v3467, %v3523
  %v3538 = vmul.f32 %v3468, %v3523
  %v3539 = vmul.f32 %v3469, %v3523
  %v3540 = vmul.f32 %v3470, %v3523
  %v3541 = vmul.f32 %v3471, %v3523
  %v3542 = vmul.f32 %v3472, %v3523
  %v3543 = vmul.f32 %v3473, %v3523
  %v3544 = vmul.f32 %v3474, %v3523
  %v3545 = vmul.f32 %v3475, %v3523
  %v3546 = vmul.f32 %v3476, %v3523
  %v3547 = vmul.f32 %v3477, %v3523
  %v3548 = vmul.f32 %v3478, %v3523
  %v3549 = vmul.f32 %v3479, %v3523
  %v3550 = vmul.f32 %v3480, %v3523
  %v3551 = vmul.f32 %v3481, %v3523
  %v3552 = vmul.f32 %v3482, %v3523
  %v3553 = vmul.f32 %v3483, %v3523
  %v3554 = vmul.f32 %v3484, %v3523
  %v3555 = vmul.f32 %v3485, %v3523
  %v3556 = vmul.f32 %v3486, %v3523
  %v3557 = vmul.f32 %v3487, %v3523
  %v3558 = vmul.f32 %v3488, %v3523
  %v3559 = vmul.f32 %v3489, %v3523
  %v3560 = vmul.f32 %v3490, %v3523
  %v3561 = vmul.f32 %v3491, %v3523
  %v3562 = vmul.f32 %v3492, %v3523
  %v3563 = vmul.f32 %v3493, %v3523
  %v3564 = vmul.f32 %v3494, %v3523
  %v3565 = vmul.f32 %v3495, %v3523
  %v3566 = vmul.f32 %v3496, %v3523
  %v3567 = vmul.f32 %v3497, %v3523
  %v3568 = vmul.f32 %v3498, %v3523
  %v3569 = vmul.f32 %v3499, %v3523
  %v3570 = vmul.f32 %v3500, %v3523
  %v3571 = vmul.f32 %v3501, %v3523
  %v3572 = vmul.f32 %v3502, %v3523
  %v3573 = vmul.f32 %v3503, %v3523
  %v3574 = vmul.f32 %v3504, %v3523
  %v3575 = vmul.f32 %v3505, %v3523
  %v3576 = vmul.f32 %v3506, %v3523
  %v3577 = vmul.f32 %v3507, %v3523
  %v3578 = vmul.f32 %v3508, %v3523
  %v3579 = vmul.f32 %v3509, %v3523
  %v3580 = vmul.f32 %v3510, %v3523
  %v3581 = vmul.f32 %v3511, %v3523
  %v3582 = vmul.f32 %v3512, %v3523
  %v3583 = vmul.f32 %v3513, %v3523
  %v3584 = vmul.f32 %v3514, %v3523
  %v3585 = vmul.f32 %v3515, %v3523
  %v3586 = vmul.f32 %v3516, %v3523
  %v3587 = vmul.f32 %v3517, %v3523
  %v3588 = vmul.f32 %v3518, %v3523
  %v3590 = vlaneseq
  %v3591 = vshrl.u32 %v3590, 7
  %v3592 = vsub.s32 0, %v3591
  %v3593 = vrot.slane %v3052, %v3592
  %v3595 = vadd.f32 %v3525, %v3593
  %v3596 = vadd.f32 %v3526, %v3593
  %v3597 = vadd.f32 %v3527, %v3593
  %v3598 = vadd.f32 %v3528, %v3593
  %v3599 = vadd.f32 %v3529, %v3593
  %v3600 = vadd.f32 %v3530, %v3593
  %v3601 = vadd.f32 %v3531, %v3593
  %v3602 = vadd.f32 %v3532, %v3593
  %v3603 = vadd.f32 %v3533, %v3593
  %v3604 = vadd.f32 %v3534, %v3593
  %v3605 = vadd.f32 %v3535, %v3593
  %v3606 = vadd.f32 %v3536, %v3593
  %v3607 = vadd.f32 %v3537, %v3593
  %v3608 = vadd.f32 %v3538, %v3593
  %v3609 = vadd.f32 %v3539, %v3593
  %v3610 = vadd.f32 %v3540, %v3593
  %v3611 = vadd.f32 %v3541, %v3593
  %v3612 = vadd.f32 %v3542, %v3593
  %v3613 = vadd.f32 %v3543, %v3593
  %v3614 = vadd.f32 %v3544, %v3593
  %v3615 = vadd.f32 %v3545, %v3593
  %v3616 = vadd.f32 %v3546, %v3593
  %v3617 = vadd.f32 %v3547, %v3593
  %v3618 = vadd.f32 %v3548, %v3593
  %v3619 = vadd.f32 %v3549, %v3593
  %v3620 = vadd.f32 %v3550, %v3593
  %v3621 = vadd.f32 %v3551, %v3593
  %v3622 = vadd.f32 %v3552, %v3593
  %v3623 = vadd.f32 %v3553, %v3593
  %v3624 = vadd.f32 %v3554, %v3593
  %v3625 = vadd.f32 %v3555, %v3593
  %v3626 = vadd.f32 %v3556, %v3593
  %v3627 = vadd.f32 %v3557, %v3593
  %v3628 = vadd.f32 %v3558, %v3593
  %v3629 = vadd.f32 %v3559, %v3593
  %v3630 = vadd.f32 %v3560, %v3593
  %v3631 = vadd.f32 %v3561, %v3593
  %v3632 = vadd.f32 %v3562, %v3593
  %v3633 = vadd.f32 %v3563, %v3593
  %v3634 = vadd.f32 %v3564, %v3593
  %v3635 = vadd.f32 %v3565, %v3593
  %v3636 = vadd.f32 %v3566, %v3593
  %v3637 = vadd.f32 %v3567, %v3593
  %v3638 = vadd.f32 %v3568, %v3593
  %v3639 = vadd.f32 %v3569, %v3593
  %v3640 = vadd.f32 %v3570, %v3593
  %v3641 = vadd.f32 %v3571, %v3593
  %v3642 = vadd.f32 %v3572, %v3593
  %v3643 = vadd.f32 %v3573, %v3593
  %v3644 = vadd.f32 %v3574, %v3593
  %v3645 = vadd.f32 %v3575, %v3593
  %v3646 = vadd.f32 %v3576, %v3593
  %v3647 = vadd.f32 %v3577, %v3593
  %v3648 = vadd.f32 %v3578, %v3593
  %v3649 = vadd.f32 %v3579, %v3593
  %v3650 = vadd.f32 %v3580, %v3593
  %v3651 = vadd.f32 %v3581, %v3593
  %v3652 = vadd.f32 %v3582, %v3593
  %v3653 = vadd.f32 %v3583, %v3593
  %v3654 = vadd.f32 %v3584, %v3593
  %v3655 = vadd.f32 %v3585, %v3593
  %v3656 = vadd.f32 %v3586, %v3593
  %v3657 = vadd.f32 %v3587, %v3593
  %v3658 = vadd.f32 %v3588, %v3593
  %v3659 = vmax.f32 %v3595, 0.0
  %v3660 = vmax.f32 %v3596, 0.0
  %v3661 = vmax.f32 %v3597, 0.0
  %v3662 = vmax.f32 %v3598, 0.0
  %v3663 = vmax.f32 %v3599, 0.0
  %v3664 = vmax.f32 %v3600, 0.0
  %v3665 = vmax.f32 %v3601, 0.0
  %v3666 = vmax.f32 %v3602, 0.0
  %v3667 = vmax.f32 %v3603, 0.0
  %v3668 = vmax.f32 %v3604, 0.0
  %v3669 = vmax.f32 %v3605, 0.0
  %v3670 = vmax.f32 %v3606, 0.0
  %v3671 = vmax.f32 %v3607, 0.0
  %v3672 = vmax.f32 %v3608, 0.0
  %v3673 = vmax.f32 %v3609, 0.0
  %v3674 = vmax.f32 %v3610, 0.0
  %v3675 = vmax.f32 %v3611, 0.0
  %v3676 = vmax.f32 %v3612, 0.0
  %v3677 = vmax.f32 %v3613, 0.0
  %v3678 = vmax.f32 %v3614, 0.0
  %v3679 = vmax.f32 %v3615, 0.0
  %v3680 = vmax.f32 %v3616, 0.0
  %v3681 = vmax.f32 %v3617, 0.0
  %v3682 = vmax.f32 %v3618, 0.0
  %v3683 = vmax.f32 %v3619, 0.0
  %v3684 = vmax.f32 %v3620, 0.0
  %v3685 = vmax.f32 %v3621, 0.0
  %v3686 = vmax.f32 %v3622, 0.0
  %v3687 = vmax.f32 %v3623, 0.0
  %v3688 = vmax.f32 %v3624, 0.0
  %v3689 = vmax.f32 %v3625, 0.0
  %v3690 = vmax.f32 %v3626, 0.0
  %v3691 = vmax.f32 %v3627, 0.0
  %v3692 = vmax.f32 %v3628, 0.0
  %v3693 = vmax.f32 %v3629, 0.0
  %v3694 = vmax.f32 %v3630, 0.0
  %v3695 = vmax.f32 %v3631, 0.0
  %v3696 = vmax.f32 %v3632, 0.0
  %v3697 = vmax.f32 %v3633, 0.0
  %v3698 = vmax.f32 %v3634, 0.0
  %v3699 = vmax.f32 %v3635, 0.0
  %v3700 = vmax.f32 %v3636, 0.0
  %v3701 = vmax.f32 %v3637, 0.0
  %v3702 = vmax.f32 %v3638, 0.0
  %v3703 = vmax.f32 %v3639, 0.0
  %v3704 = vmax.f32 %v3640, 0.0
  %v3705 = vmax.f32 %v3641, 0.0
  %v3706 = vmax.f32 %v3642, 0.0
  %v3707 = vmax.f32 %v3643, 0.0
  %v3708 = vmax.f32 %v3644, 0.0
  %v3709 = vmax.f32 %v3645, 0.0
  %v3710 = vmax.f32 %v3646, 0.0
  %v3711 = vmax.f32 %v3647, 0.0
  %v3712 = vmax.f32 %v3648, 0.0
  %v3713 = vmax.f32 %v3649, 0.0
  %v3714 = vmax.f32 %v3650, 0.0
  %v3715 = vmax.f32 %v3651, 0.0
  %v3716 = vmax.f32 %v3652, 0.0
  %v3717 = vmax.f32 %v3653, 0.0
  %v3718 = vmax.f32 %v3654, 0.0
  %v3719 = vmax.f32 %v3655, 0.0
  %v3720 = vmax.f32 %v3656, 0.0
  %v3721 = vmax.f32 %v3657, 0.0
  %v3722 = vmax.f32 %v3658, 0.0
  %v3723 = vadd.s32 %v1367, 256
  %v3724 = vadd.s32 %v1367, 264
  %v3725 = vadd.s32 %v1367, 272
  %v3726 = vadd.s32 %v1367, 280
  %v3727 = vadd.s32 %v1367, 288
  %v3728 = vadd.s32 %v1367, 296
  %v3729 = vadd.s32 %v1367, 304
  %v3730 = vadd.s32 %v1367, 312
  %v3731 = vadd.s32 %v1367, 320
  %v3732 = vadd.s32 %v1367, 328
  %v3733 = vadd.s32 %v1367, 336
  %v3734 = vadd.s32 %v1367, 344
  %v3735 = vadd.s32 %v1367, 352
  %v3736 = vadd.s32 %v1367, 360
  %v3737 = vadd.s32 %v1367, 368
  %v3738 = vadd.s32 %v1367, 376
  %v3739 = vadd.s32 %v1367, 384
  %v3740 = vadd.s32 %v1367, 392
  %v3741 = vadd.s32 %v1367, 400
  %v3742 = vadd.s32 %v1367, 408
  %v3743 = vadd.s32 %v1367, 416
  %v3744 = vadd.s32 %v1367, 424
  %v3745 = vadd.s32 %v1367, 432
  %v3746 = vadd.s32 %v1367, 440
  %v3747 = vadd.s32 %v1367, 448
  %v3748 = vadd.s32 %v1367, 456
  %v3749 = vadd.s32 %v1367, 464
  %v3750 = vadd.s32 %v1367, 472
  %v3751 = vadd.s32 %v1367, 480
  %v3752 = vadd.s32 %v1367, 488
  %v3753 = vadd.s32 %v1367, 496
  %v3754 = vadd.s32 %v1367, 504
  %vm3755 = vcmp.lt.s32.totalorder %v3723, 0
  %v3756 = vsub.s32 0, %v3723
  %v3757 = vsel %vm3755, %v3756, %v3723
  %v3758 = vshrl.u32 %v3757, 4
  %v3759 = vand.u32 %v3757, 15
  %v3760 = vsub.s32 0, %v3759
  %v3761 = vsel %vm3755, %v3760, %v3759
  %vm3762 = vcmp.lt.s32.totalorder %v3724, 0
  %v3763 = vsub.s32 0, %v3724
  %v3764 = vsel %vm3762, %v3763, %v3724
  %v3765 = vshrl.u32 %v3764, 4
  %v3766 = vand.u32 %v3764, 15
  %v3767 = vsub.s32 0, %v3766
  %v3768 = vsel %vm3762, %v3767, %v3766
  %vm3769 = vcmp.lt.s32.totalorder %v3725, 0
  %v3770 = vsub.s32 0, %v3725
  %v3771 = vsel %vm3769, %v3770, %v3725
  %v3772 = vshrl.u32 %v3771, 4
  %v3773 = vand.u32 %v3771, 15
  %v3774 = vsub.s32 0, %v3773
  %v3775 = vsel %vm3769, %v3774, %v3773
  %vm3776 = vcmp.lt.s32.totalorder %v3726, 0
  %v3777 = vsub.s32 0, %v3726
  %v3778 = vsel %vm3776, %v3777, %v3726
  %v3779 = vshrl.u32 %v3778, 4
  %v3780 = vand.u32 %v3778, 15
  %v3781 = vsub.s32 0, %v3780
  %v3782 = vsel %vm3776, %v3781, %v3780
  %vm3783 = vcmp.lt.s32.totalorder %v3727, 0
  %v3784 = vsub.s32 0, %v3727
  %v3785 = vsel %vm3783, %v3784, %v3727
  %v3786 = vshrl.u32 %v3785, 4
  %v3787 = vand.u32 %v3785, 15
  %v3788 = vsub.s32 0, %v3787
  %v3789 = vsel %vm3783, %v3788, %v3787
  %vm3790 = vcmp.lt.s32.totalorder %v3728, 0
  %v3791 = vsub.s32 0, %v3728
  %v3792 = vsel %vm3790, %v3791, %v3728
  %v3793 = vshrl.u32 %v3792, 4
  %v3794 = vand.u32 %v3792, 15
  %v3795 = vsub.s32 0, %v3794
  %v3796 = vsel %vm3790, %v3795, %v3794
  %vm3797 = vcmp.lt.s32.totalorder %v3729, 0
  %v3798 = vsub.s32 0, %v3729
  %v3799 = vsel %vm3797, %v3798, %v3729
  %v3800 = vshrl.u32 %v3799, 4
  %v3801 = vand.u32 %v3799, 15
  %v3802 = vsub.s32 0, %v3801
  %v3803 = vsel %vm3797, %v3802, %v3801
  %vm3804 = vcmp.lt.s32.totalorder %v3730, 0
  %v3805 = vsub.s32 0, %v3730
  %v3806 = vsel %vm3804, %v3805, %v3730
  %v3807 = vshrl.u32 %v3806, 4
  %v3808 = vand.u32 %v3806, 15
  %v3809 = vsub.s32 0, %v3808
  %v3810 = vsel %vm3804, %v3809, %v3808
  %vm3811 = vcmp.lt.s32.totalorder %v3731, 0
  %v3812 = vsub.s32 0, %v3731
  %v3813 = vsel %vm3811, %v3812, %v3731
  %v3814 = vshrl.u32 %v3813, 4
  %v3815 = vand.u32 %v3813, 15
  %v3816 = vsub.s32 0, %v3815
  %v3817 = vsel %vm3811, %v3816, %v3815
  %vm3818 = vcmp.lt.s32.totalorder %v3732, 0
  %v3819 = vsub.s32 0, %v3732
  %v3820 = vsel %vm3818, %v3819, %v3732
  %v3821 = vshrl.u32 %v3820, 4
  %v3822 = vand.u32 %v3820, 15
  %v3823 = vsub.s32 0, %v3822
  %v3824 = vsel %vm3818, %v3823, %v3822
  %vm3825 = vcmp.lt.s32.totalorder %v3733, 0
  %v3826 = vsub.s32 0, %v3733
  %v3827 = vsel %vm3825, %v3826, %v3733
  %v3828 = vshrl.u32 %v3827, 4
  %v3829 = vand.u32 %v3827, 15
  %v3830 = vsub.s32 0, %v3829
  %v3831 = vsel %vm3825, %v3830, %v3829
  %vm3832 = vcmp.lt.s32.totalorder %v3734, 0
  %v3833 = vsub.s32 0, %v3734
  %v3834 = vsel %vm3832, %v3833, %v3734
  %v3835 = vshrl.u32 %v3834, 4
  %v3836 = vand.u32 %v3834, 15
  %v3837 = vsub.s32 0, %v3836
  %v3838 = vsel %vm3832, %v3837, %v3836
  %vm3839 = vcmp.lt.s32.totalorder %v3735, 0
  %v3840 = vsub.s32 0, %v3735
  %v3841 = vsel %vm3839, %v3840, %v3735
  %v3842 = vshrl.u32 %v3841, 4
  %v3843 = vand.u32 %v3841, 15
  %v3844 = vsub.s32 0, %v3843
  %v3845 = vsel %vm3839, %v3844, %v3843
  %vm3846 = vcmp.lt.s32.totalorder %v3736, 0
  %v3847 = vsub.s32 0, %v3736
  %v3848 = vsel %vm3846, %v3847, %v3736
  %v3849 = vshrl.u32 %v3848, 4
  %v3850 = vand.u32 %v3848, 15
  %v3851 = vsub.s32 0, %v3850
  %v3852 = vsel %vm3846, %v3851, %v3850
  %vm3853 = vcmp.lt.s32.totalorder %v3737, 0
  %v3854 = vsub.s32 0, %v3737
  %v3855 = vsel %vm3853, %v3854, %v3737
  %v3856 = vshrl.u32 %v3855, 4
  %v3857 = vand.u32 %v3855, 15
  %v3858 = vsub.s32 0, %v3857
  %v3859 = vsel %vm3853, %v3858, %v3857
  %vm3860 = vcmp.lt.s32.totalorder %v3738, 0
  %v3861 = vsub.s32 0, %v3738
  %v3862 = vsel %vm3860, %v3861, %v3738
  %v3863 = vshrl.u32 %v3862, 4
  %v3864 = vand.u32 %v3862, 15
  %v3865 = vsub.s32 0, %v3864
  %v3866 = vsel %vm3860, %v3865, %v3864
  %vm3867 = vcmp.lt.s32.totalorder %v3739, 0
  %v3868 = vsub.s32 0, %v3739
  %v3869 = vsel %vm3867, %v3868, %v3739
  %v3870 = vshrl.u32 %v3869, 4
  %v3871 = vand.u32 %v3869, 15
  %v3872 = vsub.s32 0, %v3871
  %v3873 = vsel %vm3867, %v3872, %v3871
  %vm3874 = vcmp.lt.s32.totalorder %v3740, 0
  %v3875 = vsub.s32 0, %v3740
  %v3876 = vsel %vm3874, %v3875, %v3740
  %v3877 = vshrl.u32 %v3876, 4
  %v3878 = vand.u32 %v3876, 15
  %v3879 = vsub.s32 0, %v3878
  %v3880 = vsel %vm3874, %v3879, %v3878
  %vm3881 = vcmp.lt.s32.totalorder %v3741, 0
  %v3882 = vsub.s32 0, %v3741
  %v3883 = vsel %vm3881, %v3882, %v3741
  %v3884 = vshrl.u32 %v3883, 4
  %v3885 = vand.u32 %v3883, 15
  %v3886 = vsub.s32 0, %v3885
  %v3887 = vsel %vm3881, %v3886, %v3885
  %vm3888 = vcmp.lt.s32.totalorder %v3742, 0
  %v3889 = vsub.s32 0, %v3742
  %v3890 = vsel %vm3888, %v3889, %v3742
  %v3891 = vshrl.u32 %v3890, 4
  %v3892 = vand.u32 %v3890, 15
  %v3893 = vsub.s32 0, %v3892
  %v3894 = vsel %vm3888, %v3893, %v3892
  %vm3895 = vcmp.lt.s32.totalorder %v3743, 0
  %v3896 = vsub.s32 0, %v3743
  %v3897 = vsel %vm3895, %v3896, %v3743
  %v3898 = vshrl.u32 %v3897, 4
  %v3899 = vand.u32 %v3897, 15
  %v3900 = vsub.s32 0, %v3899
  %v3901 = vsel %vm3895, %v3900, %v3899
  %vm3902 = vcmp.lt.s32.totalorder %v3744, 0
  %v3903 = vsub.s32 0, %v3744
  %v3904 = vsel %vm3902, %v3903, %v3744
  %v3905 = vshrl.u32 %v3904, 4
  %v3906 = vand.u32 %v3904, 15
  %v3907 = vsub.s32 0, %v3906
  %v3908 = vsel %vm3902, %v3907, %v3906
  %vm3909 = vcmp.lt.s32.totalorder %v3745, 0
  %v3910 = vsub.s32 0, %v3745
  %v3911 = vsel %vm3909, %v3910, %v3745
  %v3912 = vshrl.u32 %v3911, 4
  %v3913 = vand.u32 %v3911, 15
  %v3914 = vsub.s32 0, %v3913
  %v3915 = vsel %vm3909, %v3914, %v3913
  %vm3916 = vcmp.lt.s32.totalorder %v3746, 0
  %v3917 = vsub.s32 0, %v3746
  %v3918 = vsel %vm3916, %v3917, %v3746
  %v3919 = vshrl.u32 %v3918, 4
  %v3920 = vand.u32 %v3918, 15
  %v3921 = vsub.s32 0, %v3920
  %v3922 = vsel %vm3916, %v3921, %v3920
  %vm3923 = vcmp.lt.s32.totalorder %v3747, 0
  %v3924 = vsub.s32 0, %v3747
  %v3925 = vsel %vm3923, %v3924, %v3747
  %v3926 = vshrl.u32 %v3925, 4
  %v3927 = vand.u32 %v3925, 15
  %v3928 = vsub.s32 0, %v3927
  %v3929 = vsel %vm3923, %v3928, %v3927
  %vm3930 = vcmp.lt.s32.totalorder %v3748, 0
  %v3931 = vsub.s32 0, %v3748
  %v3932 = vsel %vm3930, %v3931, %v3748
  %v3933 = vshrl.u32 %v3932, 4
  %v3934 = vand.u32 %v3932, 15
  %v3935 = vsub.s32 0, %v3934
  %v3936 = vsel %vm3930, %v3935, %v3934
  %vm3937 = vcmp.lt.s32.totalorder %v3749, 0
  %v3938 = vsub.s32 0, %v3749
  %v3939 = vsel %vm3937, %v3938, %v3749
  %v3940 = vshrl.u32 %v3939, 4
  %v3941 = vand.u32 %v3939, 15
  %v3942 = vsub.s32 0, %v3941
  %v3943 = vsel %vm3937, %v3942, %v3941
  %vm3944 = vcmp.lt.s32.totalorder %v3750, 0
  %v3945 = vsub.s32 0, %v3750
  %v3946 = vsel %vm3944, %v3945, %v3750
  %v3947 = vshrl.u32 %v3946, 4
  %v3948 = vand.u32 %v3946, 15
  %v3949 = vsub.s32 0, %v3948
  %v3950 = vsel %vm3944, %v3949, %v3948
  %vm3951 = vcmp.lt.s32.totalorder %v3751, 0
  %v3952 = vsub.s32 0, %v3751
  %v3953 = vsel %vm3951, %v3952, %v3751
  %v3954 = vshrl.u32 %v3953, 4
  %v3955 = vand.u32 %v3953, 15
  %v3956 = vsub.s32 0, %v3955
  %v3957 = vsel %vm3951, %v3956, %v3955
  %vm3958 = vcmp.lt.s32.totalorder %v3752, 0
  %v3959 = vsub.s32 0, %v3752
  %v3960 = vsel %vm3958, %v3959, %v3752
  %v3961 = vshrl.u32 %v3960, 4
  %v3962 = vand.u32 %v3960, 15
  %v3963 = vsub.s32 0, %v3962
  %v3964 = vsel %vm3958, %v3963, %v3962
  %vm3965 = vcmp.lt.s32.totalorder %v3753, 0
  %v3966 = vsub.s32 0, %v3753
  %v3967 = vsel %vm3965, %v3966, %v3753
  %v3968 = vshrl.u32 %v3967, 4
  %v3969 = vand.u32 %v3967, 15
  %v3970 = vsub.s32 0, %v3969
  %v3971 = vsel %vm3965, %v3970, %v3969
  %vm3972 = vcmp.lt.s32.totalorder %v3754, 0
  %v3973 = vsub.s32 0, %v3754
  %v3974 = vsel %vm3972, %v3973, %v3754
  %v3975 = vshrl.u32 %v3974, 4
  %v3976 = vand.u32 %v3974, 15
  %v3977 = vsub.s32 0, %v3976
  %v3978 = vsel %vm3972, %v3977, %v3976
  %vm3979 = vcmp.ne.s32.totalorder %v3761, 0
  %vm3980 = vcmp.ne.s32.totalorder %v3768, 0
  %vm3981 = vcmp.ne.s32.totalorder %v3775, 0
  %vm3982 = vcmp.ne.s32.totalorder %v3782, 0
  %vm3983 = vcmp.ne.s32.totalorder %v3789, 0
  %vm3984 = vcmp.ne.s32.totalorder %v3796, 0
  %vm3985 = vcmp.ne.s32.totalorder %v3803, 0
  %vm3986 = vcmp.ne.s32.totalorder %v3810, 0
  %vm3987 = vcmp.ne.s32.totalorder %v3817, 0
  %vm3988 = vcmp.ne.s32.totalorder %v3824, 0
  %vm3989 = vcmp.ne.s32.totalorder %v3831, 0
  %vm3990 = vcmp.ne.s32.totalorder %v3838, 0
  %vm3991 = vcmp.ne.s32.totalorder %v3845, 0
  %vm3992 = vcmp.ne.s32.totalorder %v3852, 0
  %vm3993 = vcmp.ne.s32.totalorder %v3859, 0
  %vm3994 = vcmp.ne.s32.totalorder %v3866, 0
  %vm3995 = vcmp.ne.s32.totalorder %v3873, 0
  %vm3996 = vcmp.ne.s32.totalorder %v3880, 0
  %vm3997 = vcmp.ne.s32.totalorder %v3887, 0
  %vm3998 = vcmp.ne.s32.totalorder %v3894, 0
  %vm3999 = vcmp.ne.s32.totalorder %v3901, 0
  %vm4000 = vcmp.ne.s32.totalorder %v3908, 0
  %vm4001 = vcmp.ne.s32.totalorder %v3915, 0
  %vm4002 = vcmp.ne.s32.totalorder %v3922, 0
  %vm4003 = vcmp.ne.s32.totalorder %v3929, 0
  %vm4004 = vcmp.ne.s32.totalorder %v3936, 0
  %vm4005 = vcmp.ne.s32.totalorder %v3943, 0
  %vm4006 = vcmp.ne.s32.totalorder %v3950, 0
  %vm4007 = vcmp.ne.s32.totalorder %v3957, 0
  %vm4008 = vcmp.ne.s32.totalorder %v3964, 0
  %vm4009 = vcmp.ne.s32.totalorder %v3971, 0
  %vm4010 = vcmp.ne.s32.totalorder %v3978, 0
  %vm4011 = vcmp.lt.s32.totalorder %v3761, 0
  %vm4012 = vcmp.lt.s32.totalorder %v3768, 0
  %vm4013 = vcmp.lt.s32.totalorder %v3775, 0
  %vm4014 = vcmp.lt.s32.totalorder %v3782, 0
  %vm4015 = vcmp.lt.s32.totalorder %v3789, 0
  %vm4016 = vcmp.lt.s32.totalorder %v3796, 0
  %vm4017 = vcmp.lt.s32.totalorder %v3803, 0
  %vm4018 = vcmp.lt.s32.totalorder %v3810, 0
  %vm4019 = vcmp.lt.s32.totalorder %v3817, 0
  %vm4020 = vcmp.lt.s32.totalorder %v3824, 0
  %vm4021 = vcmp.lt.s32.totalorder %v3831, 0
  %vm4022 = vcmp.lt.s32.totalorder %v3838, 0
  %vm4023 = vcmp.lt.s32.totalorder %v3845, 0
  %vm4024 = vcmp.lt.s32.totalorder %v3852, 0
  %vm4025 = vcmp.lt.s32.totalorder %v3859, 0
  %vm4026 = vcmp.lt.s32.totalorder %v3866, 0
  %vm4027 = vcmp.lt.s32.totalorder %v3873, 0
  %vm4028 = vcmp.lt.s32.totalorder %v3880, 0
  %vm4029 = vcmp.lt.s32.totalorder %v3887, 0
  %vm4030 = vcmp.lt.s32.totalorder %v3894, 0
  %vm4031 = vcmp.lt.s32.totalorder %v3901, 0
  %vm4032 = vcmp.lt.s32.totalorder %v3908, 0
  %vm4033 = vcmp.lt.s32.totalorder %v3915, 0
  %vm4034 = vcmp.lt.s32.totalorder %v3922, 0
  %vm4035 = vcmp.lt.s32.totalorder %v3929, 0
  %vm4036 = vcmp.lt.s32.totalorder %v3936, 0
  %vm4037 = vcmp.lt.s32.totalorder %v3943, 0
  %vm4038 = vcmp.lt.s32.totalorder %v3950, 0
  %vm4039 = vcmp.lt.s32.totalorder %v3957, 0
  %vm4040 = vcmp.lt.s32.totalorder %v3964, 0
  %vm4041 = vcmp.lt.s32.totalorder %v3971, 0
  %vm4042 = vcmp.lt.s32.totalorder %v3978, 0
  %vm4043 = vmand %vm4011, %vm3979
  %vm4044 = vmand %vm4012, %vm3980
  %vm4045 = vmand %vm4013, %vm3981
  %vm4046 = vmand %vm4014, %vm3982
  %vm4047 = vmand %vm4015, %vm3983
  %vm4048 = vmand %vm4016, %vm3984
  %vm4049 = vmand %vm4017, %vm3985
  %vm4050 = vmand %vm4018, %vm3986
  %vm4051 = vmand %vm4019, %vm3987
  %vm4052 = vmand %vm4020, %vm3988
  %vm4053 = vmand %vm4021, %vm3989
  %vm4054 = vmand %vm4022, %vm3990
  %vm4055 = vmand %vm4023, %vm3991
  %vm4056 = vmand %vm4024, %vm3992
  %vm4057 = vmand %vm4025, %vm3993
  %vm4058 = vmand %vm4026, %vm3994
  %vm4059 = vmand %vm4027, %vm3995
  %vm4060 = vmand %vm4028, %vm3996
  %vm4061 = vmand %vm4029, %vm3997
  %vm4062 = vmand %vm4030, %vm3998
  %vm4063 = vmand %vm4031, %vm3999
  %vm4064 = vmand %vm4032, %vm4000
  %vm4065 = vmand %vm4033, %vm4001
  %vm4066 = vmand %vm4034, %vm4002
  %vm4067 = vmand %vm4035, %vm4003
  %vm4068 = vmand %vm4036, %vm4004
  %vm4069 = vmand %vm4037, %vm4005
  %vm4070 = vmand %vm4038, %vm4006
  %vm4071 = vmand %vm4039, %vm4007
  %vm4072 = vmand %vm4040, %vm4008
  %vm4073 = vmand %vm4041, %vm4009
  %vm4074 = vmand %vm4042, %vm4010
  %v4075 = vadd.s32 %v3761, 16
  %v4076 = vadd.s32 %v3768, 16
  %v4077 = vadd.s32 %v3775, 16
  %v4078 = vadd.s32 %v3782, 16
  %v4079 = vadd.s32 %v3789, 16
  %v4080 = vadd.s32 %v3796, 16
  %v4081 = vadd.s32 %v3803, 16
  %v4082 = vadd.s32 %v3810, 16
  %v4083 = vadd.s32 %v3817, 16
  %v4084 = vadd.s32 %v3824, 16
  %v4085 = vadd.s32 %v3831, 16
  %v4086 = vadd.s32 %v3838, 16
  %v4087 = vadd.s32 %v3845, 16
  %v4088 = vadd.s32 %v3852, 16
  %v4089 = vadd.s32 %v3859, 16
  %v4090 = vadd.s32 %v3866, 16
  %v4091 = vadd.s32 %v3873, 16
  %v4092 = vadd.s32 %v3880, 16
  %v4093 = vadd.s32 %v3887, 16
  %v4094 = vadd.s32 %v3894, 16
  %v4095 = vadd.s32 %v3901, 16
  %v4096 = vadd.s32 %v3908, 16
  %v4097 = vadd.s32 %v3915, 16
  %v4098 = vadd.s32 %v3922, 16
  %v4099 = vadd.s32 %v3929, 16
  %v4100 = vadd.s32 %v3936, 16
  %v4101 = vadd.s32 %v3943, 16
  %v4102 = vadd.s32 %v3950, 16
  %v4103 = vadd.s32 %v3957, 16
  %v4104 = vadd.s32 %v3964, 16
  %v4105 = vadd.s32 %v3971, 16
  %v4106 = vadd.s32 %v3978, 16
  %v4107 = vsel %vm4043, %v4075, %v3761
  %v4108 = vsel %vm4044, %v4076, %v3768
  %v4109 = vsel %vm4045, %v4077, %v3775
  %v4110 = vsel %vm4046, %v4078, %v3782
  %v4111 = vsel %vm4047, %v4079, %v3789
  %v4112 = vsel %vm4048, %v4080, %v3796
  %v4113 = vsel %vm4049, %v4081, %v3803
  %v4114 = vsel %vm4050, %v4082, %v3810
  %v4115 = vsel %vm4051, %v4083, %v3817
  %v4116 = vsel %vm4052, %v4084, %v3824
  %v4117 = vsel %vm4053, %v4085, %v3831
  %v4118 = vsel %vm4054, %v4086, %v3838
  %v4119 = vsel %vm4055, %v4087, %v3845
  %v4120 = vsel %vm4056, %v4088, %v3852
  %v4121 = vsel %vm4057, %v4089, %v3859
  %v4122 = vsel %vm4058, %v4090, %v3866
  %v4123 = vsel %vm4059, %v4091, %v3873
  %v4124 = vsel %vm4060, %v4092, %v3880
  %v4125 = vsel %vm4061, %v4093, %v3887
  %v4126 = vsel %vm4062, %v4094, %v3894
  %v4127 = vsel %vm4063, %v4095, %v3901
  %v4128 = vsel %vm4064, %v4096, %v3908
  %v4129 = vsel %vm4065, %v4097, %v3915
  %v4130 = vsel %vm4066, %v4098, %v3922
  %v4131 = vsel %vm4067, %v4099, %v3929
  %v4132 = vsel %vm4068, %v4100, %v3936
  %v4133 = vsel %vm4069, %v4101, %v3943
  %v4134 = vsel %vm4070, %v4102, %v3950
  %v4135 = vsel %vm4071, %v4103, %v3957
  %v4136 = vsel %vm4072, %v4104, %v3964
  %v4137 = vsel %vm4073, %v4105, %v3971
  %v4138 = vsel %vm4074, %v4106, %v3978
  %vm4139 = vcmp.lt.s32.totalorder %v4107, 12
  %vm4140 = vcmp.lt.s32.totalorder %v4108, 12
  %vm4141 = vcmp.lt.s32.totalorder %v4109, 12
  %vm4142 = vcmp.lt.s32.totalorder %v4110, 12
  %vm4143 = vcmp.lt.s32.totalorder %v4111, 12
  %vm4144 = vcmp.lt.s32.totalorder %v4112, 12
  %vm4145 = vcmp.lt.s32.totalorder %v4113, 12
  %vm4146 = vcmp.lt.s32.totalorder %v4114, 12
  %vm4147 = vcmp.lt.s32.totalorder %v4115, 12
  %vm4148 = vcmp.lt.s32.totalorder %v4116, 12
  %vm4149 = vcmp.lt.s32.totalorder %v4117, 12
  %vm4150 = vcmp.lt.s32.totalorder %v4118, 12
  %vm4151 = vcmp.lt.s32.totalorder %v4119, 12
  %vm4152 = vcmp.lt.s32.totalorder %v4120, 12
  %vm4153 = vcmp.lt.s32.totalorder %v4121, 12
  %vm4154 = vcmp.lt.s32.totalorder %v4122, 12
  %vm4155 = vcmp.lt.s32.totalorder %v4123, 12
  %vm4156 = vcmp.lt.s32.totalorder %v4124, 12
  %vm4157 = vcmp.lt.s32.totalorder %v4125, 12
  %vm4158 = vcmp.lt.s32.totalorder %v4126, 12
  %vm4159 = vcmp.lt.s32.totalorder %v4127, 12
  %vm4160 = vcmp.lt.s32.totalorder %v4128, 12
  %vm4161 = vcmp.lt.s32.totalorder %v4129, 12
  %vm4162 = vcmp.lt.s32.totalorder %v4130, 12
  %vm4163 = vcmp.lt.s32.totalorder %v4131, 12
  %vm4164 = vcmp.lt.s32.totalorder %v4132, 12
  %vm4165 = vcmp.lt.s32.totalorder %v4133, 12
  %vm4166 = vcmp.lt.s32.totalorder %v4134, 12
  %vm4167 = vcmp.lt.s32.totalorder %v4135, 12
  %vm4168 = vcmp.lt.s32.totalorder %v4136, 12
  %vm4169 = vcmp.lt.s32.totalorder %v4137, 12
  %vm4170 = vcmp.lt.s32.totalorder %v4138, 12
  %v4171 = vsel %vm4139, 1, 0
  %v4172 = vsel %vm4140, 1, 0
  %v4173 = vsel %vm4141, 1, 0
  %v4174 = vsel %vm4142, 1, 0
  %v4175 = vsel %vm4143, 1, 0
  %v4176 = vsel %vm4144, 1, 0
  %v4177 = vsel %vm4145, 1, 0
  %v4178 = vsel %vm4146, 1, 0
  %v4179 = vsel %vm4147, 1, 0
  %v4180 = vsel %vm4148, 1, 0
  %v4181 = vsel %vm4149, 1, 0
  %v4182 = vsel %vm4150, 1, 0
  %v4183 = vsel %vm4151, 1, 0
  %v4184 = vsel %vm4152, 1, 0
  %v4185 = vsel %vm4153, 1, 0
  %v4186 = vsel %vm4154, 1, 0
  %v4187 = vsel %vm4155, 1, 0
  %v4188 = vsel %vm4156, 1, 0
  %v4189 = vsel %vm4157, 1, 0
  %v4190 = vsel %vm4158, 1, 0
  %v4191 = vsel %vm4159, 1, 0
  %v4192 = vsel %vm4160, 1, 0
  %v4193 = vsel %vm4161, 1, 0
  %v4194 = vsel %vm4162, 1, 0
  %v4195 = vsel %vm4163, 1, 0
  %v4196 = vsel %vm4164, 1, 0
  %v4197 = vsel %vm4165, 1, 0
  %v4198 = vsel %vm4166, 1, 0
  %v4199 = vsel %vm4167, 1, 0
  %v4200 = vsel %vm4168, 1, 0
  %v4201 = vsel %vm4169, 1, 0
  %v4202 = vsel %vm4170, 1, 0
  %vm4203 = vcmp.eq.s32.totalorder %v4171, 1
  %vm4204 = vcmp.eq.s32.totalorder %v4172, 1
  %vm4205 = vcmp.eq.s32.totalorder %v4173, 1
  %vm4206 = vcmp.eq.s32.totalorder %v4174, 1
  %vm4207 = vcmp.eq.s32.totalorder %v4175, 1
  %vm4208 = vcmp.eq.s32.totalorder %v4176, 1
  %vm4209 = vcmp.eq.s32.totalorder %v4177, 1
  %vm4210 = vcmp.eq.s32.totalorder %v4178, 1
  %vm4211 = vcmp.eq.s32.totalorder %v4179, 1
  %vm4212 = vcmp.eq.s32.totalorder %v4180, 1
  %vm4213 = vcmp.eq.s32.totalorder %v4181, 1
  %vm4214 = vcmp.eq.s32.totalorder %v4182, 1
  %vm4215 = vcmp.eq.s32.totalorder %v4183, 1
  %vm4216 = vcmp.eq.s32.totalorder %v4184, 1
  %vm4217 = vcmp.eq.s32.totalorder %v4185, 1
  %vm4218 = vcmp.eq.s32.totalorder %v4186, 1
  %vm4219 = vcmp.eq.s32.totalorder %v4187, 1
  %vm4220 = vcmp.eq.s32.totalorder %v4188, 1
  %vm4221 = vcmp.eq.s32.totalorder %v4189, 1
  %vm4222 = vcmp.eq.s32.totalorder %v4190, 1
  %vm4223 = vcmp.eq.s32.totalorder %v4191, 1
  %vm4224 = vcmp.eq.s32.totalorder %v4192, 1
  %vm4225 = vcmp.eq.s32.totalorder %v4193, 1
  %vm4226 = vcmp.eq.s32.totalorder %v4194, 1
  %vm4227 = vcmp.eq.s32.totalorder %v4195, 1
  %vm4228 = vcmp.eq.s32.totalorder %v4196, 1
  %vm4229 = vcmp.eq.s32.totalorder %v4197, 1
  %vm4230 = vcmp.eq.s32.totalorder %v4198, 1
  %vm4231 = vcmp.eq.s32.totalorder %v4199, 1
  %vm4232 = vcmp.eq.s32.totalorder %v4200, 1
  %vm4233 = vcmp.eq.s32.totalorder %v4201, 1
  %vm4234 = vcmp.eq.s32.totalorder %v4202, 1
  %v4235 = vsel %vm1487, %v3659, 0.0
  %v4236 = vsel %vm1488, %v3660, 0.0
  %v4237 = vsel %vm1489, %v3661, 0.0
  %v4238 = vsel %vm1490, %v3662, 0.0
  %v4239 = vsel %vm1491, %v3663, 0.0
  %v4240 = vsel %vm1492, %v3664, 0.0
  %v4241 = vsel %vm1493, %v3665, 0.0
  %v4242 = vsel %vm1494, %v3666, 0.0
  %v4243 = vsel %vm2512, %v3667, 0.0
  %v4244 = vsel %vm2513, %v3668, 0.0
  %v4245 = vsel %vm2514, %v3669, 0.0
  %v4246 = vsel %vm2515, %v3670, 0.0
  %v4247 = vsel %vm2516, %v3671, 0.0
  %v4248 = vsel %vm2517, %v3672, 0.0
  %v4249 = vsel %vm2518, %v3673, 0.0
  %v4250 = vsel %vm2519, %v3674, 0.0
  %v4251 = vsel %vm2520, %v3675, 0.0
  %v4252 = vsel %vm2521, %v3676, 0.0
  %v4253 = vsel %vm2522, %v3677, 0.0
  %v4254 = vsel %vm2523, %v3678, 0.0
  %v4255 = vsel %vm2524, %v3679, 0.0
  %v4256 = vsel %vm2525, %v3680, 0.0
  %v4257 = vsel %vm2526, %v3681, 0.0
  %v4258 = vsel %vm2527, %v3682, 0.0
  %v4259 = vsel %vm2528, %v3683, 0.0
  %v4260 = vsel %vm2529, %v3684, 0.0
  %v4261 = vsel %vm2530, %v3685, 0.0
  %v4262 = vsel %vm2531, %v3686, 0.0
  %v4263 = vsel %vm2532, %v3687, 0.0
  %v4264 = vsel %vm2533, %v3688, 0.0
  %v4265 = vsel %vm2534, %v3689, 0.0
  %v4266 = vsel %vm2535, %v3690, 0.0
  %v4267 = vsel %vm4203, %v3691, 0.0
  %v4268 = vsel %vm4204, %v3692, 0.0
  %v4269 = vsel %vm4205, %v3693, 0.0
  %v4270 = vsel %vm4206, %v3694, 0.0
  %v4271 = vsel %vm4207, %v3695, 0.0
  %v4272 = vsel %vm4208, %v3696, 0.0
  %v4273 = vsel %vm4209, %v3697, 0.0
  %v4274 = vsel %vm4210, %v3698, 0.0
  %v4275 = vsel %vm4211, %v3699, 0.0
  %v4276 = vsel %vm4212, %v3700, 0.0
  %v4277 = vsel %vm4213, %v3701, 0.0
  %v4278 = vsel %vm4214, %v3702, 0.0
  %v4279 = vsel %vm4215, %v3703, 0.0
  %v4280 = vsel %vm4216, %v3704, 0.0
  %v4281 = vsel %vm4217, %v3705, 0.0
  %v4282 = vsel %vm4218, %v3706, 0.0
  %v4283 = vsel %vm4219, %v3707, 0.0
  %v4284 = vsel %vm4220, %v3708, 0.0
  %v4285 = vsel %vm4221, %v3709, 0.0
  %v4286 = vsel %vm4222, %v3710, 0.0
  %v4287 = vsel %vm4223, %v3711, 0.0
  %v4288 = vsel %vm4224, %v3712, 0.0
  %v4289 = vsel %vm4225, %v3713, 0.0
  %v4290 = vsel %vm4226, %v3714, 0.0
  %v4291 = vsel %vm4227, %v3715, 0.0
  %v4292 = vsel %vm4228, %v3716, 0.0
  %v4293 = vsel %vm4229, %v3717, 0.0
  %v4294 = vsel %vm4230, %v3718, 0.0
  %v4295 = vsel %vm4231, %v3719, 0.0
  %v4296 = vsel %vm4232, %v3720, 0.0
  %v4297 = vsel %vm4233, %v3721, 0.0
  %v4298 = vsel %vm4234, %v3722, 0.0
  %v4299 = vld [vmem:[%s4] sm:$0xff]
  %v4300 = vld [vmem:[%s4 + $0x8] sm:$0xff]
  %v4301 = vld [vmem:[%s4 + $0x10] sm:$0xff]
  %v4302 = vld [vmem:[%s4 + $0x18] sm:$0xff]
  %v4303 = vld [vmem:[%s4 + $0x20] sm:$0xff]
  %v4304 = vld [vmem:[%s4 + $0x28] sm:$0xff]
  %v4305 = vld [vmem:[%s4 + $0x30] sm:$0xff]
  %v4306 = vld [vmem:[%s4 + $0x38] sm:$0xff]
  %v4308 = vsel %vm3053, %v4235, 0
  %v4311 = vsel %vm3053, %v4236, 0
  %v4314 = vsel %vm3053, %v4237, 0
  %v4317 = vsel %vm3053, %v4238, 0
  %v4320 = vsel %vm3053, %v4239, 0
  %v4323 = vsel %vm3053, %v4240, 0
  %v4326 = vsel %vm3053, %v4241, 0
  %v4329 = vsel %vm3053, %v4242, 0
  %v4332 = vsel %vm3053, %v4243, 0
  %v4335 = vsel %vm3053, %v4244, 0
  %v4338 = vsel %vm3053, %v4245, 0
  %v4341 = vsel %vm3053, %v4246, 0
  %v4344 = vsel %vm3053, %v4247, 0
  %v4347 = vsel %vm3053, %v4248, 0
  %v4350 = vsel %vm3053, %v4249, 0
  %v4353 = vsel %vm3053, %v4250, 0
  %v4356 = vsel %vm3053, %v4251, 0
  %v4359 = vsel %vm3053, %v4252, 0
  %v4362 = vsel %vm3053, %v4253, 0
  %v4365 = vsel %vm3053, %v4254, 0
  %v4368 = vsel %vm3053, %v4255, 0
  %v4371 = vsel %vm3053, %v4256, 0
  %v4374 = vsel %vm3053, %v4257, 0
  %v4377 = vsel %vm3053, %v4258, 0
  %v4380 = vsel %vm3053, %v4259, 0
  %v4383 = vsel %vm3053, %v4260, 0
  %v4386 = vsel %vm3053, %v4261, 0
  %v4389 = vsel %vm3053, %v4262, 0
  %v4392 = vsel %vm3053, %v4263, 0
  %v4395 = vsel %vm3053, %v4264, 0
  %v4398 = vsel %vm3053, %v4265, 0
  %v4401 = vsel %vm3053, %v4266, 0
  %v4404 = vsel %vm3053, %v4267, 0
  %v4407 = vsel %vm3053, %v4268, 0
  %v4410 = vsel %vm3053, %v4269, 0
  %v4413 = vsel %vm3053, %v4270, 0
  %v4416 = vsel %vm3053, %v4271, 0
  %v4419 = vsel %vm3053, %v4272, 0
  %v4422 = vsel %vm3053, %v4273, 0
  %v4425 = vsel %vm3053, %v4274, 0
  %v4428 = vsel %vm3053, %v4275, 0
  %v4431 = vsel %vm3053, %v4276, 0
  %v4434 = vsel %vm3053, %v4277, 0
  %v4437 = vsel %vm3053, %v4278, 0
  %v4440 = vsel %vm3053, %v4279, 0
  %v4443 = vsel %vm3053, %v4280, 0
  %v4446 = vsel %vm3053, %v4281, 0
  %v4449 = vsel %vm3053, %v4282, 0
  %v4452 = vsel %vm3053, %v4283, 0
  %v4455 = vsel %vm3053, %v4284, 0
  %v4458 = vsel %vm3053, %v4285, 0
  %v4461 = vsel %vm3053, %v4286, 0
  %v4464 = vsel %vm3053, %v4287, 0
  %v4467 = vsel %vm3053, %v4288, 0
  %v4470 = vsel %vm3053, %v4289, 0
  %v4473 = vsel %vm3053, %v4290, 0
  %v4476 = vsel %vm3053, %v4291, 0
  %v4479 = vsel %vm3053, %v4292, 0
  %v4482 = vsel %vm3053, %v4293, 0
  %v4485 = vsel %vm3053, %v4294, 0
  %v4488 = vsel %vm3053, %v4295, 0
  %v4491 = vsel %vm3053, %v4296, 0
  %v4494 = vsel %vm3053, %v4297, 0
  %v4497 = vsel %vm3053, %v4298, 0
  %4499 = vmatprep.subr.mxu0 0.0
  %4500 = vmatpush1.msra.mxu0 %v4299
  %4501 = vmatprep.subr.mxu0 0.0
  %4502 = vmatpush1.msra.mxu0 %v4300
  %4503 = vmatprep.subr.mxu0 0.0
  %4504 = vmatpush1.msra.mxu0 %v4301
  %4505 = vmatprep.subr.mxu0 0.0
  %4506 = vmatpush1.msra.mxu0 %v4302
  %4507 = vmatprep.subr.mxu0 0.0
  %4508 = vmatpush1.msra.mxu0 %v4303
  %4509 = vmatprep.subr.mxu0 0.0
  %4510 = vmatpush1.msra.mxu0 %v4304
  %4511 = vmatprep.subr.mxu0 0.0
  %4512 = vmatpush1.msra.mxu0 %v4305
  %4513 = vmatprep.subr.mxu0 0.0
  %4514 = vmatpush1.msra.mxu0 %v4306
  %4515 = vmatprep.subr.mxu0 0.0
  %4516 = vmatpush1.msra.mxu0 0.0
  %4517 = vmatprep.subr.mxu0 0.0
  %4518 = vmatpush1.msra.mxu0 0.0
  %4519 = vmatprep.subr.mxu0 0.0
  %4520 = vmatpush1.msra.mxu0 0.0
  %4521 = vmatprep.subr.mxu0 0.0
  %4522 = vmatpush1.msra.mxu0 0.0
  %4523 = vmatprep.subr.mxu0 0.0
  %4524 = vmatpush1.msra.mxu0 0.0
  %4525 = vmatprep.subr.mxu0 0.0
  %4526 = vmatpush1.msra.mxu0 0.0
  %4527 = vmatprep.subr.mxu0 0.0
  %4528 = vmatpush1.msra.mxu0 0.0
  %4529 = vmatprep.subr.mxu0 0.0
  %4530 = vmatpush1.msra.mxu0 0.0
  %4531 = vmatprep.subr.mxu0 0.0
  %4532 = vmatpush1.msra.mxu0 0.0
  %4533 = vmatprep.subr.mxu0 0.0
  %4534 = vmatpush1.msra.mxu0 0.0
  %4535 = vmatprep.subr.mxu0 0.0
  %4536 = vmatpush1.msra.mxu0 0.0
  %4537 = vmatprep.subr.mxu0 0.0
  %4538 = vmatpush1.msra.mxu0 0.0
  %4539 = vmatprep.subr.mxu0 0.0
  %4540 = vmatpush1.msra.mxu0 0.0
  %4541 = vmatprep.subr.mxu0 0.0
  %4542 = vmatpush1.msra.mxu0 0.0
  %4543 = vmatprep.subr.mxu0 0.0
  %4544 = vmatpush1.msra.mxu0 0.0
  %4545 = vmatprep.subr.mxu0 0.0
  %4546 = vmatpush1.msra.mxu0 0.0
  %4547 = vmatprep.subr.mxu0 0.0
  %4548 = vmatpush1.msra.mxu0 0.0
  %4549 = vmatprep.subr.mxu0 0.0
  %4550 = vmatpush1.msra.mxu0 0.0
  %4551 = vmatprep.subr.mxu0 0.0
  %4552 = vmatpush1.msra.mxu0 0.0
  %4553 = vmatprep.subr.mxu0 0.0
  %4554 = vmatpush1.msra.mxu0 0.0
  %4555 = vmatprep.subr.mxu0 0.0
  %4556 = vmatpush1.msra.mxu0 0.0
  %4557 = vmatprep.subr.mxu0 0.0
  %4558 = vmatpush1.msra.mxu0 0.0
  %4559 = vmatprep.subr.mxu0 0.0
  %4560 = vmatpush1.msra.mxu0 0.0
  %4561 = vmatprep.subr.mxu0 0.0
  %4562 = vmatpush1.msra.mxu0 0.0
  %4563 = vmatprep.mubr.f32.mxu0 0.0
  %4564 = vmatmul.mubr.f32.gmra.mrb[0].mxu0 %v4308
  %v4565 = vpop.f32.mrb[0].mxu0
  %v4566 = vadd.f32 0.0, %v4565
  %v4567 = vpop.f32.mrb[0].mxu0
  %4568 = vmatprep.mubr.f32.mxu0 0.0
  %4569 = vmatmul.mubr.f32.gmra.mrb[0].mxu0 %v4311
  %v4570 = vpop.f32.mrb[0].mxu0
  %v4571 = vadd.f32 0.0, %v4570
  %v4572 = vpop.f32.mrb[0].mxu0
  %4573 = vmatprep.mubr.f32.mxu0 0.0
  %4574 = vmatmul.mubr.f32.gmra.mrb[0].mxu0 %v4314
  %v4575 = vpop.f32.mrb[0].mxu0
  %v4576 = vadd.f32 0.0, %v4575
  %v4577 = vpop.f32.mrb[0].mxu0
  %4578 = vmatprep.mubr.f32.mxu0 0.0
  %4579 = vmatmul.mubr.f32.gmra.mrb[0].mxu0 %v4317
  %v4580 = vpop.f32.mrb[0].mxu0
  %v4581 = vadd.f32 0.0, %v4580
  %v4582 = vpop.f32.mrb[0].mxu0
  %4583 = vmatprep.mubr.f32.mxu0 0.0
  %4584 = vmatmul.mubr.f32.gmra.mrb[0].mxu0 %v4320
  %v4585 = vpop.f32.mrb[0].mxu0
  %v4586 = vadd.f32 0.0, %v4585
  %v4587 = vpop.f32.mrb[0].mxu0
  %4588 = vmatprep.mubr.f32.mxu0 0.0
  %4589 = vmatmul.mubr.f32.gmra.mrb[0].mxu0 %v4323
  %v4590 = vpop.f32.mrb[0].mxu0
  %v4591 = vadd.f32 0.0, %v4590
  %v4592 = vpop.f32.mrb[0].mxu0
  %4593 = vmatprep.mubr.f32.mxu0 0.0
  %4594 = vmatmul.mubr.f32.gmra.mrb[0].mxu0 %v4326
  %v4595 = vpop.f32.mrb[0].mxu0
  %v4596 = vadd.f32 0.0, %v4595
  %v4597 = vpop.f32.mrb[0].mxu0
  %4598 = vmatprep.mubr.f32.mxu0 0.0
  %4599 = vmatmul.mubr.f32.gmra.mrb[0].mxu0 %v4329
  %v4600 = vpop.f32.mrb[0].mxu0
  %v4601 = vadd.f32 0.0, %v4600
  %v4602 = vpop.f32.mrb[0].mxu0
  %4603 = vmatprep.mubr.f32.mxu0 0.0
  %4604 = vmatmul.mubr.f32.gmra.mrb[0].mxu0 %v4332
  %v4605 = vpop.f32.mrb[0].mxu0
  %v4606 = vadd.f32 0.0, %v4605
  %v4607 = vpop.f32.mrb[0].mxu0
  %4608 = vmatprep.mubr.f32.mxu0 0.0
  %4609 = vmatmul.mubr.f32.gmra.mrb[0].mxu0 %v4335
  %v4610 = vpop.f32.mrb[0].mxu0
  %v4611 = vadd.f32 0.0, %v4610
  %v4612 = vpop.f32.mrb[0].mxu0
  %4613 = vmatprep.mubr.f32.mxu0 0.0
  %4614 = vmatmul.mubr.f32.gmra.mrb[0].mxu0 %v4338
  %v4615 = vpop.f32.mrb[0].mxu0
  %v4616 = vadd.f32 0.0, %v4615
  %v4617 = vpop.f32.mrb[0].mxu0
  %4618 = vmatprep.mubr.f32.mxu0 0.0
  %4619 = vmatmul.mubr.f32.gmra.mrb[0].mxu0 %v4341
  %v4620 = vpop.f32.mrb[0].mxu0
  %v4621 = vadd.f32 0.0, %v4620
  %v4622 = vpop.f32.mrb[0].mxu0
  %4623 = vmatprep.mubr.f32.mxu0 0.0
  %4624 = vmatmul.mubr.f32.gmra.mrb[0].mxu0 %v4344
  %v4625 = vpop.f32.mrb[0].mxu0
  %v4626 = vadd.f32 0.0, %v4625
  %v4627 = vpop.f32.mrb[0].mxu0
  %4628 = vmatprep.mubr.f32.mxu0 0.0
  %4629 = vmatmul.mubr.f32.gmra.mrb[0].mxu0 %v4347
  %v4630 = vpop.f32.mrb[0].mxu0
  %v4631 = vadd.f32 0.0, %v4630
  %v4632 = vpop.f32.mrb[0].mxu0
  %4633 = vmatprep.mubr.f32.mxu0 0.0
  %4634 = vmatmul.mubr.f32.gmra.mrb[0].mxu0 %v4350
  %v4635 = vpop.f32.mrb[0].mxu0
  %v4636 = vadd.f32 0.0, %v4635
  %v4637 = vpop.f32.mrb[0].mxu0
  %4638 = vmatprep.mubr.f32.mxu0 0.0
  %4639 = vmatmul.mubr.f32.gmra.mrb[0].mxu0 %v4353
  %v4640 = vpop.f32.mrb[0].mxu0
  %v4641 = vadd.f32 0.0, %v4640
  %v4642 = vpop.f32.mrb[0].mxu0
  %4643 = vmatprep.mubr.f32.mxu0 0.0
  %4644 = vmatmul.mubr.f32.gmra.mrb[0].mxu0 %v4356
  %v4645 = vpop.f32.mrb[0].mxu0
  %v4646 = vadd.f32 0.0, %v4645
  %v4647 = vpop.f32.mrb[0].mxu0
  %4648 = vmatprep.mubr.f32.mxu0 0.0
  %4649 = vmatmul.mubr.f32.gmra.mrb[0].mxu0 %v4359
  %v4650 = vpop.f32.mrb[0].mxu0
  %v4651 = vadd.f32 0.0, %v4650
  %v4652 = vpop.f32.mrb[0].mxu0
  %4653 = vmatprep.mubr.f32.mxu0 0.0
  %4654 = vmatmul.mubr.f32.gmra.mrb[0].mxu0 %v4362
  %v4655 = vpop.f32.mrb[0].mxu0
  %v4656 = vadd.f32 0.0, %v4655
  %v4657 = vpop.f32.mrb[0].mxu0
  %4658 = vmatprep.mubr.f32.mxu0 0.0
  %4659 = vmatmul.mubr.f32.gmra.mrb[0].mxu0 %v4365
  %v4660 = vpop.f32.mrb[0].mxu0
  %v4661 = vadd.f32 0.0, %v4660
  %v4662 = vpop.f32.mrb[0].mxu0
  %4663 = vmatprep.mubr.f32.mxu0 0.0
  %4664 = vmatmul.mubr.f32.gmra.mrb[0].mxu0 %v4368
  %v4665 = vpop.f32.mrb[0].mxu0
  %v4666 = vadd.f32 0.0, %v4665
  %v4667 = vpop.f32.mrb[0].mxu0
  %4668 = vmatprep.mubr.f32.mxu0 0.0
  %4669 = vmatmul.mubr.f32.gmra.mrb[0].mxu0 %v4371
  %v4670 = vpop.f32.mrb[0].mxu0
  %v4671 = vadd.f32 0.0, %v4670
  %v4672 = vpop.f32.mrb[0].mxu0
  %4673 = vmatprep.mubr.f32.mxu0 0.0
  %4674 = vmatmul.mubr.f32.gmra.mrb[0].mxu0 %v4374
  %v4675 = vpop.f32.mrb[0].mxu0
  %v4676 = vadd.f32 0.0, %v4675
  %v4677 = vpop.f32.mrb[0].mxu0
  %4678 = vmatprep.mubr.f32.mxu0 0.0
  %4679 = vmatmul.mubr.f32.gmra.mrb[0].mxu0 %v4377
  %v4680 = vpop.f32.mrb[0].mxu0
  %v4681 = vadd.f32 0.0, %v4680
  %v4682 = vpop.f32.mrb[0].mxu0
  %4683 = vmatprep.mubr.f32.mxu0 0.0
  %4684 = vmatmul.mubr.f32.gmra.mrb[0].mxu0 %v4380
  %v4685 = vpop.f32.mrb[0].mxu0
  %v4686 = vadd.f32 0.0, %v4685
  %v4687 = vpop.f32.mrb[0].mxu0
  %4688 = vmatprep.mubr.f32.mxu0 0.0
  %4689 = vmatmul.mubr.f32.gmra.mrb[0].mxu0 %v4383
  %v4690 = vpop.f32.mrb[0].mxu0
  %v4691 = vadd.f32 0.0, %v4690
  %v4692 = vpop.f32.mrb[0].mxu0
  %4693 = vmatprep.mubr.f32.mxu0 0.0
  %4694 = vmatmul.mubr.f32.gmra.mrb[0].mxu0 %v4386
  %v4695 = vpop.f32.mrb[0].mxu0
  %v4696 = vadd.f32 0.0, %v4695
  %v4697 = vpop.f32.mrb[0].mxu0
  %4698 = vmatprep.mubr.f32.mxu0 0.0
  %4699 = vmatmul.mubr.f32.gmra.mrb[0].mxu0 %v4389
  %v4700 = vpop.f32.mrb[0].mxu0
  %v4701 = vadd.f32 0.0, %v4700
  %v4702 = vpop.f32.mrb[0].mxu0
  %4703 = vmatprep.mubr.f32.mxu0 0.0
  %4704 = vmatmul.mubr.f32.gmra.mrb[0].mxu0 %v4392
  %v4705 = vpop.f32.mrb[0].mxu0
  %v4706 = vadd.f32 0.0, %v4705
  %v4707 = vpop.f32.mrb[0].mxu0
  %4708 = vmatprep.mubr.f32.mxu0 0.0
  %4709 = vmatmul.mubr.f32.gmra.mrb[0].mxu0 %v4395
  %v4710 = vpop.f32.mrb[0].mxu0
  %v4711 = vadd.f32 0.0, %v4710
  %v4712 = vpop.f32.mrb[0].mxu0
  %4713 = vmatprep.mubr.f32.mxu0 0.0
  %4714 = vmatmul.mubr.f32.gmra.mrb[0].mxu0 %v4398
  %v4715 = vpop.f32.mrb[0].mxu0
  %v4716 = vadd.f32 0.0, %v4715
  %v4717 = vpop.f32.mrb[0].mxu0
  %4718 = vmatprep.mubr.f32.mxu0 0.0
  %4719 = vmatmul.mubr.f32.gmra.mrb[0].mxu0 %v4401
  %v4720 = vpop.f32.mrb[0].mxu0
  %v4721 = vadd.f32 0.0, %v4720
  %v4722 = vpop.f32.mrb[0].mxu0
  %4723 = vmatprep.mubr.f32.mxu0 0.0
  %4724 = vmatmul.mubr.f32.gmra.mrb[0].mxu0 %v4404
  %v4725 = vpop.f32.mrb[0].mxu0
  %v4726 = vadd.f32 0.0, %v4725
  %v4727 = vpop.f32.mrb[0].mxu0
  %4728 = vmatprep.mubr.f32.mxu0 0.0
  %4729 = vmatmul.mubr.f32.gmra.mrb[0].mxu0 %v4407
  %v4730 = vpop.f32.mrb[0].mxu0
  %v4731 = vadd.f32 0.0, %v4730
  %v4732 = vpop.f32.mrb[0].mxu0
  %4733 = vmatprep.mubr.f32.mxu0 0.0
  %4734 = vmatmul.mubr.f32.gmra.mrb[0].mxu0 %v4410
  %v4735 = vpop.f32.mrb[0].mxu0
  %v4736 = vadd.f32 0.0, %v4735
  %v4737 = vpop.f32.mrb[0].mxu0
  %4738 = vmatprep.mubr.f32.mxu0 0.0
  %4739 = vmatmul.mubr.f32.gmra.mrb[0].mxu0 %v4413
  %v4740 = vpop.f32.mrb[0].mxu0
  %v4741 = vadd.f32 0.0, %v4740
  %v4742 = vpop.f32.mrb[0].mxu0
  %4743 = vmatprep.mubr.f32.mxu0 0.0
  %4744 = vmatmul.mubr.f32.gmra.mrb[0].mxu0 %v4416
  %v4745 = vpop.f32.mrb[0].mxu0
  %v4746 = vadd.f32 0.0, %v4745
  %v4747 = vpop.f32.mrb[0].mxu0
  %4748 = vmatprep.mubr.f32.mxu0 0.0
  %4749 = vmatmul.mubr.f32.gmra.mrb[0].mxu0 %v4419
  %v4750 = vpop.f32.mrb[0].mxu0
  %v4751 = vadd.f32 0.0, %v4750
  %v4752 = vpop.f32.mrb[0].mxu0
  %4753 = vmatprep.mubr.f32.mxu0 0.0
  %4754 = vmatmul.mubr.f32.gmra.mrb[0].mxu0 %v4422
  %v4755 = vpop.f32.mrb[0].mxu0
  %v4756 = vadd.f32 0.0, %v4755
  %v4757 = vpop.f32.mrb[0].mxu0
  %4758 = vmatprep.mubr.f32.mxu0 0.0
  %4759 = vmatmul.mubr.f32.gmra.mrb[0].mxu0 %v4425
  %v4760 = vpop.f32.mrb[0].mxu0
  %v4761 = vadd.f32 0.0, %v4760
  %v4762 = vpop.f32.mrb[0].mxu0
  %4763 = vmatprep.mubr.f32.mxu0 0.0
  %4764 = vmatmul.mubr.f32.gmra.mrb[0].mxu0 %v4428
  %v4765 = vpop.f32.mrb[0].mxu0
  %v4766 = vadd.f32 0.0, %v4765
  %v4767 = vpop.f32.mrb[0].mxu0
  %4768 = vmatprep.mubr.f32.mxu0 0.0
  %4769 = vmatmul.mubr.f32.gmra.mrb[0].mxu0 %v4431
  %v4770 = vpop.f32.mrb[0].mxu0
  %v4771 = vadd.f32 0.0, %v4770
  %v4772 = vpop.f32.mrb[0].mxu0
  %4773 = vmatprep.mubr.f32.mxu0 0.0
  %4774 = vmatmul.mubr.f32.gmra.mrb[0].mxu0 %v4434
  %v4775 = vpop.f32.mrb[0].mxu0
  %v4776 = vadd.f32 0.0, %v4775
  %v4777 = vpop.f32.mrb[0].mxu0
  %4778 = vmatprep.mubr.f32.mxu0 0.0
  %4779 = vmatmul.mubr.f32.gmra.mrb[0].mxu0 %v4437
  %v4780 = vpop.f32.mrb[0].mxu0
  %v4781 = vadd.f32 0.0, %v4780
  %v4782 = vpop.f32.mrb[0].mxu0
  %4783 = vmatprep.mubr.f32.mxu0 0.0
  %4784 = vmatmul.mubr.f32.gmra.mrb[0].mxu0 %v4440
  %v4785 = vpop.f32.mrb[0].mxu0
  %v4786 = vadd.f32 0.0, %v4785
  %v4787 = vpop.f32.mrb[0].mxu0
  %4788 = vmatprep.mubr.f32.mxu0 0.0
  %4789 = vmatmul.mubr.f32.gmra.mrb[0].mxu0 %v4443
  %v4790 = vpop.f32.mrb[0].mxu0
  %v4791 = vadd.f32 0.0, %v4790
  %v4792 = vpop.f32.mrb[0].mxu0
  %4793 = vmatprep.mubr.f32.mxu0 0.0
  %4794 = vmatmul.mubr.f32.gmra.mrb[0].mxu0 %v4446
  %v4795 = vpop.f32.mrb[0].mxu0
  %v4796 = vadd.f32 0.0, %v4795
  %v4797 = vpop.f32.mrb[0].mxu0
  %4798 = vmatprep.mubr.f32.mxu0 0.0
  %4799 = vmatmul.mubr.f32.gmra.mrb[0].mxu0 %v4449
  %v4800 = vpop.f32.mrb[0].mxu0
  %v4801 = vadd.f32 0.0, %v4800
  %v4802 = vpop.f32.mrb[0].mxu0
  %4803 = vmatprep.mubr.f32.mxu0 0.0
  %4804 = vmatmul.mubr.f32.gmra.mrb[0].mxu0 %v4452
  %v4805 = vpop.f32.mrb[0].mxu0
  %v4806 = vadd.f32 0.0, %v4805
  %v4807 = vpop.f32.mrb[0].mxu0
  %4808 = vmatprep.mubr.f32.mxu0 0.0
  %4809 = vmatmul.mubr.f32.gmra.mrb[0].mxu0 %v4455
  %v4810 = vpop.f32.mrb[0].mxu0
  %v4811 = vadd.f32 0.0, %v4810
  %v4812 = vpop.f32.mrb[0].mxu0
  %4813 = vmatprep.mubr.f32.mxu0 0.0
  %4814 = vmatmul.mubr.f32.gmra.mrb[0].mxu0 %v4458
  %v4815 = vpop.f32.mrb[0].mxu0
  %v4816 = vadd.f32 0.0, %v4815
  %v4817 = vpop.f32.mrb[0].mxu0
  %4818 = vmatprep.mubr.f32.mxu0 0.0
  %4819 = vmatmul.mubr.f32.gmra.mrb[0].mxu0 %v4461
  %v4820 = vpop.f32.mrb[0].mxu0
  %v4821 = vadd.f32 0.0, %v4820
  %v4822 = vpop.f32.mrb[0].mxu0
  %4823 = vmatprep.mubr.f32.mxu0 0.0
  %4824 = vmatmul.mubr.f32.gmra.mrb[0].mxu0 %v4464
  %v4825 = vpop.f32.mrb[0].mxu0
  %v4826 = vadd.f32 0.0, %v4825
  %v4827 = vpop.f32.mrb[0].mxu0
  %4828 = vmatprep.mubr.f32.mxu0 0.0
  %4829 = vmatmul.mubr.f32.gmra.mrb[0].mxu0 %v4467
  %v4830 = vpop.f32.mrb[0].mxu0
  %v4831 = vadd.f32 0.0, %v4830
  %v4832 = vpop.f32.mrb[0].mxu0
  %4833 = vmatprep.mubr.f32.mxu0 0.0
  %4834 = vmatmul.mubr.f32.gmra.mrb[0].mxu0 %v4470
  %v4835 = vpop.f32.mrb[0].mxu0
  %v4836 = vadd.f32 0.0, %v4835
  %v4837 = vpop.f32.mrb[0].mxu0
  %4838 = vmatprep.mubr.f32.mxu0 0.0
  %4839 = vmatmul.mubr.f32.gmra.mrb[0].mxu0 %v4473
  %v4840 = vpop.f32.mrb[0].mxu0
  %v4841 = vadd.f32 0.0, %v4840
  %v4842 = vpop.f32.mrb[0].mxu0
  %4843 = vmatprep.mubr.f32.mxu0 0.0
  %4844 = vmatmul.mubr.f32.gmra.mrb[0].mxu0 %v4476
  %v4845 = vpop.f32.mrb[0].mxu0
  %v4846 = vadd.f32 0.0, %v4845
  %v4847 = vpop.f32.mrb[0].mxu0
  %4848 = vmatprep.mubr.f32.mxu0 0.0
  %4849 = vmatmul.mubr.f32.gmra.mrb[0].mxu0 %v4479
  %v4850 = vpop.f32.mrb[0].mxu0
  %v4851 = vadd.f32 0.0, %v4850
  %v4852 = vpop.f32.mrb[0].mxu0
  %4853 = vmatprep.mubr.f32.mxu0 0.0
  %4854 = vmatmul.mubr.f32.gmra.mrb[0].mxu0 %v4482
  %v4855 = vpop.f32.mrb[0].mxu0
  %v4856 = vadd.f32 0.0, %v4855
  %v4857 = vpop.f32.mrb[0].mxu0
  %4858 = vmatprep.mubr.f32.mxu0 0.0
  %4859 = vmatmul.mubr.f32.gmra.mrb[0].mxu0 %v4485
  %v4860 = vpop.f32.mrb[0].mxu0
  %v4861 = vadd.f32 0.0, %v4860
  %v4862 = vpop.f32.mrb[0].mxu0
  %4863 = vmatprep.mubr.f32.mxu0 0.0
  %4864 = vmatmul.mubr.f32.gmra.mrb[0].mxu0 %v4488
  %v4865 = vpop.f32.mrb[0].mxu0
  %v4866 = vadd.f32 0.0, %v4865
  %v4867 = vpop.f32.mrb[0].mxu0
  %4868 = vmatprep.mubr.f32.mxu0 0.0
  %4869 = vmatmul.mubr.f32.gmra.mrb[0].mxu0 %v4491
  %v4870 = vpop.f32.mrb[0].mxu0
  %v4871 = vadd.f32 0.0, %v4870
  %v4872 = vpop.f32.mrb[0].mxu0
  %4873 = vmatprep.mubr.f32.mxu0 0.0
  %4874 = vmatmul.mubr.f32.gmra.mrb[0].mxu0 %v4494
  %v4875 = vpop.f32.mrb[0].mxu0
  %v4876 = vadd.f32 0.0, %v4875
  %v4877 = vpop.f32.mrb[0].mxu0
  %4878 = vmatprep.mubr.f32.mxu0 0.0
  %4879 = vmatmul.mubr.f32.gmra.mrb[0].mxu0 %v4497
  %v4880 = vpop.f32.mrb[0].mxu0
  %v4881 = vadd.f32 0.0, %v4880
  %v4882 = vpop.f32.mrb[0].mxu0
  %4883 = vdwg.mxu0
  %s4884 = scalar_lea.vmem %s4, 64
  %v4885 = vld [vmem:[%s4884] sm:$0xff]
  %v4886 = vld [vmem:[%s4884 + $0x8] sm:$0xff]
  %v4887 = vld [vmem:[%s4884 + $0x10] sm:$0xff]
  %v4888 = vld [vmem:[%s4884 + $0x18] sm:$0xff]
  %v4889 = vld [vmem:[%s4884 + $0x20] sm:$0xff]
  %v4890 = vld [vmem:[%s4884 + $0x28] sm:$0xff]
  %v4891 = vld [vmem:[%s4884 + $0x30] sm:$0xff]
  %v4892 = vld [vmem:[%s4884 + $0x38] sm:$0xff]
  %4893 = vmatprep.subr.mxu0 0.0
  %4894 = vmatpush1.msra.mxu0 %v4885
  %4895 = vmatprep.subr.mxu0 0.0
  %4896 = vmatpush1.msra.mxu0 %v4886
  %4897 = vmatprep.subr.mxu0 0.0
  %4898 = vmatpush1.msra.mxu0 %v4887
  %4899 = vmatprep.subr.mxu0 0.0
  %4900 = vmatpush1.msra.mxu0 %v4888
  %4901 = vmatprep.subr.mxu0 0.0
  %4902 = vmatpush1.msra.mxu0 %v4889
  %4903 = vmatprep.subr.mxu0 0.0
  %4904 = vmatpush1.msra.mxu0 %v4890
  %4905 = vmatprep.subr.mxu0 0.0
  %4906 = vmatpush1.msra.mxu0 %v4891
  %4907 = vmatprep.subr.mxu0 0.0
  %4908 = vmatpush1.msra.mxu0 %v4892
  %4909 = vmatprep.subr.mxu0 0.0
  %4910 = vmatpush1.msra.mxu0 0.0
  %4911 = vmatprep.subr.mxu0 0.0
  %4912 = vmatpush1.msra.mxu0 0.0
  %4913 = vmatprep.subr.mxu0 0.0
  %4914 = vmatpush1.msra.mxu0 0.0
  %4915 = vmatprep.subr.mxu0 0.0
  %4916 = vmatpush1.msra.mxu0 0.0
  %4917 = vmatprep.subr.mxu0 0.0
  %4918 = vmatpush1.msra.mxu0 0.0
  %4919 = vmatprep.subr.mxu0 0.0
  %4920 = vmatpush1.msra.mxu0 0.0
  %4921 = vmatprep.subr.mxu0 0.0
  %4922 = vmatpush1.msra.mxu0 0.0
  %4923 = vmatprep.subr.mxu0 0.0
  %4924 = vmatpush1.msra.mxu0 0.0
  %4925 = vmatprep.subr.mxu0 0.0
  %4926 = vmatpush1.msra.mxu0 0.0
  %4927 = vmatprep.subr.mxu0 0.0
  %4928 = vmatpush1.msra.mxu0 0.0
  %4929 = vmatprep.subr.mxu0 0.0
  %4930 = vmatpush1.msra.mxu0 0.0
  %4931 = vmatprep.subr.mxu0 0.0
  %4932 = vmatpush1.msra.mxu0 0.0
  %4933 = vmatprep.subr.mxu0 0.0
  %4934 = vmatpush1.msra.mxu0 0.0
  %4935 = vmatprep.subr.mxu0 0.0
  %4936 = vmatpush1.msra.mxu0 0.0
  %4937 = vmatprep.subr.mxu0 0.0
  %4938 = vmatpush1.msra.mxu0 0.0
  %4939 = vmatprep.subr.mxu0 0.0
  %4940 = vmatpush1.msra.mxu0 0.0
  %4941 = vmatprep.subr.mxu0 0.0
  %4942 = vmatpush1.msra.mxu0 0.0
  %4943 = vmatprep.subr.mxu0 0.0
  %4944 = vmatpush1.msra.mxu0 0.0
  %4945 = vmatprep.subr.mxu0 0.0
  %4946 = vmatpush1.msra.mxu0 0.0
  %4947 = vmatprep.subr.mxu0 0.0
  %4948 = vmatpush1.msra.mxu0 0.0
  %4949 = vmatprep.subr.mxu0 0.0
  %4950 = vmatpush1.msra.mxu0 0.0
  %4951 = vmatprep.subr.mxu0 0.0
  %4952 = vmatpush1.msra.mxu0 0.0
  %4953 = vmatprep.subr.mxu0 0.0
  %4954 = vmatpush1.msra.mxu0 0.0
  %4955 = vmatprep.subr.mxu0 0.0
  %4956 = vmatpush1.msra.mxu0 0.0
  %4957 = vmatprep.mubr.f32.mxu0 0.0
  %4958 = vmatmul.mubr.f32.gmra.mrb[0].mxu0 %v4308
  %v4959 = vpop.f32.mrb[0].mxu0
  %v4960 = vadd.f32 0.0, %v4959
  %v4961 = vpop.f32.mrb[0].mxu0
  %4962 = vmatprep.mubr.f32.mxu0 0.0
  %4963 = vmatmul.mubr.f32.gmra.mrb[0].mxu0 %v4311
  %v4964 = vpop.f32.mrb[0].mxu0
  %v4965 = vadd.f32 0.0, %v4964
  %v4966 = vpop.f32.mrb[0].mxu0
  %4967 = vmatprep.mubr.f32.mxu0 0.0
  %4968 = vmatmul.mubr.f32.gmra.mrb[0].mxu0 %v4314
  %v4969 = vpop.f32.mrb[0].mxu0
  %v4970 = vadd.f32 0.0, %v4969
  %v4971 = vpop.f32.mrb[0].mxu0
  %4972 = vmatprep.mubr.f32.mxu0 0.0
  %4973 = vmatmul.mubr.f32.gmra.mrb[0].mxu0 %v4317
  %v4974 = vpop.f32.mrb[0].mxu0
  %v4975 = vadd.f32 0.0, %v4974
  %v4976 = vpop.f32.mrb[0].mxu0
  %4977 = vmatprep.mubr.f32.mxu0 0.0
  %4978 = vmatmul.mubr.f32.gmra.mrb[0].mxu0 %v4320
  %v4979 = vpop.f32.mrb[0].mxu0
  %v4980 = vadd.f32 0.0, %v4979
  %v4981 = vpop.f32.mrb[0].mxu0
  %4982 = vmatprep.mubr.f32.mxu0 0.0
  %4983 = vmatmul.mubr.f32.gmra.mrb[0].mxu0 %v4323
  %v4984 = vpop.f32.mrb[0].mxu0
  %v4985 = vadd.f32 0.0, %v4984
  %v4986 = vpop.f32.mrb[0].mxu0
  %4987 = vmatprep.mubr.f32.mxu0 0.0
  %4988 = vmatmul.mubr.f32.gmra.mrb[0].mxu0 %v4326
  %v4989 = vpop.f32.mrb[0].mxu0
  %v4990 = vadd.f32 0.0, %v4989
  %v4991 = vpop.f32.mrb[0].mxu0
  %4992 = vmatprep.mubr.f32.mxu0 0.0
  %4993 = vmatmul.mubr.f32.gmra.mrb[0].mxu0 %v4329
  %v4994 = vpop.f32.mrb[0].mxu0
  %v4995 = vadd.f32 0.0, %v4994
  %v4996 = vpop.f32.mrb[0].mxu0
  %4997 = vmatprep.mubr.f32.mxu0 0.0
  %4998 = vmatmul.mubr.f32.gmra.mrb[0].mxu0 %v4332
  %v4999 = vpop.f32.mrb[0].mxu0
  %v5000 = vadd.f32 0.0, %v4999
  %v5001 = vpop.f32.mrb[0].mxu0
  %5002 = vmatprep.mubr.f32.mxu0 0.0
  %5003 = vmatmul.mubr.f32.gmra.mrb[0].mxu0 %v4335
  %v5004 = vpop.f32.mrb[0].mxu0
  %v5005 = vadd.f32 0.0, %v5004
  %v5006 = vpop.f32.mrb[0].mxu0
  %5007 = vmatprep.mubr.f32.mxu0 0.0
  %5008 = vmatmul.mubr.f32.gmra.mrb[0].mxu0 %v4338
  %v5009 = vpop.f32.mrb[0].mxu0
  %v5010 = vadd.f32 0.0, %v5009
  %v5011 = vpop.f32.mrb[0].mxu0
  %5012 = vmatprep.mubr.f32.mxu0 0.0
  %5013 = vmatmul.mubr.f32.gmra.mrb[0].mxu0 %v4341
  %v5014 = vpop.f32.mrb[0].mxu0
  %v5015 = vadd.f32 0.0, %v5014
  %v5016 = vpop.f32.mrb[0].mxu0
  %5017 = vmatprep.mubr.f32.mxu0 0.0
  %5018 = vmatmul.mubr.f32.gmra.mrb[0].mxu0 %v4344
  %v5019 = vpop.f32.mrb[0].mxu0
  %v5020 = vadd.f32 0.0, %v5019
  %v5021 = vpop.f32.mrb[0].mxu0
  %5022 = vmatprep.mubr.f32.mxu0 0.0
  %5023 = vmatmul.mubr.f32.gmra.mrb[0].mxu0 %v4347
  %v5024 = vpop.f32.mrb[0].mxu0
  %v5025 = vadd.f32 0.0, %v5024
  %v5026 = vpop.f32.mrb[0].mxu0
  %5027 = vmatprep.mubr.f32.mxu0 0.0
  %5028 = vmatmul.mubr.f32.gmra.mrb[0].mxu0 %v4350
  %v5029 = vpop.f32.mrb[0].mxu0
  %v5030 = vadd.f32 0.0, %v5029
  %v5031 = vpop.f32.mrb[0].mxu0
  %5032 = vmatprep.mubr.f32.mxu0 0.0
  %5033 = vmatmul.mubr.f32.gmra.mrb[0].mxu0 %v4353
  %v5034 = vpop.f32.mrb[0].mxu0
  %v5035 = vadd.f32 0.0, %v5034
  %v5036 = vpop.f32.mrb[0].mxu0
  %5037 = vmatprep.mubr.f32.mxu0 0.0
  %5038 = vmatmul.mubr.f32.gmra.mrb[0].mxu0 %v4356
  %v5039 = vpop.f32.mrb[0].mxu0
  %v5040 = vadd.f32 0.0, %v5039
  %v5041 = vpop.f32.mrb[0].mxu0
  %5042 = vmatprep.mubr.f32.mxu0 0.0
  %5043 = vmatmul.mubr.f32.gmra.mrb[0].mxu0 %v4359
  %v5044 = vpop.f32.mrb[0].mxu0
  %v5045 = vadd.f32 0.0, %v5044
  %v5046 = vpop.f32.mrb[0].mxu0
  %5047 = vmatprep.mubr.f32.mxu0 0.0
  %5048 = vmatmul.mubr.f32.gmra.mrb[0].mxu0 %v4362
  %v5049 = vpop.f32.mrb[0].mxu0
  %v5050 = vadd.f32 0.0, %v5049
  %v5051 = vpop.f32.mrb[0].mxu0
  %5052 = vmatprep.mubr.f32.mxu0 0.0
  %5053 = vmatmul.mubr.f32.gmra.mrb[0].mxu0 %v4365
  %v5054 = vpop.f32.mrb[0].mxu0
  %v5055 = vadd.f32 0.0, %v5054
  %v5056 = vpop.f32.mrb[0].mxu0
  %5057 = vmatprep.mubr.f32.mxu0 0.0
  %5058 = vmatmul.mubr.f32.gmra.mrb[0].mxu0 %v4368
  %v5059 = vpop.f32.mrb[0].mxu0
  %v5060 = vadd.f32 0.0, %v5059
  %v5061 = vpop.f32.mrb[0].mxu0
  %5062 = vmatprep.mubr.f32.mxu0 0.0
  %5063 = vmatmul.mubr.f32.gmra.mrb[0].mxu0 %v4371
  %v5064 = vpop.f32.mrb[0].mxu0
  %v5065 = vadd.f32 0.0, %v5064
  %v5066 = vpop.f32.mrb[0].mxu0
  %5067 = vmatprep.mubr.f32.mxu0 0.0
  %5068 = vmatmul.mubr.f32.gmra.mrb[0].mxu0 %v4374
  %v5069 = vpop.f32.mrb[0].mxu0
  %v5070 = vadd.f32 0.0, %v5069
  %v5071 = vpop.f32.mrb[0].mxu0
  %5072 = vmatprep.mubr.f32.mxu0 0.0
  %5073 = vmatmul.mubr.f32.gmra.mrb[0].mxu0 %v4377
  %v5074 = vpop.f32.mrb[0].mxu0
  %v5075 = vadd.f32 0.0, %v5074
  %v5076 = vpop.f32.mrb[0].mxu0
  %5077 = vmatprep.mubr.f32.mxu0 0.0
  %5078 = vmatmul.mubr.f32.gmra.mrb[0].mxu0 %v4380
  %v5079 = vpop.f32.mrb[0].mxu0
  %v5080 = vadd.f32 0.0, %v5079
  %v5081 = vpop.f32.mrb[0].mxu0
  %5082 = vmatprep.mubr.f32.mxu0 0.0
  %5083 = vmatmul.mubr.f32.gmra.mrb[0].mxu0 %v4383
  %v5084 = vpop.f32.mrb[0].mxu0
  %v5085 = vadd.f32 0.0, %v5084
  %v5086 = vpop.f32.mrb[0].mxu0
  %5087 = vmatprep.mubr.f32.mxu0 0.0
  %5088 = vmatmul.mubr.f32.gmra.mrb[0].mxu0 %v4386
  %v5089 = vpop.f32.mrb[0].mxu0
  %v5090 = vadd.f32 0.0, %v5089
  %v5091 = vpop.f32.mrb[0].mxu0
  %5092 = vmatprep.mubr.f32.mxu0 0.0
  %5093 = vmatmul.mubr.f32.gmra.mrb[0].mxu0 %v4389
  %v5094 = vpop.f32.mrb[0].mxu0
  %v5095 = vadd.f32 0.0, %v5094
  %v5096 = vpop.f32.mrb[0].mxu0
  %5097 = vmatprep.mubr.f32.mxu0 0.0
  %5098 = vmatmul.mubr.f32.gmra.mrb[0].mxu0 %v4392
  %v5099 = vpop.f32.mrb[0].mxu0
  %v5100 = vadd.f32 0.0, %v5099
  %v5101 = vpop.f32.mrb[0].mxu0
  %5102 = vmatprep.mubr.f32.mxu0 0.0
  %5103 = vmatmul.mubr.f32.gmra.mrb[0].mxu0 %v4395
  %v5104 = vpop.f32.mrb[0].mxu0
  %v5105 = vadd.f32 0.0, %v5104
  %v5106 = vpop.f32.mrb[0].mxu0
  %5107 = vmatprep.mubr.f32.mxu0 0.0
  %5108 = vmatmul.mubr.f32.gmra.mrb[0].mxu0 %v4398
  %v5109 = vpop.f32.mrb[0].mxu0
  %v5110 = vadd.f32 0.0, %v5109
  %v5111 = vpop.f32.mrb[0].mxu0
  %5112 = vmatprep.mubr.f32.mxu0 0.0
  %5113 = vmatmul.mubr.f32.gmra.mrb[0].mxu0 %v4401
  %v5114 = vpop.f32.mrb[0].mxu0
  %v5115 = vadd.f32 0.0, %v5114
  %v5116 = vpop.f32.mrb[0].mxu0
  %5117 = vmatprep.mubr.f32.mxu0 0.0
  %5118 = vmatmul.mubr.f32.gmra.mrb[0].mxu0 %v4404
  %v5119 = vpop.f32.mrb[0].mxu0
  %v5120 = vadd.f32 0.0, %v5119
  %v5121 = vpop.f32.mrb[0].mxu0
  %5122 = vmatprep.mubr.f32.mxu0 0.0
  %5123 = vmatmul.mubr.f32.gmra.mrb[0].mxu0 %v4407
  %v5124 = vpop.f32.mrb[0].mxu0
  %v5125 = vadd.f32 0.0, %v5124
  %v5126 = vpop.f32.mrb[0].mxu0
  %5127 = vmatprep.mubr.f32.mxu0 0.0
  %5128 = vmatmul.mubr.f32.gmra.mrb[0].mxu0 %v4410
  %v5129 = vpop.f32.mrb[0].mxu0
  %v5130 = vadd.f32 0.0, %v5129
  %v5131 = vpop.f32.mrb[0].mxu0
  %5132 = vmatprep.mubr.f32.mxu0 0.0
  %5133 = vmatmul.mubr.f32.gmra.mrb[0].mxu0 %v4413
  %v5134 = vpop.f32.mrb[0].mxu0
  %v5135 = vadd.f32 0.0, %v5134
  %v5136 = vpop.f32.mrb[0].mxu0
  %5137 = vmatprep.mubr.f32.mxu0 0.0
  %5138 = vmatmul.mubr.f32.gmra.mrb[0].mxu0 %v4416
  %v5139 = vpop.f32.mrb[0].mxu0
  %v5140 = vadd.f32 0.0, %v5139
  %v5141 = vpop.f32.mrb[0].mxu0
  %5142 = vmatprep.mubr.f32.mxu0 0.0
  %5143 = vmatmul.mubr.f32.gmra.mrb[0].mxu0 %v4419
  %v5144 = vpop.f32.mrb[0].mxu0
  %v5145 = vadd.f32 0.0, %v5144
  %v5146 = vpop.f32.mrb[0].mxu0
  %5147 = vmatprep.mubr.f32.mxu0 0.0
  %5148 = vmatmul.mubr.f32.gmra.mrb[0].mxu0 %v4422
  %v5149 = vpop.f32.mrb[0].mxu0
  %v5150 = vadd.f32 0.0, %v5149
  %v5151 = vpop.f32.mrb[0].mxu0
  %5152 = vmatprep.mubr.f32.mxu0 0.0
  %5153 = vmatmul.mubr.f32.gmra.mrb[0].mxu0 %v4425
  %v5154 = vpop.f32.mrb[0].mxu0
  %v5155 = vadd.f32 0.0, %v5154
  %v5156 = vpop.f32.mrb[0].mxu0
  %5157 = vmatprep.mubr.f32.mxu0 0.0
  %5158 = vmatmul.mubr.f32.gmra.mrb[0].mxu0 %v4428
  %v5159 = vpop.f32.mrb[0].mxu0
  %v5160 = vadd.f32 0.0, %v5159
  %v5161 = vpop.f32.mrb[0].mxu0
  %5162 = vmatprep.mubr.f32.mxu0 0.0
  %5163 = vmatmul.mubr.f32.gmra.mrb[0].mxu0 %v4431
  %v5164 = vpop.f32.mrb[0].mxu0
  %v5165 = vadd.f32 0.0, %v5164
  %v5166 = vpop.f32.mrb[0].mxu0
  %5167 = vmatprep.mubr.f32.mxu0 0.0
  %5168 = vmatmul.mubr.f32.gmra.mrb[0].mxu0 %v4434
  %v5169 = vpop.f32.mrb[0].mxu0
  %v5170 = vadd.f32 0.0, %v5169
  %v5171 = vpop.f32.mrb[0].mxu0
  %5172 = vmatprep.mubr.f32.mxu0 0.0
  %5173 = vmatmul.mubr.f32.gmra.mrb[0].mxu0 %v4437
  %v5174 = vpop.f32.mrb[0].mxu0
  %v5175 = vadd.f32 0.0, %v5174
  %v5176 = vpop.f32.mrb[0].mxu0
  %5177 = vmatprep.mubr.f32.mxu0 0.0
  %5178 = vmatmul.mubr.f32.gmra.mrb[0].mxu0 %v4440
  %v5179 = vpop.f32.mrb[0].mxu0
  %v5180 = vadd.f32 0.0, %v5179
  %v5181 = vpop.f32.mrb[0].mxu0
  %5182 = vmatprep.mubr.f32.mxu0 0.0
  %5183 = vmatmul.mubr.f32.gmra.mrb[0].mxu0 %v4443
  %v5184 = vpop.f32.mrb[0].mxu0
  %v5185 = vadd.f32 0.0, %v5184
  %v5186 = vpop.f32.mrb[0].mxu0
  %5187 = vmatprep.mubr.f32.mxu0 0.0
  %5188 = vmatmul.mubr.f32.gmra.mrb[0].mxu0 %v4446
  %v5189 = vpop.f32.mrb[0].mxu0
  %v5190 = vadd.f32 0.0, %v5189
  %v5191 = vpop.f32.mrb[0].mxu0
  %5192 = vmatprep.mubr.f32.mxu0 0.0
  %5193 = vmatmul.mubr.f32.gmra.mrb[0].mxu0 %v4449
  %v5194 = vpop.f32.mrb[0].mxu0
  %v5195 = vadd.f32 0.0, %v5194
  %v5196 = vpop.f32.mrb[0].mxu0
  %5197 = vmatprep.mubr.f32.mxu0 0.0
  %5198 = vmatmul.mubr.f32.gmra.mrb[0].mxu0 %v4452
  %v5199 = vpop.f32.mrb[0].mxu0
  %v5200 = vadd.f32 0.0, %v5199
  %v5201 = vpop.f32.mrb[0].mxu0
  %5202 = vmatprep.mubr.f32.mxu0 0.0
  %5203 = vmatmul.mubr.f32.gmra.mrb[0].mxu0 %v4455
  %v5204 = vpop.f32.mrb[0].mxu0
  %v5205 = vadd.f32 0.0, %v5204
  %v5206 = vpop.f32.mrb[0].mxu0
  %5207 = vmatprep.mubr.f32.mxu0 0.0
  %5208 = vmatmul.mubr.f32.gmra.mrb[0].mxu0 %v4458
  %v5209 = vpop.f32.mrb[0].mxu0
  %v5210 = vadd.f32 0.0, %v5209
  %v5211 = vpop.f32.mrb[0].mxu0
  %5212 = vmatprep.mubr.f32.mxu0 0.0
  %5213 = vmatmul.mubr.f32.gmra.mrb[0].mxu0 %v4461
  %v5214 = vpop.f32.mrb[0].mxu0
  %v5215 = vadd.f32 0.0, %v5214
  %v5216 = vpop.f32.mrb[0].mxu0
  %5217 = vmatprep.mubr.f32.mxu0 0.0
  %5218 = vmatmul.mubr.f32.gmra.mrb[0].mxu0 %v4464
  %v5219 = vpop.f32.mrb[0].mxu0
  %v5220 = vadd.f32 0.0, %v5219
  %v5221 = vpop.f32.mrb[0].mxu0
  %5222 = vmatprep.mubr.f32.mxu0 0.0
  %5223 = vmatmul.mubr.f32.gmra.mrb[0].mxu0 %v4467
  %v5224 = vpop.f32.mrb[0].mxu0
  %v5225 = vadd.f32 0.0, %v5224
  %v5226 = vpop.f32.mrb[0].mxu0
  %5227 = vmatprep.mubr.f32.mxu0 0.0
  %5228 = vmatmul.mubr.f32.gmra.mrb[0].mxu0 %v4470
  %v5229 = vpop.f32.mrb[0].mxu0
  %v5230 = vadd.f32 0.0, %v5229
  %v5231 = vpop.f32.mrb[0].mxu0
  %5232 = vmatprep.mubr.f32.mxu0 0.0
  %5233 = vmatmul.mubr.f32.gmra.mrb[0].mxu0 %v4473
  %v5234 = vpop.f32.mrb[0].mxu0
  %v5235 = vadd.f32 0.0, %v5234
  %v5236 = vpop.f32.mrb[0].mxu0
  %5237 = vmatprep.mubr.f32.mxu0 0.0
  %5238 = vmatmul.mubr.f32.gmra.mrb[0].mxu0 %v4476
  %v5239 = vpop.f32.mrb[0].mxu0
  %v5240 = vadd.f32 0.0, %v5239
  %v5241 = vpop.f32.mrb[0].mxu0
  %5242 = vmatprep.mubr.f32.mxu0 0.0
  %5243 = vmatmul.mubr.f32.gmra.mrb[0].mxu0 %v4479
  %v5244 = vpop.f32.mrb[0].mxu0
  %v5245 = vadd.f32 0.0, %v5244
  %v5246 = vpop.f32.mrb[0].mxu0
  %5247 = vmatprep.mubr.f32.mxu0 0.0
  %5248 = vmatmul.mubr.f32.gmra.mrb[0].mxu0 %v4482
  %v5249 = vpop.f32.mrb[0].mxu0
  %v5250 = vadd.f32 0.0, %v5249
  %v5251 = vpop.f32.mrb[0].mxu0
  %5252 = vmatprep.mubr.f32.mxu0 0.0
  %5253 = vmatmul.mubr.f32.gmra.mrb[0].mxu0 %v4485
  %v5254 = vpop.f32.mrb[0].mxu0
  %v5255 = vadd.f32 0.0, %v5254
  %v5256 = vpop.f32.mrb[0].mxu0
  %5257 = vmatprep.mubr.f32.mxu0 0.0
  %5258 = vmatmul.mubr.f32.gmra.mrb[0].mxu0 %v4488
  %v5259 = vpop.f32.mrb[0].mxu0
  %v5260 = vadd.f32 0.0, %v5259
  %v5261 = vpop.f32.mrb[0].mxu0
  %5262 = vmatprep.mubr.f32.mxu0 0.0
  %5263 = vmatmul.mubr.f32.gmra.mrb[0].mxu0 %v4491
  %v5264 = vpop.f32.mrb[0].mxu0
  %v5265 = vadd.f32 0.0, %v5264
  %v5266 = vpop.f32.mrb[0].mxu0
  %5267 = vmatprep.mubr.f32.mxu0 0.0
  %5268 = vmatmul.mubr.f32.gmra.mrb[0].mxu0 %v4494
  %v5269 = vpop.f32.mrb[0].mxu0
  %v5270 = vadd.f32 0.0, %v5269
  %v5271 = vpop.f32.mrb[0].mxu0
  %5272 = vmatprep.mubr.f32.mxu0 0.0
  %5273 = vmatmul.mubr.f32.gmra.mrb[0].mxu0 %v4497
  %v5274 = vpop.f32.mrb[0].mxu0
  %v5275 = vadd.f32 0.0, %v5274
  %v5276 = vpop.f32.mrb[0].mxu0
  %5277 = vdwg.mxu0
  %v5278 = vld [vmem:[%s11] sm:$0x1]
  %v5279 = vld [vmem:[%s12] sm:$0x1]
  %v5280 = vsel %vm3053, %v4566, 0.0
  %v5281 = vsel %vm3053, %v4571, 0.0
  %v5282 = vadd.f32 %v5280, %v5281
  %v5283 = vsel %vm3053, %v4576, 0.0
  %v5284 = vadd.f32 %v5282, %v5283
  %v5285 = vsel %vm3053, %v4581, 0.0
  %v5286 = vadd.f32 %v5284, %v5285
  %v5287 = vsel %vm3053, %v4586, 0.0
  %v5288 = vadd.f32 %v5286, %v5287
  %v5289 = vsel %vm3053, %v4591, 0.0
  %v5290 = vadd.f32 %v5288, %v5289
  %v5291 = vsel %vm3053, %v4596, 0.0
  %v5292 = vadd.f32 %v5290, %v5291
  %v5293 = vsel %vm3053, %v4601, 0.0
  %v5294 = vadd.f32 %v5292, %v5293
  %v5295 = vsel %vm3053, %v4606, 0.0
  %v5296 = vadd.f32 %v5294, %v5295
  %v5297 = vsel %vm3053, %v4611, 0.0
  %v5298 = vadd.f32 %v5296, %v5297
  %v5299 = vsel %vm3053, %v4616, 0.0
  %v5300 = vadd.f32 %v5298, %v5299
  %v5301 = vsel %vm3053, %v4621, 0.0
  %v5302 = vadd.f32 %v5300, %v5301
  %v5303 = vsel %vm3053, %v4626, 0.0
  %v5304 = vadd.f32 %v5302, %v5303
  %v5305 = vsel %vm3053, %v4631, 0.0
  %v5306 = vadd.f32 %v5304, %v5305
  %v5307 = vsel %vm3053, %v4636, 0.0
  %v5308 = vadd.f32 %v5306, %v5307
  %v5309 = vsel %vm3053, %v4641, 0.0
  %v5310 = vadd.f32 %v5308, %v5309
  %v5311 = vsel %vm3053, %v4646, 0.0
  %v5312 = vadd.f32 %v5310, %v5311
  %v5313 = vsel %vm3053, %v4651, 0.0
  %v5314 = vadd.f32 %v5312, %v5313
  %v5315 = vsel %vm3053, %v4656, 0.0
  %v5316 = vadd.f32 %v5314, %v5315
  %v5317 = vsel %vm3053, %v4661, 0.0
  %v5318 = vadd.f32 %v5316, %v5317
  %v5319 = vsel %vm3053, %v4666, 0.0
  %v5320 = vadd.f32 %v5318, %v5319
  %v5321 = vsel %vm3053, %v4671, 0.0
  %v5322 = vadd.f32 %v5320, %v5321
  %v5323 = vsel %vm3053, %v4676, 0.0
  %v5324 = vadd.f32 %v5322, %v5323
  %v5325 = vsel %vm3053, %v4681, 0.0
  %v5326 = vadd.f32 %v5324, %v5325
  %v5327 = vsel %vm3053, %v4686, 0.0
  %v5328 = vadd.f32 %v5326, %v5327
  %v5329 = vsel %vm3053, %v4691, 0.0
  %v5330 = vadd.f32 %v5328, %v5329
  %v5331 = vsel %vm3053, %v4696, 0.0
  %v5332 = vadd.f32 %v5330, %v5331
  %v5333 = vsel %vm3053, %v4701, 0.0
  %v5334 = vadd.f32 %v5332, %v5333
  %v5335 = vsel %vm3053, %v4706, 0.0
  %v5336 = vadd.f32 %v5334, %v5335
  %v5337 = vsel %vm3053, %v4711, 0.0
  %v5338 = vadd.f32 %v5336, %v5337
  %v5339 = vsel %vm3053, %v4716, 0.0
  %v5340 = vadd.f32 %v5338, %v5339
  %v5341 = vsel %vm3053, %v4721, 0.0
  %v5342 = vadd.f32 %v5340, %v5341
  %v5343 = vsel %vm3053, %v4726, 0.0
  %v5344 = vadd.f32 %v5342, %v5343
  %v5345 = vsel %vm3053, %v4731, 0.0
  %v5346 = vadd.f32 %v5344, %v5345
  %v5347 = vsel %vm3053, %v4736, 0.0
  %v5348 = vadd.f32 %v5346, %v5347
  %v5349 = vsel %vm3053, %v4741, 0.0
  %v5350 = vadd.f32 %v5348, %v5349
  %v5351 = vsel %vm3053, %v4746, 0.0
  %v5352 = vadd.f32 %v5350, %v5351
  %v5353 = vsel %vm3053, %v4751, 0.0
  %v5354 = vadd.f32 %v5352, %v5353
  %v5355 = vsel %vm3053, %v4756, 0.0
  %v5356 = vadd.f32 %v5354, %v5355
  %v5357 = vsel %vm3053, %v4761, 0.0
  %v5358 = vadd.f32 %v5356, %v5357
  %v5359 = vsel %vm3053, %v4766, 0.0
  %v5360 = vadd.f32 %v5358, %v5359
  %v5361 = vsel %vm3053, %v4771, 0.0
  %v5362 = vadd.f32 %v5360, %v5361
  %v5363 = vsel %vm3053, %v4776, 0.0
  %v5364 = vadd.f32 %v5362, %v5363
  %v5365 = vsel %vm3053, %v4781, 0.0
  %v5366 = vadd.f32 %v5364, %v5365
  %v5367 = vsel %vm3053, %v4786, 0.0
  %v5368 = vadd.f32 %v5366, %v5367
  %v5369 = vsel %vm3053, %v4791, 0.0
  %v5370 = vadd.f32 %v5368, %v5369
  %v5371 = vsel %vm3053, %v4796, 0.0
  %v5372 = vadd.f32 %v5370, %v5371
  %v5373 = vsel %vm3053, %v4801, 0.0
  %v5374 = vadd.f32 %v5372, %v5373
  %v5375 = vsel %vm3053, %v4806, 0.0
  %v5376 = vadd.f32 %v5374, %v5375
  %v5377 = vsel %vm3053, %v4811, 0.0
  %v5378 = vadd.f32 %v5376, %v5377
  %v5379 = vsel %vm3053, %v4816, 0.0
  %v5380 = vadd.f32 %v5378, %v5379
  %v5381 = vsel %vm3053, %v4821, 0.0
  %v5382 = vadd.f32 %v5380, %v5381
  %v5383 = vsel %vm3053, %v4826, 0.0
  %v5384 = vadd.f32 %v5382, %v5383
  %v5385 = vsel %vm3053, %v4831, 0.0
  %v5386 = vadd.f32 %v5384, %v5385
  %v5387 = vsel %vm3053, %v4836, 0.0
  %v5388 = vadd.f32 %v5386, %v5387
  %v5389 = vsel %vm3053, %v4841, 0.0
  %v5390 = vadd.f32 %v5388, %v5389
  %v5391 = vsel %vm3053, %v4846, 0.0
  %v5392 = vadd.f32 %v5390, %v5391
  %v5393 = vsel %vm3053, %v4851, 0.0
  %v5394 = vadd.f32 %v5392, %v5393
  %v5395 = vsel %vm3053, %v4856, 0.0
  %v5396 = vadd.f32 %v5394, %v5395
  %v5397 = vsel %vm3053, %v4861, 0.0
  %v5398 = vadd.f32 %v5396, %v5397
  %v5399 = vsel %vm3053, %v4866, 0.0
  %v5400 = vadd.f32 %v5398, %v5399
  %v5401 = vsel %vm3053, %v4871, 0.0
  %v5402 = vadd.f32 %v5400, %v5401
  %v5403 = vsel %vm3053, %v4876, 0.0
  %v5404 = vadd.f32 %v5402, %v5403
  %v5405 = vsel %vm3053, %v4881, 0.0
  %v5406 = vadd.f32 %v5404, %v5405
  %v5407 = vsel %vm3053, %v4960, 0.0
  %v5408 = vadd.f32 %v5406, %v5407
  %v5409 = vsel %vm3053, %v4965, 0.0
  %v5410 = vadd.f32 %v5408, %v5409
  %v5411 = vsel %vm3053, %v4970, 0.0
  %v5412 = vadd.f32 %v5410, %v5411
  %v5413 = vsel %vm3053, %v4975, 0.0
  %v5414 = vadd.f32 %v5412, %v5413
  %v5415 = vsel %vm3053, %v4980, 0.0
  %v5416 = vadd.f32 %v5414, %v5415
  %v5417 = vsel %vm3053, %v4985, 0.0
  %v5418 = vadd.f32 %v5416, %v5417
  %v5419 = vsel %vm3053, %v4990, 0.0
  %v5420 = vadd.f32 %v5418, %v5419
  %v5421 = vsel %vm3053, %v4995, 0.0
  %v5422 = vadd.f32 %v5420, %v5421
  %v5423 = vsel %vm3053, %v5000, 0.0
  %v5424 = vadd.f32 %v5422, %v5423
  %v5425 = vsel %vm3053, %v5005, 0.0
  %v5426 = vadd.f32 %v5424, %v5425
  %v5427 = vsel %vm3053, %v5010, 0.0
  %v5428 = vadd.f32 %v5426, %v5427
  %v5429 = vsel %vm3053, %v5015, 0.0
  %v5430 = vadd.f32 %v5428, %v5429
  %v5431 = vsel %vm3053, %v5020, 0.0
  %v5432 = vadd.f32 %v5430, %v5431
  %v5433 = vsel %vm3053, %v5025, 0.0
  %v5434 = vadd.f32 %v5432, %v5433
  %v5435 = vsel %vm3053, %v5030, 0.0
  %v5436 = vadd.f32 %v5434, %v5435
  %v5437 = vsel %vm3053, %v5035, 0.0
  %v5438 = vadd.f32 %v5436, %v5437
  %v5439 = vsel %vm3053, %v5040, 0.0
  %v5440 = vadd.f32 %v5438, %v5439
  %v5441 = vsel %vm3053, %v5045, 0.0
  %v5442 = vadd.f32 %v5440, %v5441
  %v5443 = vsel %vm3053, %v5050, 0.0
  %v5444 = vadd.f32 %v5442, %v5443
  %v5445 = vsel %vm3053, %v5055, 0.0
  %v5446 = vadd.f32 %v5444, %v5445
  %v5447 = vsel %vm3053, %v5060, 0.0
  %v5448 = vadd.f32 %v5446, %v5447
  %v5449 = vsel %vm3053, %v5065, 0.0
  %v5450 = vadd.f32 %v5448, %v5449
  %v5451 = vsel %vm3053, %v5070, 0.0
  %v5452 = vadd.f32 %v5450, %v5451
  %v5453 = vsel %vm3053, %v5075, 0.0
  %v5454 = vadd.f32 %v5452, %v5453
  %v5455 = vsel %vm3053, %v5080, 0.0
  %v5456 = vadd.f32 %v5454, %v5455
  %v5457 = vsel %vm3053, %v5085, 0.0
  %v5458 = vadd.f32 %v5456, %v5457
  %v5459 = vsel %vm3053, %v5090, 0.0
  %v5460 = vadd.f32 %v5458, %v5459
  %v5461 = vsel %vm3053, %v5095, 0.0
  %v5462 = vadd.f32 %v5460, %v5461
  %v5463 = vsel %vm3053, %v5100, 0.0
  %v5464 = vadd.f32 %v5462, %v5463
  %v5465 = vsel %vm3053, %v5105, 0.0
  %v5466 = vadd.f32 %v5464, %v5465
  %v5467 = vsel %vm3053, %v5110, 0.0
  %v5468 = vadd.f32 %v5466, %v5467
  %v5469 = vsel %vm3053, %v5115, 0.0
  %v5470 = vadd.f32 %v5468, %v5469
  %v5471 = vsel %vm3053, %v5120, 0.0
  %v5472 = vadd.f32 %v5470, %v5471
  %v5473 = vsel %vm3053, %v5125, 0.0
  %v5474 = vadd.f32 %v5472, %v5473
  %v5475 = vsel %vm3053, %v5130, 0.0
  %v5476 = vadd.f32 %v5474, %v5475
  %v5477 = vsel %vm3053, %v5135, 0.0
  %v5478 = vadd.f32 %v5476, %v5477
  %v5479 = vsel %vm3053, %v5140, 0.0
  %v5480 = vadd.f32 %v5478, %v5479
  %v5481 = vsel %vm3053, %v5145, 0.0
  %v5482 = vadd.f32 %v5480, %v5481
  %v5483 = vsel %vm3053, %v5150, 0.0
  %v5484 = vadd.f32 %v5482, %v5483
  %v5485 = vsel %vm3053, %v5155, 0.0
  %v5486 = vadd.f32 %v5484, %v5485
  %v5487 = vsel %vm3053, %v5160, 0.0
  %v5488 = vadd.f32 %v5486, %v5487
  %v5489 = vsel %vm3053, %v5165, 0.0
  %v5490 = vadd.f32 %v5488, %v5489
  %v5491 = vsel %vm3053, %v5170, 0.0
  %v5492 = vadd.f32 %v5490, %v5491
  %v5493 = vsel %vm3053, %v5175, 0.0
  %v5494 = vadd.f32 %v5492, %v5493
  %v5495 = vsel %vm3053, %v5180, 0.0
  %v5496 = vadd.f32 %v5494, %v5495
  %v5497 = vsel %vm3053, %v5185, 0.0
  %v5498 = vadd.f32 %v5496, %v5497
  %v5499 = vsel %vm3053, %v5190, 0.0
  %v5500 = vadd.f32 %v5498, %v5499
  %v5501 = vsel %vm3053, %v5195, 0.0
  %v5502 = vadd.f32 %v5500, %v5501
  %v5503 = vsel %vm3053, %v5200, 0.0
  %v5504 = vadd.f32 %v5502, %v5503
  %v5505 = vsel %vm3053, %v5205, 0.0
  %v5506 = vadd.f32 %v5504, %v5505
  %v5507 = vsel %vm3053, %v5210, 0.0
  %v5508 = vadd.f32 %v5506, %v5507
  %v5509 = vsel %vm3053, %v5215, 0.0
  %v5510 = vadd.f32 %v5508, %v5509
  %v5511 = vsel %vm3053, %v5220, 0.0
  %v5512 = vadd.f32 %v5510, %v5511
  %v5513 = vsel %vm3053, %v5225, 0.0
  %v5514 = vadd.f32 %v5512, %v5513
  %v5515 = vsel %vm3053, %v5230, 0.0
  %v5516 = vadd.f32 %v5514, %v5515
  %v5517 = vsel %vm3053, %v5235, 0.0
  %v5518 = vadd.f32 %v5516, %v5517
  %v5519 = vsel %vm3053, %v5240, 0.0
  %v5520 = vadd.f32 %v5518, %v5519
  %v5521 = vsel %vm3053, %v5245, 0.0
  %v5522 = vadd.f32 %v5520, %v5521
  %v5523 = vsel %vm3053, %v5250, 0.0
  %v5524 = vadd.f32 %v5522, %v5523
  %v5525 = vsel %vm3053, %v5255, 0.0
  %v5526 = vadd.f32 %v5524, %v5525
  %v5527 = vsel %vm3053, %v5260, 0.0
  %v5528 = vadd.f32 %v5526, %v5527
  %v5529 = vsel %vm3053, %v5265, 0.0
  %v5530 = vadd.f32 %v5528, %v5529
  %v5531 = vsel %vm3053, %v5270, 0.0
  %v5532 = vadd.f32 %v5530, %v5531
  %v5533 = vsel %vm3053, %v5275, 0.0
  %v5534 = vadd.f32 %v5532, %v5533
  %v5535 = vrot.slane %v5534, 4
  %v5536 = vadd.f32 %v5534, %v5535
  %v5537 = vrot.slane %v5536, 2
  %v5538 = vadd.f32 %v5536, %v5537
  %v5539 = vrot.slane %v5538, 1
  %v5540 = vadd.f32 %v5538, %v5539
  %v5541 = vmul.f32 %v4566, %v4566
  %v5542 = vmul.f32 %v4571, %v4571
  %v5543 = vmul.f32 %v4576, %v4576
  %v5544 = vmul.f32 %v4581, %v4581
  %v5545 = vmul.f32 %v4586, %v4586
  %v5546 = vmul.f32 %v4591, %v4591
  %v5547 = vmul.f32 %v4596, %v4596
  %v5548 = vmul.f32 %v4601, %v4601
  %v5549 = vmul.f32 %v4606, %v4606
  %v5550 = vmul.f32 %v4611, %v4611
  %v5551 = vmul.f32 %v4616, %v4616
  %v5552 = vmul.f32 %v4621, %v4621
  %v5553 = vmul.f32 %v4626, %v4626
  %v5554 = vmul.f32 %v4631, %v4631
  %v5555 = vmul.f32 %v4636, %v4636
  %v5556 = vmul.f32 %v4641, %v4641
  %v5557 = vmul.f32 %v4646, %v4646
  %v5558 = vmul.f32 %v4651, %v4651
  %v5559 = vmul.f32 %v4656, %v4656
  %v5560 = vmul.f32 %v4661, %v4661
  %v5561 = vmul.f32 %v4666, %v4666
  %v5562 = vmul.f32 %v4671, %v4671
  %v5563 = vmul.f32 %v4676, %v4676
  %v5564 = vmul.f32 %v4681, %v4681
  %v5565 = vmul.f32 %v4686, %v4686
  %v5566 = vmul.f32 %v4691, %v4691
  %v5567 = vmul.f32 %v4696, %v4696
  %v5568 = vmul.f32 %v4701, %v4701
  %v5569 = vmul.f32 %v4706, %v4706
  %v5570 = vmul.f32 %v4711, %v4711
  %v5571 = vmul.f32 %v4716, %v4716
  %v5572 = vmul.f32 %v4721, %v4721
  %v5573 = vmul.f32 %v4726, %v4726
  %v5574 = vmul.f32 %v4731, %v4731
  %v5575 = vmul.f32 %v4736, %v4736
  %v5576 = vmul.f32 %v4741, %v4741
  %v5577 = vmul.f32 %v4746, %v4746
  %v5578 = vmul.f32 %v4751, %v4751
  %v5579 = vmul.f32 %v4756, %v4756
  %v5580 = vmul.f32 %v4761, %v4761
  %v5581 = vmul.f32 %v4766, %v4766
  %v5582 = vmul.f32 %v4771, %v4771
  %v5583 = vmul.f32 %v4776, %v4776
  %v5584 = vmul.f32 %v4781, %v4781
  %v5585 = vmul.f32 %v4786, %v4786
  %v5586 = vmul.f32 %v4791, %v4791
  %v5587 = vmul.f32 %v4796, %v4796
  %v5588 = vmul.f32 %v4801, %v4801
  %v5589 = vmul.f32 %v4806, %v4806
  %v5590 = vmul.f32 %v4811, %v4811
  %v5591 = vmul.f32 %v4816, %v4816
  %v5592 = vmul.f32 %v4821, %v4821
  %v5593 = vmul.f32 %v4826, %v4826
  %v5594 = vmul.f32 %v4831, %v4831
  %v5595 = vmul.f32 %v4836, %v4836
  %v5596 = vmul.f32 %v4841, %v4841
  %v5597 = vmul.f32 %v4846, %v4846
  %v5598 = vmul.f32 %v4851, %v4851
  %v5599 = vmul.f32 %v4856, %v4856
  %v5600 = vmul.f32 %v4861, %v4861
  %v5601 = vmul.f32 %v4866, %v4866
  %v5602 = vmul.f32 %v4871, %v4871
  %v5603 = vmul.f32 %v4876, %v4876
  %v5604 = vmul.f32 %v4881, %v4881
  %v5605 = vmul.f32 %v4960, %v4960
  %v5606 = vmul.f32 %v4965, %v4965
  %v5607 = vmul.f32 %v4970, %v4970
  %v5608 = vmul.f32 %v4975, %v4975
  %v5609 = vmul.f32 %v4980, %v4980
  %v5610 = vmul.f32 %v4985, %v4985
  %v5611 = vmul.f32 %v4990, %v4990
  %v5612 = vmul.f32 %v4995, %v4995
  %v5613 = vmul.f32 %v5000, %v5000
  %v5614 = vmul.f32 %v5005, %v5005
  %v5615 = vmul.f32 %v5010, %v5010
  %v5616 = vmul.f32 %v5015, %v5015
  %v5617 = vmul.f32 %v5020, %v5020
  %v5618 = vmul.f32 %v5025, %v5025
  %v5619 = vmul.f32 %v5030, %v5030
  %v5620 = vmul.f32 %v5035, %v5035
  %v5621 = vmul.f32 %v5040, %v5040
  %v5622 = vmul.f32 %v5045, %v5045
  %v5623 = vmul.f32 %v5050, %v5050
  %v5624 = vmul.f32 %v5055, %v5055
  %v5625 = vmul.f32 %v5060, %v5060
  %v5626 = vmul.f32 %v5065, %v5065
  %v5627 = vmul.f32 %v5070, %v5070
  %v5628 = vmul.f32 %v5075, %v5075
  %v5629 = vmul.f32 %v5080, %v5080
  %v5630 = vmul.f32 %v5085, %v5085
  %v5631 = vmul.f32 %v5090, %v5090
  %v5632 = vmul.f32 %v5095, %v5095
  %v5633 = vmul.f32 %v5100, %v5100
  %v5634 = vmul.f32 %v5105, %v5105
  %v5635 = vmul.f32 %v5110, %v5110
  %v5636 = vmul.f32 %v5115, %v5115
  %v5637 = vmul.f32 %v5120, %v5120
  %v5638 = vmul.f32 %v5125, %v5125
  %v5639 = vmul.f32 %v5130, %v5130
  %v5640 = vmul.f32 %v5135, %v5135
  %v5641 = vmul.f32 %v5140, %v5140
  %v5642 = vmul.f32 %v5145, %v5145
  %v5643 = vmul.f32 %v5150, %v5150
  %v5644 = vmul.f32 %v5155, %v5155
  %v5645 = vmul.f32 %v5160, %v5160
  %v5646 = vmul.f32 %v5165, %v5165
  %v5647 = vmul.f32 %v5170, %v5170
  %v5648 = vmul.f32 %v5175, %v5175
  %v5649 = vmul.f32 %v5180, %v5180
  %v5650 = vmul.f32 %v5185, %v5185
  %v5651 = vmul.f32 %v5190, %v5190
  %v5652 = vmul.f32 %v5195, %v5195
  %v5653 = vmul.f32 %v5200, %v5200
  %v5654 = vmul.f32 %v5205, %v5205
  %v5655 = vmul.f32 %v5210, %v5210
  %v5656 = vmul.f32 %v5215, %v5215
  %v5657 = vmul.f32 %v5220, %v5220
  %v5658 = vmul.f32 %v5225, %v5225
  %v5659 = vmul.f32 %v5230, %v5230
  %v5660 = vmul.f32 %v5235, %v5235
  %v5661 = vmul.f32 %v5240, %v5240
  %v5662 = vmul.f32 %v5245, %v5245
  %v5663 = vmul.f32 %v5250, %v5250
  %v5664 = vmul.f32 %v5255, %v5255
  %v5665 = vmul.f32 %v5260, %v5260
  %v5666 = vmul.f32 %v5265, %v5265
  %v5667 = vmul.f32 %v5270, %v5270
  %v5668 = vmul.f32 %v5275, %v5275
  %v5669 = vsel %vm3053, %v5541, 0.0
  %v5670 = vsel %vm3053, %v5542, 0.0
  %v5671 = vadd.f32 %v5669, %v5670
  %v5672 = vsel %vm3053, %v5543, 0.0
  %v5673 = vadd.f32 %v5671, %v5672
  %v5674 = vsel %vm3053, %v5544, 0.0
  %v5675 = vadd.f32 %v5673, %v5674
  %v5676 = vsel %vm3053, %v5545, 0.0
  %v5677 = vadd.f32 %v5675, %v5676
  %v5678 = vsel %vm3053, %v5546, 0.0
  %v5679 = vadd.f32 %v5677, %v5678
  %v5680 = vsel %vm3053, %v5547, 0.0
  %v5681 = vadd.f32 %v5679, %v5680
  %v5682 = vsel %vm3053, %v5548, 0.0
  %v5683 = vadd.f32 %v5681, %v5682
  %v5684 = vsel %vm3053, %v5549, 0.0
  %v5685 = vadd.f32 %v5683, %v5684
  %v5686 = vsel %vm3053, %v5550, 0.0
  %v5687 = vadd.f32 %v5685, %v5686
  %v5688 = vsel %vm3053, %v5551, 0.0
  %v5689 = vadd.f32 %v5687, %v5688
  %v5690 = vsel %vm3053, %v5552, 0.0
  %v5691 = vadd.f32 %v5689, %v5690
  %v5692 = vsel %vm3053, %v5553, 0.0
  %v5693 = vadd.f32 %v5691, %v5692
  %v5694 = vsel %vm3053, %v5554, 0.0
  %v5695 = vadd.f32 %v5693, %v5694
  %v5696 = vsel %vm3053, %v5555, 0.0
  %v5697 = vadd.f32 %v5695, %v5696
  %v5698 = vsel %vm3053, %v5556, 0.0
  %v5699 = vadd.f32 %v5697, %v5698
  %v5700 = vsel %vm3053, %v5557, 0.0
  %v5701 = vadd.f32 %v5699, %v5700
  %v5702 = vsel %vm3053, %v5558, 0.0
  %v5703 = vadd.f32 %v5701, %v5702
  %v5704 = vsel %vm3053, %v5559, 0.0
  %v5705 = vadd.f32 %v5703, %v5704
  %v5706 = vsel %vm3053, %v5560, 0.0
  %v5707 = vadd.f32 %v5705, %v5706
  %v5708 = vsel %vm3053, %v5561, 0.0
  %v5709 = vadd.f32 %v5707, %v5708
  %v5710 = vsel %vm3053, %v5562, 0.0
  %v5711 = vadd.f32 %v5709, %v5710
  %v5712 = vsel %vm3053, %v5563, 0.0
  %v5713 = vadd.f32 %v5711, %v5712
  %v5714 = vsel %vm3053, %v5564, 0.0
  %v5715 = vadd.f32 %v5713, %v5714
  %v5716 = vsel %vm3053, %v5565, 0.0
  %v5717 = vadd.f32 %v5715, %v5716
  %v5718 = vsel %vm3053, %v5566, 0.0
  %v5719 = vadd.f32 %v5717, %v5718
  %v5720 = vsel %vm3053, %v5567, 0.0
  %v5721 = vadd.f32 %v5719, %v5720
  %v5722 = vsel %vm3053, %v5568, 0.0
  %v5723 = vadd.f32 %v5721, %v5722
  %v5724 = vsel %vm3053, %v5569, 0.0
  %v5725 = vadd.f32 %v5723, %v5724
  %v5726 = vsel %vm3053, %v5570, 0.0
  %v5727 = vadd.f32 %v5725, %v5726
  %v5728 = vsel %vm3053, %v5571, 0.0
  %v5729 = vadd.f32 %v5727, %v5728
  %v5730 = vsel %vm3053, %v5572, 0.0
  %v5731 = vadd.f32 %v5729, %v5730
  %v5732 = vsel %vm3053, %v5573, 0.0
  %v5733 = vadd.f32 %v5731, %v5732
  %v5734 = vsel %vm3053, %v5574, 0.0
  %v5735 = vadd.f32 %v5733, %v5734
  %v5736 = vsel %vm3053, %v5575, 0.0
  %v5737 = vadd.f32 %v5735, %v5736
  %v5738 = vsel %vm3053, %v5576, 0.0
  %v5739 = vadd.f32 %v5737, %v5738
  %v5740 = vsel %vm3053, %v5577, 0.0
  %v5741 = vadd.f32 %v5739, %v5740
  %v5742 = vsel %vm3053, %v5578, 0.0
  %v5743 = vadd.f32 %v5741, %v5742
  %v5744 = vsel %vm3053, %v5579, 0.0
  %v5745 = vadd.f32 %v5743, %v5744
  %v5746 = vsel %vm3053, %v5580, 0.0
  %v5747 = vadd.f32 %v5745, %v5746
  %v5748 = vsel %vm3053, %v5581, 0.0
  %v5749 = vadd.f32 %v5747, %v5748
  %v5750 = vsel %vm3053, %v5582, 0.0
  %v5751 = vadd.f32 %v5749, %v5750
  %v5752 = vsel %vm3053, %v5583, 0.0
  %v5753 = vadd.f32 %v5751, %v5752
  %v5754 = vsel %vm3053, %v5584, 0.0
  %v5755 = vadd.f32 %v5753, %v5754
  %v5756 = vsel %vm3053, %v5585, 0.0
  %v5757 = vadd.f32 %v5755, %v5756
  %v5758 = vsel %vm3053, %v5586, 0.0
  %v5759 = vadd.f32 %v5757, %v5758
  %v5760 = vsel %vm3053, %v5587, 0.0
  %v5761 = vadd.f32 %v5759, %v5760
  %v5762 = vsel %vm3053, %v5588, 0.0
  %v5763 = vadd.f32 %v5761, %v5762
  %v5764 = vsel %vm3053, %v5589, 0.0
  %v5765 = vadd.f32 %v5763, %v5764
  %v5766 = vsel %vm3053, %v5590, 0.0
  %v5767 = vadd.f32 %v5765, %v5766
  %v5768 = vsel %vm3053, %v5591, 0.0
  %v5769 = vadd.f32 %v5767, %v5768
  %v5770 = vsel %vm3053, %v5592, 0.0
  %v5771 = vadd.f32 %v5769, %v5770
  %v5772 = vsel %vm3053, %v5593, 0.0
  %v5773 = vadd.f32 %v5771, %v5772
  %v5774 = vsel %vm3053, %v5594, 0.0
  %v5775 = vadd.f32 %v5773, %v5774
  %v5776 = vsel %vm3053, %v5595, 0.0
  %v5777 = vadd.f32 %v5775, %v5776
  %v5778 = vsel %vm3053, %v5596, 0.0
  %v5779 = vadd.f32 %v5777, %v5778
  %v5780 = vsel %vm3053, %v5597, 0.0
  %v5781 = vadd.f32 %v5779, %v5780
  %v5782 = vsel %vm3053, %v5598, 0.0
  %v5783 = vadd.f32 %v5781, %v5782
  %v5784 = vsel %vm3053, %v5599, 0.0
  %v5785 = vadd.f32 %v5783, %v5784
  %v5786 = vsel %vm3053, %v5600, 0.0
  %v5787 = vadd.f32 %v5785, %v5786
  %v5788 = vsel %vm3053, %v5601, 0.0
  %v5789 = vadd.f32 %v5787, %v5788
  %v5790 = vsel %vm3053, %v5602, 0.0
  %v5791 = vadd.f32 %v5789, %v5790
  %v5792 = vsel %vm3053, %v5603, 0.0
  %v5793 = vadd.f32 %v5791, %v5792
  %v5794 = vsel %vm3053, %v5604, 0.0
  %v5795 = vadd.f32 %v5793, %v5794
  %v5796 = vsel %vm3053, %v5605, 0.0
  %v5797 = vadd.f32 %v5795, %v5796
  %v5798 = vsel %vm3053, %v5606, 0.0
  %v5799 = vadd.f32 %v5797, %v5798
  %v5800 = vsel %vm3053, %v5607, 0.0
  %v5801 = vadd.f32 %v5799, %v5800
  %v5802 = vsel %vm3053, %v5608, 0.0
  %v5803 = vadd.f32 %v5801, %v5802
  %v5804 = vsel %vm3053, %v5609, 0.0
  %v5805 = vadd.f32 %v5803, %v5804
  %v5806 = vsel %vm3053, %v5610, 0.0
  %v5807 = vadd.f32 %v5805, %v5806
  %v5808 = vsel %vm3053, %v5611, 0.0
  %v5809 = vadd.f32 %v5807, %v5808
  %v5810 = vsel %vm3053, %v5612, 0.0
  %v5811 = vadd.f32 %v5809, %v5810
  %v5812 = vsel %vm3053, %v5613, 0.0
  %v5813 = vadd.f32 %v5811, %v5812
  %v5814 = vsel %vm3053, %v5614, 0.0
  %v5815 = vadd.f32 %v5813, %v5814
  %v5816 = vsel %vm3053, %v5615, 0.0
  %v5817 = vadd.f32 %v5815, %v5816
  %v5818 = vsel %vm3053, %v5616, 0.0
  %v5819 = vadd.f32 %v5817, %v5818
  %v5820 = vsel %vm3053, %v5617, 0.0
  %v5821 = vadd.f32 %v5819, %v5820
  %v5822 = vsel %vm3053, %v5618, 0.0
  %v5823 = vadd.f32 %v5821, %v5822
  %v5824 = vsel %vm3053, %v5619, 0.0
  %v5825 = vadd.f32 %v5823, %v5824
  %v5826 = vsel %vm3053, %v5620, 0.0
  %v5827 = vadd.f32 %v5825, %v5826
  %v5828 = vsel %vm3053, %v5621, 0.0
  %v5829 = vadd.f32 %v5827, %v5828
  %v5830 = vsel %vm3053, %v5622, 0.0
  %v5831 = vadd.f32 %v5829, %v5830
  %v5832 = vsel %vm3053, %v5623, 0.0
  %v5833 = vadd.f32 %v5831, %v5832
  %v5834 = vsel %vm3053, %v5624, 0.0
  %v5835 = vadd.f32 %v5833, %v5834
  %v5836 = vsel %vm3053, %v5625, 0.0
  %v5837 = vadd.f32 %v5835, %v5836
  %v5838 = vsel %vm3053, %v5626, 0.0
  %v5839 = vadd.f32 %v5837, %v5838
  %v5840 = vsel %vm3053, %v5627, 0.0
  %v5841 = vadd.f32 %v5839, %v5840
  %v5842 = vsel %vm3053, %v5628, 0.0
  %v5843 = vadd.f32 %v5841, %v5842
  %v5844 = vsel %vm3053, %v5629, 0.0
  %v5845 = vadd.f32 %v5843, %v5844
  %v5846 = vsel %vm3053, %v5630, 0.0
  %v5847 = vadd.f32 %v5845, %v5846
  %v5848 = vsel %vm3053, %v5631, 0.0
  %v5849 = vadd.f32 %v5847, %v5848
  %v5850 = vsel %vm3053, %v5632, 0.0
  %v5851 = vadd.f32 %v5849, %v5850
  %v5852 = vsel %vm3053, %v5633, 0.0
  %v5853 = vadd.f32 %v5851, %v5852
  %v5854 = vsel %vm3053, %v5634, 0.0
  %v5855 = vadd.f32 %v5853, %v5854
  %v5856 = vsel %vm3053, %v5635, 0.0
  %v5857 = vadd.f32 %v5855, %v5856
  %v5858 = vsel %vm3053, %v5636, 0.0
  %v5859 = vadd.f32 %v5857, %v5858
  %v5860 = vsel %vm3053, %v5637, 0.0
  %v5861 = vadd.f32 %v5859, %v5860
  %v5862 = vsel %vm3053, %v5638, 0.0
  %v5863 = vadd.f32 %v5861, %v5862
  %v5864 = vsel %vm3053, %v5639, 0.0
  %v5865 = vadd.f32 %v5863, %v5864
  %v5866 = vsel %vm3053, %v5640, 0.0
  %v5867 = vadd.f32 %v5865, %v5866
  %v5868 = vsel %vm3053, %v5641, 0.0
  %v5869 = vadd.f32 %v5867, %v5868
  %v5870 = vsel %vm3053, %v5642, 0.0
  %v5871 = vadd.f32 %v5869, %v5870
  %v5872 = vsel %vm3053, %v5643, 0.0
  %v5873 = vadd.f32 %v5871, %v5872
  %v5874 = vsel %vm3053, %v5644, 0.0
  %v5875 = vadd.f32 %v5873, %v5874
  %v5876 = vsel %vm3053, %v5645, 0.0
  %v5877 = vadd.f32 %v5875, %v5876
  %v5878 = vsel %vm3053, %v5646, 0.0
  %v5879 = vadd.f32 %v5877, %v5878
  %v5880 = vsel %vm3053, %v5647, 0.0
  %v5881 = vadd.f32 %v5879, %v5880
  %v5882 = vsel %vm3053, %v5648, 0.0
  %v5883 = vadd.f32 %v5881, %v5882
  %v5884 = vsel %vm3053, %v5649, 0.0
  %v5885 = vadd.f32 %v5883, %v5884
  %v5886 = vsel %vm3053, %v5650, 0.0
  %v5887 = vadd.f32 %v5885, %v5886
  %v5888 = vsel %vm3053, %v5651, 0.0
  %v5889 = vadd.f32 %v5887, %v5888
  %v5890 = vsel %vm3053, %v5652, 0.0
  %v5891 = vadd.f32 %v5889, %v5890
  %v5892 = vsel %vm3053, %v5653, 0.0
  %v5893 = vadd.f32 %v5891, %v5892
  %v5894 = vsel %vm3053, %v5654, 0.0
  %v5895 = vadd.f32 %v5893, %v5894
  %v5896 = vsel %vm3053, %v5655, 0.0
  %v5897 = vadd.f32 %v5895, %v5896
  %v5898 = vsel %vm3053, %v5656, 0.0
  %v5899 = vadd.f32 %v5897, %v5898
  %v5900 = vsel %vm3053, %v5657, 0.0
  %v5901 = vadd.f32 %v5899, %v5900
  %v5902 = vsel %vm3053, %v5658, 0.0
  %v5903 = vadd.f32 %v5901, %v5902
  %v5904 = vsel %vm3053, %v5659, 0.0
  %v5905 = vadd.f32 %v5903, %v5904
  %v5906 = vsel %vm3053, %v5660, 0.0
  %v5907 = vadd.f32 %v5905, %v5906
  %v5908 = vsel %vm3053, %v5661, 0.0
  %v5909 = vadd.f32 %v5907, %v5908
  %v5910 = vsel %vm3053, %v5662, 0.0
  %v5911 = vadd.f32 %v5909, %v5910
  %v5912 = vsel %vm3053, %v5663, 0.0
  %v5913 = vadd.f32 %v5911, %v5912
  %v5914 = vsel %vm3053, %v5664, 0.0
  %v5915 = vadd.f32 %v5913, %v5914
  %v5916 = vsel %vm3053, %v5665, 0.0
  %v5917 = vadd.f32 %v5915, %v5916
  %v5918 = vsel %vm3053, %v5666, 0.0
  %v5919 = vadd.f32 %v5917, %v5918
  %v5920 = vsel %vm3053, %v5667, 0.0
  %v5921 = vadd.f32 %v5919, %v5920
  %v5922 = vsel %vm3053, %v5668, 0.0
  %v5923 = vadd.f32 %v5921, %v5922
  %v5924 = vrot.slane %v5923, 4
  %v5925 = vadd.f32 %v5923, %v5924
  %v5926 = vrot.slane %v5925, 2
  %v5927 = vadd.f32 %v5925, %v5926
  %v5928 = vrot.slane %v5927, 1
  %v5929 = vadd.f32 %v5927, %v5928
  %v5930 = vmul.f32 %v5540, 0.0013020834
  %v5931 = vmul.f32 %v5929, 0.0013020834
  %v5932 = vmul.f32 %v5930, %v5930
  %v5933 = vsub.f32 %v5931, %v5932
  %v5934 = vmax.f32 %v5933, 0.0
  %v5935 = vsub.f32 %v4566, %v5930
  %v5936 = vsub.f32 %v4571, %v5930
  %v5937 = vsub.f32 %v4576, %v5930
  %v5938 = vsub.f32 %v4581, %v5930
  %v5939 = vsub.f32 %v4586, %v5930
  %v5940 = vsub.f32 %v4591, %v5930
  %v5941 = vsub.f32 %v4596, %v5930
  %v5942 = vsub.f32 %v4601, %v5930
  %v5943 = vsub.f32 %v4606, %v5930
  %v5944 = vsub.f32 %v4611, %v5930
  %v5945 = vsub.f32 %v4616, %v5930
  %v5946 = vsub.f32 %v4621, %v5930
  %v5947 = vsub.f32 %v4626, %v5930
  %v5948 = vsub.f32 %v4631, %v5930
  %v5949 = vsub.f32 %v4636, %v5930
  %v5950 = vsub.f32 %v4641, %v5930
  %v5951 = vsub.f32 %v4646, %v5930
  %v5952 = vsub.f32 %v4651, %v5930
  %v5953 = vsub.f32 %v4656, %v5930
  %v5954 = vsub.f32 %v4661, %v5930
  %v5955 = vsub.f32 %v4666, %v5930
  %v5956 = vsub.f32 %v4671, %v5930
  %v5957 = vsub.f32 %v4676, %v5930
  %v5958 = vsub.f32 %v4681, %v5930
  %v5959 = vsub.f32 %v4686, %v5930
  %v5960 = vsub.f32 %v4691, %v5930
  %v5961 = vsub.f32 %v4696, %v5930
  %v5962 = vsub.f32 %v4701, %v5930
  %v5963 = vsub.f32 %v4706, %v5930
  %v5964 = vsub.f32 %v4711, %v5930
  %v5965 = vsub.f32 %v4716, %v5930
  %v5966 = vsub.f32 %v4721, %v5930
  %v5967 = vsub.f32 %v4726, %v5930
  %v5968 = vsub.f32 %v4731, %v5930
  %v5969 = vsub.f32 %v4736, %v5930
  %v5970 = vsub.f32 %v4741, %v5930
  %v5971 = vsub.f32 %v4746, %v5930
  %v5972 = vsub.f32 %v4751, %v5930
  %v5973 = vsub.f32 %v4756, %v5930
  %v5974 = vsub.f32 %v4761, %v5930
  %v5975 = vsub.f32 %v4766, %v5930
  %v5976 = vsub.f32 %v4771, %v5930
  %v5977 = vsub.f32 %v4776, %v5930
  %v5978 = vsub.f32 %v4781, %v5930
  %v5979 = vsub.f32 %v4786, %v5930
  %v5980 = vsub.f32 %v4791, %v5930
  %v5981 = vsub.f32 %v4796, %v5930
  %v5982 = vsub.f32 %v4801, %v5930
  %v5983 = vsub.f32 %v4806, %v5930
  %v5984 = vsub.f32 %v4811, %v5930
  %v5985 = vsub.f32 %v4816, %v5930
  %v5986 = vsub.f32 %v4821, %v5930
  %v5987 = vsub.f32 %v4826, %v5930
  %v5988 = vsub.f32 %v4831, %v5930
  %v5989 = vsub.f32 %v4836, %v5930
  %v5990 = vsub.f32 %v4841, %v5930
  %v5991 = vsub.f32 %v4846, %v5930
  %v5992 = vsub.f32 %v4851, %v5930
  %v5993 = vsub.f32 %v4856, %v5930
  %v5994 = vsub.f32 %v4861, %v5930
  %v5995 = vsub.f32 %v4866, %v5930
  %v5996 = vsub.f32 %v4871, %v5930
  %v5997 = vsub.f32 %v4876, %v5930
  %v5998 = vsub.f32 %v4881, %v5930
  %v5999 = vsub.f32 %v4960, %v5930
  %v6000 = vsub.f32 %v4965, %v5930
  %v6001 = vsub.f32 %v4970, %v5930
  %v6002 = vsub.f32 %v4975, %v5930
  %v6003 = vsub.f32 %v4980, %v5930
  %v6004 = vsub.f32 %v4985, %v5930
  %v6005 = vsub.f32 %v4990, %v5930
  %v6006 = vsub.f32 %v4995, %v5930
  %v6007 = vsub.f32 %v5000, %v5930
  %v6008 = vsub.f32 %v5005, %v5930
  %v6009 = vsub.f32 %v5010, %v5930
  %v6010 = vsub.f32 %v5015, %v5930
  %v6011 = vsub.f32 %v5020, %v5930
  %v6012 = vsub.f32 %v5025, %v5930
  %v6013 = vsub.f32 %v5030, %v5930
  %v6014 = vsub.f32 %v5035, %v5930
  %v6015 = vsub.f32 %v5040, %v5930
  %v6016 = vsub.f32 %v5045, %v5930
  %v6017 = vsub.f32 %v5050, %v5930
  %v6018 = vsub.f32 %v5055, %v5930
  %v6019 = vsub.f32 %v5060, %v5930
  %v6020 = vsub.f32 %v5065, %v5930
  %v6021 = vsub.f32 %v5070, %v5930
  %v6022 = vsub.f32 %v5075, %v5930
  %v6023 = vsub.f32 %v5080, %v5930
  %v6024 = vsub.f32 %v5085, %v5930
  %v6025 = vsub.f32 %v5090, %v5930
  %v6026 = vsub.f32 %v5095, %v5930
  %v6027 = vsub.f32 %v5100, %v5930
  %v6028 = vsub.f32 %v5105, %v5930
  %v6029 = vsub.f32 %v5110, %v5930
  %v6030 = vsub.f32 %v5115, %v5930
  %v6031 = vsub.f32 %v5120, %v5930
  %v6032 = vsub.f32 %v5125, %v5930
  %v6033 = vsub.f32 %v5130, %v5930
  %v6034 = vsub.f32 %v5135, %v5930
  %v6035 = vsub.f32 %v5140, %v5930
  %v6036 = vsub.f32 %v5145, %v5930
  %v6037 = vsub.f32 %v5150, %v5930
  %v6038 = vsub.f32 %v5155, %v5930
  %v6039 = vsub.f32 %v5160, %v5930
  %v6040 = vsub.f32 %v5165, %v5930
  %v6041 = vsub.f32 %v5170, %v5930
  %v6042 = vsub.f32 %v5175, %v5930
  %v6043 = vsub.f32 %v5180, %v5930
  %v6044 = vsub.f32 %v5185, %v5930
  %v6045 = vsub.f32 %v5190, %v5930
  %v6046 = vsub.f32 %v5195, %v5930
  %v6047 = vsub.f32 %v5200, %v5930
  %v6048 = vsub.f32 %v5205, %v5930
  %v6049 = vsub.f32 %v5210, %v5930
  %v6050 = vsub.f32 %v5215, %v5930
  %v6051 = vsub.f32 %v5220, %v5930
  %v6052 = vsub.f32 %v5225, %v5930
  %v6053 = vsub.f32 %v5230, %v5930
  %v6054 = vsub.f32 %v5235, %v5930
  %v6055 = vsub.f32 %v5240, %v5930
  %v6056 = vsub.f32 %v5245, %v5930
  %v6057 = vsub.f32 %v5250, %v5930
  %v6058 = vsub.f32 %v5255, %v5930
  %v6059 = vsub.f32 %v5260, %v5930
  %v6060 = vsub.f32 %v5265, %v5930
  %v6061 = vsub.f32 %v5270, %v5930
  %v6062 = vsub.f32 %v5275, %v5930
  %v6063 = vadd.f32 %v5934, 1e-05
  %v6064 = vrsqrt.pop %v6063
  %v6065 = vmul.f32 %v5935, %v6064
  %v6066 = vmul.f32 %v5936, %v6064
  %v6067 = vmul.f32 %v5937, %v6064
  %v6068 = vmul.f32 %v5938, %v6064
  %v6069 = vmul.f32 %v5939, %v6064
  %v6070 = vmul.f32 %v5940, %v6064
  %v6071 = vmul.f32 %v5941, %v6064
  %v6072 = vmul.f32 %v5942, %v6064
  %v6073 = vmul.f32 %v5943, %v6064
  %v6074 = vmul.f32 %v5944, %v6064
  %v6075 = vmul.f32 %v5945, %v6064
  %v6076 = vmul.f32 %v5946, %v6064
  %v6077 = vmul.f32 %v5947, %v6064
  %v6078 = vmul.f32 %v5948, %v6064
  %v6079 = vmul.f32 %v5949, %v6064
  %v6080 = vmul.f32 %v5950, %v6064
  %v6081 = vmul.f32 %v5951, %v6064
  %v6082 = vmul.f32 %v5952, %v6064
  %v6083 = vmul.f32 %v5953, %v6064
  %v6084 = vmul.f32 %v5954, %v6064
  %v6085 = vmul.f32 %v5955, %v6064
  %v6086 = vmul.f32 %v5956, %v6064
  %v6087 = vmul.f32 %v5957, %v6064
  %v6088 = vmul.f32 %v5958, %v6064
  %v6089 = vmul.f32 %v5959, %v6064
  %v6090 = vmul.f32 %v5960, %v6064
  %v6091 = vmul.f32 %v5961, %v6064
  %v6092 = vmul.f32 %v5962, %v6064
  %v6093 = vmul.f32 %v5963, %v6064
  %v6094 = vmul.f32 %v5964, %v6064
  %v6095 = vmul.f32 %v5965, %v6064
  %v6096 = vmul.f32 %v5966, %v6064
  %v6097 = vmul.f32 %v5967, %v6064
  %v6098 = vmul.f32 %v5968, %v6064
  %v6099 = vmul.f32 %v5969, %v6064
  %v6100 = vmul.f32 %v5970, %v6064
  %v6101 = vmul.f32 %v5971, %v6064
  %v6102 = vmul.f32 %v5972, %v6064
  %v6103 = vmul.f32 %v5973, %v6064
  %v6104 = vmul.f32 %v5974, %v6064
  %v6105 = vmul.f32 %v5975, %v6064
  %v6106 = vmul.f32 %v5976, %v6064
  %v6107 = vmul.f32 %v5977, %v6064
  %v6108 = vmul.f32 %v5978, %v6064
  %v6109 = vmul.f32 %v5979, %v6064
  %v6110 = vmul.f32 %v5980, %v6064
  %v6111 = vmul.f32 %v5981, %v6064
  %v6112 = vmul.f32 %v5982, %v6064
  %v6113 = vmul.f32 %v5983, %v6064
  %v6114 = vmul.f32 %v5984, %v6064
  %v6115 = vmul.f32 %v5985, %v6064
  %v6116 = vmul.f32 %v5986, %v6064
  %v6117 = vmul.f32 %v5987, %v6064
  %v6118 = vmul.f32 %v5988, %v6064
  %v6119 = vmul.f32 %v5989, %v6064
  %v6120 = vmul.f32 %v5990, %v6064
  %v6121 = vmul.f32 %v5991, %v6064
  %v6122 = vmul.f32 %v5992, %v6064
  %v6123 = vmul.f32 %v5993, %v6064
  %v6124 = vmul.f32 %v5994, %v6064
  %v6125 = vmul.f32 %v5995, %v6064
  %v6126 = vmul.f32 %v5996, %v6064
  %v6127 = vmul.f32 %v5997, %v6064
  %v6128 = vmul.f32 %v5998, %v6064
  %v6129 = vmul.f32 %v5999, %v6064
  %v6130 = vmul.f32 %v6000, %v6064
  %v6131 = vmul.f32 %v6001, %v6064
  %v6132 = vmul.f32 %v6002, %v6064
  %v6133 = vmul.f32 %v6003, %v6064
  %v6134 = vmul.f32 %v6004, %v6064
  %v6135 = vmul.f32 %v6005, %v6064
  %v6136 = vmul.f32 %v6006, %v6064
  %v6137 = vmul.f32 %v6007, %v6064
  %v6138 = vmul.f32 %v6008, %v6064
  %v6139 = vmul.f32 %v6009, %v6064
  %v6140 = vmul.f32 %v6010, %v6064
  %v6141 = vmul.f32 %v6011, %v6064
  %v6142 = vmul.f32 %v6012, %v6064
  %v6143 = vmul.f32 %v6013, %v6064
  %v6144 = vmul.f32 %v6014, %v6064
  %v6145 = vmul.f32 %v6015, %v6064
  %v6146 = vmul.f32 %v6016, %v6064
  %v6147 = vmul.f32 %v6017, %v6064
  %v6148 = vmul.f32 %v6018, %v6064
  %v6149 = vmul.f32 %v6019, %v6064
  %v6150 = vmul.f32 %v6020, %v6064
  %v6151 = vmul.f32 %v6021, %v6064
  %v6152 = vmul.f32 %v6022, %v6064
  %v6153 = vmul.f32 %v6023, %v6064
  %v6154 = vmul.f32 %v6024, %v6064
  %v6155 = vmul.f32 %v6025, %v6064
  %v6156 = vmul.f32 %v6026, %v6064
  %v6157 = vmul.f32 %v6027, %v6064
  %v6158 = vmul.f32 %v6028, %v6064
  %v6159 = vmul.f32 %v6029, %v6064
  %v6160 = vmul.f32 %v6030, %v6064
  %v6161 = vmul.f32 %v6031, %v6064
  %v6162 = vmul.f32 %v6032, %v6064
  %v6163 = vmul.f32 %v6033, %v6064
  %v6164 = vmul.f32 %v6034, %v6064
  %v6165 = vmul.f32 %v6035, %v6064
  %v6166 = vmul.f32 %v6036, %v6064
  %v6167 = vmul.f32 %v6037, %v6064
  %v6168 = vmul.f32 %v6038, %v6064
  %v6169 = vmul.f32 %v6039, %v6064
  %v6170 = vmul.f32 %v6040, %v6064
  %v6171 = vmul.f32 %v6041, %v6064
  %v6172 = vmul.f32 %v6042, %v6064
  %v6173 = vmul.f32 %v6043, %v6064
  %v6174 = vmul.f32 %v6044, %v6064
  %v6175 = vmul.f32 %v6045, %v6064
  %v6176 = vmul.f32 %v6046, %v6064
  %v6177 = vmul.f32 %v6047, %v6064
  %v6178 = vmul.f32 %v6048, %v6064
  %v6179 = vmul.f32 %v6049, %v6064
  %v6180 = vmul.f32 %v6050, %v6064
  %v6181 = vmul.f32 %v6051, %v6064
  %v6182 = vmul.f32 %v6052, %v6064
  %v6183 = vmul.f32 %v6053, %v6064
  %v6184 = vmul.f32 %v6054, %v6064
  %v6185 = vmul.f32 %v6055, %v6064
  %v6186 = vmul.f32 %v6056, %v6064
  %v6187 = vmul.f32 %v6057, %v6064
  %v6188 = vmul.f32 %v6058, %v6064
  %v6189 = vmul.f32 %v6059, %v6064
  %v6190 = vmul.f32 %v6060, %v6064
  %v6191 = vmul.f32 %v6061, %v6064
  %v6192 = vmul.f32 %v6062, %v6064
  %v6194 = vlaneseq
  %v6195 = vshrl.u32 %v6194, 7
  %v6196 = vsub.s32 0, %v6195
  %v6197 = vrot.slane %v5278, %v6196
  %v6199 = vmul.f32 %v6065, %v6197
  %v6200 = vmul.f32 %v6066, %v6197
  %v6201 = vmul.f32 %v6067, %v6197
  %v6202 = vmul.f32 %v6068, %v6197
  %v6203 = vmul.f32 %v6069, %v6197
  %v6204 = vmul.f32 %v6070, %v6197
  %v6205 = vmul.f32 %v6071, %v6197
  %v6206 = vmul.f32 %v6072, %v6197
  %v6207 = vmul.f32 %v6073, %v6197
  %v6208 = vmul.f32 %v6074, %v6197
  %v6209 = vmul.f32 %v6075, %v6197
  %v6210 = vmul.f32 %v6076, %v6197
  %v6211 = vmul.f32 %v6077, %v6197
  %v6212 = vmul.f32 %v6078, %v6197
  %v6213 = vmul.f32 %v6079, %v6197
  %v6214 = vmul.f32 %v6080, %v6197
  %v6215 = vmul.f32 %v6081, %v6197
  %v6216 = vmul.f32 %v6082, %v6197
  %v6217 = vmul.f32 %v6083, %v6197
  %v6218 = vmul.f32 %v6084, %v6197
  %v6219 = vmul.f32 %v6085, %v6197
  %v6220 = vmul.f32 %v6086, %v6197
  %v6221 = vmul.f32 %v6087, %v6197
  %v6222 = vmul.f32 %v6088, %v6197
  %v6223 = vmul.f32 %v6089, %v6197
  %v6224 = vmul.f32 %v6090, %v6197
  %v6225 = vmul.f32 %v6091, %v6197
  %v6226 = vmul.f32 %v6092, %v6197
  %v6227 = vmul.f32 %v6093, %v6197
  %v6228 = vmul.f32 %v6094, %v6197
  %v6229 = vmul.f32 %v6095, %v6197
  %v6230 = vmul.f32 %v6096, %v6197
  %v6231 = vmul.f32 %v6097, %v6197
  %v6232 = vmul.f32 %v6098, %v6197
  %v6233 = vmul.f32 %v6099, %v6197
  %v6234 = vmul.f32 %v6100, %v6197
  %v6235 = vmul.f32 %v6101, %v6197
  %v6236 = vmul.f32 %v6102, %v6197
  %v6237 = vmul.f32 %v6103, %v6197
  %v6238 = vmul.f32 %v6104, %v6197
  %v6239 = vmul.f32 %v6105, %v6197
  %v6240 = vmul.f32 %v6106, %v6197
  %v6241 = vmul.f32 %v6107, %v6197
  %v6242 = vmul.f32 %v6108, %v6197
  %v6243 = vmul.f32 %v6109, %v6197
  %v6244 = vmul.f32 %v6110, %v6197
  %v6245 = vmul.f32 %v6111, %v6197
  %v6246 = vmul.f32 %v6112, %v6197
  %v6247 = vmul.f32 %v6113, %v6197
  %v6248 = vmul.f32 %v6114, %v6197
  %v6249 = vmul.f32 %v6115, %v6197
  %v6250 = vmul.f32 %v6116, %v6197
  %v6251 = vmul.f32 %v6117, %v6197
  %v6252 = vmul.f32 %v6118, %v6197
  %v6253 = vmul.f32 %v6119, %v6197
  %v6254 = vmul.f32 %v6120, %v6197
  %v6255 = vmul.f32 %v6121, %v6197
  %v6256 = vmul.f32 %v6122, %v6197
  %v6257 = vmul.f32 %v6123, %v6197
  %v6258 = vmul.f32 %v6124, %v6197
  %v6259 = vmul.f32 %v6125, %v6197
  %v6260 = vmul.f32 %v6126, %v6197
  %v6261 = vmul.f32 %v6127, %v6197
  %v6262 = vmul.f32 %v6128, %v6197
  %v6263 = vmul.f32 %v6129, %v6197
  %v6264 = vmul.f32 %v6130, %v6197
  %v6265 = vmul.f32 %v6131, %v6197
  %v6266 = vmul.f32 %v6132, %v6197
  %v6267 = vmul.f32 %v6133, %v6197
  %v6268 = vmul.f32 %v6134, %v6197
  %v6269 = vmul.f32 %v6135, %v6197
  %v6270 = vmul.f32 %v6136, %v6197
  %v6271 = vmul.f32 %v6137, %v6197
  %v6272 = vmul.f32 %v6138, %v6197
  %v6273 = vmul.f32 %v6139, %v6197
  %v6274 = vmul.f32 %v6140, %v6197
  %v6275 = vmul.f32 %v6141, %v6197
  %v6276 = vmul.f32 %v6142, %v6197
  %v6277 = vmul.f32 %v6143, %v6197
  %v6278 = vmul.f32 %v6144, %v6197
  %v6279 = vmul.f32 %v6145, %v6197
  %v6280 = vmul.f32 %v6146, %v6197
  %v6281 = vmul.f32 %v6147, %v6197
  %v6282 = vmul.f32 %v6148, %v6197
  %v6283 = vmul.f32 %v6149, %v6197
  %v6284 = vmul.f32 %v6150, %v6197
  %v6285 = vmul.f32 %v6151, %v6197
  %v6286 = vmul.f32 %v6152, %v6197
  %v6287 = vmul.f32 %v6153, %v6197
  %v6288 = vmul.f32 %v6154, %v6197
  %v6289 = vmul.f32 %v6155, %v6197
  %v6290 = vmul.f32 %v6156, %v6197
  %v6291 = vmul.f32 %v6157, %v6197
  %v6292 = vmul.f32 %v6158, %v6197
  %v6293 = vmul.f32 %v6159, %v6197
  %v6294 = vmul.f32 %v6160, %v6197
  %v6295 = vmul.f32 %v6161, %v6197
  %v6296 = vmul.f32 %v6162, %v6197
  %v6297 = vmul.f32 %v6163, %v6197
  %v6298 = vmul.f32 %v6164, %v6197
  %v6299 = vmul.f32 %v6165, %v6197
  %v6300 = vmul.f32 %v6166, %v6197
  %v6301 = vmul.f32 %v6167, %v6197
  %v6302 = vmul.f32 %v6168, %v6197
  %v6303 = vmul.f32 %v6169, %v6197
  %v6304 = vmul.f32 %v6170, %v6197
  %v6305 = vmul.f32 %v6171, %v6197
  %v6306 = vmul.f32 %v6172, %v6197
  %v6307 = vmul.f32 %v6173, %v6197
  %v6308 = vmul.f32 %v6174, %v6197
  %v6309 = vmul.f32 %v6175, %v6197
  %v6310 = vmul.f32 %v6176, %v6197
  %v6311 = vmul.f32 %v6177, %v6197
  %v6312 = vmul.f32 %v6178, %v6197
  %v6313 = vmul.f32 %v6179, %v6197
  %v6314 = vmul.f32 %v6180, %v6197
  %v6315 = vmul.f32 %v6181, %v6197
  %v6316 = vmul.f32 %v6182, %v6197
  %v6317 = vmul.f32 %v6183, %v6197
  %v6318 = vmul.f32 %v6184, %v6197
  %v6319 = vmul.f32 %v6185, %v6197
  %v6320 = vmul.f32 %v6186, %v6197
  %v6321 = vmul.f32 %v6187, %v6197
  %v6322 = vmul.f32 %v6188, %v6197
  %v6323 = vmul.f32 %v6189, %v6197
  %v6324 = vmul.f32 %v6190, %v6197
  %v6325 = vmul.f32 %v6191, %v6197
  %v6326 = vmul.f32 %v6192, %v6197
  %v6328 = vlaneseq
  %v6329 = vshrl.u32 %v6328, 7
  %v6330 = vsub.s32 0, %v6329
  %v6331 = vrot.slane %v5279, %v6330
  %v6333 = vadd.f32 %v6199, %v6331
  %v6334 = vadd.f32 %v6200, %v6331
  %v6335 = vadd.f32 %v6201, %v6331
  %v6336 = vadd.f32 %v6202, %v6331
  %v6337 = vadd.f32 %v6203, %v6331
  %v6338 = vadd.f32 %v6204, %v6331
  %v6339 = vadd.f32 %v6205, %v6331
  %v6340 = vadd.f32 %v6206, %v6331
  %v6341 = vadd.f32 %v6207, %v6331
  %v6342 = vadd.f32 %v6208, %v6331
  %v6343 = vadd.f32 %v6209, %v6331
  %v6344 = vadd.f32 %v6210, %v6331
  %v6345 = vadd.f32 %v6211, %v6331
  %v6346 = vadd.f32 %v6212, %v6331
  %v6347 = vadd.f32 %v6213, %v6331
  %v6348 = vadd.f32 %v6214, %v6331
  %v6349 = vadd.f32 %v6215, %v6331
  %v6350 = vadd.f32 %v6216, %v6331
  %v6351 = vadd.f32 %v6217, %v6331
  %v6352 = vadd.f32 %v6218, %v6331
  %v6353 = vadd.f32 %v6219, %v6331
  %v6354 = vadd.f32 %v6220, %v6331
  %v6355 = vadd.f32 %v6221, %v6331
  %v6356 = vadd.f32 %v6222, %v6331
  %v6357 = vadd.f32 %v6223, %v6331
  %v6358 = vadd.f32 %v6224, %v6331
  %v6359 = vadd.f32 %v6225, %v6331
  %v6360 = vadd.f32 %v6226, %v6331
  %v6361 = vadd.f32 %v6227, %v6331
  %v6362 = vadd.f32 %v6228, %v6331
  %v6363 = vadd.f32 %v6229, %v6331
  %v6364 = vadd.f32 %v6230, %v6331
  %v6365 = vadd.f32 %v6231, %v6331
  %v6366 = vadd.f32 %v6232, %v6331
  %v6367 = vadd.f32 %v6233, %v6331
  %v6368 = vadd.f32 %v6234, %v6331
  %v6369 = vadd.f32 %v6235, %v6331
  %v6370 = vadd.f32 %v6236, %v6331
  %v6371 = vadd.f32 %v6237, %v6331
  %v6372 = vadd.f32 %v6238, %v6331
  %v6373 = vadd.f32 %v6239, %v6331
  %v6374 = vadd.f32 %v6240, %v6331
  %v6375 = vadd.f32 %v6241, %v6331
  %v6376 = vadd.f32 %v6242, %v6331
  %v6377 = vadd.f32 %v6243, %v6331
  %v6378 = vadd.f32 %v6244, %v6331
  %v6379 = vadd.f32 %v6245, %v6331
  %v6380 = vadd.f32 %v6246, %v6331
  %v6381 = vadd.f32 %v6247, %v6331
  %v6382 = vadd.f32 %v6248, %v6331
  %v6383 = vadd.f32 %v6249, %v6331
  %v6384 = vadd.f32 %v6250, %v6331
  %v6385 = vadd.f32 %v6251, %v6331
  %v6386 = vadd.f32 %v6252, %v6331
  %v6387 = vadd.f32 %v6253, %v6331
  %v6388 = vadd.f32 %v6254, %v6331
  %v6389 = vadd.f32 %v6255, %v6331
  %v6390 = vadd.f32 %v6256, %v6331
  %v6391 = vadd.f32 %v6257, %v6331
  %v6392 = vadd.f32 %v6258, %v6331
  %v6393 = vadd.f32 %v6259, %v6331
  %v6394 = vadd.f32 %v6260, %v6331
  %v6395 = vadd.f32 %v6261, %v6331
  %v6396 = vadd.f32 %v6262, %v6331
  %v6397 = vadd.f32 %v6263, %v6331
  %v6398 = vadd.f32 %v6264, %v6331
  %v6399 = vadd.f32 %v6265, %v6331
  %v6400 = vadd.f32 %v6266, %v6331
  %v6401 = vadd.f32 %v6267, %v6331
  %v6402 = vadd.f32 %v6268, %v6331
  %v6403 = vadd.f32 %v6269, %v6331
  %v6404 = vadd.f32 %v6270, %v6331
  %v6405 = vadd.f32 %v6271, %v6331
  %v6406 = vadd.f32 %v6272, %v6331
  %v6407 = vadd.f32 %v6273, %v6331
  %v6408 = vadd.f32 %v6274, %v6331
  %v6409 = vadd.f32 %v6275, %v6331
  %v6410 = vadd.f32 %v6276, %v6331
  %v6411 = vadd.f32 %v6277, %v6331
  %v6412 = vadd.f32 %v6278, %v6331
  %v6413 = vadd.f32 %v6279, %v6331
  %v6414 = vadd.f32 %v6280, %v6331
  %v6415 = vadd.f32 %v6281, %v6331
  %v6416 = vadd.f32 %v6282, %v6331
  %v6417 = vadd.f32 %v6283, %v6331
  %v6418 = vadd.f32 %v6284, %v6331
  %v6419 = vadd.f32 %v6285, %v6331
  %v6420 = vadd.f32 %v6286, %v6331
  %v6421 = vadd.f32 %v6287, %v6331
  %v6422 = vadd.f32 %v6288, %v6331
  %v6423 = vadd.f32 %v6289, %v6331
  %v6424 = vadd.f32 %v6290, %v6331
  %v6425 = vadd.f32 %v6291, %v6331
  %v6426 = vadd.f32 %v6292, %v6331
  %v6427 = vadd.f32 %v6293, %v6331
  %v6428 = vadd.f32 %v6294, %v6331
  %v6429 = vadd.f32 %v6295, %v6331
  %v6430 = vadd.f32 %v6296, %v6331
  %v6431 = vadd.f32 %v6297, %v6331
  %v6432 = vadd.f32 %v6298, %v6331
  %v6433 = vadd.f32 %v6299, %v6331
  %v6434 = vadd.f32 %v6300, %v6331
  %v6435 = vadd.f32 %v6301, %v6331
  %v6436 = vadd.f32 %v6302, %v6331
  %v6437 = vadd.f32 %v6303, %v6331
  %v6438 = vadd.f32 %v6304, %v6331
  %v6439 = vadd.f32 %v6305, %v6331
  %v6440 = vadd.f32 %v6306, %v6331
  %v6441 = vadd.f32 %v6307, %v6331
  %v6442 = vadd.f32 %v6308, %v6331
  %v6443 = vadd.f32 %v6309, %v6331
  %v6444 = vadd.f32 %v6310, %v6331
  %v6445 = vadd.f32 %v6311, %v6331
  %v6446 = vadd.f32 %v6312, %v6331
  %v6447 = vadd.f32 %v6313, %v6331
  %v6448 = vadd.f32 %v6314, %v6331
  %v6449 = vadd.f32 %v6315, %v6331
  %v6450 = vadd.f32 %v6316, %v6331
  %v6451 = vadd.f32 %v6317, %v6331
  %v6452 = vadd.f32 %v6318, %v6331
  %v6453 = vadd.f32 %v6319, %v6331
  %v6454 = vadd.f32 %v6320, %v6331
  %v6455 = vadd.f32 %v6321, %v6331
  %v6456 = vadd.f32 %v6322, %v6331
  %v6457 = vadd.f32 %v6323, %v6331
  %v6458 = vadd.f32 %v6324, %v6331
  %v6459 = vadd.f32 %v6325, %v6331
  %v6460 = vadd.f32 %v6326, %v6331
  %v6461 = vmax.f32 %v6333, 0.0
  %v6462 = vmax.f32 %v6334, 0.0
  %v6463 = vmax.f32 %v6335, 0.0
  %v6464 = vmax.f32 %v6336, 0.0
  %v6465 = vmax.f32 %v6337, 0.0
  %v6466 = vmax.f32 %v6338, 0.0
  %v6467 = vmax.f32 %v6339, 0.0
  %v6468 = vmax.f32 %v6340, 0.0
  %v6469 = vmax.f32 %v6341, 0.0
  %v6470 = vmax.f32 %v6342, 0.0
  %v6471 = vmax.f32 %v6343, 0.0
  %v6472 = vmax.f32 %v6344, 0.0
  %v6473 = vmax.f32 %v6345, 0.0
  %v6474 = vmax.f32 %v6346, 0.0
  %v6475 = vmax.f32 %v6347, 0.0
  %v6476 = vmax.f32 %v6348, 0.0
  %v6477 = vmax.f32 %v6349, 0.0
  %v6478 = vmax.f32 %v6350, 0.0
  %v6479 = vmax.f32 %v6351, 0.0
  %v6480 = vmax.f32 %v6352, 0.0
  %v6481 = vmax.f32 %v6353, 0.0
  %v6482 = vmax.f32 %v6354, 0.0
  %v6483 = vmax.f32 %v6355, 0.0
  %v6484 = vmax.f32 %v6356, 0.0
  %v6485 = vmax.f32 %v6357, 0.0
  %v6486 = vmax.f32 %v6358, 0.0
  %v6487 = vmax.f32 %v6359, 0.0
  %v6488 = vmax.f32 %v6360, 0.0
  %v6489 = vmax.f32 %v6361, 0.0
  %v6490 = vmax.f32 %v6362, 0.0
  %v6491 = vmax.f32 %v6363, 0.0
  %v6492 = vmax.f32 %v6364, 0.0
  %v6493 = vmax.f32 %v6365, 0.0
  %v6494 = vmax.f32 %v6366, 0.0
  %v6495 = vmax.f32 %v6367, 0.0
  %v6496 = vmax.f32 %v6368, 0.0
  %v6497 = vmax.f32 %v6369, 0.0
  %v6498 = vmax.f32 %v6370, 0.0
  %v6499 = vmax.f32 %v6371, 0.0
  %v6500 = vmax.f32 %v6372, 0.0
  %v6501 = vmax.f32 %v6373, 0.0
  %v6502 = vmax.f32 %v6374, 0.0
  %v6503 = vmax.f32 %v6375, 0.0
  %v6504 = vmax.f32 %v6376, 0.0
  %v6505 = vmax.f32 %v6377, 0.0
  %v6506 = vmax.f32 %v6378, 0.0
  %v6507 = vmax.f32 %v6379, 0.0
  %v6508 = vmax.f32 %v6380, 0.0
  %v6509 = vmax.f32 %v6381, 0.0
  %v6510 = vmax.f32 %v6382, 0.0
  %v6511 = vmax.f32 %v6383, 0.0
  %v6512 = vmax.f32 %v6384, 0.0
  %v6513 = vmax.f32 %v6385, 0.0
  %v6514 = vmax.f32 %v6386, 0.0
  %v6515 = vmax.f32 %v6387, 0.0
  %v6516 = vmax.f32 %v6388, 0.0
  %v6517 = vmax.f32 %v6389, 0.0
  %v6518 = vmax.f32 %v6390, 0.0
  %v6519 = vmax.f32 %v6391, 0.0
  %v6520 = vmax.f32 %v6392, 0.0
  %v6521 = vmax.f32 %v6393, 0.0
  %v6522 = vmax.f32 %v6394, 0.0
  %v6523 = vmax.f32 %v6395, 0.0
  %v6524 = vmax.f32 %v6396, 0.0
  %v6525 = vmax.f32 %v6397, 0.0
  %v6526 = vmax.f32 %v6398, 0.0
  %v6527 = vmax.f32 %v6399, 0.0
  %v6528 = vmax.f32 %v6400, 0.0
  %v6529 = vmax.f32 %v6401, 0.0
  %v6530 = vmax.f32 %v6402, 0.0
  %v6531 = vmax.f32 %v6403, 0.0
  %v6532 = vmax.f32 %v6404, 0.0
  %v6533 = vmax.f32 %v6405, 0.0
  %v6534 = vmax.f32 %v6406, 0.0
  %v6535 = vmax.f32 %v6407, 0.0
  %v6536 = vmax.f32 %v6408, 0.0
  %v6537 = vmax.f32 %v6409, 0.0
  %v6538 = vmax.f32 %v6410, 0.0
  %v6539 = vmax.f32 %v6411, 0.0
  %v6540 = vmax.f32 %v6412, 0.0
  %v6541 = vmax.f32 %v6413, 0.0
  %v6542 = vmax.f32 %v6414, 0.0
  %v6543 = vmax.f32 %v6415, 0.0
  %v6544 = vmax.f32 %v6416, 0.0
  %v6545 = vmax.f32 %v6417, 0.0
  %v6546 = vmax.f32 %v6418, 0.0
  %v6547 = vmax.f32 %v6419, 0.0
  %v6548 = vmax.f32 %v6420, 0.0
  %v6549 = vmax.f32 %v6421, 0.0
  %v6550 = vmax.f32 %v6422, 0.0
  %v6551 = vmax.f32 %v6423, 0.0
  %v6552 = vmax.f32 %v6424, 0.0
  %v6553 = vmax.f32 %v6425, 0.0
  %v6554 = vmax.f32 %v6426, 0.0
  %v6555 = vmax.f32 %v6427, 0.0
  %v6556 = vmax.f32 %v6428, 0.0
  %v6557 = vmax.f32 %v6429, 0.0
  %v6558 = vmax.f32 %v6430, 0.0
  %v6559 = vmax.f32 %v6431, 0.0
  %v6560 = vmax.f32 %v6432, 0.0
  %v6561 = vmax.f32 %v6433, 0.0
  %v6562 = vmax.f32 %v6434, 0.0
  %v6563 = vmax.f32 %v6435, 0.0
  %v6564 = vmax.f32 %v6436, 0.0
  %v6565 = vmax.f32 %v6437, 0.0
  %v6566 = vmax.f32 %v6438, 0.0
  %v6567 = vmax.f32 %v6439, 0.0
  %v6568 = vmax.f32 %v6440, 0.0
  %v6569 = vmax.f32 %v6441, 0.0
  %v6570 = vmax.f32 %v6442, 0.0
  %v6571 = vmax.f32 %v6443, 0.0
  %v6572 = vmax.f32 %v6444, 0.0
  %v6573 = vmax.f32 %v6445, 0.0
  %v6574 = vmax.f32 %v6446, 0.0
  %v6575 = vmax.f32 %v6447, 0.0
  %v6576 = vmax.f32 %v6448, 0.0
  %v6577 = vmax.f32 %v6449, 0.0
  %v6578 = vmax.f32 %v6450, 0.0
  %v6579 = vmax.f32 %v6451, 0.0
  %v6580 = vmax.f32 %v6452, 0.0
  %v6581 = vmax.f32 %v6453, 0.0
  %v6582 = vmax.f32 %v6454, 0.0
  %v6583 = vmax.f32 %v6455, 0.0
  %v6584 = vmax.f32 %v6456, 0.0
  %v6585 = vmax.f32 %v6457, 0.0
  %v6586 = vmax.f32 %v6458, 0.0
  %v6587 = vmax.f32 %v6459, 0.0
  %v6588 = vmax.f32 %v6460, 0.0
  %v6589 = vadd.s32 %v1367, 512
  %v6590 = vadd.s32 %v1367, 520
  %v6591 = vadd.s32 %v1367, 528
  %v6592 = vadd.s32 %v1367, 536
  %v6593 = vadd.s32 %v1367, 544
  %v6594 = vadd.s32 %v1367, 552
  %v6595 = vadd.s32 %v1367, 560
  %v6596 = vadd.s32 %v1367, 568
  %v6597 = vadd.s32 %v1367, 576
  %v6598 = vadd.s32 %v1367, 584
  %v6599 = vadd.s32 %v1367, 592
  %v6600 = vadd.s32 %v1367, 600
  %v6601 = vadd.s32 %v1367, 608
  %v6602 = vadd.s32 %v1367, 616
  %v6603 = vadd.s32 %v1367, 624
  %v6604 = vadd.s32 %v1367, 632
  %v6605 = vadd.s32 %v1367, 640
  %v6606 = vadd.s32 %v1367, 648
  %v6607 = vadd.s32 %v1367, 656
  %v6608 = vadd.s32 %v1367, 664
  %v6609 = vadd.s32 %v1367, 672
  %v6610 = vadd.s32 %v1367, 680
  %v6611 = vadd.s32 %v1367, 688
  %v6612 = vadd.s32 %v1367, 696
  %v6613 = vadd.s32 %v1367, 704
  %v6614 = vadd.s32 %v1367, 712
  %v6615 = vadd.s32 %v1367, 720
  %v6616 = vadd.s32 %v1367, 728
  %v6617 = vadd.s32 %v1367, 736
  %v6618 = vadd.s32 %v1367, 744
  %v6619 = vadd.s32 %v1367, 752
  %v6620 = vadd.s32 %v1367, 760
  %v6621 = vadd.s32 %v1367, 768
  %v6622 = vadd.s32 %v1367, 776
  %v6623 = vadd.s32 %v1367, 784
  %v6624 = vadd.s32 %v1367, 792
  %v6625 = vadd.s32 %v1367, 800
  %v6626 = vadd.s32 %v1367, 808
  %v6627 = vadd.s32 %v1367, 816
  %v6628 = vadd.s32 %v1367, 824
  %v6629 = vadd.s32 %v1367, 832
  %v6630 = vadd.s32 %v1367, 840
  %v6631 = vadd.s32 %v1367, 848
  %v6632 = vadd.s32 %v1367, 856
  %v6633 = vadd.s32 %v1367, 864
  %v6634 = vadd.s32 %v1367, 872
  %v6635 = vadd.s32 %v1367, 880
  %v6636 = vadd.s32 %v1367, 888
  %v6637 = vadd.s32 %v1367, 896
  %v6638 = vadd.s32 %v1367, 904
  %v6639 = vadd.s32 %v1367, 912
  %v6640 = vadd.s32 %v1367, 920
  %v6641 = vadd.s32 %v1367, 928
  %v6642 = vadd.s32 %v1367, 936
  %v6643 = vadd.s32 %v1367, 944
  %v6644 = vadd.s32 %v1367, 952
  %v6645 = vadd.s32 %v1367, 960
  %v6646 = vadd.s32 %v1367, 968
  %v6647 = vadd.s32 %v1367, 976
  %v6648 = vadd.s32 %v1367, 984
  %v6649 = vadd.s32 %v1367, 992
  %v6650 = vadd.s32 %v1367, 1000
  %v6651 = vadd.s32 %v1367, 1008
  %v6652 = vadd.s32 %v1367, 1016
  %vm6653 = vcmp.lt.s32.totalorder %v6589, 0
  %v6654 = vsub.s32 0, %v6589
  %v6655 = vsel %vm6653, %v6654, %v6589
  %v6656 = vshrl.u32 %v6655, 4
  %v6657 = vand.u32 %v6655, 15
  %v6658 = vsub.s32 0, %v6657
  %v6659 = vsel %vm6653, %v6658, %v6657
  %vm6660 = vcmp.lt.s32.totalorder %v6590, 0
  %v6661 = vsub.s32 0, %v6590
  %v6662 = vsel %vm6660, %v6661, %v6590
  %v6663 = vshrl.u32 %v6662, 4
  %v6664 = vand.u32 %v6662, 15
  %v6665 = vsub.s32 0, %v6664
  %v6666 = vsel %vm6660, %v6665, %v6664
  %vm6667 = vcmp.lt.s32.totalorder %v6591, 0
  %v6668 = vsub.s32 0, %v6591
  %v6669 = vsel %vm6667, %v6668, %v6591
  %v6670 = vshrl.u32 %v6669, 4
  %v6671 = vand.u32 %v6669, 15
  %v6672 = vsub.s32 0, %v6671
  %v6673 = vsel %vm6667, %v6672, %v6671
  %vm6674 = vcmp.lt.s32.totalorder %v6592, 0
  %v6675 = vsub.s32 0, %v6592
  %v6676 = vsel %vm6674, %v6675, %v6592
  %v6677 = vshrl.u32 %v6676, 4
  %v6678 = vand.u32 %v6676, 15
  %v6679 = vsub.s32 0, %v6678
  %v6680 = vsel %vm6674, %v6679, %v6678
  %vm6681 = vcmp.lt.s32.totalorder %v6593, 0
  %v6682 = vsub.s32 0, %v6593
  %v6683 = vsel %vm6681, %v6682, %v6593
  %v6684 = vshrl.u32 %v6683, 4
  %v6685 = vand.u32 %v6683, 15
  %v6686 = vsub.s32 0, %v6685
  %v6687 = vsel %vm6681, %v6686, %v6685
  %vm6688 = vcmp.lt.s32.totalorder %v6594, 0
  %v6689 = vsub.s32 0, %v6594
  %v6690 = vsel %vm6688, %v6689, %v6594
  %v6691 = vshrl.u32 %v6690, 4
  %v6692 = vand.u32 %v6690, 15
  %v6693 = vsub.s32 0, %v6692
  %v6694 = vsel %vm6688, %v6693, %v6692
  %vm6695 = vcmp.lt.s32.totalorder %v6595, 0
  %v6696 = vsub.s32 0, %v6595
  %v6697 = vsel %vm6695, %v6696, %v6595
  %v6698 = vshrl.u32 %v6697, 4
  %v6699 = vand.u32 %v6697, 15
  %v6700 = vsub.s32 0, %v6699
  %v6701 = vsel %vm6695, %v6700, %v6699
  %vm6702 = vcmp.lt.s32.totalorder %v6596, 0
  %v6703 = vsub.s32 0, %v6596
  %v6704 = vsel %vm6702, %v6703, %v6596
  %v6705 = vshrl.u32 %v6704, 4
  %v6706 = vand.u32 %v6704, 15
  %v6707 = vsub.s32 0, %v6706
  %v6708 = vsel %vm6702, %v6707, %v6706
  %vm6709 = vcmp.lt.s32.totalorder %v6597, 0
  %v6710 = vsub.s32 0, %v6597
  %v6711 = vsel %vm6709, %v6710, %v6597
  %v6712 = vshrl.u32 %v6711, 4
  %v6713 = vand.u32 %v6711, 15
  %v6714 = vsub.s32 0, %v6713
  %v6715 = vsel %vm6709, %v6714, %v6713
  %vm6716 = vcmp.lt.s32.totalorder %v6598, 0
  %v6717 = vsub.s32 0, %v6598
  %v6718 = vsel %vm6716, %v6717, %v6598
  %v6719 = vshrl.u32 %v6718, 4
  %v6720 = vand.u32 %v6718, 15
  %v6721 = vsub.s32 0, %v6720
  %v6722 = vsel %vm6716, %v6721, %v6720
  %vm6723 = vcmp.lt.s32.totalorder %v6599, 0
  %v6724 = vsub.s32 0, %v6599
  %v6725 = vsel %vm6723, %v6724, %v6599
  %v6726 = vshrl.u32 %v6725, 4
  %v6727 = vand.u32 %v6725, 15
  %v6728 = vsub.s32 0, %v6727
  %v6729 = vsel %vm6723, %v6728, %v6727
  %vm6730 = vcmp.lt.s32.totalorder %v6600, 0
  %v6731 = vsub.s32 0, %v6600
  %v6732 = vsel %vm6730, %v6731, %v6600
  %v6733 = vshrl.u32 %v6732, 4
  %v6734 = vand.u32 %v6732, 15
  %v6735 = vsub.s32 0, %v6734
  %v6736 = vsel %vm6730, %v6735, %v6734
  %vm6737 = vcmp.lt.s32.totalorder %v6601, 0
  %v6738 = vsub.s32 0, %v6601
  %v6739 = vsel %vm6737, %v6738, %v6601
  %v6740 = vshrl.u32 %v6739, 4
  %v6741 = vand.u32 %v6739, 15
  %v6742 = vsub.s32 0, %v6741
  %v6743 = vsel %vm6737, %v6742, %v6741
  %vm6744 = vcmp.lt.s32.totalorder %v6602, 0
  %v6745 = vsub.s32 0, %v6602
  %v6746 = vsel %vm6744, %v6745, %v6602
  %v6747 = vshrl.u32 %v6746, 4
  %v6748 = vand.u32 %v6746, 15
  %v6749 = vsub.s32 0, %v6748
  %v6750 = vsel %vm6744, %v6749, %v6748
  %vm6751 = vcmp.lt.s32.totalorder %v6603, 0
  %v6752 = vsub.s32 0, %v6603
  %v6753 = vsel %vm6751, %v6752, %v6603
  %v6754 = vshrl.u32 %v6753, 4
  %v6755 = vand.u32 %v6753, 15
  %v6756 = vsub.s32 0, %v6755
  %v6757 = vsel %vm6751, %v6756, %v6755
  %vm6758 = vcmp.lt.s32.totalorder %v6604, 0
  %v6759 = vsub.s32 0, %v6604
  %v6760 = vsel %vm6758, %v6759, %v6604
  %v6761 = vshrl.u32 %v6760, 4
  %v6762 = vand.u32 %v6760, 15
  %v6763 = vsub.s32 0, %v6762
  %v6764 = vsel %vm6758, %v6763, %v6762
  %vm6765 = vcmp.lt.s32.totalorder %v6605, 0
  %v6766 = vsub.s32 0, %v6605
  %v6767 = vsel %vm6765, %v6766, %v6605
  %v6768 = vshrl.u32 %v6767, 4
  %v6769 = vand.u32 %v6767, 15
  %v6770 = vsub.s32 0, %v6769
  %v6771 = vsel %vm6765, %v6770, %v6769
  %vm6772 = vcmp.lt.s32.totalorder %v6606, 0
  %v6773 = vsub.s32 0, %v6606
  %v6774 = vsel %vm6772, %v6773, %v6606
  %v6775 = vshrl.u32 %v6774, 4
  %v6776 = vand.u32 %v6774, 15
  %v6777 = vsub.s32 0, %v6776
  %v6778 = vsel %vm6772, %v6777, %v6776
  %vm6779 = vcmp.lt.s32.totalorder %v6607, 0
  %v6780 = vsub.s32 0, %v6607
  %v6781 = vsel %vm6779, %v6780, %v6607
  %v6782 = vshrl.u32 %v6781, 4
  %v6783 = vand.u32 %v6781, 15
  %v6784 = vsub.s32 0, %v6783
  %v6785 = vsel %vm6779, %v6784, %v6783
  %vm6786 = vcmp.lt.s32.totalorder %v6608, 0
  %v6787 = vsub.s32 0, %v6608
  %v6788 = vsel %vm6786, %v6787, %v6608
  %v6789 = vshrl.u32 %v6788, 4
  %v6790 = vand.u32 %v6788, 15
  %v6791 = vsub.s32 0, %v6790
  %v6792 = vsel %vm6786, %v6791, %v6790
  %vm6793 = vcmp.lt.s32.totalorder %v6609, 0
  %v6794 = vsub.s32 0, %v6609
  %v6795 = vsel %vm6793, %v6794, %v6609
  %v6796 = vshrl.u32 %v6795, 4
  %v6797 = vand.u32 %v6795, 15
  %v6798 = vsub.s32 0, %v6797
  %v6799 = vsel %vm6793, %v6798, %v6797
  %vm6800 = vcmp.lt.s32.totalorder %v6610, 0
  %v6801 = vsub.s32 0, %v6610
  %v6802 = vsel %vm6800, %v6801, %v6610
  %v6803 = vshrl.u32 %v6802, 4
  %v6804 = vand.u32 %v6802, 15
  %v6805 = vsub.s32 0, %v6804
  %v6806 = vsel %vm6800, %v6805, %v6804
  %vm6807 = vcmp.lt.s32.totalorder %v6611, 0
  %v6808 = vsub.s32 0, %v6611
  %v6809 = vsel %vm6807, %v6808, %v6611
  %v6810 = vshrl.u32 %v6809, 4
  %v6811 = vand.u32 %v6809, 15
  %v6812 = vsub.s32 0, %v6811
  %v6813 = vsel %vm6807, %v6812, %v6811
  %vm6814 = vcmp.lt.s32.totalorder %v6612, 0
  %v6815 = vsub.s32 0, %v6612
  %v6816 = vsel %vm6814, %v6815, %v6612
  %v6817 = vshrl.u32 %v6816, 4
  %v6818 = vand.u32 %v6816, 15
  %v6819 = vsub.s32 0, %v6818
  %v6820 = vsel %vm6814, %v6819, %v6818
  %vm6821 = vcmp.lt.s32.totalorder %v6613, 0
  %v6822 = vsub.s32 0, %v6613
  %v6823 = vsel %vm6821, %v6822, %v6613
  %v6824 = vshrl.u32 %v6823, 4
  %v6825 = vand.u32 %v6823, 15
  %v6826 = vsub.s32 0, %v6825
  %v6827 = vsel %vm6821, %v6826, %v6825
  %vm6828 = vcmp.lt.s32.totalorder %v6614, 0
  %v6829 = vsub.s32 0, %v6614
  %v6830 = vsel %vm6828, %v6829, %v6614
  %v6831 = vshrl.u32 %v6830, 4
  %v6832 = vand.u32 %v6830, 15
  %v6833 = vsub.s32 0, %v6832
  %v6834 = vsel %vm6828, %v6833, %v6832
  %vm6835 = vcmp.lt.s32.totalorder %v6615, 0
  %v6836 = vsub.s32 0, %v6615
  %v6837 = vsel %vm6835, %v6836, %v6615
  %v6838 = vshrl.u32 %v6837, 4
  %v6839 = vand.u32 %v6837, 15
  %v6840 = vsub.s32 0, %v6839
  %v6841 = vsel %vm6835, %v6840, %v6839
  %vm6842 = vcmp.lt.s32.totalorder %v6616, 0
  %v6843 = vsub.s32 0, %v6616
  %v6844 = vsel %vm6842, %v6843, %v6616
  %v6845 = vshrl.u32 %v6844, 4
  %v6846 = vand.u32 %v6844, 15
  %v6847 = vsub.s32 0, %v6846
  %v6848 = vsel %vm6842, %v6847, %v6846
  %vm6849 = vcmp.lt.s32.totalorder %v6617, 0
  %v6850 = vsub.s32 0, %v6617
  %v6851 = vsel %vm6849, %v6850, %v6617
  %v6852 = vshrl.u32 %v6851, 4
  %v6853 = vand.u32 %v6851, 15
  %v6854 = vsub.s32 0, %v6853
  %v6855 = vsel %vm6849, %v6854, %v6853
  %vm6856 = vcmp.lt.s32.totalorder %v6618, 0
  %v6857 = vsub.s32 0, %v6618
  %v6858 = vsel %vm6856, %v6857, %v6618
  %v6859 = vshrl.u32 %v6858, 4
  %v6860 = vand.u32 %v6858, 15
  %v6861 = vsub.s32 0, %v6860
  %v6862 = vsel %vm6856, %v6861, %v6860
  %vm6863 = vcmp.lt.s32.totalorder %v6619, 0
  %v6864 = vsub.s32 0, %v6619
  %v6865 = vsel %vm6863, %v6864, %v6619
  %v6866 = vshrl.u32 %v6865, 4
  %v6867 = vand.u32 %v6865, 15
  %v6868 = vsub.s32 0, %v6867
  %v6869 = vsel %vm6863, %v6868, %v6867
  %vm6870 = vcmp.lt.s32.totalorder %v6620, 0
  %v6871 = vsub.s32 0, %v6620
  %v6872 = vsel %vm6870, %v6871, %v6620
  %v6873 = vshrl.u32 %v6872, 4
  %v6874 = vand.u32 %v6872, 15
  %v6875 = vsub.s32 0, %v6874
  %v6876 = vsel %vm6870, %v6875, %v6874
  %vm6877 = vcmp.lt.s32.totalorder %v6621, 0
  %v6878 = vsub.s32 0, %v6621
  %v6879 = vsel %vm6877, %v6878, %v6621
  %v6880 = vshrl.u32 %v6879, 4
  %v6881 = vand.u32 %v6879, 15
  %v6882 = vsub.s32 0, %v6881
  %v6883 = vsel %vm6877, %v6882, %v6881
  %vm6884 = vcmp.lt.s32.totalorder %v6622, 0
  %v6885 = vsub.s32 0, %v6622
  %v6886 = vsel %vm6884, %v6885, %v6622
  %v6887 = vshrl.u32 %v6886, 4
  %v6888 = vand.u32 %v6886, 15
  %v6889 = vsub.s32 0, %v6888
  %v6890 = vsel %vm6884, %v6889, %v6888
  %vm6891 = vcmp.lt.s32.totalorder %v6623, 0
  %v6892 = vsub.s32 0, %v6623
  %v6893 = vsel %vm6891, %v6892, %v6623
  %v6894 = vshrl.u32 %v6893, 4
  %v6895 = vand.u32 %v6893, 15
  %v6896 = vsub.s32 0, %v6895
  %v6897 = vsel %vm6891, %v6896, %v6895
  %vm6898 = vcmp.lt.s32.totalorder %v6624, 0
  %v6899 = vsub.s32 0, %v6624
  %v6900 = vsel %vm6898, %v6899, %v6624
  %v6901 = vshrl.u32 %v6900, 4
  %v6902 = vand.u32 %v6900, 15
  %v6903 = vsub.s32 0, %v6902
  %v6904 = vsel %vm6898, %v6903, %v6902
  %vm6905 = vcmp.lt.s32.totalorder %v6625, 0
  %v6906 = vsub.s32 0, %v6625
  %v6907 = vsel %vm6905, %v6906, %v6625
  %v6908 = vshrl.u32 %v6907, 4
  %v6909 = vand.u32 %v6907, 15
  %v6910 = vsub.s32 0, %v6909
  %v6911 = vsel %vm6905, %v6910, %v6909
  %vm6912 = vcmp.lt.s32.totalorder %v6626, 0
  %v6913 = vsub.s32 0, %v6626
  %v6914 = vsel %vm6912, %v6913, %v6626
  %v6915 = vshrl.u32 %v6914, 4
  %v6916 = vand.u32 %v6914, 15
  %v6917 = vsub.s32 0, %v6916
  %v6918 = vsel %vm6912, %v6917, %v6916
  %vm6919 = vcmp.lt.s32.totalorder %v6627, 0
  %v6920 = vsub.s32 0, %v6627
  %v6921 = vsel %vm6919, %v6920, %v6627
  %v6922 = vshrl.u32 %v6921, 4
  %v6923 = vand.u32 %v6921, 15
  %v6924 = vsub.s32 0, %v6923
  %v6925 = vsel %vm6919, %v6924, %v6923
  %vm6926 = vcmp.lt.s32.totalorder %v6628, 0
  %v6927 = vsub.s32 0, %v6628
  %v6928 = vsel %vm6926, %v6927, %v6628
  %v6929 = vshrl.u32 %v6928, 4
  %v6930 = vand.u32 %v6928, 15
  %v6931 = vsub.s32 0, %v6930
  %v6932 = vsel %vm6926, %v6931, %v6930
  %vm6933 = vcmp.lt.s32.totalorder %v6629, 0
  %v6934 = vsub.s32 0, %v6629
  %v6935 = vsel %vm6933, %v6934, %v6629
  %v6936 = vshrl.u32 %v6935, 4
  %v6937 = vand.u32 %v6935, 15
  %v6938 = vsub.s32 0, %v6937
  %v6939 = vsel %vm6933, %v6938, %v6937
  %vm6940 = vcmp.lt.s32.totalorder %v6630, 0
  %v6941 = vsub.s32 0, %v6630
  %v6942 = vsel %vm6940, %v6941, %v6630
  %v6943 = vshrl.u32 %v6942, 4
  %v6944 = vand.u32 %v6942, 15
  %v6945 = vsub.s32 0, %v6944
  %v6946 = vsel %vm6940, %v6945, %v6944
  %vm6947 = vcmp.lt.s32.totalorder %v6631, 0
  %v6948 = vsub.s32 0, %v6631
  %v6949 = vsel %vm6947, %v6948, %v6631
  %v6950 = vshrl.u32 %v6949, 4
  %v6951 = vand.u32 %v6949, 15
  %v6952 = vsub.s32 0, %v6951
  %v6953 = vsel %vm6947, %v6952, %v6951
  %vm6954 = vcmp.lt.s32.totalorder %v6632, 0
  %v6955 = vsub.s32 0, %v6632
  %v6956 = vsel %vm6954, %v6955, %v6632
  %v6957 = vshrl.u32 %v6956, 4
  %v6958 = vand.u32 %v6956, 15
  %v6959 = vsub.s32 0, %v6958
  %v6960 = vsel %vm6954, %v6959, %v6958
  %vm6961 = vcmp.lt.s32.totalorder %v6633, 0
  %v6962 = vsub.s32 0, %v6633
  %v6963 = vsel %vm6961, %v6962, %v6633
  %v6964 = vshrl.u32 %v6963, 4
  %v6965 = vand.u32 %v6963, 15
  %v6966 = vsub.s32 0, %v6965
  %v6967 = vsel %vm6961, %v6966, %v6965
  %vm6968 = vcmp.lt.s32.totalorder %v6634, 0
  %v6969 = vsub.s32 0, %v6634
  %v6970 = vsel %vm6968, %v6969, %v6634
  %v6971 = vshrl.u32 %v6970, 4
  %v6972 = vand.u32 %v6970, 15
  %v6973 = vsub.s32 0, %v6972
  %v6974 = vsel %vm6968, %v6973, %v6972
  %vm6975 = vcmp.lt.s32.totalorder %v6635, 0
  %v6976 = vsub.s32 0, %v6635
  %v6977 = vsel %vm6975, %v6976, %v6635
  %v6978 = vshrl.u32 %v6977, 4
  %v6979 = vand.u32 %v6977, 15
  %v6980 = vsub.s32 0, %v6979
  %v6981 = vsel %vm6975, %v6980, %v6979
  %vm6982 = vcmp.lt.s32.totalorder %v6636, 0
  %v6983 = vsub.s32 0, %v6636
  %v6984 = vsel %vm6982, %v6983, %v6636
  %v6985 = vshrl.u32 %v6984, 4
  %v6986 = vand.u32 %v6984, 15
  %v6987 = vsub.s32 0, %v6986
  %v6988 = vsel %vm6982, %v6987, %v6986
  %vm6989 = vcmp.lt.s32.totalorder %v6637, 0
  %v6990 = vsub.s32 0, %v6637
  %v6991 = vsel %vm6989, %v6990, %v6637
  %v6992 = vshrl.u32 %v6991, 4
  %v6993 = vand.u32 %v6991, 15
  %v6994 = vsub.s32 0, %v6993
  %v6995 = vsel %vm6989, %v6994, %v6993
  %vm6996 = vcmp.lt.s32.totalorder %v6638, 0
  %v6997 = vsub.s32 0, %v6638
  %v6998 = vsel %vm6996, %v6997, %v6638
  %v6999 = vshrl.u32 %v6998, 4
  %v7000 = vand.u32 %v6998, 15
  %v7001 = vsub.s32 0, %v7000
  %v7002 = vsel %vm6996, %v7001, %v7000
  %vm7003 = vcmp.lt.s32.totalorder %v6639, 0
  %v7004 = vsub.s32 0, %v6639
  %v7005 = vsel %vm7003, %v7004, %v6639
  %v7006 = vshrl.u32 %v7005, 4
  %v7007 = vand.u32 %v7005, 15
  %v7008 = vsub.s32 0, %v7007
  %v7009 = vsel %vm7003, %v7008, %v7007
  %vm7010 = vcmp.lt.s32.totalorder %v6640, 0
  %v7011 = vsub.s32 0, %v6640
  %v7012 = vsel %vm7010, %v7011, %v6640
  %v7013 = vshrl.u32 %v7012, 4
  %v7014 = vand.u32 %v7012, 15
  %v7015 = vsub.s32 0, %v7014
  %v7016 = vsel %vm7010, %v7015, %v7014
  %vm7017 = vcmp.lt.s32.totalorder %v6641, 0
  %v7018 = vsub.s32 0, %v6641
  %v7019 = vsel %vm7017, %v7018, %v6641
  %v7020 = vshrl.u32 %v7019, 4
  %v7021 = vand.u32 %v7019, 15
  %v7022 = vsub.s32 0, %v7021
  %v7023 = vsel %vm7017, %v7022, %v7021
  %vm7024 = vcmp.lt.s32.totalorder %v6642, 0
  %v7025 = vsub.s32 0, %v6642
  %v7026 = vsel %vm7024, %v7025, %v6642
  %v7027 = vshrl.u32 %v7026, 4
  %v7028 = vand.u32 %v7026, 15
  %v7029 = vsub.s32 0, %v7028
  %v7030 = vsel %vm7024, %v7029, %v7028
  %vm7031 = vcmp.lt.s32.totalorder %v6643, 0
  %v7032 = vsub.s32 0, %v6643
  %v7033 = vsel %vm7031, %v7032, %v6643
  %v7034 = vshrl.u32 %v7033, 4
  %v7035 = vand.u32 %v7033, 15
  %v7036 = vsub.s32 0, %v7035
  %v7037 = vsel %vm7031, %v7036, %v7035
  %vm7038 = vcmp.lt.s32.totalorder %v6644, 0
  %v7039 = vsub.s32 0, %v6644
  %v7040 = vsel %vm7038, %v7039, %v6644
  %v7041 = vshrl.u32 %v7040, 4
  %v7042 = vand.u32 %v7040, 15
  %v7043 = vsub.s32 0, %v7042
  %v7044 = vsel %vm7038, %v7043, %v7042
  %vm7045 = vcmp.lt.s32.totalorder %v6645, 0
  %v7046 = vsub.s32 0, %v6645
  %v7047 = vsel %vm7045, %v7046, %v6645
  %v7048 = vshrl.u32 %v7047, 4
  %v7049 = vand.u32 %v7047, 15
  %v7050 = vsub.s32 0, %v7049
  %v7051 = vsel %vm7045, %v7050, %v7049
  %vm7052 = vcmp.lt.s32.totalorder %v6646, 0
  %v7053 = vsub.s32 0, %v6646
  %v7054 = vsel %vm7052, %v7053, %v6646
  %v7055 = vshrl.u32 %v7054, 4
  %v7056 = vand.u32 %v7054, 15
  %v7057 = vsub.s32 0, %v7056
  %v7058 = vsel %vm7052, %v7057, %v7056
  %vm7059 = vcmp.lt.s32.totalorder %v6647, 0
  %v7060 = vsub.s32 0, %v6647
  %v7061 = vsel %vm7059, %v7060, %v6647
  %v7062 = vshrl.u32 %v7061, 4
  %v7063 = vand.u32 %v7061, 15
  %v7064 = vsub.s32 0, %v7063
  %v7065 = vsel %vm7059, %v7064, %v7063
  %vm7066 = vcmp.lt.s32.totalorder %v6648, 0
  %v7067 = vsub.s32 0, %v6648
  %v7068 = vsel %vm7066, %v7067, %v6648
  %v7069 = vshrl.u32 %v7068, 4
  %v7070 = vand.u32 %v7068, 15
  %v7071 = vsub.s32 0, %v7070
  %v7072 = vsel %vm7066, %v7071, %v7070
  %vm7073 = vcmp.lt.s32.totalorder %v6649, 0
  %v7074 = vsub.s32 0, %v6649
  %v7075 = vsel %vm7073, %v7074, %v6649
  %v7076 = vshrl.u32 %v7075, 4
  %v7077 = vand.u32 %v7075, 15
  %v7078 = vsub.s32 0, %v7077
  %v7079 = vsel %vm7073, %v7078, %v7077
  %vm7080 = vcmp.lt.s32.totalorder %v6650, 0
  %v7081 = vsub.s32 0, %v6650
  %v7082 = vsel %vm7080, %v7081, %v6650
  %v7083 = vshrl.u32 %v7082, 4
  %v7084 = vand.u32 %v7082, 15
  %v7085 = vsub.s32 0, %v7084
  %v7086 = vsel %vm7080, %v7085, %v7084
  %vm7087 = vcmp.lt.s32.totalorder %v6651, 0
  %v7088 = vsub.s32 0, %v6651
  %v7089 = vsel %vm7087, %v7088, %v6651
  %v7090 = vshrl.u32 %v7089, 4
  %v7091 = vand.u32 %v7089, 15
  %v7092 = vsub.s32 0, %v7091
  %v7093 = vsel %vm7087, %v7092, %v7091
  %vm7094 = vcmp.lt.s32.totalorder %v6652, 0
  %v7095 = vsub.s32 0, %v6652
  %v7096 = vsel %vm7094, %v7095, %v6652
  %v7097 = vshrl.u32 %v7096, 4
  %v7098 = vand.u32 %v7096, 15
  %v7099 = vsub.s32 0, %v7098
  %v7100 = vsel %vm7094, %v7099, %v7098
  %vm7101 = vcmp.ne.s32.totalorder %v6659, 0
  %vm7102 = vcmp.ne.s32.totalorder %v6666, 0
  %vm7103 = vcmp.ne.s32.totalorder %v6673, 0
  %vm7104 = vcmp.ne.s32.totalorder %v6680, 0
  %vm7105 = vcmp.ne.s32.totalorder %v6687, 0
  %vm7106 = vcmp.ne.s32.totalorder %v6694, 0
  %vm7107 = vcmp.ne.s32.totalorder %v6701, 0
  %vm7108 = vcmp.ne.s32.totalorder %v6708, 0
  %vm7109 = vcmp.ne.s32.totalorder %v6715, 0
  %vm7110 = vcmp.ne.s32.totalorder %v6722, 0
  %vm7111 = vcmp.ne.s32.totalorder %v6729, 0
  %vm7112 = vcmp.ne.s32.totalorder %v6736, 0
  %vm7113 = vcmp.ne.s32.totalorder %v6743, 0
  %vm7114 = vcmp.ne.s32.totalorder %v6750, 0
  %vm7115 = vcmp.ne.s32.totalorder %v6757, 0
  %vm7116 = vcmp.ne.s32.totalorder %v6764, 0
  %vm7117 = vcmp.ne.s32.totalorder %v6771, 0
  %vm7118 = vcmp.ne.s32.totalorder %v6778, 0
  %vm7119 = vcmp.ne.s32.totalorder %v6785, 0
  %vm7120 = vcmp.ne.s32.totalorder %v6792, 0
  %vm7121 = vcmp.ne.s32.totalorder %v6799, 0
  %vm7122 = vcmp.ne.s32.totalorder %v6806, 0
  %vm7123 = vcmp.ne.s32.totalorder %v6813, 0
  %vm7124 = vcmp.ne.s32.totalorder %v6820, 0
  %vm7125 = vcmp.ne.s32.totalorder %v6827, 0
  %vm7126 = vcmp.ne.s32.totalorder %v6834, 0
  %vm7127 = vcmp.ne.s32.totalorder %v6841, 0
  %vm7128 = vcmp.ne.s32.totalorder %v6848, 0
  %vm7129 = vcmp.ne.s32.totalorder %v6855, 0
  %vm7130 = vcmp.ne.s32.totalorder %v6862, 0
  %vm7131 = vcmp.ne.s32.totalorder %v6869, 0
  %vm7132 = vcmp.ne.s32.totalorder %v6876, 0
  %vm7133 = vcmp.ne.s32.totalorder %v6883, 0
  %vm7134 = vcmp.ne.s32.totalorder %v6890, 0
  %vm7135 = vcmp.ne.s32.totalorder %v6897, 0
  %vm7136 = vcmp.ne.s32.totalorder %v6904, 0
  %vm7137 = vcmp.ne.s32.totalorder %v6911, 0
  %vm7138 = vcmp.ne.s32.totalorder %v6918, 0
  %vm7139 = vcmp.ne.s32.totalorder %v6925, 0
  %vm7140 = vcmp.ne.s32.totalorder %v6932, 0
  %vm7141 = vcmp.ne.s32.totalorder %v6939, 0
  %vm7142 = vcmp.ne.s32.totalorder %v6946, 0
  %vm7143 = vcmp.ne.s32.totalorder %v6953, 0
  %vm7144 = vcmp.ne.s32.totalorder %v6960, 0
  %vm7145 = vcmp.ne.s32.totalorder %v6967, 0
  %vm7146 = vcmp.ne.s32.totalorder %v6974, 0
  %vm7147 = vcmp.ne.s32.totalorder %v6981, 0
  %vm7148 = vcmp.ne.s32.totalorder %v6988, 0
  %vm7149 = vcmp.ne.s32.totalorder %v6995, 0
  %vm7150 = vcmp.ne.s32.totalorder %v7002, 0
  %vm7151 = vcmp.ne.s32.totalorder %v7009, 0
  %vm7152 = vcmp.ne.s32.totalorder %v7016, 0
  %vm7153 = vcmp.ne.s32.totalorder %v7023, 0
  %vm7154 = vcmp.ne.s32.totalorder %v7030, 0
  %vm7155 = vcmp.ne.s32.totalorder %v7037, 0
  %vm7156 = vcmp.ne.s32.totalorder %v7044, 0
  %vm7157 = vcmp.ne.s32.totalorder %v7051, 0
  %vm7158 = vcmp.ne.s32.totalorder %v7058, 0
  %vm7159 = vcmp.ne.s32.totalorder %v7065, 0
  %vm7160 = vcmp.ne.s32.totalorder %v7072, 0
  %vm7161 = vcmp.ne.s32.totalorder %v7079, 0
  %vm7162 = vcmp.ne.s32.totalorder %v7086, 0
  %vm7163 = vcmp.ne.s32.totalorder %v7093, 0
  %vm7164 = vcmp.ne.s32.totalorder %v7100, 0
  %vm7165 = vcmp.lt.s32.totalorder %v6659, 0
  %vm7166 = vcmp.lt.s32.totalorder %v6666, 0
  %vm7167 = vcmp.lt.s32.totalorder %v6673, 0
  %vm7168 = vcmp.lt.s32.totalorder %v6680, 0
  %vm7169 = vcmp.lt.s32.totalorder %v6687, 0
  %vm7170 = vcmp.lt.s32.totalorder %v6694, 0
  %vm7171 = vcmp.lt.s32.totalorder %v6701, 0
  %vm7172 = vcmp.lt.s32.totalorder %v6708, 0
  %vm7173 = vcmp.lt.s32.totalorder %v6715, 0
  %vm7174 = vcmp.lt.s32.totalorder %v6722, 0
  %vm7175 = vcmp.lt.s32.totalorder %v6729, 0
  %vm7176 = vcmp.lt.s32.totalorder %v6736, 0
  %vm7177 = vcmp.lt.s32.totalorder %v6743, 0
  %vm7178 = vcmp.lt.s32.totalorder %v6750, 0
  %vm7179 = vcmp.lt.s32.totalorder %v6757, 0
  %vm7180 = vcmp.lt.s32.totalorder %v6764, 0
  %vm7181 = vcmp.lt.s32.totalorder %v6771, 0
  %vm7182 = vcmp.lt.s32.totalorder %v6778, 0
  %vm7183 = vcmp.lt.s32.totalorder %v6785, 0
  %vm7184 = vcmp.lt.s32.totalorder %v6792, 0
  %vm7185 = vcmp.lt.s32.totalorder %v6799, 0
  %vm7186 = vcmp.lt.s32.totalorder %v6806, 0
  %vm7187 = vcmp.lt.s32.totalorder %v6813, 0
  %vm7188 = vcmp.lt.s32.totalorder %v6820, 0
  %vm7189 = vcmp.lt.s32.totalorder %v6827, 0
  %vm7190 = vcmp.lt.s32.totalorder %v6834, 0
  %vm7191 = vcmp.lt.s32.totalorder %v6841, 0
  %vm7192 = vcmp.lt.s32.totalorder %v6848, 0
  %vm7193 = vcmp.lt.s32.totalorder %v6855, 0
  %vm7194 = vcmp.lt.s32.totalorder %v6862, 0
  %vm7195 = vcmp.lt.s32.totalorder %v6869, 0
  %vm7196 = vcmp.lt.s32.totalorder %v6876, 0
  %vm7197 = vcmp.lt.s32.totalorder %v6883, 0
  %vm7198 = vcmp.lt.s32.totalorder %v6890, 0
  %vm7199 = vcmp.lt.s32.totalorder %v6897, 0
  %vm7200 = vcmp.lt.s32.totalorder %v6904, 0
  %vm7201 = vcmp.lt.s32.totalorder %v6911, 0
  %vm7202 = vcmp.lt.s32.totalorder %v6918, 0
  %vm7203 = vcmp.lt.s32.totalorder %v6925, 0
  %vm7204 = vcmp.lt.s32.totalorder %v6932, 0
  %vm7205 = vcmp.lt.s32.totalorder %v6939, 0
  %vm7206 = vcmp.lt.s32.totalorder %v6946, 0
  %vm7207 = vcmp.lt.s32.totalorder %v6953, 0
  %vm7208 = vcmp.lt.s32.totalorder %v6960, 0
  %vm7209 = vcmp.lt.s32.totalorder %v6967, 0
  %vm7210 = vcmp.lt.s32.totalorder %v6974, 0
  %vm7211 = vcmp.lt.s32.totalorder %v6981, 0
  %vm7212 = vcmp.lt.s32.totalorder %v6988, 0
  %vm7213 = vcmp.lt.s32.totalorder %v6995, 0
  %vm7214 = vcmp.lt.s32.totalorder %v7002, 0
  %vm7215 = vcmp.lt.s32.totalorder %v7009, 0
  %vm7216 = vcmp.lt.s32.totalorder %v7016, 0
  %vm7217 = vcmp.lt.s32.totalorder %v7023, 0
  %vm7218 = vcmp.lt.s32.totalorder %v7030, 0
  %vm7219 = vcmp.lt.s32.totalorder %v7037, 0
  %vm7220 = vcmp.lt.s32.totalorder %v7044, 0
  %vm7221 = vcmp.lt.s32.totalorder %v7051, 0
  %vm7222 = vcmp.lt.s32.totalorder %v7058, 0
  %vm7223 = vcmp.lt.s32.totalorder %v7065, 0
  %vm7224 = vcmp.lt.s32.totalorder %v7072, 0
  %vm7225 = vcmp.lt.s32.totalorder %v7079, 0
  %vm7226 = vcmp.lt.s32.totalorder %v7086, 0
  %vm7227 = vcmp.lt.s32.totalorder %v7093, 0
  %vm7228 = vcmp.lt.s32.totalorder %v7100, 0
  %vm7229 = vmand %vm7165, %vm7101
  %vm7230 = vmand %vm7166, %vm7102
  %vm7231 = vmand %vm7167, %vm7103
  %vm7232 = vmand %vm7168, %vm7104
  %vm7233 = vmand %vm7169, %vm7105
  %vm7234 = vmand %vm7170, %vm7106
  %vm7235 = vmand %vm7171, %vm7107
  %vm7236 = vmand %vm7172, %vm7108
  %vm7237 = vmand %vm7173, %vm7109
  %vm7238 = vmand %vm7174, %vm7110
  %vm7239 = vmand %vm7175, %vm7111
  %vm7240 = vmand %vm7176, %vm7112
  %vm7241 = vmand %vm7177, %vm7113
  %vm7242 = vmand %vm7178, %vm7114
  %vm7243 = vmand %vm7179, %vm7115
  %vm7244 = vmand %vm7180, %vm7116
  %vm7245 = vmand %vm7181, %vm7117
  %vm7246 = vmand %vm7182, %vm7118
  %vm7247 = vmand %vm7183, %vm7119
  %vm7248 = vmand %vm7184, %vm7120
  %vm7249 = vmand %vm7185, %vm7121
  %vm7250 = vmand %vm7186, %vm7122
  %vm7251 = vmand %vm7187, %vm7123
  %vm7252 = vmand %vm7188, %vm7124
  %vm7253 = vmand %vm7189, %vm7125
  %vm7254 = vmand %vm7190, %vm7126
  %vm7255 = vmand %vm7191, %vm7127
  %vm7256 = vmand %vm7192, %vm7128
  %vm7257 = vmand %vm7193, %vm7129
  %vm7258 = vmand %vm7194, %vm7130
  %vm7259 = vmand %vm7195, %vm7131
  %vm7260 = vmand %vm7196, %vm7132
  %vm7261 = vmand %vm7197, %vm7133
  %vm7262 = vmand %vm7198, %vm7134
  %vm7263 = vmand %vm7199, %vm7135
  %vm7264 = vmand %vm7200, %vm7136
  %vm7265 = vmand %vm7201, %vm7137
  %vm7266 = vmand %vm7202, %vm7138
  %vm7267 = vmand %vm7203, %vm7139
  %vm7268 = vmand %vm7204, %vm7140
  %vm7269 = vmand %vm7205, %vm7141
  %vm7270 = vmand %vm7206, %vm7142
  %vm7271 = vmand %vm7207, %vm7143
  %vm7272 = vmand %vm7208, %vm7144
  %vm7273 = vmand %vm7209, %vm7145
  %vm7274 = vmand %vm7210, %vm7146
  %vm7275 = vmand %vm7211, %vm7147
  %vm7276 = vmand %vm7212, %vm7148
  %vm7277 = vmand %vm7213, %vm7149
  %vm7278 = vmand %vm7214, %vm7150
  %vm7279 = vmand %vm7215, %vm7151
  %vm7280 = vmand %vm7216, %vm7152
  %vm7281 = vmand %vm7217, %vm7153
  %vm7282 = vmand %vm7218, %vm7154
  %vm7283 = vmand %vm7219, %vm7155
  %vm7284 = vmand %vm7220, %vm7156
  %vm7285 = vmand %vm7221, %vm7157
  %vm7286 = vmand %vm7222, %vm7158
  %vm7287 = vmand %vm7223, %vm7159
  %vm7288 = vmand %vm7224, %vm7160
  %vm7289 = vmand %vm7225, %vm7161
  %vm7290 = vmand %vm7226, %vm7162
  %vm7291 = vmand %vm7227, %vm7163
  %vm7292 = vmand %vm7228, %vm7164
  %v7293 = vadd.s32 %v6659, 16
  %v7294 = vadd.s32 %v6666, 16
  %v7295 = vadd.s32 %v6673, 16
  %v7296 = vadd.s32 %v6680, 16
  %v7297 = vadd.s32 %v6687, 16
  %v7298 = vadd.s32 %v6694, 16
  %v7299 = vadd.s32 %v6701, 16
  %v7300 = vadd.s32 %v6708, 16
  %v7301 = vadd.s32 %v6715, 16
  %v7302 = vadd.s32 %v6722, 16
  %v7303 = vadd.s32 %v6729, 16
  %v7304 = vadd.s32 %v6736, 16
  %v7305 = vadd.s32 %v6743, 16
  %v7306 = vadd.s32 %v6750, 16
  %v7307 = vadd.s32 %v6757, 16
  %v7308 = vadd.s32 %v6764, 16
  %v7309 = vadd.s32 %v6771, 16
  %v7310 = vadd.s32 %v6778, 16
  %v7311 = vadd.s32 %v6785, 16
  %v7312 = vadd.s32 %v6792, 16
  %v7313 = vadd.s32 %v6799, 16
  %v7314 = vadd.s32 %v6806, 16
  %v7315 = vadd.s32 %v6813, 16
  %v7316 = vadd.s32 %v6820, 16
  %v7317 = vadd.s32 %v6827, 16
  %v7318 = vadd.s32 %v6834, 16
  %v7319 = vadd.s32 %v6841, 16
  %v7320 = vadd.s32 %v6848, 16
  %v7321 = vadd.s32 %v6855, 16
  %v7322 = vadd.s32 %v6862, 16
  %v7323 = vadd.s32 %v6869, 16
  %v7324 = vadd.s32 %v6876, 16
  %v7325 = vadd.s32 %v6883, 16
  %v7326 = vadd.s32 %v6890, 16
  %v7327 = vadd.s32 %v6897, 16
  %v7328 = vadd.s32 %v6904, 16
  %v7329 = vadd.s32 %v6911, 16
  %v7330 = vadd.s32 %v6918, 16
  %v7331 = vadd.s32 %v6925, 16
  %v7332 = vadd.s32 %v6932, 16
  %v7333 = vadd.s32 %v6939, 16
  %v7334 = vadd.s32 %v6946, 16
  %v7335 = vadd.s32 %v6953, 16
  %v7336 = vadd.s32 %v6960, 16
  %v7337 = vadd.s32 %v6967, 16
  %v7338 = vadd.s32 %v6974, 16
  %v7339 = vadd.s32 %v6981, 16
  %v7340 = vadd.s32 %v6988, 16
  %v7341 = vadd.s32 %v6995, 16
  %v7342 = vadd.s32 %v7002, 16
  %v7343 = vadd.s32 %v7009, 16
  %v7344 = vadd.s32 %v7016, 16
  %v7345 = vadd.s32 %v7023, 16
  %v7346 = vadd.s32 %v7030, 16
  %v7347 = vadd.s32 %v7037, 16
  %v7348 = vadd.s32 %v7044, 16
  %v7349 = vadd.s32 %v7051, 16
  %v7350 = vadd.s32 %v7058, 16
  %v7351 = vadd.s32 %v7065, 16
  %v7352 = vadd.s32 %v7072, 16
  %v7353 = vadd.s32 %v7079, 16
  %v7354 = vadd.s32 %v7086, 16
  %v7355 = vadd.s32 %v7093, 16
  %v7356 = vadd.s32 %v7100, 16
  %v7357 = vsel %vm7229, %v7293, %v6659
  %v7358 = vsel %vm7230, %v7294, %v6666
  %v7359 = vsel %vm7231, %v7295, %v6673
  %v7360 = vsel %vm7232, %v7296, %v6680
  %v7361 = vsel %vm7233, %v7297, %v6687
  %v7362 = vsel %vm7234, %v7298, %v6694
  %v7363 = vsel %vm7235, %v7299, %v6701
  %v7364 = vsel %vm7236, %v7300, %v6708
  %v7365 = vsel %vm7237, %v7301, %v6715
  %v7366 = vsel %vm7238, %v7302, %v6722
  %v7367 = vsel %vm7239, %v7303, %v6729
  %v7368 = vsel %vm7240, %v7304, %v6736
  %v7369 = vsel %vm7241, %v7305, %v6743
  %v7370 = vsel %vm7242, %v7306, %v6750
  %v7371 = vsel %vm7243, %v7307, %v6757
  %v7372 = vsel %vm7244, %v7308, %v6764
  %v7373 = vsel %vm7245, %v7309, %v6771
  %v7374 = vsel %vm7246, %v7310, %v6778
  %v7375 = vsel %vm7247, %v7311, %v6785
  %v7376 = vsel %vm7248, %v7312, %v6792
  %v7377 = vsel %vm7249, %v7313, %v6799
  %v7378 = vsel %vm7250, %v7314, %v6806
  %v7379 = vsel %vm7251, %v7315, %v6813
  %v7380 = vsel %vm7252, %v7316, %v6820
  %v7381 = vsel %vm7253, %v7317, %v6827
  %v7382 = vsel %vm7254, %v7318, %v6834
  %v7383 = vsel %vm7255, %v7319, %v6841
  %v7384 = vsel %vm7256, %v7320, %v6848
  %v7385 = vsel %vm7257, %v7321, %v6855
  %v7386 = vsel %vm7258, %v7322, %v6862
  %v7387 = vsel %vm7259, %v7323, %v6869
  %v7388 = vsel %vm7260, %v7324, %v6876
  %v7389 = vsel %vm7261, %v7325, %v6883
  %v7390 = vsel %vm7262, %v7326, %v6890
  %v7391 = vsel %vm7263, %v7327, %v6897
  %v7392 = vsel %vm7264, %v7328, %v6904
  %v7393 = vsel %vm7265, %v7329, %v6911
  %v7394 = vsel %vm7266, %v7330, %v6918
  %v7395 = vsel %vm7267, %v7331, %v6925
  %v7396 = vsel %vm7268, %v7332, %v6932
  %v7397 = vsel %vm7269, %v7333, %v6939
  %v7398 = vsel %vm7270, %v7334, %v6946
  %v7399 = vsel %vm7271, %v7335, %v6953
  %v7400 = vsel %vm7272, %v7336, %v6960
  %v7401 = vsel %vm7273, %v7337, %v6967
  %v7402 = vsel %vm7274, %v7338, %v6974
  %v7403 = vsel %vm7275, %v7339, %v6981
  %v7404 = vsel %vm7276, %v7340, %v6988
  %v7405 = vsel %vm7277, %v7341, %v6995
  %v7406 = vsel %vm7278, %v7342, %v7002
  %v7407 = vsel %vm7279, %v7343, %v7009
  %v7408 = vsel %vm7280, %v7344, %v7016
  %v7409 = vsel %vm7281, %v7345, %v7023
  %v7410 = vsel %vm7282, %v7346, %v7030
  %v7411 = vsel %vm7283, %v7347, %v7037
  %v7412 = vsel %vm7284, %v7348, %v7044
  %v7413 = vsel %vm7285, %v7349, %v7051
  %v7414 = vsel %vm7286, %v7350, %v7058
  %v7415 = vsel %vm7287, %v7351, %v7065
  %v7416 = vsel %vm7288, %v7352, %v7072
  %v7417 = vsel %vm7289, %v7353, %v7079
  %v7418 = vsel %vm7290, %v7354, %v7086
  %v7419 = vsel %vm7291, %v7355, %v7093
  %v7420 = vsel %vm7292, %v7356, %v7100
  %vm7421 = vcmp.lt.s32.totalorder %v7357, 12
  %vm7422 = vcmp.lt.s32.totalorder %v7358, 12
  %vm7423 = vcmp.lt.s32.totalorder %v7359, 12
  %vm7424 = vcmp.lt.s32.totalorder %v7360, 12
  %vm7425 = vcmp.lt.s32.totalorder %v7361, 12
  %vm7426 = vcmp.lt.s32.totalorder %v7362, 12
  %vm7427 = vcmp.lt.s32.totalorder %v7363, 12
  %vm7428 = vcmp.lt.s32.totalorder %v7364, 12
  %vm7429 = vcmp.lt.s32.totalorder %v7365, 12
  %vm7430 = vcmp.lt.s32.totalorder %v7366, 12
  %vm7431 = vcmp.lt.s32.totalorder %v7367, 12
  %vm7432 = vcmp.lt.s32.totalorder %v7368, 12
  %vm7433 = vcmp.lt.s32.totalorder %v7369, 12
  %vm7434 = vcmp.lt.s32.totalorder %v7370, 12
  %vm7435 = vcmp.lt.s32.totalorder %v7371, 12
  %vm7436 = vcmp.lt.s32.totalorder %v7372, 12
  %vm7437 = vcmp.lt.s32.totalorder %v7373, 12
  %vm7438 = vcmp.lt.s32.totalorder %v7374, 12
  %vm7439 = vcmp.lt.s32.totalorder %v7375, 12
  %vm7440 = vcmp.lt.s32.totalorder %v7376, 12
  %vm7441 = vcmp.lt.s32.totalorder %v7377, 12
  %vm7442 = vcmp.lt.s32.totalorder %v7378, 12
  %vm7443 = vcmp.lt.s32.totalorder %v7379, 12
  %vm7444 = vcmp.lt.s32.totalorder %v7380, 12
  %vm7445 = vcmp.lt.s32.totalorder %v7381, 12
  %vm7446 = vcmp.lt.s32.totalorder %v7382, 12
  %vm7447 = vcmp.lt.s32.totalorder %v7383, 12
  %vm7448 = vcmp.lt.s32.totalorder %v7384, 12
  %vm7449 = vcmp.lt.s32.totalorder %v7385, 12
  %vm7450 = vcmp.lt.s32.totalorder %v7386, 12
  %vm7451 = vcmp.lt.s32.totalorder %v7387, 12
  %vm7452 = vcmp.lt.s32.totalorder %v7388, 12
  %vm7453 = vcmp.lt.s32.totalorder %v7389, 12
  %vm7454 = vcmp.lt.s32.totalorder %v7390, 12
  %vm7455 = vcmp.lt.s32.totalorder %v7391, 12
  %vm7456 = vcmp.lt.s32.totalorder %v7392, 12
  %vm7457 = vcmp.lt.s32.totalorder %v7393, 12
  %vm7458 = vcmp.lt.s32.totalorder %v7394, 12
  %vm7459 = vcmp.lt.s32.totalorder %v7395, 12
  %vm7460 = vcmp.lt.s32.totalorder %v7396, 12
  %vm7461 = vcmp.lt.s32.totalorder %v7397, 12
  %vm7462 = vcmp.lt.s32.totalorder %v7398, 12
  %vm7463 = vcmp.lt.s32.totalorder %v7399, 12
  %vm7464 = vcmp.lt.s32.totalorder %v7400, 12
  %vm7465 = vcmp.lt.s32.totalorder %v7401, 12
  %vm7466 = vcmp.lt.s32.totalorder %v7402, 12
  %vm7467 = vcmp.lt.s32.totalorder %v7403, 12
  %vm7468 = vcmp.lt.s32.totalorder %v7404, 12
  %vm7469 = vcmp.lt.s32.totalorder %v7405, 12
  %vm7470 = vcmp.lt.s32.totalorder %v7406, 12
  %vm7471 = vcmp.lt.s32.totalorder %v7407, 12
  %vm7472 = vcmp.lt.s32.totalorder %v7408, 12
  %vm7473 = vcmp.lt.s32.totalorder %v7409, 12
  %vm7474 = vcmp.lt.s32.totalorder %v7410, 12
  %vm7475 = vcmp.lt.s32.totalorder %v7411, 12
  %vm7476 = vcmp.lt.s32.totalorder %v7412, 12
  %vm7477 = vcmp.lt.s32.totalorder %v7413, 12
  %vm7478 = vcmp.lt.s32.totalorder %v7414, 12
  %vm7479 = vcmp.lt.s32.totalorder %v7415, 12
  %vm7480 = vcmp.lt.s32.totalorder %v7416, 12
  %vm7481 = vcmp.lt.s32.totalorder %v7417, 12
  %vm7482 = vcmp.lt.s32.totalorder %v7418, 12
  %vm7483 = vcmp.lt.s32.totalorder %v7419, 12
  %vm7484 = vcmp.lt.s32.totalorder %v7420, 12
  %v7485 = vsel %vm7421, 1, 0
  %v7486 = vsel %vm7422, 1, 0
  %v7487 = vsel %vm7423, 1, 0
  %v7488 = vsel %vm7424, 1, 0
  %v7489 = vsel %vm7425, 1, 0
  %v7490 = vsel %vm7426, 1, 0
  %v7491 = vsel %vm7427, 1, 0
  %v7492 = vsel %vm7428, 1, 0
  %v7493 = vsel %vm7429, 1, 0
  %v7494 = vsel %vm7430, 1, 0
  %v7495 = vsel %vm7431, 1, 0
  %v7496 = vsel %vm7432, 1, 0
  %v7497 = vsel %vm7433, 1, 0
  %v7498 = vsel %vm7434, 1, 0
  %v7499 = vsel %vm7435, 1, 0
  %v7500 = vsel %vm7436, 1, 0
  %v7501 = vsel %vm7437, 1, 0
  %v7502 = vsel %vm7438, 1, 0
  %v7503 = vsel %vm7439, 1, 0
  %v7504 = vsel %vm7440, 1, 0
  %v7505 = vsel %vm7441, 1, 0
  %v7506 = vsel %vm7442, 1, 0
  %v7507 = vsel %vm7443, 1, 0
  %v7508 = vsel %vm7444, 1, 0
  %v7509 = vsel %vm7445, 1, 0
  %v7510 = vsel %vm7446, 1, 0
  %v7511 = vsel %vm7447, 1, 0
  %v7512 = vsel %vm7448, 1, 0
  %v7513 = vsel %vm7449, 1, 0
  %v7514 = vsel %vm7450, 1, 0
  %v7515 = vsel %vm7451, 1, 0
  %v7516 = vsel %vm7452, 1, 0
  %v7517 = vsel %vm7453, 1, 0
  %v7518 = vsel %vm7454, 1, 0
  %v7519 = vsel %vm7455, 1, 0
  %v7520 = vsel %vm7456, 1, 0
  %v7521 = vsel %vm7457, 1, 0
  %v7522 = vsel %vm7458, 1, 0
  %v7523 = vsel %vm7459, 1, 0
  %v7524 = vsel %vm7460, 1, 0
  %v7525 = vsel %vm7461, 1, 0
  %v7526 = vsel %vm7462, 1, 0
  %v7527 = vsel %vm7463, 1, 0
  %v7528 = vsel %vm7464, 1, 0
  %v7529 = vsel %vm7465, 1, 0
  %v7530 = vsel %vm7466, 1, 0
  %v7531 = vsel %vm7467, 1, 0
  %v7532 = vsel %vm7468, 1, 0
  %v7533 = vsel %vm7469, 1, 0
  %v7534 = vsel %vm7470, 1, 0
  %v7535 = vsel %vm7471, 1, 0
  %v7536 = vsel %vm7472, 1, 0
  %v7537 = vsel %vm7473, 1, 0
  %v7538 = vsel %vm7474, 1, 0
  %v7539 = vsel %vm7475, 1, 0
  %v7540 = vsel %vm7476, 1, 0
  %v7541 = vsel %vm7477, 1, 0
  %v7542 = vsel %vm7478, 1, 0
  %v7543 = vsel %vm7479, 1, 0
  %v7544 = vsel %vm7480, 1, 0
  %v7545 = vsel %vm7481, 1, 0
  %v7546 = vsel %vm7482, 1, 0
  %v7547 = vsel %vm7483, 1, 0
  %v7548 = vsel %vm7484, 1, 0
  %vm7549 = vcmp.eq.s32.totalorder %v7485, 1
  %vm7550 = vcmp.eq.s32.totalorder %v7486, 1
  %vm7551 = vcmp.eq.s32.totalorder %v7487, 1
  %vm7552 = vcmp.eq.s32.totalorder %v7488, 1
  %vm7553 = vcmp.eq.s32.totalorder %v7489, 1
  %vm7554 = vcmp.eq.s32.totalorder %v7490, 1
  %vm7555 = vcmp.eq.s32.totalorder %v7491, 1
  %vm7556 = vcmp.eq.s32.totalorder %v7492, 1
  %vm7557 = vcmp.eq.s32.totalorder %v7493, 1
  %vm7558 = vcmp.eq.s32.totalorder %v7494, 1
  %vm7559 = vcmp.eq.s32.totalorder %v7495, 1
  %vm7560 = vcmp.eq.s32.totalorder %v7496, 1
  %vm7561 = vcmp.eq.s32.totalorder %v7497, 1
  %vm7562 = vcmp.eq.s32.totalorder %v7498, 1
  %vm7563 = vcmp.eq.s32.totalorder %v7499, 1
  %vm7564 = vcmp.eq.s32.totalorder %v7500, 1
  %vm7565 = vcmp.eq.s32.totalorder %v7501, 1
  %vm7566 = vcmp.eq.s32.totalorder %v7502, 1
  %vm7567 = vcmp.eq.s32.totalorder %v7503, 1
  %vm7568 = vcmp.eq.s32.totalorder %v7504, 1
  %vm7569 = vcmp.eq.s32.totalorder %v7505, 1
  %vm7570 = vcmp.eq.s32.totalorder %v7506, 1
  %vm7571 = vcmp.eq.s32.totalorder %v7507, 1
  %vm7572 = vcmp.eq.s32.totalorder %v7508, 1
  %vm7573 = vcmp.eq.s32.totalorder %v7509, 1
  %vm7574 = vcmp.eq.s32.totalorder %v7510, 1
  %vm7575 = vcmp.eq.s32.totalorder %v7511, 1
  %vm7576 = vcmp.eq.s32.totalorder %v7512, 1
  %vm7577 = vcmp.eq.s32.totalorder %v7513, 1
  %vm7578 = vcmp.eq.s32.totalorder %v7514, 1
  %vm7579 = vcmp.eq.s32.totalorder %v7515, 1
  %vm7580 = vcmp.eq.s32.totalorder %v7516, 1
  %vm7581 = vcmp.eq.s32.totalorder %v7517, 1
  %vm7582 = vcmp.eq.s32.totalorder %v7518, 1
  %vm7583 = vcmp.eq.s32.totalorder %v7519, 1
  %vm7584 = vcmp.eq.s32.totalorder %v7520, 1
  %vm7585 = vcmp.eq.s32.totalorder %v7521, 1
  %vm7586 = vcmp.eq.s32.totalorder %v7522, 1
  %vm7587 = vcmp.eq.s32.totalorder %v7523, 1
  %vm7588 = vcmp.eq.s32.totalorder %v7524, 1
  %vm7589 = vcmp.eq.s32.totalorder %v7525, 1
  %vm7590 = vcmp.eq.s32.totalorder %v7526, 1
  %vm7591 = vcmp.eq.s32.totalorder %v7527, 1
  %vm7592 = vcmp.eq.s32.totalorder %v7528, 1
  %vm7593 = vcmp.eq.s32.totalorder %v7529, 1
  %vm7594 = vcmp.eq.s32.totalorder %v7530, 1
  %vm7595 = vcmp.eq.s32.totalorder %v7531, 1
  %vm7596 = vcmp.eq.s32.totalorder %v7532, 1
  %vm7597 = vcmp.eq.s32.totalorder %v7533, 1
  %vm7598 = vcmp.eq.s32.totalorder %v7534, 1
  %vm7599 = vcmp.eq.s32.totalorder %v7535, 1
  %vm7600 = vcmp.eq.s32.totalorder %v7536, 1
  %vm7601 = vcmp.eq.s32.totalorder %v7537, 1
  %vm7602 = vcmp.eq.s32.totalorder %v7538, 1
  %vm7603 = vcmp.eq.s32.totalorder %v7539, 1
  %vm7604 = vcmp.eq.s32.totalorder %v7540, 1
  %vm7605 = vcmp.eq.s32.totalorder %v7541, 1
  %vm7606 = vcmp.eq.s32.totalorder %v7542, 1
  %vm7607 = vcmp.eq.s32.totalorder %v7543, 1
  %vm7608 = vcmp.eq.s32.totalorder %v7544, 1
  %vm7609 = vcmp.eq.s32.totalorder %v7545, 1
  %vm7610 = vcmp.eq.s32.totalorder %v7546, 1
  %vm7611 = vcmp.eq.s32.totalorder %v7547, 1
  %vm7612 = vcmp.eq.s32.totalorder %v7548, 1
  %v7613 = vsel %vm1487, %v6461, 0.0
  %v7614 = vsel %vm1488, %v6462, 0.0
  %v7615 = vsel %vm1489, %v6463, 0.0
  %v7616 = vsel %vm1490, %v6464, 0.0
  %v7617 = vsel %vm1491, %v6465, 0.0
  %v7618 = vsel %vm1492, %v6466, 0.0
  %v7619 = vsel %vm1493, %v6467, 0.0
  %v7620 = vsel %vm1494, %v6468, 0.0
  %v7621 = vsel %vm2512, %v6469, 0.0
  %v7622 = vsel %vm2513, %v6470, 0.0
  %v7623 = vsel %vm2514, %v6471, 0.0
  %v7624 = vsel %vm2515, %v6472, 0.0
  %v7625 = vsel %vm2516, %v6473, 0.0
  %v7626 = vsel %vm2517, %v6474, 0.0
  %v7627 = vsel %vm2518, %v6475, 0.0
  %v7628 = vsel %vm2519, %v6476, 0.0
  %v7629 = vsel %vm2520, %v6477, 0.0
  %v7630 = vsel %vm2521, %v6478, 0.0
  %v7631 = vsel %vm2522, %v6479, 0.0
  %v7632 = vsel %vm2523, %v6480, 0.0
  %v7633 = vsel %vm2524, %v6481, 0.0
  %v7634 = vsel %vm2525, %v6482, 0.0
  %v7635 = vsel %vm2526, %v6483, 0.0
  %v7636 = vsel %vm2527, %v6484, 0.0
  %v7637 = vsel %vm2528, %v6485, 0.0
  %v7638 = vsel %vm2529, %v6486, 0.0
  %v7639 = vsel %vm2530, %v6487, 0.0
  %v7640 = vsel %vm2531, %v6488, 0.0
  %v7641 = vsel %vm2532, %v6489, 0.0
  %v7642 = vsel %vm2533, %v6490, 0.0
  %v7643 = vsel %vm2534, %v6491, 0.0
  %v7644 = vsel %vm2535, %v6492, 0.0
  %v7645 = vsel %vm4203, %v6493, 0.0
  %v7646 = vsel %vm4204, %v6494, 0.0
  %v7647 = vsel %vm4205, %v6495, 0.0
  %v7648 = vsel %vm4206, %v6496, 0.0
  %v7649 = vsel %vm4207, %v6497, 0.0
  %v7650 = vsel %vm4208, %v6498, 0.0
  %v7651 = vsel %vm4209, %v6499, 0.0
  %v7652 = vsel %vm4210, %v6500, 0.0
  %v7653 = vsel %vm4211, %v6501, 0.0
  %v7654 = vsel %vm4212, %v6502, 0.0
  %v7655 = vsel %vm4213, %v6503, 0.0
  %v7656 = vsel %vm4214, %v6504, 0.0
  %v7657 = vsel %vm4215, %v6505, 0.0
  %v7658 = vsel %vm4216, %v6506, 0.0
  %v7659 = vsel %vm4217, %v6507, 0.0
  %v7660 = vsel %vm4218, %v6508, 0.0
  %v7661 = vsel %vm4219, %v6509, 0.0
  %v7662 = vsel %vm4220, %v6510, 0.0
  %v7663 = vsel %vm4221, %v6511, 0.0
  %v7664 = vsel %vm4222, %v6512, 0.0
  %v7665 = vsel %vm4223, %v6513, 0.0
  %v7666 = vsel %vm4224, %v6514, 0.0
  %v7667 = vsel %vm4225, %v6515, 0.0
  %v7668 = vsel %vm4226, %v6516, 0.0
  %v7669 = vsel %vm4227, %v6517, 0.0
  %v7670 = vsel %vm4228, %v6518, 0.0
  %v7671 = vsel %vm4229, %v6519, 0.0
  %v7672 = vsel %vm4230, %v6520, 0.0
  %v7673 = vsel %vm4231, %v6521, 0.0
  %v7674 = vsel %vm4232, %v6522, 0.0
  %v7675 = vsel %vm4233, %v6523, 0.0
  %v7676 = vsel %vm4234, %v6524, 0.0
  %v7677 = vsel %vm7549, %v6525, 0.0
  %v7678 = vsel %vm7550, %v6526, 0.0
  %v7679 = vsel %vm7551, %v6527, 0.0
  %v7680 = vsel %vm7552, %v6528, 0.0
  %v7681 = vsel %vm7553, %v6529, 0.0
  %v7682 = vsel %vm7554, %v6530, 0.0
  %v7683 = vsel %vm7555, %v6531, 0.0
  %v7684 = vsel %vm7556, %v6532, 0.0
  %v7685 = vsel %vm7557, %v6533, 0.0
  %v7686 = vsel %vm7558, %v6534, 0.0
  %v7687 = vsel %vm7559, %v6535, 0.0
  %v7688 = vsel %vm7560, %v6536, 0.0
  %v7689 = vsel %vm7561, %v6537, 0.0
  %v7690 = vsel %vm7562, %v6538, 0.0
  %v7691 = vsel %vm7563, %v6539, 0.0
  %v7692 = vsel %vm7564, %v6540, 0.0
  %v7693 = vsel %vm7565, %v6541, 0.0
  %v7694 = vsel %vm7566, %v6542, 0.0
  %v7695 = vsel %vm7567, %v6543, 0.0
  %v7696 = vsel %vm7568, %v6544, 0.0
  %v7697 = vsel %vm7569, %v6545, 0.0
  %v7698 = vsel %vm7570, %v6546, 0.0
  %v7699 = vsel %vm7571, %v6547, 0.0
  %v7700 = vsel %vm7572, %v6548, 0.0
  %v7701 = vsel %vm7573, %v6549, 0.0
  %v7702 = vsel %vm7574, %v6550, 0.0
  %v7703 = vsel %vm7575, %v6551, 0.0
  %v7704 = vsel %vm7576, %v6552, 0.0
  %v7705 = vsel %vm7577, %v6553, 0.0
  %v7706 = vsel %vm7578, %v6554, 0.0
  %v7707 = vsel %vm7579, %v6555, 0.0
  %v7708 = vsel %vm7580, %v6556, 0.0
  %v7709 = vsel %vm7581, %v6557, 0.0
  %v7710 = vsel %vm7582, %v6558, 0.0
  %v7711 = vsel %vm7583, %v6559, 0.0
  %v7712 = vsel %vm7584, %v6560, 0.0
  %v7713 = vsel %vm7585, %v6561, 0.0
  %v7714 = vsel %vm7586, %v6562, 0.0
  %v7715 = vsel %vm7587, %v6563, 0.0
  %v7716 = vsel %vm7588, %v6564, 0.0
  %v7717 = vsel %vm7589, %v6565, 0.0
  %v7718 = vsel %vm7590, %v6566, 0.0
  %v7719 = vsel %vm7591, %v6567, 0.0
  %v7720 = vsel %vm7592, %v6568, 0.0
  %v7721 = vsel %vm7593, %v6569, 0.0
  %v7722 = vsel %vm7594, %v6570, 0.0
  %v7723 = vsel %vm7595, %v6571, 0.0
  %v7724 = vsel %vm7596, %v6572, 0.0
  %v7725 = vsel %vm7597, %v6573, 0.0
  %v7726 = vsel %vm7598, %v6574, 0.0
  %v7727 = vsel %vm7599, %v6575, 0.0
  %v7728 = vsel %vm7600, %v6576, 0.0
  %v7729 = vsel %vm7601, %v6577, 0.0
  %v7730 = vsel %vm7602, %v6578, 0.0
  %v7731 = vsel %vm7603, %v6579, 0.0
  %v7732 = vsel %vm7604, %v6580, 0.0
  %v7733 = vsel %vm7605, %v6581, 0.0
  %v7734 = vsel %vm7606, %v6582, 0.0
  %v7735 = vsel %vm7607, %v6583, 0.0
  %v7736 = vsel %vm7608, %v6584, 0.0
  %v7737 = vsel %vm7609, %v6585, 0.0
  %v7738 = vsel %vm7610, %v6586, 0.0
  %v7739 = vsel %vm7611, %v6587, 0.0
  %v7740 = vsel %vm7612, %v6588, 0.0
  %7741 = vst.msk [vmem:[%s13] sm:$0xff] %vm3053, %v7613
  %7742 = vst.msk [vmem:[%s13 + $0x8] sm:$0xff] %vm3053, %v7614
  %7743 = vst.msk [vmem:[%s13 + $0x10] sm:$0xff] %vm3053, %v7615
  %7744 = vst.msk [vmem:[%s13 + $0x18] sm:$0xff] %vm3053, %v7616
  %7745 = vst.msk [vmem:[%s13 + $0x20] sm:$0xff] %vm3053, %v7617
  %7746 = vst.msk [vmem:[%s13 + $0x28] sm:$0xff] %vm3053, %v7618
  %7747 = vst.msk [vmem:[%s13 + $0x30] sm:$0xff] %vm3053, %v7619
  %7748 = vst.msk [vmem:[%s13 + $0x38] sm:$0xff] %vm3053, %v7620
  %7749 = vst.msk [vmem:[%s13 + $0x40] sm:$0xff] %vm3053, %v7621
  %7750 = vst.msk [vmem:[%s13 + $0x48] sm:$0xff] %vm3053, %v7622
  %7751 = vst.msk [vmem:[%s13 + $0x50] sm:$0xff] %vm3053, %v7623
  %7752 = vst.msk [vmem:[%s13 + $0x58] sm:$0xff] %vm3053, %v7624
  %7753 = vst.msk [vmem:[%s13 + $0x60] sm:$0xff] %vm3053, %v7625
  %7754 = vst.msk [vmem:[%s13 + $0x68] sm:$0xff] %vm3053, %v7626
  %7755 = vst.msk [vmem:[%s13 + $0x70] sm:$0xff] %vm3053, %v7627
  %7756 = vst.msk [vmem:[%s13 + $0x78] sm:$0xff] %vm3053, %v7628
  %7757 = vst.msk [vmem:[%s13 + $0x80] sm:$0xff] %vm3053, %v7629
  %7758 = vst.msk [vmem:[%s13 + $0x88] sm:$0xff] %vm3053, %v7630
  %7759 = vst.msk [vmem:[%s13 + $0x90] sm:$0xff] %vm3053, %v7631
  %7760 = vst.msk [vmem:[%s13 + $0x98] sm:$0xff] %vm3053, %v7632
  %7761 = vst.msk [vmem:[%s13 + $0xa0] sm:$0xff] %vm3053, %v7633
  %7762 = vst.msk [vmem:[%s13 + $0xa8] sm:$0xff] %vm3053, %v7634
  %7763 = vst.msk [vmem:[%s13 + $0xb0] sm:$0xff] %vm3053, %v7635
  %7764 = vst.msk [vmem:[%s13 + $0xb8] sm:$0xff] %vm3053, %v7636
  %7765 = vst.msk [vmem:[%s13 + $0xc0] sm:$0xff] %vm3053, %v7637
  %7766 = vst.msk [vmem:[%s13 + $0xc8] sm:$0xff] %vm3053, %v7638
  %7767 = vst.msk [vmem:[%s13 + $0xd0] sm:$0xff] %vm3053, %v7639
  %7768 = vst.msk [vmem:[%s13 + $0xd8] sm:$0xff] %vm3053, %v7640
  %7769 = vst.msk [vmem:[%s13 + $0xe0] sm:$0xff] %vm3053, %v7641
  %7770 = vst.msk [vmem:[%s13 + $0xe8] sm:$0xff] %vm3053, %v7642
  %7771 = vst.msk [vmem:[%s13 + $0xf0] sm:$0xff] %vm3053, %v7643
  %7772 = vst.msk [vmem:[%s13 + $0xf8] sm:$0xff] %vm3053, %v7644
  %7773 = vst.msk [vmem:[%s13 + $0x100] sm:$0xff] %vm3053, %v7645
  %7774 = vst.msk [vmem:[%s13 + $0x108] sm:$0xff] %vm3053, %v7646
  %7775 = vst.msk [vmem:[%s13 + $0x110] sm:$0xff] %vm3053, %v7647
  %7776 = vst.msk [vmem:[%s13 + $0x118] sm:$0xff] %vm3053, %v7648
  %7777 = vst.msk [vmem:[%s13 + $0x120] sm:$0xff] %vm3053, %v7649
  %7778 = vst.msk [vmem:[%s13 + $0x128] sm:$0xff] %vm3053, %v7650
  %7779 = vst.msk [vmem:[%s13 + $0x130] sm:$0xff] %vm3053, %v7651
  %7780 = vst.msk [vmem:[%s13 + $0x138] sm:$0xff] %vm3053, %v7652
  %7781 = vst.msk [vmem:[%s13 + $0x140] sm:$0xff] %vm3053, %v7653
  %7782 = vst.msk [vmem:[%s13 + $0x148] sm:$0xff] %vm3053, %v7654
  %7783 = vst.msk [vmem:[%s13 + $0x150] sm:$0xff] %vm3053, %v7655
  %7784 = vst.msk [vmem:[%s13 + $0x158] sm:$0xff] %vm3053, %v7656
  %7785 = vst.msk [vmem:[%s13 + $0x160] sm:$0xff] %vm3053, %v7657
  %7786 = vst.msk [vmem:[%s13 + $0x168] sm:$0xff] %vm3053, %v7658
  %7787 = vst.msk [vmem:[%s13 + $0x170] sm:$0xff] %vm3053, %v7659
  %7788 = vst.msk [vmem:[%s13 + $0x178] sm:$0xff] %vm3053, %v7660
  %7789 = vst.msk [vmem:[%s13 + $0x180] sm:$0xff] %vm3053, %v7661
  %7790 = vst.msk [vmem:[%s13 + $0x188] sm:$0xff] %vm3053, %v7662
  %7791 = vst.msk [vmem:[%s13 + $0x190] sm:$0xff] %vm3053, %v7663
  %7792 = vst.msk [vmem:[%s13 + $0x198] sm:$0xff] %vm3053, %v7664
  %7793 = vst.msk [vmem:[%s13 + $0x1a0] sm:$0xff] %vm3053, %v7665
  %7794 = vst.msk [vmem:[%s13 + $0x1a8] sm:$0xff] %vm3053, %v7666
  %7795 = vst.msk [vmem:[%s13 + $0x1b0] sm:$0xff] %vm3053, %v7667
  %7796 = vst.msk [vmem:[%s13 + $0x1b8] sm:$0xff] %vm3053, %v7668
  %7797 = vst.msk [vmem:[%s13 + $0x1c0] sm:$0xff] %vm3053, %v7669
  %7798 = vst.msk [vmem:[%s13 + $0x1c8] sm:$0xff] %vm3053, %v7670
  %7799 = vst.msk [vmem:[%s13 + $0x1d0] sm:$0xff] %vm3053, %v7671
  %7800 = vst.msk [vmem:[%s13 + $0x1d8] sm:$0xff] %vm3053, %v7672
  %7801 = vst.msk [vmem:[%s13 + $0x1e0] sm:$0xff] %vm3053, %v7673
  %7802 = vst.msk [vmem:[%s13 + $0x1e8] sm:$0xff] %vm3053, %v7674
  %7803 = vst.msk [vmem:[%s13 + $0x1f0] sm:$0xff] %vm3053, %v7675
  %7804 = vst.msk [vmem:[%s13 + $0x1f8] sm:$0xff] %vm3053, %v7676
  %7805 = vst.msk [vmem:[%s13 + $0x200] sm:$0xff] %vm3053, %v7677
  %7806 = vst.msk [vmem:[%s13 + $0x208] sm:$0xff] %vm3053, %v7678
  %7807 = vst.msk [vmem:[%s13 + $0x210] sm:$0xff] %vm3053, %v7679
  %7808 = vst.msk [vmem:[%s13 + $0x218] sm:$0xff] %vm3053, %v7680
  %7809 = vst.msk [vmem:[%s13 + $0x220] sm:$0xff] %vm3053, %v7681
  %7810 = vst.msk [vmem:[%s13 + $0x228] sm:$0xff] %vm3053, %v7682
  %7811 = vst.msk [vmem:[%s13 + $0x230] sm:$0xff] %vm3053, %v7683
  %7812 = vst.msk [vmem:[%s13 + $0x238] sm:$0xff] %vm3053, %v7684
  %7813 = vst.msk [vmem:[%s13 + $0x240] sm:$0xff] %vm3053, %v7685
  %7814 = vst.msk [vmem:[%s13 + $0x248] sm:$0xff] %vm3053, %v7686
  %7815 = vst.msk [vmem:[%s13 + $0x250] sm:$0xff] %vm3053, %v7687
  %7816 = vst.msk [vmem:[%s13 + $0x258] sm:$0xff] %vm3053, %v7688
  %7817 = vst.msk [vmem:[%s13 + $0x260] sm:$0xff] %vm3053, %v7689
  %7818 = vst.msk [vmem:[%s13 + $0x268] sm:$0xff] %vm3053, %v7690
  %7819 = vst.msk [vmem:[%s13 + $0x270] sm:$0xff] %vm3053, %v7691
  %7820 = vst.msk [vmem:[%s13 + $0x278] sm:$0xff] %vm3053, %v7692
  %7821 = vst.msk [vmem:[%s13 + $0x280] sm:$0xff] %vm3053, %v7693
  %7822 = vst.msk [vmem:[%s13 + $0x288] sm:$0xff] %vm3053, %v7694
  %7823 = vst.msk [vmem:[%s13 + $0x290] sm:$0xff] %vm3053, %v7695
  %7824 = vst.msk [vmem:[%s13 + $0x298] sm:$0xff] %vm3053, %v7696
  %7825 = vst.msk [vmem:[%s13 + $0x2a0] sm:$0xff] %vm3053, %v7697
  %7826 = vst.msk [vmem:[%s13 + $0x2a8] sm:$0xff] %vm3053, %v7698
  %7827 = vst.msk [vmem:[%s13 + $0x2b0] sm:$0xff] %vm3053, %v7699
  %7828 = vst.msk [vmem:[%s13 + $0x2b8] sm:$0xff] %vm3053, %v7700
  %7829 = vst.msk [vmem:[%s13 + $0x2c0] sm:$0xff] %vm3053, %v7701
  %7830 = vst.msk [vmem:[%s13 + $0x2c8] sm:$0xff] %vm3053, %v7702
  %7831 = vst.msk [vmem:[%s13 + $0x2d0] sm:$0xff] %vm3053, %v7703
  %7832 = vst.msk [vmem:[%s13 + $0x2d8] sm:$0xff] %vm3053, %v7704
  %7833 = vst.msk [vmem:[%s13 + $0x2e0] sm:$0xff] %vm3053, %v7705
  %7834 = vst.msk [vmem:[%s13 + $0x2e8] sm:$0xff] %vm3053, %v7706
  %7835 = vst.msk [vmem:[%s13 + $0x2f0] sm:$0xff] %vm3053, %v7707
  %7836 = vst.msk [vmem:[%s13 + $0x2f8] sm:$0xff] %vm3053, %v7708
  %7837 = vst.msk [vmem:[%s13 + $0x300] sm:$0xff] %vm3053, %v7709
  %7838 = vst.msk [vmem:[%s13 + $0x308] sm:$0xff] %vm3053, %v7710
  %7839 = vst.msk [vmem:[%s13 + $0x310] sm:$0xff] %vm3053, %v7711
  %7840 = vst.msk [vmem:[%s13 + $0x318] sm:$0xff] %vm3053, %v7712
  %7841 = vst.msk [vmem:[%s13 + $0x320] sm:$0xff] %vm3053, %v7713
  %7842 = vst.msk [vmem:[%s13 + $0x328] sm:$0xff] %vm3053, %v7714
  %7843 = vst.msk [vmem:[%s13 + $0x330] sm:$0xff] %vm3053, %v7715
  %7844 = vst.msk [vmem:[%s13 + $0x338] sm:$0xff] %vm3053, %v7716
  %7845 = vst.msk [vmem:[%s13 + $0x340] sm:$0xff] %vm3053, %v7717
  %7846 = vst.msk [vmem:[%s13 + $0x348] sm:$0xff] %vm3053, %v7718
  %7847 = vst.msk [vmem:[%s13 + $0x350] sm:$0xff] %vm3053, %v7719
  %7848 = vst.msk [vmem:[%s13 + $0x358] sm:$0xff] %vm3053, %v7720
  %7849 = vst.msk [vmem:[%s13 + $0x360] sm:$0xff] %vm3053, %v7721
  %7850 = vst.msk [vmem:[%s13 + $0x368] sm:$0xff] %vm3053, %v7722
  %7851 = vst.msk [vmem:[%s13 + $0x370] sm:$0xff] %vm3053, %v7723
  %7852 = vst.msk [vmem:[%s13 + $0x378] sm:$0xff] %vm3053, %v7724
  %7853 = vst.msk [vmem:[%s13 + $0x380] sm:$0xff] %vm3053, %v7725
  %7854 = vst.msk [vmem:[%s13 + $0x388] sm:$0xff] %vm3053, %v7726
  %7855 = vst.msk [vmem:[%s13 + $0x390] sm:$0xff] %vm3053, %v7727
  %7856 = vst.msk [vmem:[%s13 + $0x398] sm:$0xff] %vm3053, %v7728
  %7857 = vst.msk [vmem:[%s13 + $0x3a0] sm:$0xff] %vm3053, %v7729
  %7858 = vst.msk [vmem:[%s13 + $0x3a8] sm:$0xff] %vm3053, %v7730
  %7859 = vst.msk [vmem:[%s13 + $0x3b0] sm:$0xff] %vm3053, %v7731
  %7860 = vst.msk [vmem:[%s13 + $0x3b8] sm:$0xff] %vm3053, %v7732
  %7861 = vst.msk [vmem:[%s13 + $0x3c0] sm:$0xff] %vm3053, %v7733
  %7862 = vst.msk [vmem:[%s13 + $0x3c8] sm:$0xff] %vm3053, %v7734
  %7863 = vst.msk [vmem:[%s13 + $0x3d0] sm:$0xff] %vm3053, %v7735
  %7864 = vst.msk [vmem:[%s13 + $0x3d8] sm:$0xff] %vm3053, %v7736
  %7865 = vst.msk [vmem:[%s13 + $0x3e0] sm:$0xff] %vm3053, %v7737
  %7866 = vst.msk [vmem:[%s13 + $0x3e8] sm:$0xff] %vm3053, %v7738
  %7867 = vst.msk [vmem:[%s13 + $0x3f0] sm:$0xff] %vm3053, %v7739
  %7868 = vst.msk [vmem:[%s13 + $0x3f8] sm:$0xff] %vm3053, %v7740
  // Predicated region
  $region54: #{decoder_forward.2} parent=0 // pred_check
    _
  $region55: #{decoder_forward.2} parent=0 // pred_check_branch
    %7870 = sbr.rel (0) target = $region57
  $region56: #{decoder_forward.2} parent=0 // pred_region
    _
  $region57: #{decoder_forward.2} parent=0 // pred_fallthru
    _
  // Predicated region
  $region58: #{decoder_forward.2} parent=0 // pred_check
    _
  $region59: #{decoder_forward.2} parent=0 // pred_check_branch
    %7872 = sbr.rel (0) target = $region61
  $region60: #{decoder_forward.2} parent=0 // pred_region
    _
  $region61: #{decoder_forward.2} parent=0 // pred_fallthru
    _

// kernel: decoder_forward.3
$region0: #{decoder_forward.3}
  #allocation0 [shape = 'u32[]', space=smem, size = 0x4, offset = 0x4, fixed_abs, tag = 'smem constant byte address 0x4 - core index']
  #allocation1 [shape = 'u32[144,128]{1,0:T(1,128)}', space=vmem, size = 0x12000, scoped, tag = 'internal scratch']
  %s0 = inlined_call_operand.vmem [shape: f32[256,576], index: 0, kind: input, shape index: {}]
  %s1 = inlined_call_operand.vmem [shape: f32[576,64], index: 1, kind: input, shape index: {}]
  %s2 = inlined_call_operand.vmem [shape: f32[1,64], index: 2, kind: input, shape index: {}]
  %s3 = inlined_call_operand.vmem [shape: f32[64,30], index: 3, kind: input, shape index: {}]
  %s4 = inlined_call_operand.vmem [shape: f32[1,30], index: 4, kind: input, shape index: {}]
  %s5 = inlined_call_operand.vmem [shape: f32[256,30], index: 5, kind: output, shape index: {}]
  %s6 = sld [smem:[#allocation0]]
  $region30: #{decoder_forward.3} parent=0
    _
  %s8 = ssub.s32 1, %s6
  %s9 = scalar_select 0, %s8, %s6
  // Predicated region
  $region2: #{decoder_forward.3} parent=0 // pred_check
    _
  $region3: #{decoder_forward.3} parent=0 // pred_check_branch
    %11 = sbr.rel (0) target = $region5
  $region4: #{decoder_forward.3} parent=0 // pred_region
    _
  $region5: #{decoder_forward.3} parent=0 // pred_fallthru
    _
  // Predicated region
  $region6: #{decoder_forward.3} parent=0 // pred_check
    _
  $region7: #{decoder_forward.3} parent=0 // pred_check_branch
    %13 = sbr.rel (0) target = $region9
  $region8: #{decoder_forward.3} parent=0 // pred_region
    _
  $region9: #{decoder_forward.3} parent=0 // pred_fallthru
    _
  // Predicated region
  $region10: #{decoder_forward.3} parent=0 // pred_check
    _
  $region11: #{decoder_forward.3} parent=0 // pred_check_branch
    %15 = sbr.rel (0) target = $region13
  $region12: #{decoder_forward.3} parent=0 // pred_region
    _
  $region13: #{decoder_forward.3} parent=0 // pred_fallthru
    _
  // Predicated region
  $region14: #{decoder_forward.3} parent=0 // pred_check
    _
  $region15: #{decoder_forward.3} parent=0 // pred_check_branch
    %17 = sbr.rel (0) target = $region17
  $region16: #{decoder_forward.3} parent=0 // pred_region
    _
  $region17: #{decoder_forward.3} parent=0 // pred_fallthru
    _
  // Predicated region
  $region18: #{decoder_forward.3} parent=0 // pred_check
    _
  $region19: #{decoder_forward.3} parent=0 // pred_check_branch
    %19 = sbr.rel (0) target = $region21
  $region20: #{decoder_forward.3} parent=0 // pred_region
    _
  $region21: #{decoder_forward.3} parent=0 // pred_fallthru
    _
  %v20 = vld [vmem:[%s0] sm:$0xff]
  %v21 = vld [vmem:[%s0 + $0x8] sm:$0xff]
  %v22 = vld [vmem:[%s0 + $0x10] sm:$0xff]
  %v23 = vld [vmem:[%s0 + $0x18] sm:$0xff]
  %v24 = vld [vmem:[%s0 + $0x20] sm:$0xff]
  %v25 = vld [vmem:[%s0 + $0x28] sm:$0xff]
  %v26 = vld [vmem:[%s0 + $0x30] sm:$0xff]
  %v27 = vld [vmem:[%s0 + $0x38] sm:$0xff]
  %v28 = vld [vmem:[%s0 + $0x40] sm:$0xff]
  %v29 = vld [vmem:[%s0 + $0x48] sm:$0xff]
  %v30 = vld [vmem:[%s0 + $0x50] sm:$0xff]
  %v31 = vld [vmem:[%s0 + $0x58] sm:$0xff]
  %v32 = vld [vmem:[%s0 + $0x60] sm:$0xff]
  %v33 = vld [vmem:[%s0 + $0x68] sm:$0xff]
  %v34 = vld [vmem:[%s0 + $0x70] sm:$0xff]
  %v35 = vld [vmem:[%s0 + $0x78] sm:$0xff]
  %v36 = vld [vmem:[%s0 + $0x80] sm:$0xff]
  %v37 = vld [vmem:[%s0 + $0x88] sm:$0xff]
  %v38 = vld [vmem:[%s0 + $0x90] sm:$0xff]
  %v39 = vld [vmem:[%s0 + $0x98] sm:$0xff]
  %v40 = vld [vmem:[%s0 + $0xa0] sm:$0xff]
  %v41 = vld [vmem:[%s0 + $0xa8] sm:$0xff]
  %v42 = vld [vmem:[%s0 + $0xb0] sm:$0xff]
  %v43 = vld [vmem:[%s0 + $0xb8] sm:$0xff]
  %v44 = vld [vmem:[%s0 + $0xc0] sm:$0xff]
  %v45 = vld [vmem:[%s0 + $0xc8] sm:$0xff]
  %v46 = vld [vmem:[%s0 + $0xd0] sm:$0xff]
  %v47 = vld [vmem:[%s0 + $0xd8] sm:$0xff]
  %v48 = vld [vmem:[%s0 + $0xe0] sm:$0xff]
  %v49 = vld [vmem:[%s0 + $0xe8] sm:$0xff]
  %v50 = vld [vmem:[%s0 + $0xf0] sm:$0xff]
  %v51 = vld [vmem:[%s0 + $0xf8] sm:$0xff]
  %v52 = vld [vmem:[%s0 + $0x100] sm:$0xff]
  %v53 = vld [vmem:[%s0 + $0x108] sm:$0xff]
  %v54 = vld [vmem:[%s0 + $0x110] sm:$0xff]
  %v55 = vld [vmem:[%s0 + $0x118] sm:$0xff]
  %v56 = vld [vmem:[%s0 + $0x120] sm:$0xff]
  %v57 = vld [vmem:[%s0 + $0x128] sm:$0xff]
  %v58 = vld [vmem:[%s0 + $0x130] sm:$0xff]
  %v59 = vld [vmem:[%s0 + $0x138] sm:$0xff]
  %v60 = vld [vmem:[%s0 + $0x140] sm:$0xff]
  %v61 = vld [vmem:[%s0 + $0x148] sm:$0xff]
  %v62 = vld [vmem:[%s0 + $0x150] sm:$0xff]
  %v63 = vld [vmem:[%s0 + $0x158] sm:$0xff]
  %v64 = vld [vmem:[%s0 + $0x160] sm:$0xff]
  %v65 = vld [vmem:[%s0 + $0x168] sm:$0xff]
  %v66 = vld [vmem:[%s0 + $0x170] sm:$0xff]
  %v67 = vld [vmem:[%s0 + $0x178] sm:$0xff]
  %v68 = vld [vmem:[%s0 + $0x180] sm:$0xff]
  %v69 = vld [vmem:[%s0 + $0x188] sm:$0xff]
  %v70 = vld [vmem:[%s0 + $0x190] sm:$0xff]
  %v71 = vld [vmem:[%s0 + $0x198] sm:$0xff]
  %v72 = vld [vmem:[%s0 + $0x1a0] sm:$0xff]
  %v73 = vld [vmem:[%s0 + $0x1a8] sm:$0xff]
  %v74 = vld [vmem:[%s0 + $0x1b0] sm:$0xff]
  %v75 = vld [vmem:[%s0 + $0x1b8] sm:$0xff]
  %v76 = vld [vmem:[%s0 + $0x1c0] sm:$0xff]
  %v77 = vld [vmem:[%s0 + $0x1c8] sm:$0xff]
  %v78 = vld [vmem:[%s0 + $0x1d0] sm:$0xff]
  %v79 = vld [vmem:[%s0 + $0x1d8] sm:$0xff]
  %v80 = vld [vmem:[%s0 + $0x1e0] sm:$0xff]
  %v81 = vld [vmem:[%s0 + $0x1e8] sm:$0xff]
  %v82 = vld [vmem:[%s0 + $0x1f0] sm:$0xff]
  %v83 = vld [vmem:[%s0 + $0x1f8] sm:$0xff]
  %v84 = vld [vmem:[%s0 + $0x200] sm:$0xff]
  %v85 = vld [vmem:[%s0 + $0x208] sm:$0xff]
  %v86 = vld [vmem:[%s0 + $0x210] sm:$0xff]
  %v87 = vld [vmem:[%s0 + $0x218] sm:$0xff]
  %v88 = vld [vmem:[%s0 + $0x220] sm:$0xff]
  %v89 = vld [vmem:[%s0 + $0x228] sm:$0xff]
  %v90 = vld [vmem:[%s0 + $0x230] sm:$0xff]
  %v91 = vld [vmem:[%s0 + $0x238] sm:$0xff]
  %v92 = vld [vmem:[%s0 + $0x240] sm:$0xff]
  %v93 = vld [vmem:[%s0 + $0x248] sm:$0xff]
  %v94 = vld [vmem:[%s0 + $0x250] sm:$0xff]
  %v95 = vld [vmem:[%s0 + $0x258] sm:$0xff]
  %v96 = vld [vmem:[%s0 + $0x260] sm:$0xff]
  %v97 = vld [vmem:[%s0 + $0x268] sm:$0xff]
  %v98 = vld [vmem:[%s0 + $0x270] sm:$0xff]
  %v99 = vld [vmem:[%s0 + $0x278] sm:$0xff]
  %v100 = vld [vmem:[%s0 + $0x280] sm:$0xff]
  %v101 = vld [vmem:[%s0 + $0x288] sm:$0xff]
  %v102 = vld [vmem:[%s0 + $0x290] sm:$0xff]
  %v103 = vld [vmem:[%s0 + $0x298] sm:$0xff]
  %v104 = vld [vmem:[%s0 + $0x2a0] sm:$0xff]
  %v105 = vld [vmem:[%s0 + $0x2a8] sm:$0xff]
  %v106 = vld [vmem:[%s0 + $0x2b0] sm:$0xff]
  %v107 = vld [vmem:[%s0 + $0x2b8] sm:$0xff]
  %v108 = vld [vmem:[%s0 + $0x2c0] sm:$0xff]
  %v109 = vld [vmem:[%s0 + $0x2c8] sm:$0xff]
  %v110 = vld [vmem:[%s0 + $0x2d0] sm:$0xff]
  %v111 = vld [vmem:[%s0 + $0x2d8] sm:$0xff]
  %v112 = vld [vmem:[%s0 + $0x2e0] sm:$0xff]
  %v113 = vld [vmem:[%s0 + $0x2e8] sm:$0xff]
  %v114 = vld [vmem:[%s0 + $0x2f0] sm:$0xff]
  %v115 = vld [vmem:[%s0 + $0x2f8] sm:$0xff]
  %v116 = vld [vmem:[%s0 + $0x300] sm:$0xff]
  %v117 = vld [vmem:[%s0 + $0x308] sm:$0xff]
  %v118 = vld [vmem:[%s0 + $0x310] sm:$0xff]
  %v119 = vld [vmem:[%s0 + $0x318] sm:$0xff]
  %v120 = vld [vmem:[%s0 + $0x320] sm:$0xff]
  %v121 = vld [vmem:[%s0 + $0x328] sm:$0xff]
  %v122 = vld [vmem:[%s0 + $0x330] sm:$0xff]
  %v123 = vld [vmem:[%s0 + $0x338] sm:$0xff]
  %v124 = vld [vmem:[%s0 + $0x340] sm:$0xff]
  %v125 = vld [vmem:[%s0 + $0x348] sm:$0xff]
  %v126 = vld [vmem:[%s0 + $0x350] sm:$0xff]
  %v127 = vld [vmem:[%s0 + $0x358] sm:$0xff]
  %v128 = vld [vmem:[%s0 + $0x360] sm:$0xff]
  %v129 = vld [vmem:[%s0 + $0x368] sm:$0xff]
  %v130 = vld [vmem:[%s0 + $0x370] sm:$0xff]
  %v131 = vld [vmem:[%s0 + $0x378] sm:$0xff]
  %v132 = vld [vmem:[%s0 + $0x380] sm:$0xff]
  %v133 = vld [vmem:[%s0 + $0x388] sm:$0xff]
  %v134 = vld [vmem:[%s0 + $0x390] sm:$0xff]
  %v135 = vld [vmem:[%s0 + $0x398] sm:$0xff]
  %v136 = vld [vmem:[%s0 + $0x3a0] sm:$0xff]
  %v137 = vld [vmem:[%s0 + $0x3a8] sm:$0xff]
  %v138 = vld [vmem:[%s0 + $0x3b0] sm:$0xff]
  %v139 = vld [vmem:[%s0 + $0x3b8] sm:$0xff]
  %v140 = vld [vmem:[%s0 + $0x3c0] sm:$0xff]
  %v141 = vld [vmem:[%s0 + $0x3c8] sm:$0xff]
  %v142 = vld [vmem:[%s0 + $0x3d0] sm:$0xff]
  %v143 = vld [vmem:[%s0 + $0x3d8] sm:$0xff]
  %v144 = vld [vmem:[%s0 + $0x3e0] sm:$0xff]
  %v145 = vld [vmem:[%s0 + $0x3e8] sm:$0xff]
  %v146 = vld [vmem:[%s0 + $0x3f0] sm:$0xff]
  %v147 = vld [vmem:[%s0 + $0x3f8] sm:$0xff]
  %v148 = vld [vmem:[%s0 + $0x400] sm:$0xff]
  %v149 = vld [vmem:[%s0 + $0x408] sm:$0xff]
  %v150 = vld [vmem:[%s0 + $0x410] sm:$0xff]
  %v151 = vld [vmem:[%s0 + $0x418] sm:$0xff]
  %v152 = vld [vmem:[%s0 + $0x420] sm:$0xff]
  %v153 = vld [vmem:[%s0 + $0x428] sm:$0xff]
  %v154 = vld [vmem:[%s0 + $0x430] sm:$0xff]
  %v155 = vld [vmem:[%s0 + $0x438] sm:$0xff]
  %v156 = vld [vmem:[%s0 + $0x440] sm:$0xff]
  %v157 = vld [vmem:[%s0 + $0x448] sm:$0xff]
  %v158 = vld [vmem:[%s0 + $0x450] sm:$0xff]
  %v159 = vld [vmem:[%s0 + $0x458] sm:$0xff]
  %v160 = vld [vmem:[%s0 + $0x460] sm:$0xff]
  %v161 = vld [vmem:[%s0 + $0x468] sm:$0xff]
  %v162 = vld [vmem:[%s0 + $0x470] sm:$0xff]
  %v163 = vld [vmem:[%s0 + $0x478] sm:$0xff]
  %v164 = vld [vmem:[%s0 + $0x480] sm:$0xff]
  %v165 = vld [vmem:[%s0 + $0x488] sm:$0xff]
  %v166 = vld [vmem:[%s0 + $0x490] sm:$0xff]
  %v167 = vld [vmem:[%s0 + $0x498] sm:$0xff]
  %v168 = vld [vmem:[%s0 + $0x4a0] sm:$0xff]
  %v169 = vld [vmem:[%s0 + $0x4a8] sm:$0xff]
  %v170 = vld [vmem:[%s0 + $0x4b0] sm:$0xff]
  %v171 = vld [vmem:[%s0 + $0x4b8] sm:$0xff]
  %v172 = vld [vmem:[%s0 + $0x4c0] sm:$0xff]
  %v173 = vld [vmem:[%s0 + $0x4c8] sm:$0xff]
  %v174 = vld [vmem:[%s0 + $0x4d0] sm:$0xff]
  %v175 = vld [vmem:[%s0 + $0x4d8] sm:$0xff]
  %v176 = vld [vmem:[%s0 + $0x4e0] sm:$0xff]
  %v177 = vld [vmem:[%s0 + $0x4e8] sm:$0xff]
  %v178 = vld [vmem:[%s0 + $0x4f0] sm:$0xff]
  %v179 = vld [vmem:[%s0 + $0x4f8] sm:$0xff]
  %v180 = vld [vmem:[%s1] sm:$0xff]
  %v181 = vld [vmem:[%s1 + $0x8] sm:$0xff]
  %v182 = vld [vmem:[%s1 + $0x10] sm:$0xff]
  %v183 = vld [vmem:[%s1 + $0x18] sm:$0xff]
  %v184 = vld [vmem:[%s1 + $0x20] sm:$0xff]
  %v185 = vld [vmem:[%s1 + $0x28] sm:$0xff]
  %v186 = vld [vmem:[%s1 + $0x30] sm:$0xff]
  %v187 = vld [vmem:[%s1 + $0x38] sm:$0xff]
  %v188 = vld [vmem:[%s1 + $0x40] sm:$0xff]
  %v189 = vld [vmem:[%s1 + $0x48] sm:$0xff]
  %v190 = vld [vmem:[%s1 + $0x50] sm:$0xff]
  %v191 = vld [vmem:[%s1 + $0x58] sm:$0xff]
  %v192 = vld [vmem:[%s1 + $0x60] sm:$0xff]
  %v193 = vld [vmem:[%s1 + $0x68] sm:$0xff]
  %v194 = vld [vmem:[%s1 + $0x70] sm:$0xff]
  %v195 = vld [vmem:[%s1 + $0x78] sm:$0xff]
  %v196 = vld [vmem:[%s1 + $0x80] sm:$0xff]
  %v197 = vld [vmem:[%s1 + $0x88] sm:$0xff]
  %v198 = vld [vmem:[%s1 + $0x90] sm:$0xff]
  %v199 = vld [vmem:[%s1 + $0x98] sm:$0xff]
  %v200 = vld [vmem:[%s1 + $0xa0] sm:$0xff]
  %v201 = vld [vmem:[%s1 + $0xa8] sm:$0xff]
  %v202 = vld [vmem:[%s1 + $0xb0] sm:$0xff]
  %v203 = vld [vmem:[%s1 + $0xb8] sm:$0xff]
  %v204 = vld [vmem:[%s1 + $0xc0] sm:$0xff]
  %v205 = vld [vmem:[%s1 + $0xc8] sm:$0xff]
  %v206 = vld [vmem:[%s1 + $0xd0] sm:$0xff]
  %v207 = vld [vmem:[%s1 + $0xd8] sm:$0xff]
  %v208 = vld [vmem:[%s1 + $0xe0] sm:$0xff]
  %v209 = vld [vmem:[%s1 + $0xe8] sm:$0xff]
  %v210 = vld [vmem:[%s1 + $0xf0] sm:$0xff]
  %v211 = vld [vmem:[%s1 + $0xf8] sm:$0xff]
  %v212 = vld [vmem:[%s1 + $0x100] sm:$0xff]
  %v213 = vld [vmem:[%s1 + $0x108] sm:$0xff]
  %v214 = vld [vmem:[%s1 + $0x110] sm:$0xff]
  %v215 = vld [vmem:[%s1 + $0x118] sm:$0xff]
  %v216 = vld [vmem:[%s1 + $0x120] sm:$0xff]
  %v217 = vld [vmem:[%s1 + $0x128] sm:$0xff]
  %v218 = vld [vmem:[%s1 + $0x130] sm:$0xff]
  %v219 = vld [vmem:[%s1 + $0x138] sm:$0xff]
  %v220 = vld [vmem:[%s1 + $0x140] sm:$0xff]
  %v221 = vld [vmem:[%s1 + $0x148] sm:$0xff]
  %v222 = vld [vmem:[%s1 + $0x150] sm:$0xff]
  %v223 = vld [vmem:[%s1 + $0x158] sm:$0xff]
  %v224 = vld [vmem:[%s1 + $0x160] sm:$0xff]
  %v225 = vld [vmem:[%s1 + $0x168] sm:$0xff]
  %v226 = vld [vmem:[%s1 + $0x170] sm:$0xff]
  %v227 = vld [vmem:[%s1 + $0x178] sm:$0xff]
  %v228 = vld [vmem:[%s1 + $0x180] sm:$0xff]
  %v229 = vld [vmem:[%s1 + $0x188] sm:$0xff]
  %v230 = vld [vmem:[%s1 + $0x190] sm:$0xff]
  %v231 = vld [vmem:[%s1 + $0x198] sm:$0xff]
  %v232 = vld [vmem:[%s1 + $0x1a0] sm:$0xff]
  %v233 = vld [vmem:[%s1 + $0x1a8] sm:$0xff]
  %v234 = vld [vmem:[%s1 + $0x1b0] sm:$0xff]
  %v235 = vld [vmem:[%s1 + $0x1b8] sm:$0xff]
  %v236 = vld [vmem:[%s1 + $0x1c0] sm:$0xff]
  %v237 = vld [vmem:[%s1 + $0x1c8] sm:$0xff]
  %v238 = vld [vmem:[%s1 + $0x1d0] sm:$0xff]
  %v239 = vld [vmem:[%s1 + $0x1d8] sm:$0xff]
  %v240 = vld [vmem:[%s1 + $0x1e0] sm:$0xff]
  %v241 = vld [vmem:[%s1 + $0x1e8] sm:$0xff]
  %v242 = vld [vmem:[%s1 + $0x1f0] sm:$0xff]
  %v243 = vld [vmem:[%s1 + $0x1f8] sm:$0xff]
  %v244 = vld [vmem:[%s1 + $0x200] sm:$0xff]
  %v245 = vld [vmem:[%s1 + $0x208] sm:$0xff]
  %v246 = vld [vmem:[%s1 + $0x210] sm:$0xff]
  %v247 = vld [vmem:[%s1 + $0x218] sm:$0xff]
  %v248 = vld [vmem:[%s1 + $0x220] sm:$0xff]
  %v249 = vld [vmem:[%s1 + $0x228] sm:$0xff]
  %v250 = vld [vmem:[%s1 + $0x230] sm:$0xff]
  %v251 = vld [vmem:[%s1 + $0x238] sm:$0xff]
  %v252 = vld [vmem:[%s2] sm:$0x1]
  %v254 = vlaneseq
  %v255 = vshrl.u32 %v254, 7
  %v256 = vsub.s32 0, %v255
  %v257 = vrot.slane %v252, %v256
  %vm259 = vcmask 523264
  %v261 = vsel %vm259, %v24, 0
  %v264 = vsel %vm259, %v29, 0
  %v267 = vsel %vm259, %v34, 0
  %v270 = vsel %vm259, %v39, 0
  %v273 = vsel %vm259, %v44, 0
  %v276 = vsel %vm259, %v49, 0
  %v279 = vsel %vm259, %v54, 0
  %v282 = vsel %vm259, %v59, 0
  %v285 = vsel %vm259, %v64, 0
  %v288 = vsel %vm259, %v69, 0
  %v291 = vsel %vm259, %v74, 0
  %v294 = vsel %vm259, %v79, 0
  %v297 = vsel %vm259, %v84, 0
  %v300 = vsel %vm259, %v89, 0
  %v303 = vsel %vm259, %v94, 0
  %v306 = vsel %vm259, %v99, 0
  %v309 = vsel %vm259, %v104, 0
  %v312 = vsel %vm259, %v109, 0
  %v315 = vsel %vm259, %v114, 0
  %v318 = vsel %vm259, %v119, 0
  %v321 = vsel %vm259, %v124, 0
  %v324 = vsel %vm259, %v129, 0
  %v327 = vsel %vm259, %v134, 0
  %v330 = vsel %vm259, %v139, 0
  %v333 = vsel %vm259, %v144, 0
  %v336 = vsel %vm259, %v149, 0
  %v339 = vsel %vm259, %v154, 0
  %v342 = vsel %vm259, %v159, 0
  %v345 = vsel %vm259, %v164, 0
  %v348 = vsel %vm259, %v169, 0
  %v351 = vsel %vm259, %v174, 0
  %v354 = vsel %vm259, %v179, 0
  %356 = vmatprep.subr.mxu0 0.0
  %357 = vmatpush1.msra.mxu0 %v180
  %358 = vmatprep.subr.mxu0 0.0
  %359 = vmatpush1.msra.mxu0 %v181
  %360 = vmatprep.subr.mxu0 0.0
  %361 = vmatpush1.msra.mxu0 %v182
  %362 = vmatprep.subr.mxu0 0.0
  %363 = vmatpush1.msra.mxu0 %v183
  %364 = vmatprep.subr.mxu0 0.0
  %365 = vmatpush1.msra.mxu0 %v184
  %366 = vmatprep.subr.mxu0 0.0
  %367 = vmatpush1.msra.mxu0 %v185
  %368 = vmatprep.subr.mxu0 0.0
  %369 = vmatpush1.msra.mxu0 %v186
  %370 = vmatprep.subr.mxu0 0.0
  %371 = vmatpush1.msra.mxu0 %v187
  %372 = vmatprep.subr.mxu0 0.0
  %373 = vmatpush1.msra.mxu0 %v188
  %374 = vmatprep.subr.mxu0 0.0
  %375 = vmatpush1.msra.mxu0 %v189
  %376 = vmatprep.subr.mxu0 0.0
  %377 = vmatpush1.msra.mxu0 %v190
  %378 = vmatprep.subr.mxu0 0.0
  %379 = vmatpush1.msra.mxu0 %v191
  %380 = vmatprep.subr.mxu0 0.0
  %381 = vmatpush1.msra.mxu0 %v192
  %382 = vmatprep.subr.mxu0 0.0
  %383 = vmatpush1.msra.mxu0 %v193
  %384 = vmatprep.subr.mxu0 0.0
  %385 = vmatpush1.msra.mxu0 %v194
  %386 = vmatprep.subr.mxu0 0.0
  %387 = vmatpush1.msra.mxu0 %v195
  %388 = vmatprep.subr.mxu0 0.0
  %389 = vmatpush1.msra.mxu0 %v196
  %390 = vmatprep.subr.mxu0 0.0
  %391 = vmatpush1.msra.mxu0 %v197
  %392 = vmatprep.subr.mxu0 0.0
  %393 = vmatpush1.msra.mxu0 %v198
  %394 = vmatprep.subr.mxu0 0.0
  %395 = vmatpush1.msra.mxu0 %v199
  %396 = vmatprep.subr.mxu0 0.0
  %397 = vmatpush1.msra.mxu0 %v200
  %398 = vmatprep.subr.mxu0 0.0
  %399 = vmatpush1.msra.mxu0 %v201
  %400 = vmatprep.subr.mxu0 0.0
  %401 = vmatpush1.msra.mxu0 %v202
  %402 = vmatprep.subr.mxu0 0.0
  %403 = vmatpush1.msra.mxu0 %v203
  %404 = vmatprep.subr.mxu0 0.0
  %405 = vmatpush1.msra.mxu0 %v204
  %406 = vmatprep.subr.mxu0 0.0
  %407 = vmatpush1.msra.mxu0 %v205
  %408 = vmatprep.subr.mxu0 0.0
  %409 = vmatpush1.msra.mxu0 %v206
  %410 = vmatprep.subr.mxu0 0.0
  %411 = vmatpush1.msra.mxu0 %v207
  %412 = vmatprep.subr.mxu0 0.0
  %413 = vmatpush1.msra.mxu0 %v208
  %414 = vmatprep.subr.mxu0 0.0
  %415 = vmatpush1.msra.mxu0 %v209
  %416 = vmatprep.subr.mxu0 0.0
  %417 = vmatpush1.msra.mxu0 %v210
  %418 = vmatprep.subr.mxu0 0.0
  %419 = vmatpush1.msra.mxu0 %v211
  %420 = vmatprep.mubr.f32.mxu0 %v21
  %421 = vmatmul.mubr.f32.gmra.mrb[0].mxu0 %v20
  %v422 = vpop.f32.mrb[0].mxu0
  %v423 = vadd.f32 %v257, %v422
  %v424 = vpop.f32.mrb[0].mxu0
  %425 = vmatprep.mubr.f32.mxu0 %v26
  %426 = vmatmul.mubr.f32.gmra.mrb[0].mxu0 %v25
  %v427 = vpop.f32.mrb[0].mxu0
  %v428 = vadd.f32 %v257, %v427
  %v429 = vpop.f32.mrb[0].mxu0
  %430 = vmatprep.mubr.f32.mxu0 %v31
  %431 = vmatmul.mubr.f32.gmra.mrb[0].mxu0 %v30
  %v432 = vpop.f32.mrb[0].mxu0
  %v433 = vadd.f32 %v257, %v432
  %v434 = vpop.f32.mrb[0].mxu0
  %435 = vmatprep.mubr.f32.mxu0 %v36
  %436 = vmatmul.mubr.f32.gmra.mrb[0].mxu0 %v35
  %v437 = vpop.f32.mrb[0].mxu0
  %v438 = vadd.f32 %v257, %v437
  %v439 = vpop.f32.mrb[0].mxu0
  %440 = vmatprep.mubr.f32.mxu0 %v41
  %441 = vmatmul.mubr.f32.gmra.mrb[0].mxu0 %v40
  %v442 = vpop.f32.mrb[0].mxu0
  %v443 = vadd.f32 %v257, %v442
  %v444 = vpop.f32.mrb[0].mxu0
  %445 = vmatprep.mubr.f32.mxu0 %v46
  %446 = vmatmul.mubr.f32.gmra.mrb[0].mxu0 %v45
  %v447 = vpop.f32.mrb[0].mxu0
  %v448 = vadd.f32 %v257, %v447
  %v449 = vpop.f32.mrb[0].mxu0
  %450 = vmatprep.mubr.f32.mxu0 %v51
  %451 = vmatmul.mubr.f32.gmra.mrb[0].mxu0 %v50
  %v452 = vpop.f32.mrb[0].mxu0
  %v453 = vadd.f32 %v257, %v452
  %v454 = vpop.f32.mrb[0].mxu0
  %455 = vmatprep.mubr.f32.mxu0 %v56
  %456 = vmatmul.mubr.f32.gmra.mrb[0].mxu0 %v55
  %v457 = vpop.f32.mrb[0].mxu0
  %v458 = vadd.f32 %v257, %v457
  %v459 = vpop.f32.mrb[0].mxu0
  %460 = vmatprep.mubr.f32.mxu0 %v61
  %461 = vmatmul.mubr.f32.gmra.mrb[0].mxu0 %v60
  %v462 = vpop.f32.mrb[0].mxu0
  %v463 = vadd.f32 %v257, %v462
  %v464 = vpop.f32.mrb[0].mxu0
  %465 = vmatprep.mubr.f32.mxu0 %v66
  %466 = vmatmul.mubr.f32.gmra.mrb[0].mxu0 %v65
  %v467 = vpop.f32.mrb[0].mxu0
  %v468 = vadd.f32 %v257, %v467
  %v469 = vpop.f32.mrb[0].mxu0
  %470 = vmatprep.mubr.f32.mxu0 %v71
  %471 = vmatmul.mubr.f32.gmra.mrb[0].mxu0 %v70
  %v472 = vpop.f32.mrb[0].mxu0
  %v473 = vadd.f32 %v257, %v472
  %v474 = vpop.f32.mrb[0].mxu0
  %475 = vmatprep.mubr.f32.mxu0 %v76
  %476 = vmatmul.mubr.f32.gmra.mrb[0].mxu0 %v75
  %v477 = vpop.f32.mrb[0].mxu0
  %v478 = vadd.f32 %v257, %v477
  %v479 = vpop.f32.mrb[0].mxu0
  %480 = vmatprep.mubr.f32.mxu0 %v81
  %481 = vmatmul.mubr.f32.gmra.mrb[0].mxu0 %v80
  %v482 = vpop.f32.mrb[0].mxu0
  %v483 = vadd.f32 %v257, %v482
  %v484 = vpop.f32.mrb[0].mxu0
  %485 = vmatprep.mubr.f32.mxu0 %v86
  %486 = vmatmul.mubr.f32.gmra.mrb[0].mxu0 %v85
  %v487 = vpop.f32.mrb[0].mxu0
  %v488 = vadd.f32 %v257, %v487
  %v489 = vpop.f32.mrb[0].mxu0
  %490 = vmatprep.mubr.f32.mxu0 %v91
  %491 = vmatmul.mubr.f32.gmra.mrb[0].mxu0 %v90
  %v492 = vpop.f32.mrb[0].mxu0
  %v493 = vadd.f32 %v257, %v492
  %v494 = vpop.f32.mrb[0].mxu0
  %495 = vmatprep.mubr.f32.mxu0 %v96
  %496 = vmatmul.mubr.f32.gmra.mrb[0].mxu0 %v95
  %v497 = vpop.f32.mrb[0].mxu0
  %v498 = vadd.f32 %v257, %v497
  %v499 = vpop.f32.mrb[0].mxu0
  %500 = vmatprep.mubr.f32.mxu0 %v101
  %501 = vmatmul.mubr.f32.gmra.mrb[0].mxu0 %v100
  %v502 = vpop.f32.mrb[0].mxu0
  %v503 = vadd.f32 %v257, %v502
  %v504 = vpop.f32.mrb[0].mxu0
  %505 = vmatprep.mubr.f32.mxu0 %v106
  %506 = vmatmul.mubr.f32.gmra.mrb[0].mxu0 %v105
  %v507 = vpop.f32.mrb[0].mxu0
  %v508 = vadd.f32 %v257, %v507
  %v509 = vpop.f32.mrb[0].mxu0
  %510 = vmatprep.mubr.f32.mxu0 %v111
  %511 = vmatmul.mubr.f32.gmra.mrb[0].mxu0 %v110
  %v512 = vpop.f32.mrb[0].mxu0
  %v513 = vadd.f32 %v257, %v512
  %v514 = vpop.f32.mrb[0].mxu0
  %515 = vmatprep.mubr.f32.mxu0 %v116
  %516 = vmatmul.mubr.f32.gmra.mrb[0].mxu0 %v115
  %v517 = vpop.f32.mrb[0].mxu0
  %v518 = vadd.f32 %v257, %v517
  %v519 = vpop.f32.mrb[0].mxu0
  %520 = vmatprep.mubr.f32.mxu0 %v121
  %521 = vmatmul.mubr.f32.gmra.mrb[0].mxu0 %v120
  %v522 = vpop.f32.mrb[0].mxu0
  %v523 = vadd.f32 %v257, %v522
  %v524 = vpop.f32.mrb[0].mxu0
  %525 = vmatprep.mubr.f32.mxu0 %v126
  %526 = vmatmul.mubr.f32.gmra.mrb[0].mxu0 %v125
  %v527 = vpop.f32.mrb[0].mxu0
  %v528 = vadd.f32 %v257, %v527
  %v529 = vpop.f32.mrb[0].mxu0
  %530 = vmatprep.mubr.f32.mxu0 %v131
  %531 = vmatmul.mubr.f32.gmra.mrb[0].mxu0 %v130
  %v532 = vpop.f32.mrb[0].mxu0
  %v533 = vadd.f32 %v257, %v532
  %v534 = vpop.f32.mrb[0].mxu0
  %535 = vmatprep.mubr.f32.mxu0 %v136
  %536 = vmatmul.mubr.f32.gmra.mrb[0].mxu0 %v135
  %v537 = vpop.f32.mrb[0].mxu0
  %v538 = vadd.f32 %v257, %v537
  %v539 = vpop.f32.mrb[0].mxu0
  %540 = vmatprep.mubr.f32.mxu0 %v141
  %541 = vmatmul.mubr.f32.gmra.mrb[0].mxu0 %v140
  %v542 = vpop.f32.mrb[0].mxu0
  %v543 = vadd.f32 %v257, %v542
  %v544 = vpop.f32.mrb[0].mxu0
  %545 = vmatprep.mubr.f32.mxu0 %v146
  %546 = vmatmul.mubr.f32.gmra.mrb[0].mxu0 %v145
  %v547 = vpop.f32.mrb[0].mxu0
  %v548 = vadd.f32 %v257, %v547
  %v549 = vpop.f32.mrb[0].mxu0
  %550 = vmatprep.mubr.f32.mxu0 %v151
  %551 = vmatmul.mubr.f32.gmra.mrb[0].mxu0 %v150
  %v552 = vpop.f32.mrb[0].mxu0
  %v553 = vadd.f32 %v257, %v552
  %v554 = vpop.f32.mrb[0].mxu0
  %555 = vmatprep.mubr.f32.mxu0 %v156
  %556 = vmatmul.mubr.f32.gmra.mrb[0].mxu0 %v155
  %v557 = vpop.f32.mrb[0].mxu0
  %v558 = vadd.f32 %v257, %v557
  %v559 = vpop.f32.mrb[0].mxu0
  %560 = vmatprep.mubr.f32.mxu0 %v161
  %561 = vmatmul.mubr.f32.gmra.mrb[0].mxu0 %v160
  %v562 = vpop.f32.mrb[0].mxu0
  %v563 = vadd.f32 %v257, %v562
  %v564 = vpop.f32.mrb[0].mxu0
  %565 = vmatprep.mubr.f32.mxu0 %v166
  %566 = vmatmul.mubr.f32.gmra.mrb[0].mxu0 %v165
  %v567 = vpop.f32.mrb[0].mxu0
  %v568 = vadd.f32 %v257, %v567
  %v569 = vpop.f32.mrb[0].mxu0
  %570 = vmatprep.mubr.f32.mxu0 %v171
  %571 = vmatmul.mubr.f32.gmra.mrb[0].mxu0 %v170
  %v572 = vpop.f32.mrb[0].mxu0
  %v573 = vadd.f32 %v257, %v572
  %v574 = vpop.f32.mrb[0].mxu0
  %575 = vmatprep.mubr.f32.mxu0 %v176
  %576 = vmatmul.mubr.f32.gmra.mrb[0].mxu0 %v175
  %v577 = vpop.f32.mrb[0].mxu0
  %v578 = vadd.f32 %v257, %v577
  %v579 = vpop.f32.mrb[0].mxu0
  %580 = vdwg.mxu0
  %581 = vmatprep.subr.mxu0 0.0
  %582 = vmatpush1.msra.mxu0 %v212
  %583 = vmatprep.subr.mxu0 0.0
  %584 = vmatpush1.msra.mxu0 %v213
  %585 = vmatprep.subr.mxu0 0.0
  %586 = vmatpush1.msra.mxu0 %v214
  %587 = vmatprep.subr.mxu0 0.0
  %588 = vmatpush1.msra.mxu0 %v215
  %589 = vmatprep.subr.mxu0 0.0
  %590 = vmatpush1.msra.mxu0 %v216
  %591 = vmatprep.subr.mxu0 0.0
  %592 = vmatpush1.msra.mxu0 %v217
  %593 = vmatprep.subr.mxu0 0.0
  %594 = vmatpush1.msra.mxu0 %v218
  %595 = vmatprep.subr.mxu0 0.0
  %596 = vmatpush1.msra.mxu0 %v219
  %597 = vmatprep.subr.mxu0 0.0
  %598 = vmatpush1.msra.mxu0 %v220
  %599 = vmatprep.subr.mxu0 0.0
  %600 = vmatpush1.msra.mxu0 %v221
  %601 = vmatprep.subr.mxu0 0.0
  %602 = vmatpush1.msra.mxu0 %v222
  %603 = vmatprep.subr.mxu0 0.0
  %604 = vmatpush1.msra.mxu0 %v223
  %605 = vmatprep.subr.mxu0 0.0
  %606 = vmatpush1.msra.mxu0 %v224
  %607 = vmatprep.subr.mxu0 0.0
  %608 = vmatpush1.msra.mxu0 %v225
  %609 = vmatprep.subr.mxu0 0.0
  %610 = vmatpush1.msra.mxu0 %v226
  %611 = vmatprep.subr.mxu0 0.0
  %612 = vmatpush1.msra.mxu0 %v227
  %613 = vmatprep.subr.mxu0 0.0
  %614 = vmatpush1.msra.mxu0 %v228
  %615 = vmatprep.subr.mxu0 0.0
  %616 = vmatpush1.msra.mxu0 %v229
  %617 = vmatprep.subr.mxu0 0.0
  %618 = vmatpush1.msra.mxu0 %v230
  %619 = vmatprep.subr.mxu0 0.0
  %620 = vmatpush1.msra.mxu0 %v231
  %621 = vmatprep.subr.mxu0 0.0
  %622 = vmatpush1.msra.mxu0 %v232
  %623 = vmatprep.subr.mxu0 0.0
  %624 = vmatpush1.msra.mxu0 %v233
  %625 = vmatprep.subr.mxu0 0.0
  %626 = vmatpush1.msra.mxu0 %v234
  %627 = vmatprep.subr.mxu0 0.0
  %628 = vmatpush1.msra.mxu0 %v235
  %629 = vmatprep.subr.mxu0 0.0
  %630 = vmatpush1.msra.mxu0 %v236
  %631 = vmatprep.subr.mxu0 0.0
  %632 = vmatpush1.msra.mxu0 %v237
  %633 = vmatprep.subr.mxu0 0.0
  %634 = vmatpush1.msra.mxu0 %v238
  %635 = vmatprep.subr.mxu0 0.0
  %636 = vmatpush1.msra.mxu0 %v239
  %637 = vmatprep.subr.mxu0 0.0
  %638 = vmatpush1.msra.mxu0 %v240
  %639 = vmatprep.subr.mxu0 0.0
  %640 = vmatpush1.msra.mxu0 %v241
  %641 = vmatprep.subr.mxu0 0.0
  %642 = vmatpush1.msra.mxu0 %v242
  %643 = vmatprep.subr.mxu0 0.0
  %644 = vmatpush1.msra.mxu0 %v243
  %645 = vmatprep.mubr.f32.mxu0 %v23
  %646 = vmatmul.mubr.f32.gmra.mrb[0].mxu0 %v22
  %v647 = vpop.f32.mrb[0].mxu0
  %v648 = vadd.f32 %v423, %v647
  %v649 = vpop.f32.mrb[0].mxu0
  %650 = vmatprep.mubr.f32.mxu0 %v28
  %651 = vmatmul.mubr.f32.gmra.mrb[0].mxu0 %v27
  %v652 = vpop.f32.mrb[0].mxu0
  %v653 = vadd.f32 %v428, %v652
  %v654 = vpop.f32.mrb[0].mxu0
  %655 = vmatprep.mubr.f32.mxu0 %v33
  %656 = vmatmul.mubr.f32.gmra.mrb[0].mxu0 %v32
  %v657 = vpop.f32.mrb[0].mxu0
  %v658 = vadd.f32 %v433, %v657
  %v659 = vpop.f32.mrb[0].mxu0
  %660 = vmatprep.mubr.f32.mxu0 %v38
  %661 = vmatmul.mubr.f32.gmra.mrb[0].mxu0 %v37
  %v662 = vpop.f32.mrb[0].mxu0
  %v663 = vadd.f32 %v438, %v662
  %v664 = vpop.f32.mrb[0].mxu0
  %665 = vmatprep.mubr.f32.mxu0 %v43
  %666 = vmatmul.mubr.f32.gmra.mrb[0].mxu0 %v42
  %v667 = vpop.f32.mrb[0].mxu0
  %v668 = vadd.f32 %v443, %v667
  %v669 = vpop.f32.mrb[0].mxu0
  %670 = vmatprep.mubr.f32.mxu0 %v48
  %671 = vmatmul.mubr.f32.gmra.mrb[0].mxu0 %v47
  %v672 = vpop.f32.mrb[0].mxu0
  %v673 = vadd.f32 %v448, %v672
  %v674 = vpop.f32.mrb[0].mxu0
  %675 = vmatprep.mubr.f32.mxu0 %v53
  %676 = vmatmul.mubr.f32.gmra.mrb[0].mxu0 %v52
  %v677 = vpop.f32.mrb[0].mxu0
  %v678 = vadd.f32 %v453, %v677
  %v679 = vpop.f32.mrb[0].mxu0
  %680 = vmatprep.mubr.f32.mxu0 %v58
  %681 = vmatmul.mubr.f32.gmra.mrb[0].mxu0 %v57
  %v682 = vpop.f32.mrb[0].mxu0
  %v683 = vadd.f32 %v458, %v682
  %v684 = vpop.f32.mrb[0].mxu0
  %685 = vmatprep.mubr.f32.mxu0 %v63
  %686 = vmatmul.mubr.f32.gmra.mrb[0].mxu0 %v62
  %v687 = vpop.f32.mrb[0].mxu0
  %v688 = vadd.f32 %v463, %v687
  %v689 = vpop.f32.mrb[0].mxu0
  %690 = vmatprep.mubr.f32.mxu0 %v68
  %691 = vmatmul.mubr.f32.gmra.mrb[0].mxu0 %v67
  %v692 = vpop.f32.mrb[0].mxu0
  %v693 = vadd.f32 %v468, %v692
  %v694 = vpop.f32.mrb[0].mxu0
  %695 = vmatprep.mubr.f32.mxu0 %v73
  %696 = vmatmul.mubr.f32.gmra.mrb[0].mxu0 %v72
  %v697 = vpop.f32.mrb[0].mxu0
  %v698 = vadd.f32 %v473, %v697
  %v699 = vpop.f32.mrb[0].mxu0
  %700 = vmatprep.mubr.f32.mxu0 %v78
  %701 = vmatmul.mubr.f32.gmra.mrb[0].mxu0 %v77
  %v702 = vpop.f32.mrb[0].mxu0
  %v703 = vadd.f32 %v478, %v702
  %v704 = vpop.f32.mrb[0].mxu0
  %705 = vmatprep.mubr.f32.mxu0 %v83
  %706 = vmatmul.mubr.f32.gmra.mrb[0].mxu0 %v82
  %v707 = vpop.f32.mrb[0].mxu0
  %v708 = vadd.f32 %v483, %v707
  %v709 = vpop.f32.mrb[0].mxu0
  %710 = vmatprep.mubr.f32.mxu0 %v88
  %711 = vmatmul.mubr.f32.gmra.mrb[0].mxu0 %v87
  %v712 = vpop.f32.mrb[0].mxu0
  %v713 = vadd.f32 %v488, %v712
  %v714 = vpop.f32.mrb[0].mxu0
  %715 = vmatprep.mubr.f32.mxu0 %v93
  %716 = vmatmul.mubr.f32.gmra.mrb[0].mxu0 %v92
  %v717 = vpop.f32.mrb[0].mxu0
  %v718 = vadd.f32 %v493, %v717
  %v719 = vpop.f32.mrb[0].mxu0
  %720 = vmatprep.mubr.f32.mxu0 %v98
  %721 = vmatmul.mubr.f32.gmra.mrb[0].mxu0 %v97
  %v722 = vpop.f32.mrb[0].mxu0
  %v723 = vadd.f32 %v498, %v722
  %v724 = vpop.f32.mrb[0].mxu0
  %725 = vmatprep.mubr.f32.mxu0 %v103
  %726 = vmatmul.mubr.f32.gmra.mrb[0].mxu0 %v102
  %v727 = vpop.f32.mrb[0].mxu0
  %v728 = vadd.f32 %v503, %v727
  %v729 = vpop.f32.mrb[0].mxu0
  %730 = vmatprep.mubr.f32.mxu0 %v108
  %731 = vmatmul.mubr.f32.gmra.mrb[0].mxu0 %v107
  %v732 = vpop.f32.mrb[0].mxu0
  %v733 = vadd.f32 %v508, %v732
  %v734 = vpop.f32.mrb[0].mxu0
  %735 = vmatprep.mubr.f32.mxu0 %v113
  %736 = vmatmul.mubr.f32.gmra.mrb[0].mxu0 %v112
  %v737 = vpop.f32.mrb[0].mxu0
  %v738 = vadd.f32 %v513, %v737
  %v739 = vpop.f32.mrb[0].mxu0
  %740 = vmatprep.mubr.f32.mxu0 %v118
  %741 = vmatmul.mubr.f32.gmra.mrb[0].mxu0 %v117
  %v742 = vpop.f32.mrb[0].mxu0
  %v743 = vadd.f32 %v518, %v742
  %v744 = vpop.f32.mrb[0].mxu0
  %745 = vmatprep.mubr.f32.mxu0 %v123
  %746 = vmatmul.mubr.f32.gmra.mrb[0].mxu0 %v122
  %v747 = vpop.f32.mrb[0].mxu0
  %v748 = vadd.f32 %v523, %v747
  %v749 = vpop.f32.mrb[0].mxu0
  %750 = vmatprep.mubr.f32.mxu0 %v128
  %751 = vmatmul.mubr.f32.gmra.mrb[0].mxu0 %v127
  %v752 = vpop.f32.mrb[0].mxu0
  %v753 = vadd.f32 %v528, %v752
  %v754 = vpop.f32.mrb[0].mxu0
  %755 = vmatprep.mubr.f32.mxu0 %v133
  %756 = vmatmul.mubr.f32.gmra.mrb[0].mxu0 %v132
  %v757 = vpop.f32.mrb[0].mxu0
  %v758 = vadd.f32 %v533, %v757
  %v759 = vpop.f32.mrb[0].mxu0
  %760 = vmatprep.mubr.f32.mxu0 %v138
  %761 = vmatmul.mubr.f32.gmra.mrb[0].mxu0 %v137
  %v762 = vpop.f32.mrb[0].mxu0
  %v763 = vadd.f32 %v538, %v762
  %v764 = vpop.f32.mrb[0].mxu0
  %765 = vmatprep.mubr.f32.mxu0 %v143
  %766 = vmatmul.mubr.f32.gmra.mrb[0].mxu0 %v142
  %v767 = vpop.f32.mrb[0].mxu0
  %v768 = vadd.f32 %v543, %v767
  %v769 = vpop.f32.mrb[0].mxu0
  %770 = vmatprep.mubr.f32.mxu0 %v148
  %771 = vmatmul.mubr.f32.gmra.mrb[0].mxu0 %v147
  %v772 = vpop.f32.mrb[0].mxu0
  %v773 = vadd.f32 %v548, %v772
  %v774 = vpop.f32.mrb[0].mxu0
  %775 = vmatprep.mubr.f32.mxu0 %v153
  %776 = vmatmul.mubr.f32.gmra.mrb[0].mxu0 %v152
  %v777 = vpop.f32.mrb[0].mxu0
  %v778 = vadd.f32 %v553, %v777
  %v779 = vpop.f32.mrb[0].mxu0
  %780 = vmatprep.mubr.f32.mxu0 %v158
  %781 = vmatmul.mubr.f32.gmra.mrb[0].mxu0 %v157
  %v782 = vpop.f32.mrb[0].mxu0
  %v783 = vadd.f32 %v558, %v782
  %v784 = vpop.f32.mrb[0].mxu0
  %785 = vmatprep.mubr.f32.mxu0 %v163
  %786 = vmatmul.mubr.f32.gmra.mrb[0].mxu0 %v162
  %v787 = vpop.f32.mrb[0].mxu0
  %v788 = vadd.f32 %v563, %v787
  %v789 = vpop.f32.mrb[0].mxu0
  %790 = vmatprep.mubr.f32.mxu0 %v168
  %791 = vmatmul.mubr.f32.gmra.mrb[0].mxu0 %v167
  %v792 = vpop.f32.mrb[0].mxu0
  %v793 = vadd.f32 %v568, %v792
  %v794 = vpop.f32.mrb[0].mxu0
  %795 = vmatprep.mubr.f32.mxu0 %v173
  %796 = vmatmul.mubr.f32.gmra.mrb[0].mxu0 %v172
  %v797 = vpop.f32.mrb[0].mxu0
  %v798 = vadd.f32 %v573, %v797
  %v799 = vpop.f32.mrb[0].mxu0
  %800 = vmatprep.mubr.f32.mxu0 %v178
  %801 = vmatmul.mubr.f32.gmra.mrb[0].mxu0 %v177
  %v802 = vpop.f32.mrb[0].mxu0
  %v803 = vadd.f32 %v578, %v802
  %v804 = vpop.f32.mrb[0].mxu0
  %805 = vdwg.mxu0
  %806 = vmatprep.subr.mxu0 0.0
  %807 = vmatpush1.msra.mxu0 %v244
  %808 = vmatprep.subr.mxu0 0.0
  %809 = vmatpush1.msra.mxu0 %v245
  %810 = vmatprep.subr.mxu0 0.0
  %811 = vmatpush1.msra.mxu0 %v246
  %812 = vmatprep.subr.mxu0 0.0
  %813 = vmatpush1.msra.mxu0 %v247
  %814 = vmatprep.subr.mxu0 0.0
  %815 = vmatpush1.msra.mxu0 %v248
  %816 = vmatprep.subr.mxu0 0.0
  %817 = vmatpush1.msra.mxu0 %v249
  %818 = vmatprep.subr.mxu0 0.0
  %819 = vmatpush1.msra.mxu0 %v250
  %820 = vmatprep.subr.mxu0 0.0
  %821 = vmatpush1.msra.mxu0 %v251
  %822 = vmatprep.subr.mxu0 0.0
  %823 = vmatpush1.msra.mxu0 0.0
  %824 = vmatprep.subr.mxu0 0.0
  %825 = vmatpush1.msra.mxu0 0.0
  %826 = vmatprep.subr.mxu0 0.0
  %827 = vmatpush1.msra.mxu0 0.0
  %828 = vmatprep.subr.mxu0 0.0
  %829 = vmatpush1.msra.mxu0 0.0
  %830 = vmatprep.subr.mxu0 0.0
  %831 = vmatpush1.msra.mxu0 0.0
  %832 = vmatprep.subr.mxu0 0.0
  %833 = vmatpush1.msra.mxu0 0.0
  %834 = vmatprep.subr.mxu0 0.0
  %835 = vmatpush1.msra.mxu0 0.0
  %836 = vmatprep.subr.mxu0 0.0
  %837 = vmatpush1.msra.mxu0 0.0
  %838 = vmatprep.subr.mxu0 0.0
  %839 = vmatpush1.msra.mxu0 0.0
  %840 = vmatprep.subr.mxu0 0.0
  %841 = vmatpush1.msra.mxu0 0.0
  %842 = vmatprep.subr.mxu0 0.0
  %843 = vmatpush1.msra.mxu0 0.0
  %844 = vmatprep.subr.mxu0 0.0
  %845 = vmatpush1.msra.mxu0 0.0
  %846 = vmatprep.subr.mxu0 0.0
  %847 = vmatpush1.msra.mxu0 0.0
  %848 = vmatprep.subr.mxu0 0.0
  %849 = vmatpush1.msra.mxu0 0.0
  %850 = vmatprep.subr.mxu0 0.0
  %851 = vmatpush1.msra.mxu0 0.0
  %852 = vmatprep.subr.mxu0 0.0
  %853 = vmatpush1.msra.mxu0 0.0
  %854 = vmatprep.subr.mxu0 0.0
  %855 = vmatpush1.msra.mxu0 0.0
  %856 = vmatprep.subr.mxu0 0.0
  %857 = vmatpush1.msra.mxu0 0.0
  %858 = vmatprep.subr.mxu0 0.0
  %859 = vmatpush1.msra.mxu0 0.0
  %860 = vmatprep.subr.mxu0 0.0
  %861 = vmatpush1.msra.mxu0 0.0
  %862 = vmatprep.subr.mxu0 0.0
  %863 = vmatpush1.msra.mxu0 0.0
  %864 = vmatprep.subr.mxu0 0.0
  %865 = vmatpush1.msra.mxu0 0.0
  %866 = vmatprep.subr.mxu0 0.0
  %867 = vmatpush1.msra.mxu0 0.0
  %868 = vmatprep.subr.mxu0 0.0
  %869 = vmatpush1.msra.mxu0 0.0
  %870 = vmatprep.mubr.f32.mxu0 0.0
  %871 = vmatmul.mubr.f32.gmra.mrb[0].mxu0 %v261
  %v872 = vpop.f32.mrb[0].mxu0
  %v873 = vadd.f32 %v648, %v872
  %v874 = vpop.f32.mrb[0].mxu0
  %875 = vmatprep.mubr.f32.mxu0 0.0
  %876 = vmatmul.mubr.f32.gmra.mrb[0].mxu0 %v264
  %v877 = vpop.f32.mrb[0].mxu0
  %v878 = vadd.f32 %v653, %v877
  %v879 = vpop.f32.mrb[0].mxu0
  %880 = vmatprep.mubr.f32.mxu0 0.0
  %881 = vmatmul.mubr.f32.gmra.mrb[0].mxu0 %v267
  %v882 = vpop.f32.mrb[0].mxu0
  %v883 = vadd.f32 %v658, %v882
  %v884 = vpop.f32.mrb[0].mxu0
  %885 = vmatprep.mubr.f32.mxu0 0.0
  %886 = vmatmul.mubr.f32.gmra.mrb[0].mxu0 %v270
  %v887 = vpop.f32.mrb[0].mxu0
  %v888 = vadd.f32 %v663, %v887
  %v889 = vpop.f32.mrb[0].mxu0
  %890 = vmatprep.mubr.f32.mxu0 0.0
  %891 = vmatmul.mubr.f32.gmra.mrb[0].mxu0 %v273
  %v892 = vpop.f32.mrb[0].mxu0
  %v893 = vadd.f32 %v668, %v892
  %v894 = vpop.f32.mrb[0].mxu0
  %895 = vmatprep.mubr.f32.mxu0 0.0
  %896 = vmatmul.mubr.f32.gmra.mrb[0].mxu0 %v276
  %v897 = vpop.f32.mrb[0].mxu0
  %v898 = vadd.f32 %v673, %v897
  %v899 = vpop.f32.mrb[0].mxu0
  %900 = vmatprep.mubr.f32.mxu0 0.0
  %901 = vmatmul.mubr.f32.gmra.mrb[0].mxu0 %v279
  %v902 = vpop.f32.mrb[0].mxu0
  %v903 = vadd.f32 %v678, %v902
  %v904 = vpop.f32.mrb[0].mxu0
  %905 = vmatprep.mubr.f32.mxu0 0.0
  %906 = vmatmul.mubr.f32.gmra.mrb[0].mxu0 %v282
  %v907 = vpop.f32.mrb[0].mxu0
  %v908 = vadd.f32 %v683, %v907
  %v909 = vpop.f32.mrb[0].mxu0
  %910 = vmatprep.mubr.f32.mxu0 0.0
  %911 = vmatmul.mubr.f32.gmra.mrb[0].mxu0 %v285
  %v912 = vpop.f32.mrb[0].mxu0
  %v913 = vadd.f32 %v688, %v912
  %v914 = vpop.f32.mrb[0].mxu0
  %915 = vmatprep.mubr.f32.mxu0 0.0
  %916 = vmatmul.mubr.f32.gmra.mrb[0].mxu0 %v288
  %v917 = vpop.f32.mrb[0].mxu0
  %v918 = vadd.f32 %v693, %v917
  %v919 = vpop.f32.mrb[0].mxu0
  %920 = vmatprep.mubr.f32.mxu0 0.0
  %921 = vmatmul.mubr.f32.gmra.mrb[0].mxu0 %v291
  %v922 = vpop.f32.mrb[0].mxu0
  %v923 = vadd.f32 %v698, %v922
  %v924 = vpop.f32.mrb[0].mxu0
  %925 = vmatprep.mubr.f32.mxu0 0.0
  %926 = vmatmul.mubr.f32.gmra.mrb[0].mxu0 %v294
  %v927 = vpop.f32.mrb[0].mxu0
  %v928 = vadd.f32 %v703, %v927
  %v929 = vpop.f32.mrb[0].mxu0
  %930 = vmatprep.mubr.f32.mxu0 0.0
  %931 = vmatmul.mubr.f32.gmra.mrb[0].mxu0 %v297
  %v932 = vpop.f32.mrb[0].mxu0
  %v933 = vadd.f32 %v708, %v932
  %v934 = vpop.f32.mrb[0].mxu0
  %935 = vmatprep.mubr.f32.mxu0 0.0
  %936 = vmatmul.mubr.f32.gmra.mrb[0].mxu0 %v300
  %v937 = vpop.f32.mrb[0].mxu0
  %v938 = vadd.f32 %v713, %v937
  %v939 = vpop.f32.mrb[0].mxu0
  %940 = vmatprep.mubr.f32.mxu0 0.0
  %941 = vmatmul.mubr.f32.gmra.mrb[0].mxu0 %v303
  %v942 = vpop.f32.mrb[0].mxu0
  %v943 = vadd.f32 %v718, %v942
  %v944 = vpop.f32.mrb[0].mxu0
  %945 = vmatprep.mubr.f32.mxu0 0.0
  %946 = vmatmul.mubr.f32.gmra.mrb[0].mxu0 %v306
  %v947 = vpop.f32.mrb[0].mxu0
  %v948 = vadd.f32 %v723, %v947
  %v949 = vpop.f32.mrb[0].mxu0
  %950 = vmatprep.mubr.f32.mxu0 0.0
  %951 = vmatmul.mubr.f32.gmra.mrb[0].mxu0 %v309
  %v952 = vpop.f32.mrb[0].mxu0
  %v953 = vadd.f32 %v728, %v952
  %v954 = vpop.f32.mrb[0].mxu0
  %955 = vmatprep.mubr.f32.mxu0 0.0
  %956 = vmatmul.mubr.f32.gmra.mrb[0].mxu0 %v312
  %v957 = vpop.f32.mrb[0].mxu0
  %v958 = vadd.f32 %v733, %v957
  %v959 = vpop.f32.mrb[0].mxu0
  %960 = vmatprep.mubr.f32.mxu0 0.0
  %961 = vmatmul.mubr.f32.gmra.mrb[0].mxu0 %v315
  %v962 = vpop.f32.mrb[0].mxu0
  %v963 = vadd.f32 %v738, %v962
  %v964 = vpop.f32.mrb[0].mxu0
  %965 = vmatprep.mubr.f32.mxu0 0.0
  %966 = vmatmul.mubr.f32.gmra.mrb[0].mxu0 %v318
  %v967 = vpop.f32.mrb[0].mxu0
  %v968 = vadd.f32 %v743, %v967
  %v969 = vpop.f32.mrb[0].mxu0
  %970 = vmatprep.mubr.f32.mxu0 0.0
  %971 = vmatmul.mubr.f32.gmra.mrb[0].mxu0 %v321
  %v972 = vpop.f32.mrb[0].mxu0
  %v973 = vadd.f32 %v748, %v972
  %v974 = vpop.f32.mrb[0].mxu0
  %975 = vmatprep.mubr.f32.mxu0 0.0
  %976 = vmatmul.mubr.f32.gmra.mrb[0].mxu0 %v324
  %v977 = vpop.f32.mrb[0].mxu0
  %v978 = vadd.f32 %v753, %v977
  %v979 = vpop.f32.mrb[0].mxu0
  %980 = vmatprep.mubr.f32.mxu0 0.0
  %981 = vmatmul.mubr.f32.gmra.mrb[0].mxu0 %v327
  %v982 = vpop.f32.mrb[0].mxu0
  %v983 = vadd.f32 %v758, %v982
  %v984 = vpop.f32.mrb[0].mxu0
  %985 = vmatprep.mubr.f32.mxu0 0.0
  %986 = vmatmul.mubr.f32.gmra.mrb[0].mxu0 %v330
  %v987 = vpop.f32.mrb[0].mxu0
  %v988 = vadd.f32 %v763, %v987
  %v989 = vpop.f32.mrb[0].mxu0
  %990 = vmatprep.mubr.f32.mxu0 0.0
  %991 = vmatmul.mubr.f32.gmra.mrb[0].mxu0 %v333
  %v992 = vpop.f32.mrb[0].mxu0
  %v993 = vadd.f32 %v768, %v992
  %v994 = vpop.f32.mrb[0].mxu0
  %995 = vmatprep.mubr.f32.mxu0 0.0
  %996 = vmatmul.mubr.f32.gmra.mrb[0].mxu0 %v336
  %v997 = vpop.f32.mrb[0].mxu0
  %v998 = vadd.f32 %v773, %v997
  %v999 = vpop.f32.mrb[0].mxu0
  %1000 = vmatprep.mubr.f32.mxu0 0.0
  %1001 = vmatmul.mubr.f32.gmra.mrb[0].mxu0 %v339
  %v1002 = vpop.f32.mrb[0].mxu0
  %v1003 = vadd.f32 %v778, %v1002
  %v1004 = vpop.f32.mrb[0].mxu0
  %1005 = vmatprep.mubr.f32.mxu0 0.0
  %1006 = vmatmul.mubr.f32.gmra.mrb[0].mxu0 %v342
  %v1007 = vpop.f32.mrb[0].mxu0
  %v1008 = vadd.f32 %v783, %v1007
  %v1009 = vpop.f32.mrb[0].mxu0
  %1010 = vmatprep.mubr.f32.mxu0 0.0
  %1011 = vmatmul.mubr.f32.gmra.mrb[0].mxu0 %v345
  %v1012 = vpop.f32.mrb[0].mxu0
  %v1013 = vadd.f32 %v788, %v1012
  %v1014 = vpop.f32.mrb[0].mxu0
  %1015 = vmatprep.mubr.f32.mxu0 0.0
  %1016 = vmatmul.mubr.f32.gmra.mrb[0].mxu0 %v348
  %v1017 = vpop.f32.mrb[0].mxu0
  %v1018 = vadd.f32 %v793, %v1017
  %v1019 = vpop.f32.mrb[0].mxu0
  %1020 = vmatprep.mubr.f32.mxu0 0.0
  %1021 = vmatmul.mubr.f32.gmra.mrb[0].mxu0 %v351
  %v1022 = vpop.f32.mrb[0].mxu0
  %v1023 = vadd.f32 %v798, %v1022
  %v1024 = vpop.f32.mrb[0].mxu0
  %1025 = vmatprep.mubr.f32.mxu0 0.0
  %1026 = vmatmul.mubr.f32.gmra.mrb[0].mxu0 %v354
  %v1027 = vpop.f32.mrb[0].mxu0
  %v1028 = vadd.f32 %v803, %v1027
  %v1029 = vpop.f32.mrb[0].mxu0
  %1030 = vdwg.mxu0
  %v1031 = vld [vmem:[%s3] sm:$0xff]
  %v1032 = vld [vmem:[%s3 + $0x8] sm:$0xff]
  %v1033 = vld [vmem:[%s3 + $0x10] sm:$0xff]
  %v1034 = vld [vmem:[%s3 + $0x18] sm:$0xff]
  %v1035 = vld [vmem:[%s3 + $0x20] sm:$0xff]
  %v1036 = vld [vmem:[%s3 + $0x28] sm:$0xff]
  %v1037 = vld [vmem:[%s3 + $0x30] sm:$0xff]
  %v1038 = vld [vmem:[%s3 + $0x38] sm:$0xff]
  %v1039 = vld [vmem:[%s4] sm:$0x1]
  %v1041 = vlaneseq
  %v1042 = vshrl.u32 %v1041, 7
  %v1043 = vsub.s32 0, %v1042
  %v1044 = vrot.slane %v1039, %v1043
  %v1047 = vsel %vm259, %v873, 0
  %v1050 = vsel %vm259, %v878, 0
  %v1053 = vsel %vm259, %v883, 0
  %v1056 = vsel %vm259, %v888, 0
  %v1059 = vsel %vm259, %v893, 0
  %v1062 = vsel %vm259, %v898, 0
  %v1065 = vsel %vm259, %v903, 0
  %v1068 = vsel %vm259, %v908, 0
  %v1071 = vsel %vm259, %v913, 0
  %v1074 = vsel %vm259, %v918, 0
  %v1077 = vsel %vm259, %v923, 0
  %v1080 = vsel %vm259, %v928, 0
  %v1083 = vsel %vm259, %v933, 0
  %v1086 = vsel %vm259, %v938, 0
  %v1089 = vsel %vm259, %v943, 0
  %v1092 = vsel %vm259, %v948, 0
  %v1095 = vsel %vm259, %v953, 0
  %v1098 = vsel %vm259, %v958, 0
  %v1101 = vsel %vm259, %v963, 0
  %v1104 = vsel %vm259, %v968, 0
  %v1107 = vsel %vm259, %v973, 0
  %v1110 = vsel %vm259, %v978, 0
  %v1113 = vsel %vm259, %v983, 0
  %v1116 = vsel %vm259, %v988, 0
  %v1119 = vsel %vm259, %v993, 0
  %v1122 = vsel %vm259, %v998, 0
  %v1125 = vsel %vm259, %v1003, 0
  %v1128 = vsel %vm259, %v1008, 0
  %v1131 = vsel %vm259, %v1013, 0
  %v1134 = vsel %vm259, %v1018, 0
  %v1137 = vsel %vm259, %v1023, 0
  %v1140 = vsel %vm259, %v1028, 0
  %1142 = vmatprep.subr.mxu0 0.0
  %1143 = vmatpush1.msra.mxu0 %v1031
  %1144 = vmatprep.subr.mxu0 0.0
  %1145 = vmatpush1.msra.mxu0 %v1032
  %1146 = vmatprep.subr.mxu0 0.0
  %1147 = vmatpush1.msra.mxu0 %v1033
  %1148 = vmatprep.subr.mxu0 0.0
  %1149 = vmatpush1.msra.mxu0 %v1034
  %1150 = vmatprep.subr.mxu0 0.0
  %1151 = vmatpush1.msra.mxu0 %v1035
  %1152 = vmatprep.subr.mxu0 0.0
  %1153 = vmatpush1.msra.mxu0 %v1036
  %1154 = vmatprep.subr.mxu0 0.0
  %1155 = vmatpush1.msra.mxu0 %v1037
  %1156 = vmatprep.subr.mxu0 0.0
  %1157 = vmatpush1.msra.mxu0 %v1038
  %1158 = vmatprep.subr.mxu0 0.0
  %1159 = vmatpush1.msra.mxu0 0.0
  %1160 = vmatprep.subr.mxu0 0.0
  %1161 = vmatpush1.msra.mxu0 0.0
  %1162 = vmatprep.subr.mxu0 0.0
  %1163 = vmatpush1.msra.mxu0 0.0
  %1164 = vmatprep.subr.mxu0 0.0
  %1165 = vmatpush1.msra.mxu0 0.0
  %1166 = vmatprep.subr.mxu0 0.0
  %1167 = vmatpush1.msra.mxu0 0.0
  %1168 = vmatprep.subr.mxu0 0.0
  %1169 = vmatpush1.msra.mxu0 0.0
  %1170 = vmatprep.subr.mxu0 0.0
  %1171 = vmatpush1.msra.mxu0 0.0
  %1172 = vmatprep.subr.mxu0 0.0
  %1173 = vmatpush1.msra.mxu0 0.0
  %1174 = vmatprep.subr.mxu0 0.0
  %1175 = vmatpush1.msra.mxu0 0.0
  %1176 = vmatprep.subr.mxu0 0.0
  %1177 = vmatpush1.msra.mxu0 0.0
  %1178 = vmatprep.subr.mxu0 0.0
  %1179 = vmatpush1.msra.mxu0 0.0
  %1180 = vmatprep.subr.mxu0 0.0
  %1181 = vmatpush1.msra.mxu0 0.0
  %1182 = vmatprep.subr.mxu0 0.0
  %1183 = vmatpush1.msra.mxu0 0.0
  %1184 = vmatprep.subr.mxu0 0.0
  %1185 = vmatpush1.msra.mxu0 0.0
  %1186 = vmatprep.subr.mxu0 0.0
  %1187 = vmatpush1.msra.mxu0 0.0
  %1188 = vmatprep.subr.mxu0 0.0
  %1189 = vmatpush1.msra.mxu0 0.0
  %1190 = vmatprep.subr.mxu0 0.0
  %1191 = vmatpush1.msra.mxu0 0.0
  %1192 = vmatprep.subr.mxu0 0.0
  %1193 = vmatpush1.msra.mxu0 0.0
  %1194 = vmatprep.subr.mxu0 0.0
  %1195 = vmatpush1.msra.mxu0 0.0
  %1196 = vmatprep.subr.mxu0 0.0
  %1197 = vmatpush1.msra.mxu0 0.0
  %1198 = vmatprep.subr.mxu0 0.0
  %1199 = vmatpush1.msra.mxu0 0.0
  %1200 = vmatprep.subr.mxu0 0.0
  %1201 = vmatpush1.msra.mxu0 0.0
  %1202 = vmatprep.subr.mxu0 0.0
  %1203 = vmatpush1.msra.mxu0 0.0
  %1204 = vmatprep.subr.mxu0 0.0
  %1205 = vmatpush1.msra.mxu0 0.0
  %1206 = vmatprep.mubr.f32.mxu0 0.0
  %1207 = vmatmul.mubr.f32.gmra.mrb[0].mxu0 %v1047
  %v1208 = vpop.f32.mrb[0].mxu0
  %v1209 = vadd.f32 %v1044, %v1208
  %v1210 = vpop.f32.mrb[0].mxu0
  %1211 = vmatprep.mubr.f32.mxu0 0.0
  %1212 = vmatmul.mubr.f32.gmra.mrb[0].mxu0 %v1050
  %v1213 = vpop.f32.mrb[0].mxu0
  %v1214 = vadd.f32 %v1044, %v1213
  %v1215 = vpop.f32.mrb[0].mxu0
  %1216 = vmatprep.mubr.f32.mxu0 0.0
  %1217 = vmatmul.mubr.f32.gmra.mrb[0].mxu0 %v1053
  %v1218 = vpop.f32.mrb[0].mxu0
  %v1219 = vadd.f32 %v1044, %v1218
  %v1220 = vpop.f32.mrb[0].mxu0
  %1221 = vmatprep.mubr.f32.mxu0 0.0
  %1222 = vmatmul.mubr.f32.gmra.mrb[0].mxu0 %v1056
  %v1223 = vpop.f32.mrb[0].mxu0
  %v1224 = vadd.f32 %v1044, %v1223
  %v1225 = vpop.f32.mrb[0].mxu0
  %1226 = vmatprep.mubr.f32.mxu0 0.0
  %1227 = vmatmul.mubr.f32.gmra.mrb[0].mxu0 %v1059
  %v1228 = vpop.f32.mrb[0].mxu0
  %v1229 = vadd.f32 %v1044, %v1228
  %v1230 = vpop.f32.mrb[0].mxu0
  %1231 = vmatprep.mubr.f32.mxu0 0.0
  %1232 = vmatmul.mubr.f32.gmra.mrb[0].mxu0 %v1062
  %v1233 = vpop.f32.mrb[0].mxu0
  %v1234 = vadd.f32 %v1044, %v1233
  %v1235 = vpop.f32.mrb[0].mxu0
  %1236 = vmatprep.mubr.f32.mxu0 0.0
  %1237 = vmatmul.mubr.f32.gmra.mrb[0].mxu0 %v1065
  %v1238 = vpop.f32.mrb[0].mxu0
  %v1239 = vadd.f32 %v1044, %v1238
  %v1240 = vpop.f32.mrb[0].mxu0
  %1241 = vmatprep.mubr.f32.mxu0 0.0
  %1242 = vmatmul.mubr.f32.gmra.mrb[0].mxu0 %v1068
  %v1243 = vpop.f32.mrb[0].mxu0
  %v1244 = vadd.f32 %v1044, %v1243
  %v1245 = vpop.f32.mrb[0].mxu0
  %1246 = vmatprep.mubr.f32.mxu0 0.0
  %1247 = vmatmul.mubr.f32.gmra.mrb[0].mxu0 %v1071
  %v1248 = vpop.f32.mrb[0].mxu0
  %v1249 = vadd.f32 %v1044, %v1248
  %v1250 = vpop.f32.mrb[0].mxu0
  %1251 = vmatprep.mubr.f32.mxu0 0.0
  %1252 = vmatmul.mubr.f32.gmra.mrb[0].mxu0 %v1074
  %v1253 = vpop.f32.mrb[0].mxu0
  %v1254 = vadd.f32 %v1044, %v1253
  %v1255 = vpop.f32.mrb[0].mxu0
  %1256 = vmatprep.mubr.f32.mxu0 0.0
  %1257 = vmatmul.mubr.f32.gmra.mrb[0].mxu0 %v1077
  %v1258 = vpop.f32.mrb[0].mxu0
  %v1259 = vadd.f32 %v1044, %v1258
  %v1260 = vpop.f32.mrb[0].mxu0
  %1261 = vmatprep.mubr.f32.mxu0 0.0
  %1262 = vmatmul.mubr.f32.gmra.mrb[0].mxu0 %v1080
  %v1263 = vpop.f32.mrb[0].mxu0
  %v1264 = vadd.f32 %v1044, %v1263
  %v1265 = vpop.f32.mrb[0].mxu0
  %1266 = vmatprep.mubr.f32.mxu0 0.0
  %1267 = vmatmul.mubr.f32.gmra.mrb[0].mxu0 %v1083
  %v1268 = vpop.f32.mrb[0].mxu0
  %v1269 = vadd.f32 %v1044, %v1268
  %v1270 = vpop.f32.mrb[0].mxu0
  %1271 = vmatprep.mubr.f32.mxu0 0.0
  %1272 = vmatmul.mubr.f32.gmra.mrb[0].mxu0 %v1086
  %v1273 = vpop.f32.mrb[0].mxu0
  %v1274 = vadd.f32 %v1044, %v1273
  %v1275 = vpop.f32.mrb[0].mxu0
  %1276 = vmatprep.mubr.f32.mxu0 0.0
  %1277 = vmatmul.mubr.f32.gmra.mrb[0].mxu0 %v1089
  %v1278 = vpop.f32.mrb[0].mxu0
  %v1279 = vadd.f32 %v1044, %v1278
  %v1280 = vpop.f32.mrb[0].mxu0
  %1281 = vmatprep.mubr.f32.mxu0 0.0
  %1282 = vmatmul.mubr.f32.gmra.mrb[0].mxu0 %v1092
  %v1283 = vpop.f32.mrb[0].mxu0
  %v1284 = vadd.f32 %v1044, %v1283
  %v1285 = vpop.f32.mrb[0].mxu0
  %1286 = vmatprep.mubr.f32.mxu0 0.0
  %1287 = vmatmul.mubr.f32.gmra.mrb[0].mxu0 %v1095
  %v1288 = vpop.f32.mrb[0].mxu0
  %v1289 = vadd.f32 %v1044, %v1288
  %v1290 = vpop.f32.mrb[0].mxu0
  %1291 = vmatprep.mubr.f32.mxu0 0.0
  %1292 = vmatmul.mubr.f32.gmra.mrb[0].mxu0 %v1098
  %v1293 = vpop.f32.mrb[0].mxu0
  %v1294 = vadd.f32 %v1044, %v1293
  %v1295 = vpop.f32.mrb[0].mxu0
  %1296 = vmatprep.mubr.f32.mxu0 0.0
  %1297 = vmatmul.mubr.f32.gmra.mrb[0].mxu0 %v1101
  %v1298 = vpop.f32.mrb[0].mxu0
  %v1299 = vadd.f32 %v1044, %v1298
  %v1300 = vpop.f32.mrb[0].mxu0
  %1301 = vmatprep.mubr.f32.mxu0 0.0
  %1302 = vmatmul.mubr.f32.gmra.mrb[0].mxu0 %v1104
  %v1303 = vpop.f32.mrb[0].mxu0
  %v1304 = vadd.f32 %v1044, %v1303
  %v1305 = vpop.f32.mrb[0].mxu0
  %1306 = vmatprep.mubr.f32.mxu0 0.0
  %1307 = vmatmul.mubr.f32.gmra.mrb[0].mxu0 %v1107
  %v1308 = vpop.f32.mrb[0].mxu0
  %v1309 = vadd.f32 %v1044, %v1308
  %v1310 = vpop.f32.mrb[0].mxu0
  %1311 = vmatprep.mubr.f32.mxu0 0.0
  %1312 = vmatmul.mubr.f32.gmra.mrb[0].mxu0 %v1110
  %v1313 = vpop.f32.mrb[0].mxu0
  %v1314 = vadd.f32 %v1044, %v1313
  %v1315 = vpop.f32.mrb[0].mxu0
  %1316 = vmatprep.mubr.f32.mxu0 0.0
  %1317 = vmatmul.mubr.f32.gmra.mrb[0].mxu0 %v1113
  %v1318 = vpop.f32.mrb[0].mxu0
  %v1319 = vadd.f32 %v1044, %v1318
  %v1320 = vpop.f32.mrb[0].mxu0
  %1321 = vmatprep.mubr.f32.mxu0 0.0
  %1322 = vmatmul.mubr.f32.gmra.mrb[0].mxu0 %v1116
  %v1323 = vpop.f32.mrb[0].mxu0
  %v1324 = vadd.f32 %v1044, %v1323
  %v1325 = vpop.f32.mrb[0].mxu0
  %1326 = vmatprep.mubr.f32.mxu0 0.0
  %1327 = vmatmul.mubr.f32.gmra.mrb[0].mxu0 %v1119
  %v1328 = vpop.f32.mrb[0].mxu0
  %v1329 = vadd.f32 %v1044, %v1328
  %v1330 = vpop.f32.mrb[0].mxu0
  %1331 = vmatprep.mubr.f32.mxu0 0.0
  %1332 = vmatmul.mubr.f32.gmra.mrb[0].mxu0 %v1122
  %v1333 = vpop.f32.mrb[0].mxu0
  %v1334 = vadd.f32 %v1044, %v1333
  %v1335 = vpop.f32.mrb[0].mxu0
  %1336 = vmatprep.mubr.f32.mxu0 0.0
  %1337 = vmatmul.mubr.f32.gmra.mrb[0].mxu0 %v1125
  %v1338 = vpop.f32.mrb[0].mxu0
  %v1339 = vadd.f32 %v1044, %v1338
  %v1340 = vpop.f32.mrb[0].mxu0
  %1341 = vmatprep.mubr.f32.mxu0 0.0
  %1342 = vmatmul.mubr.f32.gmra.mrb[0].mxu0 %v1128
  %v1343 = vpop.f32.mrb[0].mxu0
  %v1344 = vadd.f32 %v1044, %v1343
  %v1345 = vpop.f32.mrb[0].mxu0
  %1346 = vmatprep.mubr.f32.mxu0 0.0
  %1347 = vmatmul.mubr.f32.gmra.mrb[0].mxu0 %v1131
  %v1348 = vpop.f32.mrb[0].mxu0
  %v1349 = vadd.f32 %v1044, %v1348
  %v1350 = vpop.f32.mrb[0].mxu0
  %1351 = vmatprep.mubr.f32.mxu0 0.0
  %1352 = vmatmul.mubr.f32.gmra.mrb[0].mxu0 %v1134
  %v1353 = vpop.f32.mrb[0].mxu0
  %v1354 = vadd.f32 %v1044, %v1353
  %v1355 = vpop.f32.mrb[0].mxu0
  %1356 = vmatprep.mubr.f32.mxu0 0.0
  %1357 = vmatmul.mubr.f32.gmra.mrb[0].mxu0 %v1137
  %v1358 = vpop.f32.mrb[0].mxu0
  %v1359 = vadd.f32 %v1044, %v1358
  %v1360 = vpop.f32.mrb[0].mxu0
  %1361 = vmatprep.mubr.f32.mxu0 0.0
  %1362 = vmatmul.mubr.f32.gmra.mrb[0].mxu0 %v1140
  %v1363 = vpop.f32.mrb[0].mxu0
  %v1364 = vadd.f32 %v1044, %v1363
  %v1365 = vpop.f32.mrb[0].mxu0
  %1366 = vdwg.mxu0
  %v1367 = vxor.u32 %v1209, 2147483648
  %v1368 = vxor.u32 %v1214, 2147483648
  %v1369 = vxor.u32 %v1219, 2147483648
  %v1370 = vxor.u32 %v1224, 2147483648
  %v1371 = vxor.u32 %v1229, 2147483648
  %v1372 = vxor.u32 %v1234, 2147483648
  %v1373 = vxor.u32 %v1239, 2147483648
  %v1374 = vxor.u32 %v1244, 2147483648
  %v1375 = vxor.u32 %v1249, 2147483648
  %v1376 = vxor.u32 %v1254, 2147483648
  %v1377 = vxor.u32 %v1259, 2147483648
  %v1378 = vxor.u32 %v1264, 2147483648
  %v1379 = vxor.u32 %v1269, 2147483648
  %v1380 = vxor.u32 %v1274, 2147483648
  %v1381 = vxor.u32 %v1279, 2147483648
  %v1382 = vxor.u32 %v1284, 2147483648
  %v1383 = vxor.u32 %v1289, 2147483648
  %v1384 = vxor.u32 %v1294, 2147483648
  %v1385 = vxor.u32 %v1299, 2147483648
  %v1386 = vxor.u32 %v1304, 2147483648
  %v1387 = vxor.u32 %v1309, 2147483648
  %v1388 = vxor.u32 %v1314, 2147483648
  %v1389 = vxor.u32 %v1319, 2147483648
  %v1390 = vxor.u32 %v1324, 2147483648
  %v1391 = vxor.u32 %v1329, 2147483648
  %v1392 = vxor.u32 %v1334, 2147483648
  %v1393 = vxor.u32 %v1339, 2147483648
  %v1394 = vxor.u32 %v1344, 2147483648
  %v1395 = vxor.u32 %v1349, 2147483648
  %v1396 = vxor.u32 %v1354, 2147483648
  %v1397 = vxor.u32 %v1359, 2147483648
  %v1398 = vxor.u32 %v1364, 2147483648
  %v1399 = vmul.f32 %v1367, 1.442695
  %v1400 = vpow.pop %v1399
  %v1401 = vmul.f32 %v1368, 1.442695
  %v1402 = vpow.pop %v1401
  %v1403 = vmul.f32 %v1369, 1.442695
  %v1404 = vpow.pop %v1403
  %v1405 = vmul.f32 %v1370, 1.442695
  %v1406 = vpow.pop %v1405
  %v1407 = vmul.f32 %v1371, 1.442695
  %v1408 = vpow.pop %v1407
  %v1409 = vmul.f32 %v1372, 1.442695
  %v1410 = vpow.pop %v1409
  %v1411 = vmul.f32 %v1373, 1.442695
  %v1412 = vpow.pop %v1411
  %v1413 = vmul.f32 %v1374, 1.442695
  %v1414 = vpow.pop %v1413
  %v1415 = vmul.f32 %v1375, 1.442695
  %v1416 = vpow.pop %v1415
  %v1417 = vmul.f32 %v1376, 1.442695
  %v1418 = vpow.pop %v1417
  %v1419 = vmul.f32 %v1377, 1.442695
  %v1420 = vpow.pop %v1419
  %v1421 = vmul.f32 %v1378, 1.442695
  %v1422 = vpow.pop %v1421
  %v1423 = vmul.f32 %v1379, 1.442695
  %v1424 = vpow.pop %v1423
  %v1425 = vmul.f32 %v1380, 1.442695
  %v1426 = vpow.pop %v1425
  %v1427 = vmul.f32 %v1381, 1.442695
  %v1428 = vpow.pop %v1427
  %v1429 = vmul.f32 %v1382, 1.442695
  %v1430 = vpow.pop %v1429
  %v1431 = vmul.f32 %v1383, 1.442695
  %v1432 = vpow.pop %v1431
  %v1433 = vmul.f32 %v1384, 1.442695
  %v1434 = vpow.pop %v1433
  %v1435 = vmul.f32 %v1385, 1.442695
  %v1436 = vpow.pop %v1435
  %v1437 = vmul.f32 %v1386, 1.442695
  %v1438 = vpow.pop %v1437
  %v1439 = vmul.f32 %v1387, 1.442695
  %v1440 = vpow.pop %v1439
  %v1441 = vmul.f32 %v1388, 1.442695
  %v1442 = vpow.pop %v1441
  %v1443 = vmul.f32 %v1389, 1.442695
  %v1444 = vpow.pop %v1443
  %v1445 = vmul.f32 %v1390, 1.442695
  %v1446 = vpow.pop %v1445
  %v1447 = vmul.f32 %v1391, 1.442695
  %v1448 = vpow.pop %v1447
  %v1449 = vmul.f32 %v1392, 1.442695
  %v1450 = vpow.pop %v1449
  %v1451 = vmul.f32 %v1393, 1.442695
  %v1452 = vpow.pop %v1451
  %v1453 = vmul.f32 %v1394, 1.442695
  %v1454 = vpow.pop %v1453
  %v1455 = vmul.f32 %v1395, 1.442695
  %v1456 = vpow.pop %v1455
  %v1457 = vmul.f32 %v1396, 1.442695
  %v1458 = vpow.pop %v1457
  %v1459 = vmul.f32 %v1397, 1.442695
  %v1460 = vpow.pop %v1459
  %v1461 = vmul.f32 %v1398, 1.442695
  %v1462 = vpow.pop %v1461
  %v1463 = vadd.f32 %v1400, 1.0
  %v1464 = vadd.f32 %v1402, 1.0
  %v1465 = vadd.f32 %v1404, 1.0
  %v1466 = vadd.f32 %v1406, 1.0
  %v1467 = vadd.f32 %v1408, 1.0
  %v1468 = vadd.f32 %v1410, 1.0
  %v1469 = vadd.f32 %v1412, 1.0
  %v1470 = vadd.f32 %v1414, 1.0
  %v1471 = vadd.f32 %v1416, 1.0
  %v1472 = vadd.f32 %v1418, 1.0
  %v1473 = vadd.f32 %v1420, 1.0
  %v1474 = vadd.f32 %v1422, 1.0
  %v1475 = vadd.f32 %v1424, 1.0
  %v1476 = vadd.f32 %v1426, 1.0
  %v1477 = vadd.f32 %v1428, 1.0
  %v1478 = vadd.f32 %v1430, 1.0
  %v1479 = vadd.f32 %v1432, 1.0
  %v1480 = vadd.f32 %v1434, 1.0
  %v1481 = vadd.f32 %v1436, 1.0
  %v1482 = vadd.f32 %v1438, 1.0
  %v1483 = vadd.f32 %v1440, 1.0
  %v1484 = vadd.f32 %v1442, 1.0
  %v1485 = vadd.f32 %v1444, 1.0
  %v1486 = vadd.f32 %v1446, 1.0
  %v1487 = vadd.f32 %v1448, 1.0
  %v1488 = vadd.f32 %v1450, 1.0
  %v1489 = vadd.f32 %v1452, 1.0
  %v1490 = vadd.f32 %v1454, 1.0
  %v1491 = vadd.f32 %v1456, 1.0
  %v1492 = vadd.f32 %v1458, 1.0
  %v1493 = vadd.f32 %v1460, 1.0
  %v1494 = vadd.f32 %v1462, 1.0
  %v1495 = vrcp.pop %v1463
  %v1496 = vmul.f32 1.0, %v1495
  %v1497 = vrcp.pop %v1464
  %v1498 = vmul.f32 1.0, %v1497
  %v1499 = vrcp.pop %v1465
  %v1500 = vmul.f32 1.0, %v1499
  %v1501 = vrcp.pop %v1466
  %v1502 = vmul.f32 1.0, %v1501
  %v1503 = vrcp.pop %v1467
  %v1504 = vmul.f32 1.0, %v1503
  %v1505 = vrcp.pop %v1468
  %v1506 = vmul.f32 1.0, %v1505
  %v1507 = vrcp.pop %v1469
  %v1508 = vmul.f32 1.0, %v1507
  %v1509 = vrcp.pop %v1470
  %v1510 = vmul.f32 1.0, %v1509
  %v1511 = vrcp.pop %v1471
  %v1512 = vmul.f32 1.0, %v1511
  %v1513 = vrcp.pop %v1472
  %v1514 = vmul.f32 1.0, %v1513
  %v1515 = vrcp.pop %v1473
  %v1516 = vmul.f32 1.0, %v1515
  %v1517 = vrcp.pop %v1474
  %v1518 = vmul.f32 1.0, %v1517
  %v1519 = vrcp.pop %v1475
  %v1520 = vmul.f32 1.0, %v1519
  %v1521 = vrcp.pop %v1476
  %v1522 = vmul.f32 1.0, %v1521
  %v1523 = vrcp.pop %v1477
  %v1524 = vmul.f32 1.0, %v1523
  %v1525 = vrcp.pop %v1478
  %v1526 = vmul.f32 1.0, %v1525
  %v1527 = vrcp.pop %v1479
  %v1528 = vmul.f32 1.0, %v1527
  %v1529 = vrcp.pop %v1480
  %v1530 = vmul.f32 1.0, %v1529
  %v1531 = vrcp.pop %v1481
  %v1532 = vmul.f32 1.0, %v1531
  %v1533 = vrcp.pop %v1482
  %v1534 = vmul.f32 1.0, %v1533
  %v1535 = vrcp.pop %v1483
  %v1536 = vmul.f32 1.0, %v1535
  %v1537 = vrcp.pop %v1484
  %v1538 = vmul.f32 1.0, %v1537
  %v1539 = vrcp.pop %v1485
  %v1540 = vmul.f32 1.0, %v1539
  %v1541 = vrcp.pop %v1486
  %v1542 = vmul.f32 1.0, %v1541
  %v1543 = vrcp.pop %v1487
  %v1544 = vmul.f32 1.0, %v1543
  %v1545 = vrcp.pop %v1488
  %v1546 = vmul.f32 1.0, %v1545
  %v1547 = vrcp.pop %v1489
  %v1548 = vmul.f32 1.0, %v1547
  %v1549 = vrcp.pop %v1490
  %v1550 = vmul.f32 1.0, %v1549
  %v1551 = vrcp.pop %v1491
  %v1552 = vmul.f32 1.0, %v1551
  %v1553 = vrcp.pop %v1492
  %v1554 = vmul.f32 1.0, %v1553
  %v1555 = vrcp.pop %v1493
  %v1556 = vmul.f32 1.0, %v1555
  %v1557 = vrcp.pop %v1494
  %v1558 = vmul.f32 1.0, %v1557
  %vm1559 = vcmask 244736
  %1560 = vst.msk [vmem:[%s5] sm:$0xff] %vm1559, %v1496
  %1561 = vst.msk [vmem:[%s5 + $0x8] sm:$0xff] %vm1559, %v1498
  %1562 = vst.msk [vmem:[%s5 + $0x10] sm:$0xff] %vm1559, %v1500
  %1563 = vst.msk [vmem:[%s5 + $0x18] sm:$0xff] %vm1559, %v1502
  %1564 = vst.msk [vmem:[%s5 + $0x20] sm:$0xff] %vm1559, %v1504
  %1565 = vst.msk [vmem:[%s5 + $0x28] sm:$0xff] %vm1559, %v1506
  %1566 = vst.msk [vmem:[%s5 + $0x30] sm:$0xff] %vm1559, %v1508
  %1567 = vst.msk [vmem:[%s5 + $0x38] sm:$0xff] %vm1559, %v1510
  %1568 = vst.msk [vmem:[%s5 + $0x40] sm:$0xff] %vm1559, %v1512
  %1569 = vst.msk [vmem:[%s5 + $0x48] sm:$0xff] %vm1559, %v1514
  %1570 = vst.msk [vmem:[%s5 + $0x50] sm:$0xff] %vm1559, %v1516
  %1571 = vst.msk [vmem:[%s5 + $0x58] sm:$0xff] %vm1559, %v1518
  %1572 = vst.msk [vmem:[%s5 + $0x60] sm:$0xff] %vm1559, %v1520
  %1573 = vst.msk [vmem:[%s5 + $0x68] sm:$0xff] %vm1559, %v1522
  %1574 = vst.msk [vmem:[%s5 + $0x70] sm:$0xff] %vm1559, %v1524
  %1575 = vst.msk [vmem:[%s5 + $0x78] sm:$0xff] %vm1559, %v1526
  %1576 = vst.msk [vmem:[%s5 + $0x80] sm:$0xff] %vm1559, %v1528
  %1577 = vst.msk [vmem:[%s5 + $0x88] sm:$0xff] %vm1559, %v1530
  %1578 = vst.msk [vmem:[%s5 + $0x90] sm:$0xff] %vm1559, %v1532
  %1579 = vst.msk [vmem:[%s5 + $0x98] sm:$0xff] %vm1559, %v1534
  %1580 = vst.msk [vmem:[%s5 + $0xa0] sm:$0xff] %vm1559, %v1536
  %1581 = vst.msk [vmem:[%s5 + $0xa8] sm:$0xff] %vm1559, %v1538
  %1582 = vst.msk [vmem:[%s5 + $0xb0] sm:$0xff] %vm1559, %v1540
  %1583 = vst.msk [vmem:[%s5 + $0xb8] sm:$0xff] %vm1559, %v1542
  %1584 = vst.msk [vmem:[%s5 + $0xc0] sm:$0xff] %vm1559, %v1544
  %1585 = vst.msk [vmem:[%s5 + $0xc8] sm:$0xff] %vm1559, %v1546
  %1586 = vst.msk [vmem:[%s5 + $0xd0] sm:$0xff] %vm1559, %v1548
  %1587 = vst.msk [vmem:[%s5 + $0xd8] sm:$0xff] %vm1559, %v1550
  %1588 = vst.msk [vmem:[%s5 + $0xe0] sm:$0xff] %vm1559, %v1552
  %1589 = vst.msk [vmem:[%s5 + $0xe8] sm:$0xff] %vm1559, %v1554
  %1590 = vst.msk [vmem:[%s5 + $0xf0] sm:$0xff] %vm1559, %v1556
  %1591 = vst.msk [vmem:[%s5 + $0xf8] sm:$0xff] %vm1559, %v1558
  // Predicated region
  $region22: #{decoder_forward.3} parent=0 // pred_check
    _
  $region23: #{decoder_forward.3} parent=0 // pred_check_branch
    %1593 = sbr.rel (0) target = $region25
  $region24: #{decoder_forward.3} parent=0 // pred_region
    _
  $region25: #{decoder_forward.3} parent=0 // pred_fallthru
    _
  // Predicated region
  $region26: #{decoder_forward.3} parent=0 // pred_check
    _
  $region27: #{decoder_forward.3} parent=0 // pred_check_branch
    %1595 = sbr.rel (0) target = $region29
  $region28: #{decoder_forward.3} parent=0 // pred_region
    _
  $region29: #{decoder_forward.3} parent=0 // pred_fallthru
    _

</llo_original>
